<compile_context>
chip_gen: v7x
topology: tpu7x:2x2x1
jax: 0.10.0
libtpu: 0.0.40
codegen_flags: <defaults>
</compile_context>

<pallas_src>
import functools
import math

import jax
import jax.numpy as jnp
from jax.experimental import pallas as pl
from jax.experimental.pallas import tpu as pltpu

H_LSTM = 48              # bidirectional hidden size (96 // 2)
GATE_PAD = 128           # each LSTM gate padded to one 128-lane tile
GATES_W = 4 * GATE_PAD   # padded gate width (512)

_VMEM_BUDGET = 16 * 1024 * 1024   # conservative per-kernel working-set budget (v7x VMEM is 64 MiB)


def _rep0(shape):
    """BlockSpec for a small array that is replicated (whole array) at every grid step."""
    return pl.BlockSpec(shape, lambda *_: (0,) * len(shape))


def _num_tensorcores():
    """Best-effort TensorCore-per-chip count (2 on v7x, 1 on v5e/v6e)."""
    try:
        dev = jax.devices()[0]
        nc = getattr(dev, "num_cores", None)
        if isinstance(nc, int) and nc > 0:
            return nc
        kind = str(getattr(dev, "device_kind", "")).lower()
        return 2 if ("v7" in kind or "7x" in kind) else 1
    except Exception:
        return 1


def _choose_nsteps(bt, bytes_per_sample):
    """Smallest divisor of bt whose chunk fits the VMEM budget; >=2 only on multi-TC chips."""
    nsteps = 2 if (_num_tensorcores() >= 2 and bt % 2 == 0) else 1
    while nsteps < bt and (bt // nsteps) * bytes_per_sample > _VMEM_BUDGET:
        nsteps += 1
        while bt % nsteps != 0 and nsteps < bt:
            nsteps += 1
    return nsteps


# ---------------------------------------------------------------------------
# Kernel 1 (only used when num_points > 96): LFPointTransformer attention
# diagonal + groups-of-6 sums.  diag_i = exp(q_i.k_i/sqrt(d) - rowmax_i) / rowsum_i.
# ---------------------------------------------------------------------------
def attn_group_sum_kernel(x_ref, w_in, b_in, wq, bq, wk, bk, g_ref, o_ref):
    pts = x_ref[...]                                               # (chunk, N, 5)
    chunk, n, d = pts.shape
    dot = lambda a, b: jnp.dot(a, b, preferred_element_type=jnp.float32)
    p2 = pts.reshape(chunk * n, d)
    x = dot(p2, w_in[...]) + b_in[...]                             # input_linear
    q = dot(x, wq[...]) + bq[...]
    k = dot(x, wk[...]) + bk[...]
    scale = 1.0 / math.sqrt(d)                                     # d_model = 5
    q3 = q.reshape(chunk, n, d)
    k3 = k.reshape(chunk, n, d)
    s_diag = jnp.sum(q3 * k3, axis=-1) * scale                     # (chunk, N)
    # TODO(synk): for much larger N, tile over keys with an online rowmax/rowsum instead of
    # materializing the full (chunk, N, N) scores buffer.
    scores = jnp.einsum("bnd,bmd->bnm", q3, k3,
                        preferred_element_type=jnp.float32) * scale
    rm = jnp.max(scores, axis=-1, keepdims=True)                   # (chunk, N, 1)
    den = jnp.sum(jnp.exp(scores - rm), axis=-1)                   # (chunk, N)
    num = jnp.exp(s_diag - rm[..., 0])                             # (chunk, N)
    diag = num / den                                               # exact: feeds an argmax downstream
    o_ref[0] = dot(diag, g_ref[...])                               # groups-of-6 sums (chunk, N//6)


def attn_group_sums(x, lf):
    BT, N, D = x.shape
    G = N // 6
    nsteps = _choose_nsteps(BT, 4 * N * (N + 8 * D))
    chunk = BT // nsteps
    gmat = (jnp.arange(N)[:, None] // 6 == jnp.arange(G)[None, :]).astype(jnp.float32)
    out = pl.pallas_call(
        attn_group_sum_kernel,
        out_shape=jax.ShapeDtypeStruct((nsteps, chunk, G), jnp.float32),
        grid=(nsteps,),
        in_specs=[
            pl.BlockSpec((chunk, N, D), lambda i: (i, 0, 0)),
            _rep0((D, D)), _rep0((1, D)),
            _rep0((D, D)), _rep0((1, D)),
            _rep0((D, D)), _rep0((1, D)),
            _rep0((N, G)),
        ],
        out_specs=pl.BlockSpec((1, chunk, G), lambda i: (i, 0, 0)),
        compiler_params=pltpu.CompilerParams(dimension_semantics=("parallel",)),
    )(x, lf["w_in"], lf["b_in"], lf["wq"], lf["bq"], lf["wk"], lf["bk"], gmat)
    return out.reshape(BT, G)                                      # (BT, N//6)


# ---------------------------------------------------------------------------
# JAX glue (N > 96 path only): data-dependent group argmax / centroid / top-k gather.
# TODO(synk): this gather/top-k stays as plain JAX — no clean static-BlockSpec equivalent.
# ---------------------------------------------------------------------------
def select_points(in_mat, attn_sums):
    """in_mat: (BT, N, 5), attn_sums: (BT, N//6) -> (BT, 96, 5)."""
    N = in_mat.shape[1]

    def one(pts, sums):
        gidx = jnp.argmax(sums)
        group_indices = jnp.arange(N).reshape(-1, 6)[gidx]         # (6,)
        centroid = pts[group_indices].mean(axis=0)                 # (5,)
        dist = jnp.linalg.norm(pts[:, :3] - centroid[:3], axis=1)  # (N,)
        _, closest = jax.lax.top_k(-dist, 96)                      # 96 nearest
        return pts[closest]                                        # (96, 5)

    return jax.vmap(one)(in_mat, attn_sums)


# ---------------------------------------------------------------------------
# Kernel 2: fused BasePointTiNet + GlobalPointTiNet on a flattened (chunk*N, C) slab.
#   per-point MLP 5->8->16->24, concat with raw points (split weights), 29->48->72->96,
#   attention pooling over the N points of each sample -> (96,) vector per sample.
# ---------------------------------------------------------------------------
def pointnet_kernel(x_ref, w1, b1, w2, b2, w3, b3,
                    w4a, w4b, b4, w5, b5, w6, b6, wa, ba, o_ref):
    pts = x_ref[...]                                               # (chunk*N, 5)
    chunk = o_ref.shape[1]
    n = pts.shape[0] // chunk
    dot = lambda a, b: jnp.dot(a, b, preferred_element_type=jnp.float32)
    relu = lambda v: jnp.maximum(v, 0.0)
    h1 = relu(dot(pts, w1[...]) + b1[...])                         # (CN, 8)
    h2 = relu(dot(h1, w2[...]) + b2[...])                          # (CN, 16)
    h3 = relu(dot(h2, w3[...]) + b3[...])                          # (CN, 24)
    # concat([pts, h3], -1) @ w4  ==  pts @ w4a + h3 @ w4b
    g1 = relu(dot(pts, w4a[...]) + dot(h3, w4b[...]) + b4[...])    # (CN, 48)
    g2 = relu(dot(g1, w5[...]) + b5[...])                          # (CN, 72)
    g3 = relu(dot(g2, w6[...]) + b6[...])                          # (CN, 96)
    lg = (dot(g3, wa[...]) + ba[...]).reshape(chunk, n, 1)         # per-point attn logits
    lg = lg - jnp.max(lg, axis=1, keepdims=True)                   # softmax over points
    e = jnp.exp(lg)
    wgt = e * pl.reciprocal(jnp.sum(e, axis=1, keepdims=True), approx=True)
    vec = jnp.sum(g3.reshape(chunk, n, 96) * wgt, axis=1)          # (chunk, 96)
    o_ref[0] = vec


def pointnet(x_flat, p, bt):
    """x_flat: (bt*96, 5) -> (bt, 96)."""
    n = x_flat.shape[0] // bt
    # ~live f32 bytes per sample inside the fused kernel (all intermediates + input)
    nsteps = _choose_nsteps(bt, 4 * n * (5 + 8 + 16 + 24 + 48 + 72 + 96 + 96 + 16))
    chunk = bt // nsteps
    out = pl.pallas_call(
        pointnet_kernel,
        out_shape=jax.ShapeDtypeStruct((nsteps, chunk, 96), jnp.float32),
        grid=(nsteps,),
        in_specs=[
            pl.BlockSpec((chunk * n, 5), lambda i: (i, 0)),
            _rep0((5, 8)), _rep0((1, 8)),
            _rep0((8, 16)), _rep0((1, 16)),
            _rep0((16, 24)), _rep0((1, 24)),
            _rep0((5, 48)), _rep0((24, 48)), _rep0((1, 48)),
            _rep0((48, 72)), _rep0((1, 72)),
            _rep0((72, 96)), _rep0((1, 96)),
            _rep0((96, 1)), _rep0((1, 1)),
        ],
        out_specs=pl.BlockSpec((1, chunk, 96), lambda i: (i, 0, 0)),
        compiler_params=pltpu.CompilerParams(dimension_semantics=("parallel",)),
    )(x_flat, p["w1"], p["b1"], p["w2"], p["b2"], p["w3"], p["b3"],
      p["w4a"], p["w4b"], p["b4"], p["w5"], p["b5"], p["w6"], p["b6"],
      p["wa"], p["ba"])
    return out.reshape(bt, 96)


# ---------------------------------------------------------------------------
# Kernel 3a/3b: hoisted LSTM input projections, emitted directly in the direction-leading,
# lane-padded (2, T*B, 4*128) layout (no host transpose, no concat between layers).
# ---------------------------------------------------------------------------
def proj_features_kernel(x_ref, w_ref, b_ref, o_ref):
    x = x_ref[...]                                                 # (T*B, F)
    for d in range(2):
        o_ref[d] = jnp.dot(x, w_ref[d], preferred_element_type=jnp.float32) + b_ref[d]


def proj_from_features(x, w, b):
    """x: (T*B, F), w: (2, F, 512), b: (2, 1, 512) -> (2, T*B, 512)."""
    return pl.pallas_call(
        proj_features_kernel,
        out_shape=jax.ShapeDtypeStruct((2, x.shape[0], w.shape[-1]), jnp.float32),
    )(x, w, b)


def proj_bidir_kernel(x_ref, w_ref, b_ref, o_ref):
    xf = x_ref[0]                                                  # forward-direction hidden seq
    xb = x_ref[1]                                                  # backward-direction hidden seq
    for d in range(2):
        # concat([xf, xb], -1) @ W_ih  ==  xf @ W_ih[:H] + xb @ W_ih[H:]
        o_ref[d] = (jnp.dot(xf, w_ref[d, 0], preferred_element_type=jnp.float32)
                    + jnp.dot(xb, w_ref[d, 1], preferred_element_type=jnp.float32)
                    + b_ref[d])


def proj_from_bidir(x2, w, b):
    """x2: (2, T*B, H), w: (2, 2, H, 512), b: (2, 1, 512) -> (2, T*B, 512)."""
    return pl.pallas_call(
        proj_bidir_kernel,
        out_shape=jax.ShapeDtypeStruct((2, x2.shape[1], w.shape[-1]), jnp.float32),
    )(x2, w, b)


# ---------------------------------------------------------------------------
# Kernel 4: one bidirectional LSTM layer.  Grid = (direction,) only; the whole per-direction
# x-projection and output are resident VMEM blocks and time runs as an in-kernel fori_loop.
# Gates are lane-padded: pre-activation slices at 0/128/256/384.  PyTorch order [i, f, g, o];
# c' = f*c + i*g;  h' = o*tanh(c').  Backward time reversal is pure index math.
# ---------------------------------------------------------------------------
def bidir_lstm_kernel(xp_ref, whh_ref, h0_ref, c0_ref, o_ref):
    d = pl.program_id(0)
    T = xp_ref.shape[0]
    H = o_ref.shape[-1]
    whh = whh_ref[...]                                             # (H, 512), gates lane-padded

    def step(t, carry):
        h, c = carry
        t_idx = (1 - d) * t + d * (T - 1 - t)                      # backward dir runs reversed time
        pre = xp_ref[t_idx] + jnp.dot(h, whh, preferred_element_type=jnp.float32)  # (B, 512)
        i_g = jax.nn.sigmoid(pre[:, 0:H])
        f_g = jax.nn.sigmoid(pre[:, GATE_PAD:GATE_PAD + H])
        g_g = jnp.tanh(pre[:, 2 * GATE_PAD:2 * GATE_PAD + H])
        o_g = jax.nn.sigmoid(pre[:, 3 * GATE_PAD:3 * GATE_PAD + H])
        c_new = f_g * c + i_g * g_g
        h_new = o_g * jnp.tanh(c_new)
        o_ref[t_idx] = h_new                                       # VMEM-resident; HBM writeback once/dir
        return h_new, c_new

    jax.lax.fori_loop(0, T, step, (h0_ref[...], c0_ref[...]), unroll=(T <= 16))


def bidir_lstm_layer(xp, whh, h0, c0):
    """xp: (2,T,B,512), whh: (2,H,512), h0/c0: (2,B,H) -> (2,T,B,H) (forward time order)."""
    _, T, B, W = xp.shape
    H = whh.shape[1]
    return pl.pallas_call(
        bidir_lstm_kernel,
        out_shape=jax.ShapeDtypeStruct((2, T, B, H), jnp.float32),
        grid=(2,),
        in_specs=[
            pl.BlockSpec((None, T, B, W), lambda d: (d, 0, 0, 0)),
            pl.BlockSpec((None, H, W), lambda d: (d, 0, 0)),
            pl.BlockSpec((None, B, H), lambda d: (d, 0, 0)),
            pl.BlockSpec((None, B, H), lambda d: (d, 0, 0)),
        ],
        out_specs=pl.BlockSpec((None, T, B, H), lambda d: (d, 0, 0, 0)),
        compiler_params=pltpu.CompilerParams(dimension_semantics=("parallel",)),
    )(xp, whh, h0, c0)


# ---------------------------------------------------------------------------
# Kernel 5: top layer of the final LSTM fused with fc + log_softmax, one grid step.
# Only out[:, -1, :] is consumed: forward direction loops T steps in-kernel (keeping only the
# last h), backward direction needs a single step (t = T-1, zero initial state).
# ---------------------------------------------------------------------------
def last_bidir_fc_kernel(xpf_ref, whhf_ref, xpb_ref, fcw_ref, fcb_ref, o_ref):
    T = xpf_ref.shape[0]
    B = o_ref.shape[0]
    H = whhf_ref.shape[0]
    whh = whhf_ref[...]

    def step(t, carry):
        h, c = carry
        pre = xpf_ref[t] + jnp.dot(h, whh, preferred_element_type=jnp.float32)
        i_g = jax.nn.sigmoid(pre[:, 0:H])
        f_g = jax.nn.sigmoid(pre[:, GATE_PAD:GATE_PAD + H])
        g_g = jnp.tanh(pre[:, 2 * GATE_PAD:2 * GATE_PAD + H])
        o_g = jax.nn.sigmoid(pre[:, 3 * GATE_PAD:3 * GATE_PAD + H])
        c_new = f_g * c + i_g * g_g
        h_new = o_g * jnp.tanh(c_new)
        return h_new, c_new

    zeros = jnp.zeros((B, H), jnp.float32)
    h_f, _ = jax.lax.fori_loop(0, T, step, (zeros, zeros), unroll=(T <= 16))

    xb = xpb_ref[...]                                              # (B, 512): bwd projection at t=T-1
    ib = jax.nn.sigmoid(xb[:, 0:H])
    gb = jnp.tanh(xb[:, 2 * GATE_PAD:2 * GATE_PAD + H])
    ob = jax.nn.sigmoid(xb[:, 3 * GATE_PAD:3 * GATE_PAD + H])
    hb = ob * jnp.tanh(ib * gb)                                    # zero initial state: c = i*g

    logits = (jnp.dot(h_f, fcw_ref[0], preferred_element_type=jnp.float32)
              + jnp.dot(hb, fcw_ref[1], preferred_element_type=jnp.float32)
              + fcb_ref[...])
    z = logits - jnp.max(logits, axis=-1, keepdims=True)
    o_ref[...] = z - jnp.log(jnp.sum(jnp.exp(z), axis=-1, keepdims=True))


def last_bidir_fc(xp_f, whh_f, xp_b_last, fc_w2, fc_b):
    B = xp_f.shape[1]
    C = fc_w2.shape[-1]
    return pl.pallas_call(
        last_bidir_fc_kernel,
        out_shape=jax.ShapeDtypeStruct((B, C), jnp.float32),
    )(xp_f, whh_f, xp_b_last, fc_w2, fc_b)


# ---------------------------------------------------------------------------
# LSTM stacks (time-major, no host-side transposes/concats between layers)
# ---------------------------------------------------------------------------
def grnn_forward(feat_flat_tm, layers, h0, c0, T, B):
    """3-layer bidirectional LSTM; feat_flat_tm: (T*B, 96) time-major -> (2, T, B, 48)."""
    lp = layers[0]
    xp = proj_from_features(feat_flat_tm, lp["wih"], lp["b"])
    out = bidir_lstm_layer(xp.reshape(2, T, B, GATES_W), lp["whh"], h0[0:2], c0[0:2])
    for l in range(1, len(layers)):
        lp = layers[l]
        xp = proj_from_bidir(out.reshape(2, T * B, H_LSTM), lp["wih2"], lp["b"])
        out = bidir_lstm_layer(xp.reshape(2, T, B, GATES_W), lp["whh"],
                               h0[2 * l:2 * l + 2], c0[2 * l:2 * l + 2])
    return out                                                     # (2, T, B, H)


def final_lstm_head(bidir_seq, layers, fc_w2, fc_b, T, B):
    """2-layer bidirectional LSTM (zero init), then fc + log_softmax on out[:, -1, :]."""
    zeros = jnp.zeros((2, B, H_LSTM), jnp.float32)
    l0 = layers[0]
    xp0 = proj_from_bidir(bidir_seq.reshape(2, T * B, H_LSTM), l0["wih2"], l0["b"])
    out0 = bidir_lstm_layer(xp0.reshape(2, T, B, GATES_W), l0["whh"], zeros, zeros)
    l1 = layers[1]
    xp1 = proj_from_bidir(out0.reshape(2, T * B, H_LSTM), l1["wih2"], l1["b"])
    xp1 = xp1.reshape(2, T, B, GATES_W)
    return last_bidir_fc(xp1[0], l1["whh"][0], xp1[1, T - 1], fc_w2, fc_b)


# ---------------------------------------------------------------------------
# Full forward
# ---------------------------------------------------------------------------
@functools.partial(jax.jit, static_argnums=(4, 5))
def vr_pct_forward(params, x1, h0, c0, batch_size, length_size):
    BT, N, _ = x1.shape
    if N == 96:
        # top-96-of-96 is a permutation of all points and the downstream PointNet attention
        # pooling is permutation-invariant, so point selection is a provable no-op here.
        important = x1
    else:
        attn_sums = attn_group_sums(x1, params["lf"])              # (BT, N//6)
        important = select_points(x1, attn_sums)                   # (BT, 96, 5)
    vec = pointnet(important.reshape(-1, 5), params["pn"], BT)     # (BT, 96)
    # single small (B,T)->(T,B) relayout of the 96-wide features; all later layers stay time-major
    feat_tm = jnp.transpose(vec.reshape(batch_size, length_size, 96), (1, 0, 2))
    feat_flat = feat_tm.reshape(length_size * batch_size, 96)
    g_out = grnn_forward(feat_flat, params["grnn"], h0, c0, length_size, batch_size)
    return final_lstm_head(g_out, params["lstm"], params["fc_w2"], params["fc_b"],
                           length_size, batch_size)                # (B, num_class)


# ---------------------------------------------------------------------------
# Deterministic parameter initialization (synthetic, eval-mode BN folded, gates lane-padded)
# ---------------------------------------------------------------------------
def init_params(key, num_class):
    keys = iter(jax.random.split(key, 256))
    H = H_LSTM

    def uniform(shape, bound):
        return jax.random.uniform(next(keys), shape, jnp.float32, -bound, bound)

    def linear(fan_in, fan_out):
        bound = 1.0 / math.sqrt(fan_in)
        return uniform((fan_in, fan_out), bound), uniform((1, fan_out), bound)

    def conv_bn(cin, cout):
        # Conv1d(k=1) + eval-mode BatchNorm (gamma=1, beta=0, mean=0, var=1) folded.
        w, b = linear(cin, cout)
        s = 1.0 / math.sqrt(1.0 + 1e-5)
        return w * s, b * s

    def pad_gates(w):
        """(rows, 4H) PyTorch [i,f,g,o] gate layout -> (rows, 4*128) lane-padded."""
        parts = []
        for k in range(4):
            g = w[:, k * H:(k + 1) * H]
            parts.append(jnp.pad(g, ((0, 0), (0, GATE_PAD - H))))
        return jnp.concatenate(parts, axis=1)

    def lstm_stack(num_layers, first_from_features):
        layers = []
        for l in range(num_layers):
            din = 96 if l == 0 else 2 * H
            bound = 1.0 / math.sqrt(H)
            wih_p, whh_p, b_p = [], [], []
            for _ in range(2):                                     # forward, backward
                wih = uniform((din, 4 * H), bound)
                whh = uniform((H, 4 * H), bound)
                b = uniform((1, 4 * H), bound) + uniform((1, 4 * H), bound)   # b_ih + b_hh
                wih_p.append(pad_gates(wih))
                whh_p.append(pad_gates(whh))
                b_p.append(pad_gates(b))
            wih_pad = jnp.stack(wih_p)                             # (2, din, 512)
            layer = dict(whh=jnp.stack(whh_p),                     # (2, H, 512)
                         b=jnp.stack(b_p))                         # (2, 1, 512)
            if l == 0 and first_from_features:
                layer["wih"] = wih_pad                             # plain-feature input
            else:
                # split rows into fwd/bwd halves so no concat is needed between layers
                layer["wih2"] = jnp.stack([wih_pad[:, :H], wih_pad[:, H:]], axis=1)  # (2,2,H,512)
            layers.append(layer)
        return layers

    p = {}
    # LFPointTransformer (linear_v / linear_out never affect the forward output)
    w_in, b_in = linear(5, 5)
    wq, bq = linear(5, 5)
    wk, bk = linear(5, 5)
    p["lf"] = dict(w_in=w_in, b_in=b_in, wq=wq, bq=bq, wk=wk, bk=bk)

    # BasePointTiNet + GlobalPointTiNet (BN folded)
    w1, b1 = conv_bn(5, 8)
    w2, b2 = conv_bn(8, 16)
    w3, b3 = conv_bn(16, 24)
    w4, b4 = conv_bn(29, 48)
    w5, b5 = conv_bn(48, 72)
    w6, b6 = conv_bn(72, 96)
    wa, ba = linear(96, 1)
    p["pn"] = dict(w1=w1, b1=b1, w2=w2, b2=b2, w3=w3, b3=b3,
                   w4a=w4[:5], w4b=w4[5:], b4=b4,
                   w5=w5, b5=b5, w6=w6, b6=b6, wa=wa, ba=ba)

    # GlobalTiRNN: 3-layer bidirectional LSTM, hidden 48 (dropout is train-only -> no-op)
    p["grnn"] = lstm_stack(3, first_from_features=True)
    # VR_PCT_Net.lstm: 2-layer bidirectional LSTM, hidden 48, fed by the grnn bidir output
    p["lstm"] = lstm_stack(2, first_from_features=False)
    # final fc, split into forward/backward halves of the bidirectional feature vector
    fc_w, fc_b = linear(96, num_class)
    p["fc_w2"] = jnp.stack([fc_w[:H], fc_w[H:]])                   # (2, 48, num_class)
    p["fc_b"] = fc_b
    return p


if __name__ == "__main__":
    num_class = 4
    batch_size = 2
    length_size = 4
    num_points = 96          # multiple of 6; == 96 so point selection is a no-op

    key = jax.random.PRNGKey(0)
    kp, kx, kh, kc, kx2 = jax.random.split(key, 5)
    params = init_params(kp, num_class)

    x1 = jax.random.normal(kx, (batch_size * length_size, num_points, 5), jnp.float32)
    h0 = 0.1 * jax.random.normal(kh, (3 * 2, batch_size, H_LSTM), jnp.float32)
    c0 = 0.1 * jax.random.normal(kc, (3 * 2, batch_size, H_LSTM), jnp.float32)

    out = vr_pct_forward(params, x1, h0, c0, batch_size, length_size)
    out = jax.block_until_ready(out)
    assert out.shape == (batch_size, num_class)
    assert bool(jnp.all(jnp.isfinite(out)))
    # log_softmax rows should sum (in prob space) to ~1
    assert bool(jnp.allclose(jnp.sum(jnp.exp(out), axis=1), 1.0, atol=1e-4))

    # exercise the attention-diagonal / point-selection path (used when num_points > 96)
    x_big = jax.random.normal(kx2, (batch_size * length_size, 120, 5), jnp.float32)
    sums = attn_group_sums(x_big, params["lf"])
    sel = jax.block_until_ready(select_points(x_big, sums))
    assert sel.shape == (batch_size * length_size, 96, 5)
    assert bool(jnp.all(jnp.isfinite(sel)))

    print("KERNEL_OK")
</pallas_src>

<mosaic_0001>
module attributes {stable_mosaic.version = 11 : i64} {
  func.func @pointnet_kernel(%arg0: i32, %arg1: memref<768x5xf32, #tpu.memory_space<vmem>>, %arg2: memref<5x8xf32, #tpu.memory_space<vmem>>, %arg3: memref<1x8xf32, #tpu.memory_space<vmem>>, %arg4: memref<8x16xf32, #tpu.memory_space<vmem>>, %arg5: memref<1x16xf32, #tpu.memory_space<vmem>>, %arg6: memref<16x24xf32, #tpu.memory_space<vmem>>, %arg7: memref<1x24xf32, #tpu.memory_space<vmem>>, %arg8: memref<5x48xf32, #tpu.memory_space<vmem>>, %arg9: memref<24x48xf32, #tpu.memory_space<vmem>>, %arg10: memref<1x48xf32, #tpu.memory_space<vmem>>, %arg11: memref<48x72xf32, #tpu.memory_space<vmem>>, %arg12: memref<1x72xf32, #tpu.memory_space<vmem>>, %arg13: memref<72x96xf32, #tpu.memory_space<vmem>>, %arg14: memref<1x96xf32, #tpu.memory_space<vmem>>, %arg15: memref<96x1xf32, #tpu.memory_space<vmem>>, %arg16: memref<1x1xf32, #tpu.memory_space<vmem>>, %arg17: memref<1x8x96xf32, #tpu.memory_space<vmem>>) attributes {dimension_semantics = [#tpu.dimension_semantics<parallel>], iteration_bounds = array<i64: 1>, scalar_prefetch = 0 : i64, scratch_operands = 0 : i64, tpu.core_type = #tpu.core_type<tc>, window_params = [{transform_indices = @transform_0, window_bounds = array<i64: 768, 5>}, {pipeline_mode = #tpu.pipeline_mode<synchronous>, transform_indices = @transform_1, window_bounds = array<i64: 5, 8>}, {pipeline_mode = #tpu.pipeline_mode<synchronous>, transform_indices = @transform_2, window_bounds = array<i64: 1, 8>}, {pipeline_mode = #tpu.pipeline_mode<synchronous>, transform_indices = @transform_3, window_bounds = array<i64: 8, 16>}, {pipeline_mode = #tpu.pipeline_mode<synchronous>, transform_indices = @transform_4, window_bounds = array<i64: 1, 16>}, {pipeline_mode = #tpu.pipeline_mode<synchronous>, transform_indices = @transform_5, window_bounds = array<i64: 16, 24>}, {pipeline_mode = #tpu.pipeline_mode<synchronous>, transform_indices = @transform_6, window_bounds = array<i64: 1, 24>}, {pipeline_mode = #tpu.pipeline_mode<synchronous>, transform_indices = @transform_7, window_bounds = array<i64: 5, 48>}, {pipeline_mode = #tpu.pipeline_mode<synchronous>, transform_indices = @transform_8, window_bounds = array<i64: 24, 48>}, {pipeline_mode = #tpu.pipeline_mode<synchronous>, transform_indices = @transform_9, window_bounds = array<i64: 1, 48>}, {pipeline_mode = #tpu.pipeline_mode<synchronous>, transform_indices = @transform_10, window_bounds = array<i64: 48, 72>}, {pipeline_mode = #tpu.pipeline_mode<synchronous>, transform_indices = @transform_11, window_bounds = array<i64: 1, 72>}, {pipeline_mode = #tpu.pipeline_mode<synchronous>, transform_indices = @transform_12, window_bounds = array<i64: 72, 96>}, {pipeline_mode = #tpu.pipeline_mode<synchronous>, transform_indices = @transform_13, window_bounds = array<i64: 1, 96>}, {pipeline_mode = #tpu.pipeline_mode<synchronous>, transform_indices = @transform_14, window_bounds = array<i64: 96, 1>}, {pipeline_mode = #tpu.pipeline_mode<synchronous>, transform_indices = @transform_15, window_bounds = array<i64: 1, 1>}, {transform_indices = @transform_16, window_bounds = array<i64: 1, 8, 96>}]} {
    %c0 = arith.constant 0 : index
    %c0_0 = arith.constant 0 : index
    %0 = vector.load %arg1[%c0, %c0_0] : memref<768x5xf32, #tpu.memory_space<vmem>>, vector<768x5xf32>
    %c0_1 = arith.constant 0 : index
    %c0_2 = arith.constant 0 : index
    %1 = vector.load %arg2[%c0_1, %c0_2] : memref<5x8xf32, #tpu.memory_space<vmem>>, vector<5x8xf32>
    %cst = arith.constant dense<0.000000e+00> : vector<768x8xf32>
    %2 = tpu.matmul %0, %1, %cst {dimension_numbers = #tpu.dot_dimension_numbers<[1], [0], [0], [1], [0, 0, 1, 1], [], []>} : vector<768x5xf32>, vector<5x8xf32>, vector<768x8xf32> -> vector<768x8xf32>
    %c0_3 = arith.constant 0 : index
    %c0_4 = arith.constant 0 : index
    %3 = vector.load %arg3[%c0_3, %c0_4] : memref<1x8xf32, #tpu.memory_space<vmem>>, vector<1x8xf32>
    %4 = vector.broadcast %3 : vector<1x8xf32> to vector<768x8xf32>
    %5 = arith.addf %2, %4 : vector<768x8xf32>
    %cst_5 = arith.constant 0.000000e+00 : f32
    %6 = vector.broadcast %cst_5 : f32 to vector<768x8xf32>
    %7 = arith.maximumf %5, %6 : vector<768x8xf32>
    %c0_6 = arith.constant 0 : index
    %c0_7 = arith.constant 0 : index
    %8 = vector.load %arg4[%c0_6, %c0_7] : memref<8x16xf32, #tpu.memory_space<vmem>>, vector<8x16xf32>
    %cst_8 = arith.constant dense<0.000000e+00> : vector<768x16xf32>
    %9 = tpu.matmul %7, %8, %cst_8 {dimension_numbers = #tpu.dot_dimension_numbers<[1], [0], [0], [1], [0, 0, 1, 1], [], []>} : vector<768x8xf32>, vector<8x16xf32>, vector<768x16xf32> -> vector<768x16xf32>
    %c0_9 = arith.constant 0 : index
    %c0_10 = arith.constant 0 : index
    %10 = vector.load %arg5[%c0_9, %c0_10] : memref<1x16xf32, #tpu.memory_space<vmem>>, vector<1x16xf32>
    %11 = vector.broadcast %10 : vector<1x16xf32> to vector<768x16xf32>
    %12 = arith.addf %9, %11 : vector<768x16xf32>
    %cst_11 = arith.constant 0.000000e+00 : f32
    %13 = vector.broadcast %cst_11 : f32 to vector<768x16xf32>
    %14 = arith.maximumf %12, %13 : vector<768x16xf32>
    %c0_12 = arith.constant 0 : index
    %c0_13 = arith.constant 0 : index
    %15 = vector.load %arg6[%c0_12, %c0_13] : memref<16x24xf32, #tpu.memory_space<vmem>>, vector<16x24xf32>
    %cst_14 = arith.constant dense<0.000000e+00> : vector<768x24xf32>
    %16 = tpu.matmul %14, %15, %cst_14 {dimension_numbers = #tpu.dot_dimension_numbers<[1], [0], [0], [1], [0, 0, 1, 1], [], []>} : vector<768x16xf32>, vector<16x24xf32>, vector<768x24xf32> -> vector<768x24xf32>
    %c0_15 = arith.constant 0 : index
    %c0_16 = arith.constant 0 : index
    %17 = vector.load %arg7[%c0_15, %c0_16] : memref<1x24xf32, #tpu.memory_space<vmem>>, vector<1x24xf32>
    %18 = vector.broadcast %17 : vector<1x24xf32> to vector<768x24xf32>
    %19 = arith.addf %16, %18 : vector<768x24xf32>
    %cst_17 = arith.constant 0.000000e+00 : f32
    %20 = vector.broadcast %cst_17 : f32 to vector<768x24xf32>
    %21 = arith.maximumf %19, %20 : vector<768x24xf32>
    %c0_18 = arith.constant 0 : index
    %c0_19 = arith.constant 0 : index
    %22 = vector.load %arg8[%c0_18, %c0_19] : memref<5x48xf32, #tpu.memory_space<vmem>>, vector<5x48xf32>
    %cst_20 = arith.constant dense<0.000000e+00> : vector<768x48xf32>
    %23 = tpu.matmul %0, %22, %cst_20 {dimension_numbers = #tpu.dot_dimension_numbers<[1], [0], [0], [1], [0, 0, 1, 1], [], []>} : vector<768x5xf32>, vector<5x48xf32>, vector<768x48xf32> -> vector<768x48xf32>
    %c0_21 = arith.constant 0 : index
    %c0_22 = arith.constant 0 : index
    %24 = vector.load %arg9[%c0_21, %c0_22] : memref<24x48xf32, #tpu.memory_space<vmem>>, vector<24x48xf32>
    %cst_23 = arith.constant dense<0.000000e+00> : vector<768x48xf32>
    %25 = tpu.matmul %21, %24, %cst_23 {dimension_numbers = #tpu.dot_dimension_numbers<[1], [0], [0], [1], [0, 0, 1, 1], [], []>} : vector<768x24xf32>, vector<24x48xf32>, vector<768x48xf32> -> vector<768x48xf32>
    %26 = arith.addf %23, %25 : vector<768x48xf32>
    %c0_24 = arith.constant 0 : index
    %c0_25 = arith.constant 0 : index
    %27 = vector.load %arg10[%c0_24, %c0_25] : memref<1x48xf32, #tpu.memory_space<vmem>>, vector<1x48xf32>
    %28 = vector.broadcast %27 : vector<1x48xf32> to vector<768x48xf32>
    %29 = arith.addf %26, %28 : vector<768x48xf32>
    %cst_26 = arith.constant 0.000000e+00 : f32
    %30 = vector.broadcast %cst_26 : f32 to vector<768x48xf32>
    %31 = arith.maximumf %29, %30 : vector<768x48xf32>
    %c0_27 = arith.constant 0 : index
    %c0_28 = arith.constant 0 : index
    %32 = vector.load %arg11[%c0_27, %c0_28] : memref<48x72xf32, #tpu.memory_space<vmem>>, vector<48x72xf32>
    %cst_29 = arith.constant dense<0.000000e+00> : vector<768x72xf32>
    %33 = tpu.matmul %31, %32, %cst_29 {dimension_numbers = #tpu.dot_dimension_numbers<[1], [0], [0], [1], [0, 0, 1, 1], [], []>} : vector<768x48xf32>, vector<48x72xf32>, vector<768x72xf32> -> vector<768x72xf32>
    %c0_30 = arith.constant 0 : index
    %c0_31 = arith.constant 0 : index
    %34 = vector.load %arg12[%c0_30, %c0_31] : memref<1x72xf32, #tpu.memory_space<vmem>>, vector<1x72xf32>
    %35 = vector.broadcast %34 : vector<1x72xf32> to vector<768x72xf32>
    %36 = arith.addf %33, %35 : vector<768x72xf32>
    %cst_32 = arith.constant 0.000000e+00 : f32
    %37 = vector.broadcast %cst_32 : f32 to vector<768x72xf32>
    %38 = arith.maximumf %36, %37 : vector<768x72xf32>
    %c0_33 = arith.constant 0 : index
    %c0_34 = arith.constant 0 : index
    %39 = vector.load %arg13[%c0_33, %c0_34] : memref<72x96xf32, #tpu.memory_space<vmem>>, vector<72x96xf32>
    %cst_35 = arith.constant dense<0.000000e+00> : vector<768x96xf32>
    %40 = tpu.matmul %38, %39, %cst_35 {dimension_numbers = #tpu.dot_dimension_numbers<[1], [0], [0], [1], [0, 0, 1, 1], [], []>} : vector<768x72xf32>, vector<72x96xf32>, vector<768x96xf32> -> vector<768x96xf32>
    %c0_36 = arith.constant 0 : index
    %c0_37 = arith.constant 0 : index
    %41 = vector.load %arg14[%c0_36, %c0_37] : memref<1x96xf32, #tpu.memory_space<vmem>>, vector<1x96xf32>
    %42 = vector.broadcast %41 : vector<1x96xf32> to vector<768x96xf32>
    %43 = arith.addf %40, %42 : vector<768x96xf32>
    %cst_38 = arith.constant 0.000000e+00 : f32
    %44 = vector.broadcast %cst_38 : f32 to vector<768x96xf32>
    %45 = arith.maximumf %43, %44 : vector<768x96xf32>
    %c0_39 = arith.constant 0 : index
    %c0_40 = arith.constant 0 : index
    %46 = vector.load %arg15[%c0_39, %c0_40] : memref<96x1xf32, #tpu.memory_space<vmem>>, vector<96x1xf32>
    %cst_41 = arith.constant dense<0.000000e+00> : vector<768x1xf32>
    %47 = tpu.matmul %45, %46, %cst_41 {dimension_numbers = #tpu.dot_dimension_numbers<[1], [0], [0], [1], [0, 0, 1, 1], [], []>} : vector<768x96xf32>, vector<96x1xf32>, vector<768x1xf32> -> vector<768x1xf32>
    %c0_42 = arith.constant 0 : index
    %c0_43 = arith.constant 0 : index
    %48 = vector.load %arg16[%c0_42, %c0_43] : memref<1x1xf32, #tpu.memory_space<vmem>>, vector<1x1xf32>
    %49 = vector.broadcast %48 : vector<1x1xf32> to vector<768x1xf32>
    %50 = arith.addf %47, %49 : vector<768x1xf32>
    %51 = vector.shape_cast %50 : vector<768x1xf32> to vector<8x96x1xf32>
    %cst_44 = arith.constant dense<0xFF800000> : vector<8x1xf32>
    %52 = vector.multi_reduction <maximumf>, %51, %cst_44 [1] : vector<8x96x1xf32> to vector<8x1xf32>
    %53 = vector.shape_cast %52 : vector<8x1xf32> to vector<8x1x1xf32>
    %54 = vector.broadcast %53 : vector<8x1x1xf32> to vector<8x96x1xf32>
    %55 = arith.subf %51, %54 : vector<8x96x1xf32>
    %56 = math.exp %55 : vector<8x96x1xf32>
    %cst_45 = arith.constant dense<0.000000e+00> : vector<8x1xf32>
    %57 = vector.multi_reduction <add>, %56, %cst_45 [1] : vector<8x96x1xf32> to vector<8x1xf32>
    %58 = vector.shape_cast %57 : vector<8x1xf32> to vector<8x1x1xf32>
    %59 = tpu.reciprocal %58 {approx = true} : vector<8x1x1xf32> -> vector<8x1x1xf32>
    %60 = vector.broadcast %59 : vector<8x1x1xf32> to vector<8x96x1xf32>
    %61 = arith.mulf %56, %60 : vector<8x96x1xf32>
    %62 = vector.shape_cast %45 : vector<768x96xf32> to vector<8x96x96xf32>
    %63 = vector.broadcast %61 : vector<8x96x1xf32> to vector<8x96x96xf32>
    %64 = arith.mulf %62, %63 : vector<8x96x96xf32>
    %cst_46 = arith.constant dense<0.000000e+00> : vector<8x96xf32>
    %65 = vector.multi_reduction <add>, %64, %cst_46 [1] : vector<8x96x96xf32> to vector<8x96xf32>
    %c0_47 = arith.constant 0 : index
    %c0_48 = arith.constant 0 : index
    %c0_49 = arith.constant 0 : index
    %66 = vector.load %arg17[%c0_47, %c0_48, %c0_49] : memref<1x8x96xf32, #tpu.memory_space<vmem>>, vector<1x8x96xf32>
    %67 = vector.shape_cast %66 : vector<1x8x96xf32> to vector<8x96xf32>
    %68 = vector.shape_cast %65 : vector<8x96xf32> to vector<1x8x96xf32>
    tpu.vector_store %arg17[%c0_47, %c0_48, %c0_49], %68 {strides = array<i32>} : memref<1x8x96xf32, #tpu.memory_space<vmem>>, vector<1x8x96xf32>,
    return
  }
  func.func @transform_0(%arg0: i32) -> (i32, i32) {
    %c0_i32 = arith.constant 0 : i32
    %c0_i32_0 = arith.constant 0 : i32
    return %arg0, %c0_i32 : i32, i32
  }
  func.func @transform_1(%arg0: i32) -> (i32, i32) {
    %c0_i32 = arith.constant 0 : i32
    %c0_i32_0 = arith.constant 0 : i32
    %c0_i32_1 = arith.constant 0 : i32
    return %c0_i32, %c0_i32_0 : i32, i32
  }
  func.func @transform_2(%arg0: i32) -> (i32, i32) {
    %c0_i32 = arith.constant 0 : i32
    %c0_i32_0 = arith.constant 0 : i32
    %c0_i32_1 = arith.constant 0 : i32
    return %c0_i32, %c0_i32_0 : i32, i32
  }
  func.func @transform_3(%arg0: i32) -> (i32, i32) {
    %c0_i32 = arith.constant 0 : i32
    %c0_i32_0 = arith.constant 0 : i32
    %c0_i32_1 = arith.constant 0 : i32
    return %c0_i32, %c0_i32_0 : i32, i32
  }
  func.func @transform_4(%arg0: i32) -> (i32, i32) {
    %c0_i32 = arith.constant 0 : i32
    %c0_i32_0 = arith.constant 0 : i32
    %c0_i32_1 = arith.constant 0 : i32
    return %c0_i32, %c0_i32_0 : i32, i32
  }
  func.func @transform_5(%arg0: i32) -> (i32, i32) {
    %c0_i32 = arith.constant 0 : i32
    %c0_i32_0 = arith.constant 0 : i32
    %c0_i32_1 = arith.constant 0 : i32
    return %c0_i32, %c0_i32_0 : i32, i32
  }
  func.func @transform_6(%arg0: i32) -> (i32, i32) {
    %c0_i32 = arith.constant 0 : i32
    %c0_i32_0 = arith.constant 0 : i32
    %c0_i32_1 = arith.constant 0 : i32
    return %c0_i32, %c0_i32_0 : i32, i32
  }
  func.func @transform_7(%arg0: i32) -> (i32, i32) {
    %c0_i32 = arith.constant 0 : i32
    %c0_i32_0 = arith.constant 0 : i32
    %c0_i32_1 = arith.constant 0 : i32
    return %c0_i32, %c0_i32_0 : i32, i32
  }
  func.func @transform_8(%arg0: i32) -> (i32, i32) {
    %c0_i32 = arith.constant 0 : i32
    %c0_i32_0 = arith.constant 0 : i32
    %c0_i32_1 = arith.constant 0 : i32
    return %c0_i32, %c0_i32_0 : i32, i32
  }
  func.func @transform_9(%arg0: i32) -> (i32, i32) {
    %c0_i32 = arith.constant 0 : i32
    %c0_i32_0 = arith.constant 0 : i32
    %c0_i32_1 = arith.constant 0 : i32
    return %c0_i32, %c0_i32_0 : i32, i32
  }
  func.func @transform_10(%arg0: i32) -> (i32, i32) {
    %c0_i32 = arith.constant 0 : i32
    %c0_i32_0 = arith.constant 0 : i32
    %c0_i32_1 = arith.constant 0 : i32
    return %c0_i32, %c0_i32_0 : i32, i32
  }
  func.func @transform_11(%arg0: i32) -> (i32, i32) {
    %c0_i32 = arith.constant 0 : i32
    %c0_i32_0 = arith.constant 0 : i32
    %c0_i32_1 = arith.constant 0 : i32
    return %c0_i32, %c0_i32_0 : i32, i32
  }
  func.func @transform_12(%arg0: i32) -> (i32, i32) {
    %c0_i32 = arith.constant 0 : i32
    %c0_i32_0 = arith.constant 0 : i32
    %c0_i32_1 = arith.constant 0 : i32
    return %c0_i32, %c0_i32_0 : i32, i32
  }
  func.func @transform_13(%arg0: i32) -> (i32, i32) {
    %c0_i32 = arith.constant 0 : i32
    %c0_i32_0 = arith.constant 0 : i32
    %c0_i32_1 = arith.constant 0 : i32
    return %c0_i32, %c0_i32_0 : i32, i32
  }
  func.func @transform_14(%arg0: i32) -> (i32, i32) {
    %c0_i32 = arith.constant 0 : i32
    %c0_i32_0 = arith.constant 0 : i32
    %c0_i32_1 = arith.constant 0 : i32
    return %c0_i32, %c0_i32_0 : i32, i32
  }
  func.func @transform_15(%arg0: i32) -> (i32, i32) {
    %c0_i32 = arith.constant 0 : i32
    %c0_i32_0 = arith.constant 0 : i32
    %c0_i32_1 = arith.constant 0 : i32
    return %c0_i32, %c0_i32_0 : i32, i32
  }
  func.func @transform_16(%arg0: i32) -> (i32, i32, i32) {
    %c0_i32 = arith.constant 0 : i32
    %c0_i32_0 = arith.constant 0 : i32
    %c0_i32_1 = arith.constant 0 : i32
    return %arg0, %c0_i32, %c0_i32_0 : i32, i32, i32
  }
}

module attributes {stable_mosaic.version = 11 : i64} {
  func.func @proj_features_kernel(%arg0: memref<8x96xf32, #tpu.memory_space<vmem>>, %arg1: memref<2x96x512xf32, #tpu.memory_space<vmem>>, %arg2: memref<2x1x512xf32, #tpu.memory_space<vmem>>, %arg3: memref<2x8x512xf32, #tpu.memory_space<vmem>>) attributes {dimension_semantics = [], scalar_prefetch = 0 : i64, scratch_operands = 0 : i64, tpu.core_type = #tpu.core_type<tc>} {
    %c0 = arith.constant 0 : index
    %c0_0 = arith.constant 0 : index
    %0 = vector.load %arg0[%c0, %c0_0] : memref<8x96xf32, #tpu.memory_space<vmem>>, vector<8x96xf32>
    %c0_1 = arith.constant 0 : index
    %c0_2 = arith.constant 0 : index
    %c0_3 = arith.constant 0 : index
    %1 = vector.load %arg1[%c0_1, %c0_2, %c0_3] : memref<2x96x512xf32, #tpu.memory_space<vmem>>, vector<1x96x512xf32>
    %2 = vector.shape_cast %1 : vector<1x96x512xf32> to vector<96x512xf32>
    %cst = arith.constant dense<0.000000e+00> : vector<8x512xf32>
    %3 = tpu.matmul %0, %2, %cst {dimension_numbers = #tpu.dot_dimension_numbers<[1], [0], [0], [1], [0, 0, 1, 1], [], []>} : vector<8x96xf32>, vector<96x512xf32>, vector<8x512xf32> -> vector<8x512xf32>
    %c0_4 = arith.constant 0 : index
    %c0_5 = arith.constant 0 : index
    %c0_6 = arith.constant 0 : index
    %4 = vector.load %arg2[%c0_4, %c0_5, %c0_6] : memref<2x1x512xf32, #tpu.memory_space<vmem>>, vector<1x1x512xf32>
    %5 = vector.shape_cast %4 : vector<1x1x512xf32> to vector<1x512xf32>
    %6 = vector.broadcast %5 : vector<1x512xf32> to vector<8x512xf32>
    %7 = arith.addf %3, %6 : vector<8x512xf32>
    %c0_7 = arith.constant 0 : index
    %c0_8 = arith.constant 0 : index
    %c0_9 = arith.constant 0 : index
    %8 = vector.load %arg3[%c0_7, %c0_8, %c0_9] : memref<2x8x512xf32, #tpu.memory_space<vmem>>, vector<1x8x512xf32>
    %9 = vector.shape_cast %8 : vector<1x8x512xf32> to vector<8x512xf32>
    %10 = vector.shape_cast %7 : vector<8x512xf32> to vector<1x8x512xf32>
    tpu.vector_store %arg3[%c0_7, %c0_8, %c0_9], %10 {strides = array<i32>} : memref<2x8x512xf32, #tpu.memory_space<vmem>>, vector<1x8x512xf32>,
    %c1 = arith.constant 1 : index
    %c0_10 = arith.constant 0 : index
    %c0_11 = arith.constant 0 : index
    %11 = vector.load %arg1[%c1, %c0_10, %c0_11] : memref<2x96x512xf32, #tpu.memory_space<vmem>>, vector<1x96x512xf32>
    %12 = vector.shape_cast %11 : vector<1x96x512xf32> to vector<96x512xf32>
    %cst_12 = arith.constant dense<0.000000e+00> : vector<8x512xf32>
    %13 = tpu.matmul %0, %12, %cst_12 {dimension_numbers = #tpu.dot_dimension_numbers<[1], [0], [0], [1], [0, 0, 1, 1], [], []>} : vector<8x96xf32>, vector<96x512xf32>, vector<8x512xf32> -> vector<8x512xf32>
    %c1_13 = arith.constant 1 : index
    %c0_14 = arith.constant 0 : index
    %c0_15 = arith.constant 0 : index
    %14 = vector.load %arg2[%c1_13, %c0_14, %c0_15] : memref<2x1x512xf32, #tpu.memory_space<vmem>>, vector<1x1x512xf32>
    %15 = vector.shape_cast %14 : vector<1x1x512xf32> to vector<1x512xf32>
    %16 = vector.broadcast %15 : vector<1x512xf32> to vector<8x512xf32>
    %17 = arith.addf %13, %16 : vector<8x512xf32>
    %c1_16 = arith.constant 1 : index
    %c0_17 = arith.constant 0 : index
    %c0_18 = arith.constant 0 : index
    %18 = vector.load %arg3[%c1_16, %c0_17, %c0_18] : memref<2x8x512xf32, #tpu.memory_space<vmem>>, vector<1x8x512xf32>
    %19 = vector.shape_cast %18 : vector<1x8x512xf32> to vector<8x512xf32>
    %20 = vector.shape_cast %17 : vector<8x512xf32> to vector<1x8x512xf32>
    tpu.vector_store %arg3[%c1_16, %c0_17, %c0_18], %20 {strides = array<i32>} : memref<2x8x512xf32, #tpu.memory_space<vmem>>, vector<1x8x512xf32>,
    return
  }
}

module attributes {stable_mosaic.version = 11 : i64} {
  func.func @proj_bidir_kernel(%arg0: memref<2x8x48xf32, #tpu.memory_space<vmem>>, %arg1: memref<2x2x48x512xf32, #tpu.memory_space<vmem>>, %arg2: memref<2x1x512xf32, #tpu.memory_space<vmem>>, %arg3: memref<2x8x512xf32, #tpu.memory_space<vmem>>) attributes {dimension_semantics = [], scalar_prefetch = 0 : i64, scratch_operands = 0 : i64, tpu.core_type = #tpu.core_type<tc>} {
    %c0 = arith.constant 0 : index
    %c0_0 = arith.constant 0 : index
    %c0_1 = arith.constant 0 : index
    %0 = vector.load %arg0[%c0, %c0_0, %c0_1] : memref<2x8x48xf32, #tpu.memory_space<vmem>>, vector<1x8x48xf32>
    %1 = vector.shape_cast %0 : vector<1x8x48xf32> to vector<8x48xf32>
    %c1 = arith.constant 1 : index
    %c0_2 = arith.constant 0 : index
    %c0_3 = arith.constant 0 : index
    %2 = vector.load %arg0[%c1, %c0_2, %c0_3] : memref<2x8x48xf32, #tpu.memory_space<vmem>>, vector<1x8x48xf32>
    %3 = vector.shape_cast %2 : vector<1x8x48xf32> to vector<8x48xf32>
    %c0_4 = arith.constant 0 : index
    %c0_5 = arith.constant 0 : index
    %c0_6 = arith.constant 0 : index
    %c0_7 = arith.constant 0 : index
    %4 = vector.load %arg1[%c0_4, %c0_5, %c0_6, %c0_7] : memref<2x2x48x512xf32, #tpu.memory_space<vmem>>, vector<1x1x48x512xf32>
    %5 = vector.shape_cast %4 : vector<1x1x48x512xf32> to vector<48x512xf32>
    %cst = arith.constant dense<0.000000e+00> : vector<8x512xf32>
    %6 = tpu.matmul %1, %5, %cst {dimension_numbers = #tpu.dot_dimension_numbers<[1], [0], [0], [1], [0, 0, 1, 1], [], []>} : vector<8x48xf32>, vector<48x512xf32>, vector<8x512xf32> -> vector<8x512xf32>
    %c0_8 = arith.constant 0 : index
    %c1_9 = arith.constant 1 : index
    %c0_10 = arith.constant 0 : index
    %c0_11 = arith.constant 0 : index
    %7 = vector.load %arg1[%c0_8, %c1_9, %c0_10, %c0_11] : memref<2x2x48x512xf32, #tpu.memory_space<vmem>>, vector<1x1x48x512xf32>
    %8 = vector.shape_cast %7 : vector<1x1x48x512xf32> to vector<48x512xf32>
    %cst_12 = arith.constant dense<0.000000e+00> : vector<8x512xf32>
    %9 = tpu.matmul %3, %8, %cst_12 {dimension_numbers = #tpu.dot_dimension_numbers<[1], [0], [0], [1], [0, 0, 1, 1], [], []>} : vector<8x48xf32>, vector<48x512xf32>, vector<8x512xf32> -> vector<8x512xf32>
    %10 = arith.addf %6, %9 : vector<8x512xf32>
    %c0_13 = arith.constant 0 : index
    %c0_14 = arith.constant 0 : index
    %c0_15 = arith.constant 0 : index
    %11 = vector.load %arg2[%c0_13, %c0_14, %c0_15] : memref<2x1x512xf32, #tpu.memory_space<vmem>>, vector<1x1x512xf32>
    %12 = vector.shape_cast %11 : vector<1x1x512xf32> to vector<1x512xf32>
    %13 = vector.broadcast %12 : vector<1x512xf32> to vector<8x512xf32>
    %14 = arith.addf %10, %13 : vector<8x512xf32>
    %c0_16 = arith.constant 0 : index
    %c0_17 = arith.constant 0 : index
    %c0_18 = arith.constant 0 : index
    %15 = vector.load %arg3[%c0_16, %c0_17, %c0_18] : memref<2x8x512xf32, #tpu.memory_space<vmem>>, vector<1x8x512xf32>
    %16 = vector.shape_cast %15 : vector<1x8x512xf32> to vector<8x512xf32>
    %17 = vector.shape_cast %14 : vector<8x512xf32> to vector<1x8x512xf32>
    tpu.vector_store %arg3[%c0_16, %c0_17, %c0_18], %17 {strides = array<i32>} : memref<2x8x512xf32, #tpu.memory_space<vmem>>, vector<1x8x512xf32>,
    %c1_19 = arith.constant 1 : index
    %c0_20 = arith.constant 0 : index
    %c0_21 = arith.constant 0 : index
    %c0_22 = arith.constant 0 : index
    %18 = vector.load %arg1[%c1_19, %c0_20, %c0_21, %c0_22] : memref<2x2x48x512xf32, #tpu.memory_space<vmem>>, vector<1x1x48x512xf32>
    %19 = vector.shape_cast %18 : vector<1x1x48x512xf32> to vector<48x512xf32>
    %cst_23 = arith.constant dense<0.000000e+00> : vector<8x512xf32>
    %20 = tpu.matmul %1, %19, %cst_23 {dimension_numbers = #tpu.dot_dimension_numbers<[1], [0], [0], [1], [0, 0, 1, 1], [], []>} : vector<8x48xf32>, vector<48x512xf32>, vector<8x512xf32> -> vector<8x512xf32>
    %c1_24 = arith.constant 1 : index
    %c1_25 = arith.constant 1 : index
    %c0_26 = arith.constant 0 : index
    %c0_27 = arith.constant 0 : index
    %21 = vector.load %arg1[%c1_24, %c1_25, %c0_26, %c0_27] : memref<2x2x48x512xf32, #tpu.memory_space<vmem>>, vector<1x1x48x512xf32>
    %22 = vector.shape_cast %21 : vector<1x1x48x512xf32> to vector<48x512xf32>
    %cst_28 = arith.constant dense<0.000000e+00> : vector<8x512xf32>
    %23 = tpu.matmul %3, %22, %cst_28 {dimension_numbers = #tpu.dot_dimension_numbers<[1], [0], [0], [1], [0, 0, 1, 1], [], []>} : vector<8x48xf32>, vector<48x512xf32>, vector<8x512xf32> -> vector<8x512xf32>
    %24 = arith.addf %20, %23 : vector<8x512xf32>
    %c1_29 = arith.constant 1 : index
    %c0_30 = arith.constant 0 : index
    %c0_31 = arith.constant 0 : index
    %25 = vector.load %arg2[%c1_29, %c0_30, %c0_31] : memref<2x1x512xf32, #tpu.memory_space<vmem>>, vector<1x1x512xf32>
    %26 = vector.shape_cast %25 : vector<1x1x512xf32> to vector<1x512xf32>
    %27 = vector.broadcast %26 : vector<1x512xf32> to vector<8x512xf32>
    %28 = arith.addf %24, %27 : vector<8x512xf32>
    %c1_32 = arith.constant 1 : index
    %c0_33 = arith.constant 0 : index
    %c0_34 = arith.constant 0 : index
    %29 = vector.load %arg3[%c1_32, %c0_33, %c0_34] : memref<2x8x512xf32, #tpu.memory_space<vmem>>, vector<1x8x512xf32>
    %30 = vector.shape_cast %29 : vector<1x8x512xf32> to vector<8x512xf32>
    %31 = vector.shape_cast %28 : vector<8x512xf32> to vector<1x8x512xf32>
    tpu.vector_store %arg3[%c1_32, %c0_33, %c0_34], %31 {strides = array<i32>} : memref<2x8x512xf32, #tpu.memory_space<vmem>>, vector<1x8x512xf32>,
    return
  }
}

module attributes {stable_mosaic.version = 11 : i64} {
  func.func @bidir_lstm_kernel(%arg0: i32, %arg1: memref<1x4x2x512xf32, #tpu.memory_space<vmem>>, %arg2: memref<1x48x512xf32, #tpu.memory_space<vmem>>, %arg3: memref<1x2x48xf32, #tpu.memory_space<vmem>>, %arg4: memref<1x2x48xf32, #tpu.memory_space<vmem>>, %arg5: memref<1x4x2x48xf32, #tpu.memory_space<vmem>>) attributes {dimension_semantics = [#tpu.dimension_semantics<parallel>], iteration_bounds = array<i64: 2>, scalar_prefetch = 0 : i64, scratch_operands = 0 : i64, tpu.core_type = #tpu.core_type<tc>, window_params = [{transform_indices = @transform_0, window_bounds = array<i64: 1, 4, 2, 512>}, {transform_indices = @transform_1, window_bounds = array<i64: 1, 48, 512>}, {transform_indices = @transform_2, window_bounds = array<i64: 1, 2, 48>}, {transform_indices = @transform_3, window_bounds = array<i64: 1, 2, 48>}, {transform_indices = @transform_4, window_bounds = array<i64: 1, 4, 2, 48>}]} {
    %c0 = arith.constant 0 : index
    %c0_0 = arith.constant 0 : index
    %c0_1 = arith.constant 0 : index
    %0 = vector.load %arg2[%c0, %c0_0, %c0_1] : memref<1x48x512xf32, #tpu.memory_space<vmem>>, vector<1x48x512xf32>
    %1 = vector.shape_cast %0 : vector<1x48x512xf32> to vector<48x512xf32>
    %c0_2 = arith.constant 0 : index
    %c0_3 = arith.constant 0 : index
    %c0_4 = arith.constant 0 : index
    %2 = vector.load %arg3[%c0_2, %c0_3, %c0_4] : memref<1x2x48xf32, #tpu.memory_space<vmem>>, vector<1x2x48xf32>
    %3 = vector.shape_cast %2 : vector<1x2x48xf32> to vector<2x48xf32>
    %c0_5 = arith.constant 0 : index
    %c0_6 = arith.constant 0 : index
    %c0_7 = arith.constant 0 : index
    %4 = vector.load %arg4[%c0_5, %c0_6, %c0_7] : memref<1x2x48xf32, #tpu.memory_space<vmem>>, vector<1x2x48xf32>
    %5 = vector.shape_cast %4 : vector<1x2x48xf32> to vector<2x48xf32>
    %c0_i32 = arith.constant 0 : i32
    %c1_i32 = arith.constant 1 : i32
    %6 = arith.subi %c1_i32, %arg0 : i32
    %7 = arith.muli %6, %c0_i32 : i32
    %c3_i32 = arith.constant 3 : i32
    %8 = arith.subi %c3_i32, %c0_i32 : i32
    %9 = arith.muli %arg0, %8 : i32
    %10 = arith.addi %7, %9 : i32
    %c0_8 = arith.constant 0 : index
    %11 = arith.index_cast %10 : i32 to index
    %c0_9 = arith.constant 0 : index
    %c0_10 = arith.constant 0 : index
    %12 = vector.load %arg1[%c0_8, %11, %c0_9, %c0_10] : memref<1x4x2x512xf32, #tpu.memory_space<vmem>>, vector<1x1x2x512xf32>
    %13 = vector.shape_cast %12 : vector<1x1x2x512xf32> to vector<2x512xf32>
    %cst = arith.constant dense<0.000000e+00> : vector<2x512xf32>
    %14 = tpu.matmul %3, %1, %cst {dimension_numbers = #tpu.dot_dimension_numbers<[1], [0], [0], [1], [0, 0, 1, 1], [], []>} : vector<2x48xf32>, vector<48x512xf32>, vector<2x512xf32> -> vector<2x512xf32>
    %15 = arith.addf %13, %14 : vector<2x512xf32>
    %16 = vector.extract_strided_slice %15 {offsets = [0, 0], sizes = [2, 48], strides = [1, 1]} : vector<2x512xf32> to vector<2x48xf32>
    %17 = arith.negf %16 : vector<2x48xf32>
    %18 = math.exp %17 : vector<2x48xf32>
    %cst_11 = arith.constant 1.000000e+00 : f32
    %19 = vector.broadcast %cst_11 : f32 to vector<2x48xf32>
    %20 = arith.addf %19, %18 : vector<2x48xf32>
    %21 = arith.divf %19, %20 : vector<2x48xf32>
    %22 = vector.extract_strided_slice %15 {offsets = [0, 128], sizes = [2, 48], strides = [1, 1]} : vector<2x512xf32> to vector<2x48xf32>
    %23 = arith.negf %22 : vector<2x48xf32>
    %24 = math.exp %23 : vector<2x48xf32>
    %cst_12 = arith.constant 1.000000e+00 : f32
    %25 = vector.broadcast %cst_12 : f32 to vector<2x48xf32>
    %26 = arith.addf %25, %24 : vector<2x48xf32>
    %27 = arith.divf %25, %26 : vector<2x48xf32>
    %28 = vector.extract_strided_slice %15 {offsets = [0, 256], sizes = [2, 48], strides = [1, 1]} : vector<2x512xf32> to vector<2x48xf32>
    %29 = math.tanh %28 : vector<2x48xf32>
    %30 = vector.extract_strided_slice %15 {offsets = [0, 384], sizes = [2, 48], strides = [1, 1]} : vector<2x512xf32> to vector<2x48xf32>
    %31 = arith.negf %30 : vector<2x48xf32>
    %32 = math.exp %31 : vector<2x48xf32>
    %cst_13 = arith.constant 1.000000e+00 : f32
    %33 = vector.broadcast %cst_13 : f32 to vector<2x48xf32>
    %34 = arith.addf %33, %32 : vector<2x48xf32>
    %35 = arith.divf %33, %34 : vector<2x48xf32>
    %36 = arith.mulf %27, %5 : vector<2x48xf32>
    %37 = arith.mulf %21, %29 : vector<2x48xf32>
    %38 = arith.addf %36, %37 : vector<2x48xf32>
    %39 = math.tanh %38 : vector<2x48xf32>
    %40 = arith.mulf %35, %39 : vector<2x48xf32>
    %c0_14 = arith.constant 0 : index
    %41 = arith.index_cast %10 : i32 to index
    %c0_15 = arith.constant 0 : index
    %c0_16 = arith.constant 0 : index
    %42 = vector.load %arg5[%c0_14, %41, %c0_15, %c0_16] : memref<1x4x2x48xf32, #tpu.memory_space<vmem>>, vector<1x1x2x48xf32>
    %43 = vector.shape_cast %42 : vector<1x1x2x48xf32> to vector<2x48xf32>
    %44 = vector.shape_cast %40 : vector<2x48xf32> to vector<1x1x2x48xf32>
    tpu.vector_store %arg5[%c0_14, %41, %c0_15, %c0_16], %44 {strides = array<i32>} : memref<1x4x2x48xf32, #tpu.memory_space<vmem>>, vector<1x1x2x48xf32>,
    %c1_i32_17 = arith.constant 1 : i32
    %c1_i32_18 = arith.constant 1 : i32
    %45 = arith.subi %c1_i32_18, %arg0 : i32
    %46 = arith.muli %45, %c1_i32_17 : i32
    %c3_i32_19 = arith.constant 3 : i32
    %47 = arith.subi %c3_i32_19, %c1_i32_17 : i32
    %48 = arith.muli %arg0, %47 : i32
    %49 = arith.addi %46, %48 : i32
    %c0_20 = arith.constant 0 : index
    %50 = arith.index_cast %49 : i32 to index
    %c0_21 = arith.constant 0 : index
    %c0_22 = arith.constant 0 : index
    %51 = vector.load %arg1[%c0_20, %50, %c0_21, %c0_22] : memref<1x4x2x512xf32, #tpu.memory_space<vmem>>, vector<1x1x2x512xf32>
    %52 = vector.shape_cast %51 : vector<1x1x2x512xf32> to vector<2x512xf32>
    %cst_23 = arith.constant dense<0.000000e+00> : vector<2x512xf32>
    %53 = tpu.matmul %40, %1, %cst_23 {dimension_numbers = #tpu.dot_dimension_numbers<[1], [0], [0], [1], [0, 0, 1, 1], [], []>} : vector<2x48xf32>, vector<48x512xf32>, vector<2x512xf32> -> vector<2x512xf32>
    %54 = arith.addf %52, %53 : vector<2x512xf32>
    %55 = vector.extract_strided_slice %54 {offsets = [0, 0], sizes = [2, 48], strides = [1, 1]} : vector<2x512xf32> to vector<2x48xf32>
    %56 = arith.negf %55 : vector<2x48xf32>
    %57 = math.exp %56 : vector<2x48xf32>
    %cst_24 = arith.constant 1.000000e+00 : f32
    %58 = vector.broadcast %cst_24 : f32 to vector<2x48xf32>
    %59 = arith.addf %58, %57 : vector<2x48xf32>
    %60 = arith.divf %58, %59 : vector<2x48xf32>
    %61 = vector.extract_strided_slice %54 {offsets = [0, 128], sizes = [2, 48], strides = [1, 1]} : vector<2x512xf32> to vector<2x48xf32>
    %62 = arith.negf %61 : vector<2x48xf32>
    %63 = math.exp %62 : vector<2x48xf32>
    %cst_25 = arith.constant 1.000000e+00 : f32
    %64 = vector.broadcast %cst_25 : f32 to vector<2x48xf32>
    %65 = arith.addf %64, %63 : vector<2x48xf32>
    %66 = arith.divf %64, %65 : vector<2x48xf32>
    %67 = vector.extract_strided_slice %54 {offsets = [0, 256], sizes = [2, 48], strides = [1, 1]} : vector<2x512xf32> to vector<2x48xf32>
    %68 = math.tanh %67 : vector<2x48xf32>
    %69 = vector.extract_strided_slice %54 {offsets = [0, 384], sizes = [2, 48], strides = [1, 1]} : vector<2x512xf32> to vector<2x48xf32>
    %70 = arith.negf %69 : vector<2x48xf32>
    %71 = math.exp %70 : vector<2x48xf32>
    %cst_26 = arith.constant 1.000000e+00 : f32
    %72 = vector.broadcast %cst_26 : f32 to vector<2x48xf32>
    %73 = arith.addf %72, %71 : vector<2x48xf32>
    %74 = arith.divf %72, %73 : vector<2x48xf32>
    %75 = arith.mulf %66, %38 : vector<2x48xf32>
    %76 = arith.mulf %60, %68 : vector<2x48xf32>
    %77 = arith.addf %75, %76 : vector<2x48xf32>
    %78 = math.tanh %77 : vector<2x48xf32>
    %79 = arith.mulf %74, %78 : vector<2x48xf32>
    %c0_27 = arith.constant 0 : index
    %80 = arith.index_cast %49 : i32 to index
    %c0_28 = arith.constant 0 : index
    %c0_29 = arith.constant 0 : index
    %81 = vector.load %arg5[%c0_27, %80, %c0_28, %c0_29] : memref<1x4x2x48xf32, #tpu.memory_space<vmem>>, vector<1x1x2x48xf32>
    %82 = vector.shape_cast %81 : vector<1x1x2x48xf32> to vector<2x48xf32>
    %83 = vector.shape_cast %79 : vector<2x48xf32> to vector<1x1x2x48xf32>
    tpu.vector_store %arg5[%c0_27, %80, %c0_28, %c0_29], %83 {strides = array<i32>} : memref<1x4x2x48xf32, #tpu.memory_space<vmem>>, vector<1x1x2x48xf32>,
    %c2_i32 = arith.constant 2 : i32
    %c1_i32_30 = arith.constant 1 : i32
    %84 = arith.subi %c1_i32_30, %arg0 : i32
    %85 = arith.muli %84, %c2_i32 : i32
    %c3_i32_31 = arith.constant 3 : i32
    %86 = arith.subi %c3_i32_31, %c2_i32 : i32
    %87 = arith.muli %arg0, %86 : i32
    %88 = arith.addi %85, %87 : i32
    %c0_32 = arith.constant 0 : index
    %89 = arith.index_cast %88 : i32 to index
    %c0_33 = arith.constant 0 : index
    %c0_34 = arith.constant 0 : index
    %90 = vector.load %arg1[%c0_32, %89, %c0_33, %c0_34] : memref<1x4x2x512xf32, #tpu.memory_space<vmem>>, vector<1x1x2x512xf32>
    %91 = vector.shape_cast %90 : vector<1x1x2x512xf32> to vector<2x512xf32>
    %cst_35 = arith.constant dense<0.000000e+00> : vector<2x512xf32>
    %92 = tpu.matmul %79, %1, %cst_35 {dimension_numbers = #tpu.dot_dimension_numbers<[1], [0], [0], [1], [0, 0, 1, 1], [], []>} : vector<2x48xf32>, vector<48x512xf32>, vector<2x512xf32> -> vector<2x512xf32>
    %93 = arith.addf %91, %92 : vector<2x512xf32>
    %94 = vector.extract_strided_slice %93 {offsets = [0, 0], sizes = [2, 48], strides = [1, 1]} : vector<2x512xf32> to vector<2x48xf32>
    %95 = arith.negf %94 : vector<2x48xf32>
    %96 = math.exp %95 : vector<2x48xf32>
    %cst_36 = arith.constant 1.000000e+00 : f32
    %97 = vector.broadcast %cst_36 : f32 to vector<2x48xf32>
    %98 = arith.addf %97, %96 : vector<2x48xf32>
    %99 = arith.divf %97, %98 : vector<2x48xf32>
    %100 = vector.extract_strided_slice %93 {offsets = [0, 128], sizes = [2, 48], strides = [1, 1]} : vector<2x512xf32> to vector<2x48xf32>
    %101 = arith.negf %100 : vector<2x48xf32>
    %102 = math.exp %101 : vector<2x48xf32>
    %cst_37 = arith.constant 1.000000e+00 : f32
    %103 = vector.broadcast %cst_37 : f32 to vector<2x48xf32>
    %104 = arith.addf %103, %102 : vector<2x48xf32>
    %105 = arith.divf %103, %104 : vector<2x48xf32>
    %106 = vector.extract_strided_slice %93 {offsets = [0, 256], sizes = [2, 48], strides = [1, 1]} : vector<2x512xf32> to vector<2x48xf32>
    %107 = math.tanh %106 : vector<2x48xf32>
    %108 = vector.extract_strided_slice %93 {offsets = [0, 384], sizes = [2, 48], strides = [1, 1]} : vector<2x512xf32> to vector<2x48xf32>
    %109 = arith.negf %108 : vector<2x48xf32>
    %110 = math.exp %109 : vector<2x48xf32>
    %cst_38 = arith.constant 1.000000e+00 : f32
    %111 = vector.broadcast %cst_38 : f32 to vector<2x48xf32>
    %112 = arith.addf %111, %110 : vector<2x48xf32>
    %113 = arith.divf %111, %112 : vector<2x48xf32>
    %114 = arith.mulf %105, %77 : vector<2x48xf32>
    %115 = arith.mulf %99, %107 : vector<2x48xf32>
    %116 = arith.addf %114, %115 : vector<2x48xf32>
    %117 = math.tanh %116 : vector<2x48xf32>
    %118 = arith.mulf %113, %117 : vector<2x48xf32>
    %c0_39 = arith.constant 0 : index
    %119 = arith.index_cast %88 : i32 to index
    %c0_40 = arith.constant 0 : index
    %c0_41 = arith.constant 0 : index
    %120 = vector.load %arg5[%c0_39, %119, %c0_40, %c0_41] : memref<1x4x2x48xf32, #tpu.memory_space<vmem>>, vector<1x1x2x48xf32>
    %121 = vector.shape_cast %120 : vector<1x1x2x48xf32> to vector<2x48xf32>
    %122 = vector.shape_cast %118 : vector<2x48xf32> to vector<1x1x2x48xf32>
    tpu.vector_store %arg5[%c0_39, %119, %c0_40, %c0_41], %122 {strides = array<i32>} : memref<1x4x2x48xf32, #tpu.memory_space<vmem>>, vector<1x1x2x48xf32>,
    %c3_i32_42 = arith.constant 3 : i32
    %c1_i32_43 = arith.constant 1 : i32
    %123 = arith.subi %c1_i32_43, %arg0 : i32
    %124 = arith.muli %123, %c3_i32_42 : i32
    %c3_i32_44 = arith.constant 3 : i32
    %125 = arith.subi %c3_i32_44, %c3_i32_42 : i32
    %126 = arith.muli %arg0, %125 : i32
    %127 = arith.addi %124, %126 : i32
    %c0_45 = arith.constant 0 : index
    %128 = arith.index_cast %127 : i32 to index
    %c0_46 = arith.constant 0 : index
    %c0_47 = arith.constant 0 : index
    %129 = vector.load %arg1[%c0_45, %128, %c0_46, %c0_47] : memref<1x4x2x512xf32, #tpu.memory_space<vmem>>, vector<1x1x2x512xf32>
    %130 = vector.shape_cast %129 : vector<1x1x2x512xf32> to vector<2x512xf32>
    %cst_48 = arith.constant dense<0.000000e+00> : vector<2x512xf32>
    %131 = tpu.matmul %118, %1, %cst_48 {dimension_numbers = #tpu.dot_dimension_numbers<[1], [0], [0], [1], [0, 0, 1, 1], [], []>} : vector<2x48xf32>, vector<48x512xf32>, vector<2x512xf32> -> vector<2x512xf32>
    %132 = arith.addf %130, %131 : vector<2x512xf32>
    %133 = vector.extract_strided_slice %132 {offsets = [0, 0], sizes = [2, 48], strides = [1, 1]} : vector<2x512xf32> to vector<2x48xf32>
    %134 = arith.negf %133 : vector<2x48xf32>
    %135 = math.exp %134 : vector<2x48xf32>
    %cst_49 = arith.constant 1.000000e+00 : f32
    %136 = vector.broadcast %cst_49 : f32 to vector<2x48xf32>
    %137 = arith.addf %136, %135 : vector<2x48xf32>
    %138 = arith.divf %136, %137 : vector<2x48xf32>
    %139 = vector.extract_strided_slice %132 {offsets = [0, 128], sizes = [2, 48], strides = [1, 1]} : vector<2x512xf32> to vector<2x48xf32>
    %140 = arith.negf %139 : vector<2x48xf32>
    %141 = math.exp %140 : vector<2x48xf32>
    %cst_50 = arith.constant 1.000000e+00 : f32
    %142 = vector.broadcast %cst_50 : f32 to vector<2x48xf32>
    %143 = arith.addf %142, %141 : vector<2x48xf32>
    %144 = arith.divf %142, %143 : vector<2x48xf32>
    %145 = vector.extract_strided_slice %132 {offsets = [0, 256], sizes = [2, 48], strides = [1, 1]} : vector<2x512xf32> to vector<2x48xf32>
    %146 = math.tanh %145 : vector<2x48xf32>
    %147 = vector.extract_strided_slice %132 {offsets = [0, 384], sizes = [2, 48], strides = [1, 1]} : vector<2x512xf32> to vector<2x48xf32>
    %148 = arith.negf %147 : vector<2x48xf32>
    %149 = math.exp %148 : vector<2x48xf32>
    %cst_51 = arith.constant 1.000000e+00 : f32
    %150 = vector.broadcast %cst_51 : f32 to vector<2x48xf32>
    %151 = arith.addf %150, %149 : vector<2x48xf32>
    %152 = arith.divf %150, %151 : vector<2x48xf32>
    %153 = arith.mulf %144, %116 : vector<2x48xf32>
    %154 = arith.mulf %138, %146 : vector<2x48xf32>
    %155 = arith.addf %153, %154 : vector<2x48xf32>
    %156 = math.tanh %155 : vector<2x48xf32>
    %157 = arith.mulf %152, %156 : vector<2x48xf32>
    %c0_52 = arith.constant 0 : index
    %158 = arith.index_cast %127 : i32 to index
    %c0_53 = arith.constant 0 : index
    %c0_54 = arith.constant 0 : index
    %159 = vector.load %arg5[%c0_52, %158, %c0_53, %c0_54] : memref<1x4x2x48xf32, #tpu.memory_space<vmem>>, vector<1x1x2x48xf32>
    %160 = vector.shape_cast %159 : vector<1x1x2x48xf32> to vector<2x48xf32>
    %161 = vector.shape_cast %157 : vector<2x48xf32> to vector<1x1x2x48xf32>
    tpu.vector_store %arg5[%c0_52, %158, %c0_53, %c0_54], %161 {strides = array<i32>} : memref<1x4x2x48xf32, #tpu.memory_space<vmem>>, vector<1x1x2x48xf32>,
    %c4_i32 = arith.constant 4 : i32
    return
  }
  func.func @transform_0(%arg0: i32) -> (i32, i32, i32, i32) {
    %c0_i32 = arith.constant 0 : i32
    %c0_i32_0 = arith.constant 0 : i32
    %c0_i32_1 = arith.constant 0 : i32
    %c0_i32_2 = arith.constant 0 : i32
    return %arg0, %c0_i32, %c0_i32_0, %c0_i32_1 : i32, i32, i32, i32
  }
  func.func @transform_1(%arg0: i32) -> (i32, i32, i32) {
    %c0_i32 = arith.constant 0 : i32
    %c0_i32_0 = arith.constant 0 : i32
    %c0_i32_1 = arith.constant 0 : i32
    return %arg0, %c0_i32, %c0_i32_0 : i32, i32, i32
  }
  func.func @transform_2(%arg0: i32) -> (i32, i32, i32) {
    %c0_i32 = arith.constant 0 : i32
    %c0_i32_0 = arith.constant 0 : i32
    %c0_i32_1 = arith.constant 0 : i32
    return %arg0, %c0_i32, %c0_i32_0 : i32, i32, i32
  }
  func.func @transform_3(%arg0: i32) -> (i32, i32, i32) {
    %c0_i32 = arith.constant 0 : i32
    %c0_i32_0 = arith.constant 0 : i32
    %c0_i32_1 = arith.constant 0 : i32
    return %arg0, %c0_i32, %c0_i32_0 : i32, i32, i32
  }
  func.func @transform_4(%arg0: i32) -> (i32, i32, i32, i32) {
    %c0_i32 = arith.constant 0 : i32
    %c0_i32_0 = arith.constant 0 : i32
    %c0_i32_1 = arith.constant 0 : i32
    %c0_i32_2 = arith.constant 0 : i32
    return %arg0, %c0_i32, %c0_i32_0, %c0_i32_1 : i32, i32, i32, i32
  }
}

module attributes {stable_mosaic.version = 11 : i64} {
  func.func @last_bidir_fc_kernel(%arg0: memref<4x2x512xf32, #tpu.memory_space<vmem>>, %arg1: memref<48x512xf32, #tpu.memory_space<vmem>>, %arg2: memref<2x512xf32, #tpu.memory_space<vmem>>, %arg3: memref<2x48x4xf32, #tpu.memory_space<vmem>>, %arg4: memref<1x4xf32, #tpu.memory_space<vmem>>, %arg5: memref<2x4xf32, #tpu.memory_space<vmem>>) attributes {dimension_semantics = [], scalar_prefetch = 0 : i64, scratch_operands = 0 : i64, tpu.core_type = #tpu.core_type<tc>} {
    %c0 = arith.constant 0 : index
    %c0_0 = arith.constant 0 : index
    %0 = vector.load %arg1[%c0, %c0_0] : memref<48x512xf32, #tpu.memory_space<vmem>>, vector<48x512xf32>
    %cst = arith.constant 0.000000e+00 : f32
    %1 = vector.broadcast %cst : f32 to vector<2x48xf32>
    %c0_i32 = arith.constant 0 : i32
    %2 = arith.index_cast %c0_i32 : i32 to index
    %c0_1 = arith.constant 0 : index
    %c0_2 = arith.constant 0 : index
    %3 = vector.load %arg0[%2, %c0_1, %c0_2] : memref<4x2x512xf32, #tpu.memory_space<vmem>>, vector<1x2x512xf32>
    %4 = vector.shape_cast %3 : vector<1x2x512xf32> to vector<2x512xf32>
    %cst_3 = arith.constant dense<0.000000e+00> : vector<2x512xf32>
    %5 = tpu.matmul %1, %0, %cst_3 {dimension_numbers = #tpu.dot_dimension_numbers<[1], [0], [0], [1], [0, 0, 1, 1], [], []>} : vector<2x48xf32>, vector<48x512xf32>, vector<2x512xf32> -> vector<2x512xf32>
    %6 = arith.addf %4, %5 : vector<2x512xf32>
    %7 = vector.extract_strided_slice %6 {offsets = [0, 0], sizes = [2, 48], strides = [1, 1]} : vector<2x512xf32> to vector<2x48xf32>
    %8 = arith.negf %7 : vector<2x48xf32>
    %9 = math.exp %8 : vector<2x48xf32>
    %cst_4 = arith.constant 1.000000e+00 : f32
    %10 = vector.broadcast %cst_4 : f32 to vector<2x48xf32>
    %11 = arith.addf %10, %9 : vector<2x48xf32>
    %12 = arith.divf %10, %11 : vector<2x48xf32>
    %13 = vector.extract_strided_slice %6 {offsets = [0, 128], sizes = [2, 48], strides = [1, 1]} : vector<2x512xf32> to vector<2x48xf32>
    %14 = arith.negf %13 : vector<2x48xf32>
    %15 = math.exp %14 : vector<2x48xf32>
    %cst_5 = arith.constant 1.000000e+00 : f32
    %16 = vector.broadcast %cst_5 : f32 to vector<2x48xf32>
    %17 = arith.addf %16, %15 : vector<2x48xf32>
    %18 = arith.divf %16, %17 : vector<2x48xf32>
    %19 = vector.extract_strided_slice %6 {offsets = [0, 256], sizes = [2, 48], strides = [1, 1]} : vector<2x512xf32> to vector<2x48xf32>
    %20 = math.tanh %19 : vector<2x48xf32>
    %21 = vector.extract_strided_slice %6 {offsets = [0, 384], sizes = [2, 48], strides = [1, 1]} : vector<2x512xf32> to vector<2x48xf32>
    %22 = arith.negf %21 : vector<2x48xf32>
    %23 = math.exp %22 : vector<2x48xf32>
    %cst_6 = arith.constant 1.000000e+00 : f32
    %24 = vector.broadcast %cst_6 : f32 to vector<2x48xf32>
    %25 = arith.addf %24, %23 : vector<2x48xf32>
    %26 = arith.divf %24, %25 : vector<2x48xf32>
    %27 = arith.mulf %18, %1 : vector<2x48xf32>
    %28 = arith.mulf %12, %20 : vector<2x48xf32>
    %29 = arith.addf %27, %28 : vector<2x48xf32>
    %30 = math.tanh %29 : vector<2x48xf32>
    %31 = arith.mulf %26, %30 : vector<2x48xf32>
    %c1_i32 = arith.constant 1 : i32
    %32 = arith.index_cast %c1_i32 : i32 to index
    %c0_7 = arith.constant 0 : index
    %c0_8 = arith.constant 0 : index
    %33 = vector.load %arg0[%32, %c0_7, %c0_8] : memref<4x2x512xf32, #tpu.memory_space<vmem>>, vector<1x2x512xf32>
    %34 = vector.shape_cast %33 : vector<1x2x512xf32> to vector<2x512xf32>
    %cst_9 = arith.constant dense<0.000000e+00> : vector<2x512xf32>
    %35 = tpu.matmul %31, %0, %cst_9 {dimension_numbers = #tpu.dot_dimension_numbers<[1], [0], [0], [1], [0, 0, 1, 1], [], []>} : vector<2x48xf32>, vector<48x512xf32>, vector<2x512xf32> -> vector<2x512xf32>
    %36 = arith.addf %34, %35 : vector<2x512xf32>
    %37 = vector.extract_strided_slice %36 {offsets = [0, 0], sizes = [2, 48], strides = [1, 1]} : vector<2x512xf32> to vector<2x48xf32>
    %38 = arith.negf %37 : vector<2x48xf32>
    %39 = math.exp %38 : vector<2x48xf32>
    %cst_10 = arith.constant 1.000000e+00 : f32
    %40 = vector.broadcast %cst_10 : f32 to vector<2x48xf32>
    %41 = arith.addf %40, %39 : vector<2x48xf32>
    %42 = arith.divf %40, %41 : vector<2x48xf32>
    %43 = vector.extract_strided_slice %36 {offsets = [0, 128], sizes = [2, 48], strides = [1, 1]} : vector<2x512xf32> to vector<2x48xf32>
    %44 = arith.negf %43 : vector<2x48xf32>
    %45 = math.exp %44 : vector<2x48xf32>
    %cst_11 = arith.constant 1.000000e+00 : f32
    %46 = vector.broadcast %cst_11 : f32 to vector<2x48xf32>
    %47 = arith.addf %46, %45 : vector<2x48xf32>
    %48 = arith.divf %46, %47 : vector<2x48xf32>
    %49 = vector.extract_strided_slice %36 {offsets = [0, 256], sizes = [2, 48], strides = [1, 1]} : vector<2x512xf32> to vector<2x48xf32>
    %50 = math.tanh %49 : vector<2x48xf32>
    %51 = vector.extract_strided_slice %36 {offsets = [0, 384], sizes = [2, 48], strides = [1, 1]} : vector<2x512xf32> to vector<2x48xf32>
    %52 = arith.negf %51 : vector<2x48xf32>
    %53 = math.exp %52 : vector<2x48xf32>
    %cst_12 = arith.constant 1.000000e+00 : f32
    %54 = vector.broadcast %cst_12 : f32 to vector<2x48xf32>
    %55 = arith.addf %54, %53 : vector<2x48xf32>
    %56 = arith.divf %54, %55 : vector<2x48xf32>
    %57 = arith.mulf %48, %29 : vector<2x48xf32>
    %58 = arith.mulf %42, %50 : vector<2x48xf32>
    %59 = arith.addf %57, %58 : vector<2x48xf32>
    %60 = math.tanh %59 : vector<2x48xf32>
    %61 = arith.mulf %56, %60 : vector<2x48xf32>
    %c2_i32 = arith.constant 2 : i32
    %62 = arith.index_cast %c2_i32 : i32 to index
    %c0_13 = arith.constant 0 : index
    %c0_14 = arith.constant 0 : index
    %63 = vector.load %arg0[%62, %c0_13, %c0_14] : memref<4x2x512xf32, #tpu.memory_space<vmem>>, vector<1x2x512xf32>
    %64 = vector.shape_cast %63 : vector<1x2x512xf32> to vector<2x512xf32>
    %cst_15 = arith.constant dense<0.000000e+00> : vector<2x512xf32>
    %65 = tpu.matmul %61, %0, %cst_15 {dimension_numbers = #tpu.dot_dimension_numbers<[1], [0], [0], [1], [0, 0, 1, 1], [], []>} : vector<2x48xf32>, vector<48x512xf32>, vector<2x512xf32> -> vector<2x512xf32>
    %66 = arith.addf %64, %65 : vector<2x512xf32>
    %67 = vector.extract_strided_slice %66 {offsets = [0, 0], sizes = [2, 48], strides = [1, 1]} : vector<2x512xf32> to vector<2x48xf32>
    %68 = arith.negf %67 : vector<2x48xf32>
    %69 = math.exp %68 : vector<2x48xf32>
    %cst_16 = arith.constant 1.000000e+00 : f32
    %70 = vector.broadcast %cst_16 : f32 to vector<2x48xf32>
    %71 = arith.addf %70, %69 : vector<2x48xf32>
    %72 = arith.divf %70, %71 : vector<2x48xf32>
    %73 = vector.extract_strided_slice %66 {offsets = [0, 128], sizes = [2, 48], strides = [1, 1]} : vector<2x512xf32> to vector<2x48xf32>
    %74 = arith.negf %73 : vector<2x48xf32>
    %75 = math.exp %74 : vector<2x48xf32>
    %cst_17 = arith.constant 1.000000e+00 : f32
    %76 = vector.broadcast %cst_17 : f32 to vector<2x48xf32>
    %77 = arith.addf %76, %75 : vector<2x48xf32>
    %78 = arith.divf %76, %77 : vector<2x48xf32>
    %79 = vector.extract_strided_slice %66 {offsets = [0, 256], sizes = [2, 48], strides = [1, 1]} : vector<2x512xf32> to vector<2x48xf32>
    %80 = math.tanh %79 : vector<2x48xf32>
    %81 = vector.extract_strided_slice %66 {offsets = [0, 384], sizes = [2, 48], strides = [1, 1]} : vector<2x512xf32> to vector<2x48xf32>
    %82 = arith.negf %81 : vector<2x48xf32>
    %83 = math.exp %82 : vector<2x48xf32>
    %cst_18 = arith.constant 1.000000e+00 : f32
    %84 = vector.broadcast %cst_18 : f32 to vector<2x48xf32>
    %85 = arith.addf %84, %83 : vector<2x48xf32>
    %86 = arith.divf %84, %85 : vector<2x48xf32>
    %87 = arith.mulf %78, %59 : vector<2x48xf32>
    %88 = arith.mulf %72, %80 : vector<2x48xf32>
    %89 = arith.addf %87, %88 : vector<2x48xf32>
    %90 = math.tanh %89 : vector<2x48xf32>
    %91 = arith.mulf %86, %90 : vector<2x48xf32>
    %c3_i32 = arith.constant 3 : i32
    %92 = arith.index_cast %c3_i32 : i32 to index
    %c0_19 = arith.constant 0 : index
    %c0_20 = arith.constant 0 : index
    %93 = vector.load %arg0[%92, %c0_19, %c0_20] : memref<4x2x512xf32, #tpu.memory_space<vmem>>, vector<1x2x512xf32>
    %94 = vector.shape_cast %93 : vector<1x2x512xf32> to vector<2x512xf32>
    %cst_21 = arith.constant dense<0.000000e+00> : vector<2x512xf32>
    %95 = tpu.matmul %91, %0, %cst_21 {dimension_numbers = #tpu.dot_dimension_numbers<[1], [0], [0], [1], [0, 0, 1, 1], [], []>} : vector<2x48xf32>, vector<48x512xf32>, vector<2x512xf32> -> vector<2x512xf32>
    %96 = arith.addf %94, %95 : vector<2x512xf32>
    %97 = vector.extract_strided_slice %96 {offsets = [0, 0], sizes = [2, 48], strides = [1, 1]} : vector<2x512xf32> to vector<2x48xf32>
    %98 = arith.negf %97 : vector<2x48xf32>
    %99 = math.exp %98 : vector<2x48xf32>
    %cst_22 = arith.constant 1.000000e+00 : f32
    %100 = vector.broadcast %cst_22 : f32 to vector<2x48xf32>
    %101 = arith.addf %100, %99 : vector<2x48xf32>
    %102 = arith.divf %100, %101 : vector<2x48xf32>
    %103 = vector.extract_strided_slice %96 {offsets = [0, 128], sizes = [2, 48], strides = [1, 1]} : vector<2x512xf32> to vector<2x48xf32>
    %104 = arith.negf %103 : vector<2x48xf32>
    %105 = math.exp %104 : vector<2x48xf32>
    %cst_23 = arith.constant 1.000000e+00 : f32
    %106 = vector.broadcast %cst_23 : f32 to vector<2x48xf32>
    %107 = arith.addf %106, %105 : vector<2x48xf32>
    %108 = arith.divf %106, %107 : vector<2x48xf32>
    %109 = vector.extract_strided_slice %96 {offsets = [0, 256], sizes = [2, 48], strides = [1, 1]} : vector<2x512xf32> to vector<2x48xf32>
    %110 = math.tanh %109 : vector<2x48xf32>
    %111 = vector.extract_strided_slice %96 {offsets = [0, 384], sizes = [2, 48], strides = [1, 1]} : vector<2x512xf32> to vector<2x48xf32>
    %112 = arith.negf %111 : vector<2x48xf32>
    %113 = math.exp %112 : vector<2x48xf32>
    %cst_24 = arith.constant 1.000000e+00 : f32
    %114 = vector.broadcast %cst_24 : f32 to vector<2x48xf32>
    %115 = arith.addf %114, %113 : vector<2x48xf32>
    %116 = arith.divf %114, %115 : vector<2x48xf32>
    %117 = arith.mulf %108, %89 : vector<2x48xf32>
    %118 = arith.mulf %102, %110 : vector<2x48xf32>
    %119 = arith.addf %117, %118 : vector<2x48xf32>
    %120 = math.tanh %119 : vector<2x48xf32>
    %121 = arith.mulf %116, %120 : vector<2x48xf32>
    %c4_i32 = arith.constant 4 : i32
    %c0_25 = arith.constant 0 : index
    %c0_26 = arith.constant 0 : index
    %122 = vector.load %arg2[%c0_25, %c0_26] : memref<2x512xf32, #tpu.memory_space<vmem>>, vector<2x512xf32>
    %123 = vector.extract_strided_slice %122 {offsets = [0, 0], sizes = [2, 48], strides = [1, 1]} : vector<2x512xf32> to vector<2x48xf32>
    %124 = arith.negf %123 : vector<2x48xf32>
    %125 = math.exp %124 : vector<2x48xf32>
    %cst_27 = arith.constant 1.000000e+00 : f32
    %126 = vector.broadcast %cst_27 : f32 to vector<2x48xf32>
    %127 = arith.addf %126, %125 : vector<2x48xf32>
    %128 = arith.divf %126, %127 : vector<2x48xf32>
    %129 = vector.extract_strided_slice %122 {offsets = [0, 256], sizes = [2, 48], strides = [1, 1]} : vector<2x512xf32> to vector<2x48xf32>
    %130 = math.tanh %129 : vector<2x48xf32>
    %131 = vector.extract_strided_slice %122 {offsets = [0, 384], sizes = [2, 48], strides = [1, 1]} : vector<2x512xf32> to vector<2x48xf32>
    %132 = arith.negf %131 : vector<2x48xf32>
    %133 = math.exp %132 : vector<2x48xf32>
    %cst_28 = arith.constant 1.000000e+00 : f32
    %134 = vector.broadcast %cst_28 : f32 to vector<2x48xf32>
    %135 = arith.addf %134, %133 : vector<2x48xf32>
    %136 = arith.divf %134, %135 : vector<2x48xf32>
    %137 = arith.mulf %128, %130 : vector<2x48xf32>
    %138 = math.tanh %137 : vector<2x48xf32>
    %139 = arith.mulf %136, %138 : vector<2x48xf32>
    %c0_29 = arith.constant 0 : index
    %c0_30 = arith.constant 0 : index
    %c0_31 = arith.constant 0 : index
    %140 = vector.load %arg3[%c0_29, %c0_30, %c0_31] : memref<2x48x4xf32, #tpu.memory_space<vmem>>, vector<1x48x4xf32>
    %141 = vector.shape_cast %140 : vector<1x48x4xf32> to vector<48x4xf32>
    %cst_32 = arith.constant dense<0.000000e+00> : vector<2x4xf32>
    %142 = tpu.matmul %121, %141, %cst_32 {dimension_numbers = #tpu.dot_dimension_numbers<[1], [0], [0], [1], [0, 0, 1, 1], [], []>} : vector<2x48xf32>, vector<48x4xf32>, vector<2x4xf32> -> vector<2x4xf32>
    %c1 = arith.constant 1 : index
    %c0_33 = arith.constant 0 : index
    %c0_34 = arith.constant 0 : index
    %143 = vector.load %arg3[%c1, %c0_33, %c0_34] : memref<2x48x4xf32, #tpu.memory_space<vmem>>, vector<1x48x4xf32>
    %144 = vector.shape_cast %143 : vector<1x48x4xf32> to vector<48x4xf32>
    %cst_35 = arith.constant dense<0.000000e+00> : vector<2x4xf32>
    %145 = tpu.matmul %139, %144, %cst_35 {dimension_numbers = #tpu.dot_dimension_numbers<[1], [0], [0], [1], [0, 0, 1, 1], [], []>} : vector<2x48xf32>, vector<48x4xf32>, vector<2x4xf32> -> vector<2x4xf32>
    %146 = arith.addf %142, %145 : vector<2x4xf32>
    %c0_36 = arith.constant 0 : index
    %c0_37 = arith.constant 0 : index
    %147 = vector.load %arg4[%c0_36, %c0_37] : memref<1x4xf32, #tpu.memory_space<vmem>>, vector<1x4xf32>
    %148 = vector.broadcast %147 : vector<1x4xf32> to vector<2x4xf32>
    %149 = arith.addf %146, %148 : vector<2x4xf32>
    %cst_38 = arith.constant dense<0xFF800000> : vector<2xf32>
    %150 = vector.multi_reduction <maximumf>, %149, %cst_38 [1] : vector<2x4xf32> to vector<2xf32>
    %151 = vector.shape_cast %150 : vector<2xf32> to vector<2x1xf32>
    %152 = vector.broadcast %151 : vector<2x1xf32> to vector<2x4xf32>
    %153 = arith.subf %149, %152 : vector<2x4xf32>
    %154 = math.exp %153 : vector<2x4xf32>
    %cst_39 = arith.constant dense<0.000000e+00> : vector<2xf32>
    %155 = vector.multi_reduction <add>, %154, %cst_39 [1] : vector<2x4xf32> to vector<2xf32>
    %156 = vector.shape_cast %155 : vector<2xf32> to vector<2x1xf32>
    %157 = math.log %156 : vector<2x1xf32>
    %158 = vector.broadcast %157 : vector<2x1xf32> to vector<2x4xf32>
    %159 = arith.subf %153, %158 : vector<2x4xf32>
    %c0_40 = arith.constant 0 : index
    %c0_41 = arith.constant 0 : index
    %160 = vector.load %arg5[%c0_40, %c0_41] : memref<2x4xf32, #tpu.memory_space<vmem>>, vector<2x4xf32>
    tpu.vector_store %arg5[%c0_40, %c0_41], %159 {strides = array<i32>} : memref<2x4xf32, #tpu.memory_space<vmem>>, vector<2x4xf32>,
    return
  }
}

</mosaic_0001>

<llo_original>
// kernel: vr_pct_forward.14
$region0: #{vr_pct_forward.14}
  #allocation0 [shape = 'u32[]', space=smem, size = 0x4, offset = 0x4, fixed_abs, tag = 'smem constant byte address 0x4 - core index']
  #allocation1 [shape = 'u32[144,128]{1,0:T(1,128)}', space=vmem, size = 0x12000, scoped, tag = 'internal scratch']
  %s0 = inlined_call_operand.vmem [shape: f32[2,8,48], index: 0, kind: input, shape index: {}]
  %s1 = inlined_call_operand.vmem [shape: f32[2,2,48,512], index: 1, kind: input, shape index: {}]
  %s2 = inlined_call_operand.vmem [shape: f32[2,1,512], index: 2, kind: input, shape index: {}]
  %s3 = inlined_call_operand.vmem [shape: f32[2,8,512], index: 3, kind: output, shape index: {}]
  %s4 = sld [smem:[#allocation0]]
  $region22: #{vr_pct_forward.14} parent=0
    _
  %s6 = ssub.s32 1, %s4
  %s7 = scalar_select 0, %s6, %s4
  // Predicated region
  $region2: #{vr_pct_forward.14} parent=0 // pred_check
    _
  $region3: #{vr_pct_forward.14} parent=0 // pred_check_branch
    %9 = sbr.rel (0) target = $region5
  $region4: #{vr_pct_forward.14} parent=0 // pred_region
    _
  $region5: #{vr_pct_forward.14} parent=0 // pred_fallthru
    _
  // Predicated region
  $region6: #{vr_pct_forward.14} parent=0 // pred_check
    _
  $region7: #{vr_pct_forward.14} parent=0 // pred_check_branch
    %11 = sbr.rel (0) target = $region9
  $region8: #{vr_pct_forward.14} parent=0 // pred_region
    _
  $region9: #{vr_pct_forward.14} parent=0 // pred_fallthru
    _
  // Predicated region
  $region10: #{vr_pct_forward.14} parent=0 // pred_check
    _
  $region11: #{vr_pct_forward.14} parent=0 // pred_check_branch
    %13 = sbr.rel (0) target = $region13
  $region12: #{vr_pct_forward.14} parent=0 // pred_region
    _
  $region13: #{vr_pct_forward.14} parent=0 // pred_fallthru
    _
  %v14 = vld [vmem:[%s0] sm:$0xff]
  %s15 = scalar_lea.vmem %s0, 8
  %v16 = vld [vmem:[%s15] sm:$0xff]
  %v17 = vld [vmem:[%s1] sm:$0xff]
  %v18 = vld [vmem:[%s1 + $0x8] sm:$0xff]
  %v19 = vld [vmem:[%s1 + $0x10] sm:$0xff]
  %v20 = vld [vmem:[%s1 + $0x18] sm:$0xff]
  %v21 = vld [vmem:[%s1 + $0x20] sm:$0xff]
  %v22 = vld [vmem:[%s1 + $0x28] sm:$0xff]
  %v23 = vld [vmem:[%s1 + $0x30] sm:$0xff]
  %v24 = vld [vmem:[%s1 + $0x38] sm:$0xff]
  %v25 = vld [vmem:[%s1 + $0x40] sm:$0xff]
  %v26 = vld [vmem:[%s1 + $0x48] sm:$0xff]
  %v27 = vld [vmem:[%s1 + $0x50] sm:$0xff]
  %v28 = vld [vmem:[%s1 + $0x58] sm:$0xff]
  %v29 = vld [vmem:[%s1 + $0x60] sm:$0xff]
  %v30 = vld [vmem:[%s1 + $0x68] sm:$0xff]
  %v31 = vld [vmem:[%s1 + $0x70] sm:$0xff]
  %v32 = vld [vmem:[%s1 + $0x78] sm:$0xff]
  %v33 = vld [vmem:[%s1 + $0x80] sm:$0xff]
  %v34 = vld [vmem:[%s1 + $0x88] sm:$0xff]
  %v35 = vld [vmem:[%s1 + $0x90] sm:$0xff]
  %v36 = vld [vmem:[%s1 + $0x98] sm:$0xff]
  %v37 = vld [vmem:[%s1 + $0xa0] sm:$0xff]
  %v38 = vld [vmem:[%s1 + $0xa8] sm:$0xff]
  %v39 = vld [vmem:[%s1 + $0xb0] sm:$0xff]
  %v40 = vld [vmem:[%s1 + $0xb8] sm:$0xff]
  %s41 = scalar_lea.vmem %s1, 192
  %v42 = vld [vmem:[%s41] sm:$0xff]
  %v43 = vld [vmem:[%s41 + $0x8] sm:$0xff]
  %v44 = vld [vmem:[%s41 + $0x10] sm:$0xff]
  %v45 = vld [vmem:[%s41 + $0x18] sm:$0xff]
  %v46 = vld [vmem:[%s41 + $0x20] sm:$0xff]
  %v47 = vld [vmem:[%s41 + $0x28] sm:$0xff]
  %v48 = vld [vmem:[%s41 + $0x30] sm:$0xff]
  %v49 = vld [vmem:[%s41 + $0x38] sm:$0xff]
  %v50 = vld [vmem:[%s41 + $0x40] sm:$0xff]
  %v51 = vld [vmem:[%s41 + $0x48] sm:$0xff]
  %v52 = vld [vmem:[%s41 + $0x50] sm:$0xff]
  %v53 = vld [vmem:[%s41 + $0x58] sm:$0xff]
  %v54 = vld [vmem:[%s41 + $0x60] sm:$0xff]
  %v55 = vld [vmem:[%s41 + $0x68] sm:$0xff]
  %v56 = vld [vmem:[%s41 + $0x70] sm:$0xff]
  %v57 = vld [vmem:[%s41 + $0x78] sm:$0xff]
  %v58 = vld [vmem:[%s41 + $0x80] sm:$0xff]
  %v59 = vld [vmem:[%s41 + $0x88] sm:$0xff]
  %v60 = vld [vmem:[%s41 + $0x90] sm:$0xff]
  %v61 = vld [vmem:[%s41 + $0x98] sm:$0xff]
  %v62 = vld [vmem:[%s41 + $0xa0] sm:$0xff]
  %v63 = vld [vmem:[%s41 + $0xa8] sm:$0xff]
  %v64 = vld [vmem:[%s41 + $0xb0] sm:$0xff]
  %v65 = vld [vmem:[%s41 + $0xb8] sm:$0xff]
  %vm66 = vcmask 392192
  %v68 = vsel %vm66, %v16, 0
  %70 = vmatprep.subr.mxu0 %v43
  %71 = vmatpush1.msra.mxu0 %v42
  %72 = vmatprep.subr.mxu0 %v47
  %73 = vmatpush1.msra.mxu0 %v46
  %74 = vmatprep.subr.mxu0 %v51
  %75 = vmatpush1.msra.mxu0 %v50
  %76 = vmatprep.subr.mxu0 %v55
  %77 = vmatpush1.msra.mxu0 %v54
  %78 = vmatprep.subr.mxu0 %v59
  %79 = vmatpush1.msra.mxu0 %v58
  %80 = vmatprep.subr.mxu0 %v63
  %81 = vmatpush1.msra.mxu0 %v62
  %82 = vmatprep.subr.mxu0 0.0
  %83 = vmatpush1.msra.mxu0 0.0
  %84 = vmatprep.subr.mxu0 0.0
  %85 = vmatpush1.msra.mxu0 0.0
  %86 = vmatprep.subr.mxu0 0.0
  %87 = vmatpush1.msra.mxu0 0.0
  %88 = vmatprep.subr.mxu0 0.0
  %89 = vmatpush1.msra.mxu0 0.0
  %90 = vmatprep.subr.mxu0 0.0
  %91 = vmatpush1.msra.mxu0 0.0
  %92 = vmatprep.subr.mxu0 0.0
  %93 = vmatpush1.msra.mxu0 0.0
  %94 = vmatprep.subr.mxu0 0.0
  %95 = vmatpush1.msra.mxu0 0.0
  %96 = vmatprep.subr.mxu0 0.0
  %97 = vmatpush1.msra.mxu0 0.0
  %98 = vmatprep.subr.mxu0 0.0
  %99 = vmatpush1.msra.mxu0 0.0
  %100 = vmatprep.subr.mxu0 0.0
  %101 = vmatpush1.msra.mxu0 0.0
  %102 = vmatprep.subr.mxu0 0.0
  %103 = vmatpush1.msra.mxu0 0.0
  %104 = vmatprep.subr.mxu0 0.0
  %105 = vmatpush1.msra.mxu0 0.0
  %106 = vmatprep.subr.mxu0 0.0
  %107 = vmatpush1.msra.mxu0 0.0
  %108 = vmatprep.subr.mxu0 0.0
  %109 = vmatpush1.msra.mxu0 0.0
  %110 = vmatprep.subr.mxu0 0.0
  %111 = vmatpush1.msra.mxu0 0.0
  %112 = vmatprep.subr.mxu0 0.0
  %113 = vmatpush1.msra.mxu0 0.0
  %114 = vmatprep.subr.mxu0 0.0
  %115 = vmatpush1.msra.mxu0 0.0
  %116 = vmatprep.subr.mxu0 0.0
  %117 = vmatpush1.msra.mxu0 0.0
  %118 = vmatprep.subr.mxu0 0.0
  %119 = vmatpush1.msra.mxu0 0.0
  %120 = vmatprep.subr.mxu0 0.0
  %121 = vmatpush1.msra.mxu0 0.0
  %122 = vmatprep.subr.mxu0 0.0
  %123 = vmatpush1.msra.mxu0 0.0
  %124 = vmatprep.subr.mxu0 0.0
  %125 = vmatpush1.msra.mxu0 0.0
  %126 = vmatprep.subr.mxu0 0.0
  %127 = vmatpush1.msra.mxu0 0.0
  %128 = vmatprep.subr.mxu0 0.0
  %129 = vmatpush1.msra.mxu0 0.0
  %130 = vmatprep.subr.mxu0 0.0
  %131 = vmatpush1.msra.mxu0 0.0
  %132 = vmatprep.subr.mxu0 0.0
  %133 = vmatpush1.msra.mxu0 0.0
  %134 = vmatprep.mubr.f32.mxu0 0.0
  %135 = vmatmul.mubr.f32.gmra.mrb[0].mxu0 %v68
  %v136 = vpop.f32.mrb[0].mxu0
  %v137 = vadd.f32 0.0, %v136
  %v138 = vpop.f32.mrb[0].mxu0
  %v139 = vadd.f32 0.0, %v138
  %140 = vdwg.mxu0
  %141 = vmatprep.subr.mxu0 %v45
  %142 = vmatpush1.msra.mxu0 %v44
  %143 = vmatprep.subr.mxu0 %v49
  %144 = vmatpush1.msra.mxu0 %v48
  %145 = vmatprep.subr.mxu0 %v53
  %146 = vmatpush1.msra.mxu0 %v52
  %147 = vmatprep.subr.mxu0 %v57
  %148 = vmatpush1.msra.mxu0 %v56
  %149 = vmatprep.subr.mxu0 %v61
  %150 = vmatpush1.msra.mxu0 %v60
  %151 = vmatprep.subr.mxu0 %v65
  %152 = vmatpush1.msra.mxu0 %v64
  %153 = vmatprep.subr.mxu0 0.0
  %154 = vmatpush1.msra.mxu0 0.0
  %155 = vmatprep.subr.mxu0 0.0
  %156 = vmatpush1.msra.mxu0 0.0
  %157 = vmatprep.subr.mxu0 0.0
  %158 = vmatpush1.msra.mxu0 0.0
  %159 = vmatprep.subr.mxu0 0.0
  %160 = vmatpush1.msra.mxu0 0.0
  %161 = vmatprep.subr.mxu0 0.0
  %162 = vmatpush1.msra.mxu0 0.0
  %163 = vmatprep.subr.mxu0 0.0
  %164 = vmatpush1.msra.mxu0 0.0
  %165 = vmatprep.subr.mxu0 0.0
  %166 = vmatpush1.msra.mxu0 0.0
  %167 = vmatprep.subr.mxu0 0.0
  %168 = vmatpush1.msra.mxu0 0.0
  %169 = vmatprep.subr.mxu0 0.0
  %170 = vmatpush1.msra.mxu0 0.0
  %171 = vmatprep.subr.mxu0 0.0
  %172 = vmatpush1.msra.mxu0 0.0
  %173 = vmatprep.subr.mxu0 0.0
  %174 = vmatpush1.msra.mxu0 0.0
  %175 = vmatprep.subr.mxu0 0.0
  %176 = vmatpush1.msra.mxu0 0.0
  %177 = vmatprep.subr.mxu0 0.0
  %178 = vmatpush1.msra.mxu0 0.0
  %179 = vmatprep.subr.mxu0 0.0
  %180 = vmatpush1.msra.mxu0 0.0
  %181 = vmatprep.subr.mxu0 0.0
  %182 = vmatpush1.msra.mxu0 0.0
  %183 = vmatprep.subr.mxu0 0.0
  %184 = vmatpush1.msra.mxu0 0.0
  %185 = vmatprep.subr.mxu0 0.0
  %186 = vmatpush1.msra.mxu0 0.0
  %187 = vmatprep.subr.mxu0 0.0
  %188 = vmatpush1.msra.mxu0 0.0
  %189 = vmatprep.subr.mxu0 0.0
  %190 = vmatpush1.msra.mxu0 0.0
  %191 = vmatprep.subr.mxu0 0.0
  %192 = vmatpush1.msra.mxu0 0.0
  %193 = vmatprep.subr.mxu0 0.0
  %194 = vmatpush1.msra.mxu0 0.0
  %195 = vmatprep.subr.mxu0 0.0
  %196 = vmatpush1.msra.mxu0 0.0
  %197 = vmatprep.subr.mxu0 0.0
  %198 = vmatpush1.msra.mxu0 0.0
  %199 = vmatprep.subr.mxu0 0.0
  %200 = vmatpush1.msra.mxu0 0.0
  %201 = vmatprep.subr.mxu0 0.0
  %202 = vmatpush1.msra.mxu0 0.0
  %203 = vmatprep.subr.mxu0 0.0
  %204 = vmatpush1.msra.mxu0 0.0
  %205 = vmatprep.mubr.f32.mxu0 0.0
  %206 = vmatmul.mubr.f32.gmra.mrb[0].mxu0 %v68
  %v207 = vpop.f32.mrb[0].mxu0
  %v208 = vadd.f32 0.0, %v207
  %v209 = vpop.f32.mrb[0].mxu0
  %v210 = vadd.f32 0.0, %v209
  %211 = vdwg.mxu0
  %v213 = vsel %vm66, %v14, 0
  %215 = vmatprep.subr.mxu0 %v18
  %216 = vmatpush1.msra.mxu0 %v17
  %217 = vmatprep.subr.mxu0 %v22
  %218 = vmatpush1.msra.mxu0 %v21
  %219 = vmatprep.subr.mxu0 %v26
  %220 = vmatpush1.msra.mxu0 %v25
  %221 = vmatprep.subr.mxu0 %v30
  %222 = vmatpush1.msra.mxu0 %v29
  %223 = vmatprep.subr.mxu0 %v34
  %224 = vmatpush1.msra.mxu0 %v33
  %225 = vmatprep.subr.mxu0 %v38
  %226 = vmatpush1.msra.mxu0 %v37
  %227 = vmatprep.subr.mxu0 0.0
  %228 = vmatpush1.msra.mxu0 0.0
  %229 = vmatprep.subr.mxu0 0.0
  %230 = vmatpush1.msra.mxu0 0.0
  %231 = vmatprep.subr.mxu0 0.0
  %232 = vmatpush1.msra.mxu0 0.0
  %233 = vmatprep.subr.mxu0 0.0
  %234 = vmatpush1.msra.mxu0 0.0
  %235 = vmatprep.subr.mxu0 0.0
  %236 = vmatpush1.msra.mxu0 0.0
  %237 = vmatprep.subr.mxu0 0.0
  %238 = vmatpush1.msra.mxu0 0.0
  %239 = vmatprep.subr.mxu0 0.0
  %240 = vmatpush1.msra.mxu0 0.0
  %241 = vmatprep.subr.mxu0 0.0
  %242 = vmatpush1.msra.mxu0 0.0
  %243 = vmatprep.subr.mxu0 0.0
  %244 = vmatpush1.msra.mxu0 0.0
  %245 = vmatprep.subr.mxu0 0.0
  %246 = vmatpush1.msra.mxu0 0.0
  %247 = vmatprep.subr.mxu0 0.0
  %248 = vmatpush1.msra.mxu0 0.0
  %249 = vmatprep.subr.mxu0 0.0
  %250 = vmatpush1.msra.mxu0 0.0
  %251 = vmatprep.subr.mxu0 0.0
  %252 = vmatpush1.msra.mxu0 0.0
  %253 = vmatprep.subr.mxu0 0.0
  %254 = vmatpush1.msra.mxu0 0.0
  %255 = vmatprep.subr.mxu0 0.0
  %256 = vmatpush1.msra.mxu0 0.0
  %257 = vmatprep.subr.mxu0 0.0
  %258 = vmatpush1.msra.mxu0 0.0
  %259 = vmatprep.subr.mxu0 0.0
  %260 = vmatpush1.msra.mxu0 0.0
  %261 = vmatprep.subr.mxu0 0.0
  %262 = vmatpush1.msra.mxu0 0.0
  %263 = vmatprep.subr.mxu0 0.0
  %264 = vmatpush1.msra.mxu0 0.0
  %265 = vmatprep.subr.mxu0 0.0
  %266 = vmatpush1.msra.mxu0 0.0
  %267 = vmatprep.subr.mxu0 0.0
  %268 = vmatpush1.msra.mxu0 0.0
  %269 = vmatprep.subr.mxu0 0.0
  %270 = vmatpush1.msra.mxu0 0.0
  %271 = vmatprep.subr.mxu0 0.0
  %272 = vmatpush1.msra.mxu0 0.0
  %273 = vmatprep.subr.mxu0 0.0
  %274 = vmatpush1.msra.mxu0 0.0
  %275 = vmatprep.subr.mxu0 0.0
  %276 = vmatpush1.msra.mxu0 0.0
  %277 = vmatprep.subr.mxu0 0.0
  %278 = vmatpush1.msra.mxu0 0.0
  %279 = vmatprep.mubr.f32.mxu0 0.0
  %280 = vmatmul.mubr.f32.gmra.mrb[0].mxu0 %v213
  %v281 = vpop.f32.mrb[0].mxu0
  %v282 = vadd.f32 %v137, %v281
  %v283 = vpop.f32.mrb[0].mxu0
  %v284 = vadd.f32 %v139, %v283
  %285 = vdwg.mxu0
  %286 = vmatprep.subr.mxu0 %v20
  %287 = vmatpush1.msra.mxu0 %v19
  %288 = vmatprep.subr.mxu0 %v24
  %289 = vmatpush1.msra.mxu0 %v23
  %290 = vmatprep.subr.mxu0 %v28
  %291 = vmatpush1.msra.mxu0 %v27
  %292 = vmatprep.subr.mxu0 %v32
  %293 = vmatpush1.msra.mxu0 %v31
  %294 = vmatprep.subr.mxu0 %v36
  %295 = vmatpush1.msra.mxu0 %v35
  %296 = vmatprep.subr.mxu0 %v40
  %297 = vmatpush1.msra.mxu0 %v39
  %298 = vmatprep.subr.mxu0 0.0
  %299 = vmatpush1.msra.mxu0 0.0
  %300 = vmatprep.subr.mxu0 0.0
  %301 = vmatpush1.msra.mxu0 0.0
  %302 = vmatprep.subr.mxu0 0.0
  %303 = vmatpush1.msra.mxu0 0.0
  %304 = vmatprep.subr.mxu0 0.0
  %305 = vmatpush1.msra.mxu0 0.0
  %306 = vmatprep.subr.mxu0 0.0
  %307 = vmatpush1.msra.mxu0 0.0
  %308 = vmatprep.subr.mxu0 0.0
  %309 = vmatpush1.msra.mxu0 0.0
  %310 = vmatprep.subr.mxu0 0.0
  %311 = vmatpush1.msra.mxu0 0.0
  %312 = vmatprep.subr.mxu0 0.0
  %313 = vmatpush1.msra.mxu0 0.0
  %314 = vmatprep.subr.mxu0 0.0
  %315 = vmatpush1.msra.mxu0 0.0
  %316 = vmatprep.subr.mxu0 0.0
  %317 = vmatpush1.msra.mxu0 0.0
  %318 = vmatprep.subr.mxu0 0.0
  %319 = vmatpush1.msra.mxu0 0.0
  %320 = vmatprep.subr.mxu0 0.0
  %321 = vmatpush1.msra.mxu0 0.0
  %322 = vmatprep.subr.mxu0 0.0
  %323 = vmatpush1.msra.mxu0 0.0
  %324 = vmatprep.subr.mxu0 0.0
  %325 = vmatpush1.msra.mxu0 0.0
  %326 = vmatprep.subr.mxu0 0.0
  %327 = vmatpush1.msra.mxu0 0.0
  %328 = vmatprep.subr.mxu0 0.0
  %329 = vmatpush1.msra.mxu0 0.0
  %330 = vmatprep.subr.mxu0 0.0
  %331 = vmatpush1.msra.mxu0 0.0
  %332 = vmatprep.subr.mxu0 0.0
  %333 = vmatpush1.msra.mxu0 0.0
  %334 = vmatprep.subr.mxu0 0.0
  %335 = vmatpush1.msra.mxu0 0.0
  %336 = vmatprep.subr.mxu0 0.0
  %337 = vmatpush1.msra.mxu0 0.0
  %338 = vmatprep.subr.mxu0 0.0
  %339 = vmatpush1.msra.mxu0 0.0
  %340 = vmatprep.subr.mxu0 0.0
  %341 = vmatpush1.msra.mxu0 0.0
  %342 = vmatprep.subr.mxu0 0.0
  %343 = vmatpush1.msra.mxu0 0.0
  %344 = vmatprep.subr.mxu0 0.0
  %345 = vmatpush1.msra.mxu0 0.0
  %346 = vmatprep.subr.mxu0 0.0
  %347 = vmatpush1.msra.mxu0 0.0
  %348 = vmatprep.subr.mxu0 0.0
  %349 = vmatpush1.msra.mxu0 0.0
  %350 = vmatprep.mubr.f32.mxu0 0.0
  %351 = vmatmul.mubr.f32.gmra.mrb[0].mxu0 %v213
  %v352 = vpop.f32.mrb[0].mxu0
  %v353 = vadd.f32 %v208, %v352
  %v354 = vpop.f32.mrb[0].mxu0
  %v355 = vadd.f32 %v210, %v354
  %356 = vdwg.mxu0
  %v357 = vld [vmem:[%s2] sm:$0xf]
  %v359 = vlaneseq
  %v360 = vshrl.u32 %v359, 7
  %v361 = vsub.s32 0, %v360
  %v362 = vrot.slane %v357, %v361
  %v363 = vlaneseq
  %v364 = vshrl.u32 %v363, 7
  %v365 = vsub.s32 1, %v364
  %v366 = vrot.slane %v357, %v365
  %v367 = vlaneseq
  %v368 = vshrl.u32 %v367, 7
  %v369 = vsub.s32 2, %v368
  %v370 = vrot.slane %v357, %v369
  %v371 = vlaneseq
  %v372 = vshrl.u32 %v371, 7
  %v373 = vsub.s32 3, %v372
  %v374 = vrot.slane %v357, %v373
  %v379 = vadd.f32 %v282, %v362
  %v380 = vadd.f32 %v284, %v366
  %v381 = vadd.f32 %v353, %v370
  %v382 = vadd.f32 %v355, %v374
  %383 = vst [vmem:[%s3] sm:$0xff] %v379
  %384 = vst [vmem:[%s3 + $0x8] sm:$0xff] %v380
  %385 = vst [vmem:[%s3 + $0x10] sm:$0xff] %v381
  %386 = vst [vmem:[%s3 + $0x18] sm:$0xff] %v382
  %s387 = scalar_lea.vmem %s1, 384
  %v388 = vld [vmem:[%s387] sm:$0xff]
  %v389 = vld [vmem:[%s387 + $0x8] sm:$0xff]
  %v390 = vld [vmem:[%s387 + $0x10] sm:$0xff]
  %v391 = vld [vmem:[%s387 + $0x18] sm:$0xff]
  %v392 = vld [vmem:[%s387 + $0x20] sm:$0xff]
  %v393 = vld [vmem:[%s387 + $0x28] sm:$0xff]
  %v394 = vld [vmem:[%s387 + $0x30] sm:$0xff]
  %v395 = vld [vmem:[%s387 + $0x38] sm:$0xff]
  %v396 = vld [vmem:[%s387 + $0x40] sm:$0xff]
  %v397 = vld [vmem:[%s387 + $0x48] sm:$0xff]
  %v398 = vld [vmem:[%s387 + $0x50] sm:$0xff]
  %v399 = vld [vmem:[%s387 + $0x58] sm:$0xff]
  %v400 = vld [vmem:[%s387 + $0x60] sm:$0xff]
  %v401 = vld [vmem:[%s387 + $0x68] sm:$0xff]
  %v402 = vld [vmem:[%s387 + $0x70] sm:$0xff]
  %v403 = vld [vmem:[%s387 + $0x78] sm:$0xff]
  %v404 = vld [vmem:[%s387 + $0x80] sm:$0xff]
  %v405 = vld [vmem:[%s387 + $0x88] sm:$0xff]
  %v406 = vld [vmem:[%s387 + $0x90] sm:$0xff]
  %v407 = vld [vmem:[%s387 + $0x98] sm:$0xff]
  %v408 = vld [vmem:[%s387 + $0xa0] sm:$0xff]
  %v409 = vld [vmem:[%s387 + $0xa8] sm:$0xff]
  %v410 = vld [vmem:[%s387 + $0xb0] sm:$0xff]
  %v411 = vld [vmem:[%s387 + $0xb8] sm:$0xff]
  %s412 = scalar_lea.vmem %s1, 576
  %v413 = vld [vmem:[%s412] sm:$0xff]
  %v414 = vld [vmem:[%s412 + $0x8] sm:$0xff]
  %v415 = vld [vmem:[%s412 + $0x10] sm:$0xff]
  %v416 = vld [vmem:[%s412 + $0x18] sm:$0xff]
  %v417 = vld [vmem:[%s412 + $0x20] sm:$0xff]
  %v418 = vld [vmem:[%s412 + $0x28] sm:$0xff]
  %v419 = vld [vmem:[%s412 + $0x30] sm:$0xff]
  %v420 = vld [vmem:[%s412 + $0x38] sm:$0xff]
  %v421 = vld [vmem:[%s412 + $0x40] sm:$0xff]
  %v422 = vld [vmem:[%s412 + $0x48] sm:$0xff]
  %v423 = vld [vmem:[%s412 + $0x50] sm:$0xff]
  %v424 = vld [vmem:[%s412 + $0x58] sm:$0xff]
  %v425 = vld [vmem:[%s412 + $0x60] sm:$0xff]
  %v426 = vld [vmem:[%s412 + $0x68] sm:$0xff]
  %v427 = vld [vmem:[%s412 + $0x70] sm:$0xff]
  %v428 = vld [vmem:[%s412 + $0x78] sm:$0xff]
  %v429 = vld [vmem:[%s412 + $0x80] sm:$0xff]
  %v430 = vld [vmem:[%s412 + $0x88] sm:$0xff]
  %v431 = vld [vmem:[%s412 + $0x90] sm:$0xff]
  %v432 = vld [vmem:[%s412 + $0x98] sm:$0xff]
  %v433 = vld [vmem:[%s412 + $0xa0] sm:$0xff]
  %v434 = vld [vmem:[%s412 + $0xa8] sm:$0xff]
  %v435 = vld [vmem:[%s412 + $0xb0] sm:$0xff]
  %v436 = vld [vmem:[%s412 + $0xb8] sm:$0xff]
  %437 = vmatprep.subr.mxu0 %v414
  %438 = vmatpush1.msra.mxu0 %v413
  %439 = vmatprep.subr.mxu0 %v418
  %440 = vmatpush1.msra.mxu0 %v417
  %441 = vmatprep.subr.mxu0 %v422
  %442 = vmatpush1.msra.mxu0 %v421
  %443 = vmatprep.subr.mxu0 %v426
  %444 = vmatpush1.msra.mxu0 %v425
  %445 = vmatprep.subr.mxu0 %v430
  %446 = vmatpush1.msra.mxu0 %v429
  %447 = vmatprep.subr.mxu0 %v434
  %448 = vmatpush1.msra.mxu0 %v433
  %449 = vmatprep.subr.mxu0 0.0
  %450 = vmatpush1.msra.mxu0 0.0
  %451 = vmatprep.subr.mxu0 0.0
  %452 = vmatpush1.msra.mxu0 0.0
  %453 = vmatprep.subr.mxu0 0.0
  %454 = vmatpush1.msra.mxu0 0.0
  %455 = vmatprep.subr.mxu0 0.0
  %456 = vmatpush1.msra.mxu0 0.0
  %457 = vmatprep.subr.mxu0 0.0
  %458 = vmatpush1.msra.mxu0 0.0
  %459 = vmatprep.subr.mxu0 0.0
  %460 = vmatpush1.msra.mxu0 0.0
  %461 = vmatprep.subr.mxu0 0.0
  %462 = vmatpush1.msra.mxu0 0.0
  %463 = vmatprep.subr.mxu0 0.0
  %464 = vmatpush1.msra.mxu0 0.0
  %465 = vmatprep.subr.mxu0 0.0
  %466 = vmatpush1.msra.mxu0 0.0
  %467 = vmatprep.subr.mxu0 0.0
  %468 = vmatpush1.msra.mxu0 0.0
  %469 = vmatprep.subr.mxu0 0.0
  %470 = vmatpush1.msra.mxu0 0.0
  %471 = vmatprep.subr.mxu0 0.0
  %472 = vmatpush1.msra.mxu0 0.0
  %473 = vmatprep.subr.mxu0 0.0
  %474 = vmatpush1.msra.mxu0 0.0
  %475 = vmatprep.subr.mxu0 0.0
  %476 = vmatpush1.msra.mxu0 0.0
  %477 = vmatprep.subr.mxu0 0.0
  %478 = vmatpush1.msra.mxu0 0.0
  %479 = vmatprep.subr.mxu0 0.0
  %480 = vmatpush1.msra.mxu0 0.0
  %481 = vmatprep.subr.mxu0 0.0
  %482 = vmatpush1.msra.mxu0 0.0
  %483 = vmatprep.subr.mxu0 0.0
  %484 = vmatpush1.msra.mxu0 0.0
  %485 = vmatprep.subr.mxu0 0.0
  %486 = vmatpush1.msra.mxu0 0.0
  %487 = vmatprep.subr.mxu0 0.0
  %488 = vmatpush1.msra.mxu0 0.0
  %489 = vmatprep.subr.mxu0 0.0
  %490 = vmatpush1.msra.mxu0 0.0
  %491 = vmatprep.subr.mxu0 0.0
  %492 = vmatpush1.msra.mxu0 0.0
  %493 = vmatprep.subr.mxu0 0.0
  %494 = vmatpush1.msra.mxu0 0.0
  %495 = vmatprep.subr.mxu0 0.0
  %496 = vmatpush1.msra.mxu0 0.0
  %497 = vmatprep.subr.mxu0 0.0
  %498 = vmatpush1.msra.mxu0 0.0
  %499 = vmatprep.subr.mxu0 0.0
  %500 = vmatpush1.msra.mxu0 0.0
  %501 = vmatprep.mubr.f32.mxu0 0.0
  %502 = vmatmul.mubr.f32.gmra.mrb[0].mxu0 %v68
  %v503 = vpop.f32.mrb[0].mxu0
  %v504 = vadd.f32 0.0, %v503
  %v505 = vpop.f32.mrb[0].mxu0
  %v506 = vadd.f32 0.0, %v505
  %507 = vdwg.mxu0
  %508 = vmatprep.subr.mxu0 %v416
  %509 = vmatpush1.msra.mxu0 %v415
  %510 = vmatprep.subr.mxu0 %v420
  %511 = vmatpush1.msra.mxu0 %v419
  %512 = vmatprep.subr.mxu0 %v424
  %513 = vmatpush1.msra.mxu0 %v423
  %514 = vmatprep.subr.mxu0 %v428
  %515 = vmatpush1.msra.mxu0 %v427
  %516 = vmatprep.subr.mxu0 %v432
  %517 = vmatpush1.msra.mxu0 %v431
  %518 = vmatprep.subr.mxu0 %v436
  %519 = vmatpush1.msra.mxu0 %v435
  %520 = vmatprep.subr.mxu0 0.0
  %521 = vmatpush1.msra.mxu0 0.0
  %522 = vmatprep.subr.mxu0 0.0
  %523 = vmatpush1.msra.mxu0 0.0
  %524 = vmatprep.subr.mxu0 0.0
  %525 = vmatpush1.msra.mxu0 0.0
  %526 = vmatprep.subr.mxu0 0.0
  %527 = vmatpush1.msra.mxu0 0.0
  %528 = vmatprep.subr.mxu0 0.0
  %529 = vmatpush1.msra.mxu0 0.0
  %530 = vmatprep.subr.mxu0 0.0
  %531 = vmatpush1.msra.mxu0 0.0
  %532 = vmatprep.subr.mxu0 0.0
  %533 = vmatpush1.msra.mxu0 0.0
  %534 = vmatprep.subr.mxu0 0.0
  %535 = vmatpush1.msra.mxu0 0.0
  %536 = vmatprep.subr.mxu0 0.0
  %537 = vmatpush1.msra.mxu0 0.0
  %538 = vmatprep.subr.mxu0 0.0
  %539 = vmatpush1.msra.mxu0 0.0
  %540 = vmatprep.subr.mxu0 0.0
  %541 = vmatpush1.msra.mxu0 0.0
  %542 = vmatprep.subr.mxu0 0.0
  %543 = vmatpush1.msra.mxu0 0.0
  %544 = vmatprep.subr.mxu0 0.0
  %545 = vmatpush1.msra.mxu0 0.0
  %546 = vmatprep.subr.mxu0 0.0
  %547 = vmatpush1.msra.mxu0 0.0
  %548 = vmatprep.subr.mxu0 0.0
  %549 = vmatpush1.msra.mxu0 0.0
  %550 = vmatprep.subr.mxu0 0.0
  %551 = vmatpush1.msra.mxu0 0.0
  %552 = vmatprep.subr.mxu0 0.0
  %553 = vmatpush1.msra.mxu0 0.0
  %554 = vmatprep.subr.mxu0 0.0
  %555 = vmatpush1.msra.mxu0 0.0
  %556 = vmatprep.subr.mxu0 0.0
  %557 = vmatpush1.msra.mxu0 0.0
  %558 = vmatprep.subr.mxu0 0.0
  %559 = vmatpush1.msra.mxu0 0.0
  %560 = vmatprep.subr.mxu0 0.0
  %561 = vmatpush1.msra.mxu0 0.0
  %562 = vmatprep.subr.mxu0 0.0
  %563 = vmatpush1.msra.mxu0 0.0
  %564 = vmatprep.subr.mxu0 0.0
  %565 = vmatpush1.msra.mxu0 0.0
  %566 = vmatprep.subr.mxu0 0.0
  %567 = vmatpush1.msra.mxu0 0.0
  %568 = vmatprep.subr.mxu0 0.0
  %569 = vmatpush1.msra.mxu0 0.0
  %570 = vmatprep.subr.mxu0 0.0
  %571 = vmatpush1.msra.mxu0 0.0
  %572 = vmatprep.mubr.f32.mxu0 0.0
  %573 = vmatmul.mubr.f32.gmra.mrb[0].mxu0 %v68
  %v574 = vpop.f32.mrb[0].mxu0
  %v575 = vadd.f32 0.0, %v574
  %v576 = vpop.f32.mrb[0].mxu0
  %v577 = vadd.f32 0.0, %v576
  %578 = vdwg.mxu0
  %579 = vmatprep.subr.mxu0 %v389
  %580 = vmatpush1.msra.mxu0 %v388
  %581 = vmatprep.subr.mxu0 %v393
  %582 = vmatpush1.msra.mxu0 %v392
  %583 = vmatprep.subr.mxu0 %v397
  %584 = vmatpush1.msra.mxu0 %v396
  %585 = vmatprep.subr.mxu0 %v401
  %586 = vmatpush1.msra.mxu0 %v400
  %587 = vmatprep.subr.mxu0 %v405
  %588 = vmatpush1.msra.mxu0 %v404
  %589 = vmatprep.subr.mxu0 %v409
  %590 = vmatpush1.msra.mxu0 %v408
  %591 = vmatprep.subr.mxu0 0.0
  %592 = vmatpush1.msra.mxu0 0.0
  %593 = vmatprep.subr.mxu0 0.0
  %594 = vmatpush1.msra.mxu0 0.0
  %595 = vmatprep.subr.mxu0 0.0
  %596 = vmatpush1.msra.mxu0 0.0
  %597 = vmatprep.subr.mxu0 0.0
  %598 = vmatpush1.msra.mxu0 0.0
  %599 = vmatprep.subr.mxu0 0.0
  %600 = vmatpush1.msra.mxu0 0.0
  %601 = vmatprep.subr.mxu0 0.0
  %602 = vmatpush1.msra.mxu0 0.0
  %603 = vmatprep.subr.mxu0 0.0
  %604 = vmatpush1.msra.mxu0 0.0
  %605 = vmatprep.subr.mxu0 0.0
  %606 = vmatpush1.msra.mxu0 0.0
  %607 = vmatprep.subr.mxu0 0.0
  %608 = vmatpush1.msra.mxu0 0.0
  %609 = vmatprep.subr.mxu0 0.0
  %610 = vmatpush1.msra.mxu0 0.0
  %611 = vmatprep.subr.mxu0 0.0
  %612 = vmatpush1.msra.mxu0 0.0
  %613 = vmatprep.subr.mxu0 0.0
  %614 = vmatpush1.msra.mxu0 0.0
  %615 = vmatprep.subr.mxu0 0.0
  %616 = vmatpush1.msra.mxu0 0.0
  %617 = vmatprep.subr.mxu0 0.0
  %618 = vmatpush1.msra.mxu0 0.0
  %619 = vmatprep.subr.mxu0 0.0
  %620 = vmatpush1.msra.mxu0 0.0
  %621 = vmatprep.subr.mxu0 0.0
  %622 = vmatpush1.msra.mxu0 0.0
  %623 = vmatprep.subr.mxu0 0.0
  %624 = vmatpush1.msra.mxu0 0.0
  %625 = vmatprep.subr.mxu0 0.0
  %626 = vmatpush1.msra.mxu0 0.0
  %627 = vmatprep.subr.mxu0 0.0
  %628 = vmatpush1.msra.mxu0 0.0
  %629 = vmatprep.subr.mxu0 0.0
  %630 = vmatpush1.msra.mxu0 0.0
  %631 = vmatprep.subr.mxu0 0.0
  %632 = vmatpush1.msra.mxu0 0.0
  %633 = vmatprep.subr.mxu0 0.0
  %634 = vmatpush1.msra.mxu0 0.0
  %635 = vmatprep.subr.mxu0 0.0
  %636 = vmatpush1.msra.mxu0 0.0
  %637 = vmatprep.subr.mxu0 0.0
  %638 = vmatpush1.msra.mxu0 0.0
  %639 = vmatprep.subr.mxu0 0.0
  %640 = vmatpush1.msra.mxu0 0.0
  %641 = vmatprep.subr.mxu0 0.0
  %642 = vmatpush1.msra.mxu0 0.0
  %643 = vmatprep.mubr.f32.mxu0 0.0
  %644 = vmatmul.mubr.f32.gmra.mrb[0].mxu0 %v213
  %v645 = vpop.f32.mrb[0].mxu0
  %v646 = vadd.f32 %v504, %v645
  %v647 = vpop.f32.mrb[0].mxu0
  %v648 = vadd.f32 %v506, %v647
  %649 = vdwg.mxu0
  %650 = vmatprep.subr.mxu0 %v391
  %651 = vmatpush1.msra.mxu0 %v390
  %652 = vmatprep.subr.mxu0 %v395
  %653 = vmatpush1.msra.mxu0 %v394
  %654 = vmatprep.subr.mxu0 %v399
  %655 = vmatpush1.msra.mxu0 %v398
  %656 = vmatprep.subr.mxu0 %v403
  %657 = vmatpush1.msra.mxu0 %v402
  %658 = vmatprep.subr.mxu0 %v407
  %659 = vmatpush1.msra.mxu0 %v406
  %660 = vmatprep.subr.mxu0 %v411
  %661 = vmatpush1.msra.mxu0 %v410
  %662 = vmatprep.subr.mxu0 0.0
  %663 = vmatpush1.msra.mxu0 0.0
  %664 = vmatprep.subr.mxu0 0.0
  %665 = vmatpush1.msra.mxu0 0.0
  %666 = vmatprep.subr.mxu0 0.0
  %667 = vmatpush1.msra.mxu0 0.0
  %668 = vmatprep.subr.mxu0 0.0
  %669 = vmatpush1.msra.mxu0 0.0
  %670 = vmatprep.subr.mxu0 0.0
  %671 = vmatpush1.msra.mxu0 0.0
  %672 = vmatprep.subr.mxu0 0.0
  %673 = vmatpush1.msra.mxu0 0.0
  %674 = vmatprep.subr.mxu0 0.0
  %675 = vmatpush1.msra.mxu0 0.0
  %676 = vmatprep.subr.mxu0 0.0
  %677 = vmatpush1.msra.mxu0 0.0
  %678 = vmatprep.subr.mxu0 0.0
  %679 = vmatpush1.msra.mxu0 0.0
  %680 = vmatprep.subr.mxu0 0.0
  %681 = vmatpush1.msra.mxu0 0.0
  %682 = vmatprep.subr.mxu0 0.0
  %683 = vmatpush1.msra.mxu0 0.0
  %684 = vmatprep.subr.mxu0 0.0
  %685 = vmatpush1.msra.mxu0 0.0
  %686 = vmatprep.subr.mxu0 0.0
  %687 = vmatpush1.msra.mxu0 0.0
  %688 = vmatprep.subr.mxu0 0.0
  %689 = vmatpush1.msra.mxu0 0.0
  %690 = vmatprep.subr.mxu0 0.0
  %691 = vmatpush1.msra.mxu0 0.0
  %692 = vmatprep.subr.mxu0 0.0
  %693 = vmatpush1.msra.mxu0 0.0
  %694 = vmatprep.subr.mxu0 0.0
  %695 = vmatpush1.msra.mxu0 0.0
  %696 = vmatprep.subr.mxu0 0.0
  %697 = vmatpush1.msra.mxu0 0.0
  %698 = vmatprep.subr.mxu0 0.0
  %699 = vmatpush1.msra.mxu0 0.0
  %700 = vmatprep.subr.mxu0 0.0
  %701 = vmatpush1.msra.mxu0 0.0
  %702 = vmatprep.subr.mxu0 0.0
  %703 = vmatpush1.msra.mxu0 0.0
  %704 = vmatprep.subr.mxu0 0.0
  %705 = vmatpush1.msra.mxu0 0.0
  %706 = vmatprep.subr.mxu0 0.0
  %707 = vmatpush1.msra.mxu0 0.0
  %708 = vmatprep.subr.mxu0 0.0
  %709 = vmatpush1.msra.mxu0 0.0
  %710 = vmatprep.subr.mxu0 0.0
  %711 = vmatpush1.msra.mxu0 0.0
  %712 = vmatprep.subr.mxu0 0.0
  %713 = vmatpush1.msra.mxu0 0.0
  %714 = vmatprep.mubr.f32.mxu0 0.0
  %715 = vmatmul.mubr.f32.gmra.mrb[0].mxu0 %v213
  %v716 = vpop.f32.mrb[0].mxu0
  %v717 = vadd.f32 %v575, %v716
  %v718 = vpop.f32.mrb[0].mxu0
  %v719 = vadd.f32 %v577, %v718
  %720 = vdwg.mxu0
  %s721 = scalar_lea.vmem %s2, 4
  %v722 = vld [vmem:[%s721] sm:$0xf]
  %v724 = vlaneseq
  %v725 = vshrl.u32 %v724, 7
  %v726 = vsub.s32 0, %v725
  %v727 = vrot.slane %v722, %v726
  %v728 = vlaneseq
  %v729 = vshrl.u32 %v728, 7
  %v730 = vsub.s32 1, %v729
  %v731 = vrot.slane %v722, %v730
  %v732 = vlaneseq
  %v733 = vshrl.u32 %v732, 7
  %v734 = vsub.s32 2, %v733
  %v735 = vrot.slane %v722, %v734
  %v736 = vlaneseq
  %v737 = vshrl.u32 %v736, 7
  %v738 = vsub.s32 3, %v737
  %v739 = vrot.slane %v722, %v738
  %v744 = vadd.f32 %v646, %v727
  %v745 = vadd.f32 %v648, %v731
  %v746 = vadd.f32 %v717, %v735
  %v747 = vadd.f32 %v719, %v739
  %s748 = scalar_lea.vmem %s3, 32
  %749 = vst [vmem:[%s748] sm:$0xff] %v744
  %750 = vst [vmem:[%s748 + $0x8] sm:$0xff] %v745
  %751 = vst [vmem:[%s748 + $0x10] sm:$0xff] %v746
  %752 = vst [vmem:[%s748 + $0x18] sm:$0xff] %v747
  // Predicated region
  $region14: #{vr_pct_forward.14} parent=0 // pred_check
    _
  $region15: #{vr_pct_forward.14} parent=0 // pred_check_branch
    %754 = sbr.rel (0) target = $region17
  $region16: #{vr_pct_forward.14} parent=0 // pred_region
    _
  $region17: #{vr_pct_forward.14} parent=0 // pred_fallthru
    _
  // Predicated region
  $region18: #{vr_pct_forward.14} parent=0 // pred_check
    _
  $region19: #{vr_pct_forward.14} parent=0 // pred_check_branch
    %756 = sbr.rel (0) target = $region21
  $region20: #{vr_pct_forward.14} parent=0 // pred_region
    _
  $region21: #{vr_pct_forward.14} parent=0 // pred_fallthru
    _

// kernel: vr_pct_forward.12
$region0: #{vr_pct_forward.12}
  #allocation0 [shape = 'u32[]', space=smem, size = 0x4, offset = 0x4, fixed_abs, tag = 'smem constant byte address 0x4 - core index']
  #allocation1 [shape = 'u32[144,128]{1,0:T(1,128)}', space=vmem, size = 0x12000, scoped, tag = 'internal scratch']
  %s0 = inlined_call_operand.vmem [shape: f32[8,96], index: 0, kind: input, shape index: {}]
  %s1 = inlined_call_operand.vmem [shape: f32[2,96,512], index: 1, kind: input, shape index: {}]
  %s2 = inlined_call_operand.vmem [shape: f32[2,1,512], index: 2, kind: input, shape index: {}]
  %s3 = inlined_call_operand.vmem [shape: f32[2,8,512], index: 3, kind: output, shape index: {}]
  %s4 = sld [smem:[#allocation0]]
  $region22: #{vr_pct_forward.12} parent=0
    _
  %s6 = ssub.s32 1, %s4
  %s7 = scalar_select 0, %s6, %s4
  // Predicated region
  $region2: #{vr_pct_forward.12} parent=0 // pred_check
    _
  $region3: #{vr_pct_forward.12} parent=0 // pred_check_branch
    %9 = sbr.rel (0) target = $region5
  $region4: #{vr_pct_forward.12} parent=0 // pred_region
    _
  $region5: #{vr_pct_forward.12} parent=0 // pred_fallthru
    _
  // Predicated region
  $region6: #{vr_pct_forward.12} parent=0 // pred_check
    _
  $region7: #{vr_pct_forward.12} parent=0 // pred_check_branch
    %11 = sbr.rel (0) target = $region9
  $region8: #{vr_pct_forward.12} parent=0 // pred_region
    _
  $region9: #{vr_pct_forward.12} parent=0 // pred_fallthru
    _
  // Predicated region
  $region10: #{vr_pct_forward.12} parent=0 // pred_check
    _
  $region11: #{vr_pct_forward.12} parent=0 // pred_check_branch
    %13 = sbr.rel (0) target = $region13
  $region12: #{vr_pct_forward.12} parent=0 // pred_region
    _
  $region13: #{vr_pct_forward.12} parent=0 // pred_fallthru
    _
  %v14 = vld [vmem:[%s0] sm:$0xff]
  %v15 = vld [vmem:[%s1] sm:$0xff]
  %v16 = vld [vmem:[%s1 + $0x8] sm:$0xff]
  %v17 = vld [vmem:[%s1 + $0x10] sm:$0xff]
  %v18 = vld [vmem:[%s1 + $0x18] sm:$0xff]
  %v19 = vld [vmem:[%s1 + $0x20] sm:$0xff]
  %v20 = vld [vmem:[%s1 + $0x28] sm:$0xff]
  %v21 = vld [vmem:[%s1 + $0x30] sm:$0xff]
  %v22 = vld [vmem:[%s1 + $0x38] sm:$0xff]
  %v23 = vld [vmem:[%s1 + $0x40] sm:$0xff]
  %v24 = vld [vmem:[%s1 + $0x48] sm:$0xff]
  %v25 = vld [vmem:[%s1 + $0x50] sm:$0xff]
  %v26 = vld [vmem:[%s1 + $0x58] sm:$0xff]
  %v27 = vld [vmem:[%s1 + $0x60] sm:$0xff]
  %v28 = vld [vmem:[%s1 + $0x68] sm:$0xff]
  %v29 = vld [vmem:[%s1 + $0x70] sm:$0xff]
  %v30 = vld [vmem:[%s1 + $0x78] sm:$0xff]
  %v31 = vld [vmem:[%s1 + $0x80] sm:$0xff]
  %v32 = vld [vmem:[%s1 + $0x88] sm:$0xff]
  %v33 = vld [vmem:[%s1 + $0x90] sm:$0xff]
  %v34 = vld [vmem:[%s1 + $0x98] sm:$0xff]
  %v35 = vld [vmem:[%s1 + $0xa0] sm:$0xff]
  %v36 = vld [vmem:[%s1 + $0xa8] sm:$0xff]
  %v37 = vld [vmem:[%s1 + $0xb0] sm:$0xff]
  %v38 = vld [vmem:[%s1 + $0xb8] sm:$0xff]
  %v39 = vld [vmem:[%s1 + $0xc0] sm:$0xff]
  %v40 = vld [vmem:[%s1 + $0xc8] sm:$0xff]
  %v41 = vld [vmem:[%s1 + $0xd0] sm:$0xff]
  %v42 = vld [vmem:[%s1 + $0xd8] sm:$0xff]
  %v43 = vld [vmem:[%s1 + $0xe0] sm:$0xff]
  %v44 = vld [vmem:[%s1 + $0xe8] sm:$0xff]
  %v45 = vld [vmem:[%s1 + $0xf0] sm:$0xff]
  %v46 = vld [vmem:[%s1 + $0xf8] sm:$0xff]
  %v47 = vld [vmem:[%s1 + $0x100] sm:$0xff]
  %v48 = vld [vmem:[%s1 + $0x108] sm:$0xff]
  %v49 = vld [vmem:[%s1 + $0x110] sm:$0xff]
  %v50 = vld [vmem:[%s1 + $0x118] sm:$0xff]
  %v51 = vld [vmem:[%s1 + $0x120] sm:$0xff]
  %v52 = vld [vmem:[%s1 + $0x128] sm:$0xff]
  %v53 = vld [vmem:[%s1 + $0x130] sm:$0xff]
  %v54 = vld [vmem:[%s1 + $0x138] sm:$0xff]
  %v55 = vld [vmem:[%s1 + $0x140] sm:$0xff]
  %v56 = vld [vmem:[%s1 + $0x148] sm:$0xff]
  %v57 = vld [vmem:[%s1 + $0x150] sm:$0xff]
  %v58 = vld [vmem:[%s1 + $0x158] sm:$0xff]
  %v59 = vld [vmem:[%s1 + $0x160] sm:$0xff]
  %v60 = vld [vmem:[%s1 + $0x168] sm:$0xff]
  %v61 = vld [vmem:[%s1 + $0x170] sm:$0xff]
  %v62 = vld [vmem:[%s1 + $0x178] sm:$0xff]
  %v63 = vld [vmem:[%s2] sm:$0xf]
  %v65 = vlaneseq
  %v66 = vshrl.u32 %v65, 7
  %v67 = vsub.s32 0, %v66
  %v68 = vrot.slane %v63, %v67
  %v69 = vlaneseq
  %v70 = vshrl.u32 %v69, 7
  %v71 = vsub.s32 1, %v70
  %v72 = vrot.slane %v63, %v71
  %v73 = vlaneseq
  %v74 = vshrl.u32 %v73, 7
  %v75 = vsub.s32 2, %v74
  %v76 = vrot.slane %v63, %v75
  %v77 = vlaneseq
  %v78 = vshrl.u32 %v77, 7
  %v79 = vsub.s32 3, %v78
  %v80 = vrot.slane %v63, %v79
  %vm85 = vcmask 785408
  %v87 = vsel %vm85, %v14, 0
  %89 = vmatprep.subr.mxu0 %v16
  %90 = vmatpush1.msra.mxu0 %v15
  %91 = vmatprep.subr.mxu0 %v20
  %92 = vmatpush1.msra.mxu0 %v19
  %93 = vmatprep.subr.mxu0 %v24
  %94 = vmatpush1.msra.mxu0 %v23
  %95 = vmatprep.subr.mxu0 %v28
  %96 = vmatpush1.msra.mxu0 %v27
  %97 = vmatprep.subr.mxu0 %v32
  %98 = vmatpush1.msra.mxu0 %v31
  %99 = vmatprep.subr.mxu0 %v36
  %100 = vmatpush1.msra.mxu0 %v35
  %101 = vmatprep.subr.mxu0 %v40
  %102 = vmatpush1.msra.mxu0 %v39
  %103 = vmatprep.subr.mxu0 %v44
  %104 = vmatpush1.msra.mxu0 %v43
  %105 = vmatprep.subr.mxu0 %v48
  %106 = vmatpush1.msra.mxu0 %v47
  %107 = vmatprep.subr.mxu0 %v52
  %108 = vmatpush1.msra.mxu0 %v51
  %109 = vmatprep.subr.mxu0 %v56
  %110 = vmatpush1.msra.mxu0 %v55
  %111 = vmatprep.subr.mxu0 %v60
  %112 = vmatpush1.msra.mxu0 %v59
  %113 = vmatprep.subr.mxu0 0.0
  %114 = vmatpush1.msra.mxu0 0.0
  %115 = vmatprep.subr.mxu0 0.0
  %116 = vmatpush1.msra.mxu0 0.0
  %117 = vmatprep.subr.mxu0 0.0
  %118 = vmatpush1.msra.mxu0 0.0
  %119 = vmatprep.subr.mxu0 0.0
  %120 = vmatpush1.msra.mxu0 0.0
  %121 = vmatprep.subr.mxu0 0.0
  %122 = vmatpush1.msra.mxu0 0.0
  %123 = vmatprep.subr.mxu0 0.0
  %124 = vmatpush1.msra.mxu0 0.0
  %125 = vmatprep.subr.mxu0 0.0
  %126 = vmatpush1.msra.mxu0 0.0
  %127 = vmatprep.subr.mxu0 0.0
  %128 = vmatpush1.msra.mxu0 0.0
  %129 = vmatprep.subr.mxu0 0.0
  %130 = vmatpush1.msra.mxu0 0.0
  %131 = vmatprep.subr.mxu0 0.0
  %132 = vmatpush1.msra.mxu0 0.0
  %133 = vmatprep.subr.mxu0 0.0
  %134 = vmatpush1.msra.mxu0 0.0
  %135 = vmatprep.subr.mxu0 0.0
  %136 = vmatpush1.msra.mxu0 0.0
  %137 = vmatprep.subr.mxu0 0.0
  %138 = vmatpush1.msra.mxu0 0.0
  %139 = vmatprep.subr.mxu0 0.0
  %140 = vmatpush1.msra.mxu0 0.0
  %141 = vmatprep.subr.mxu0 0.0
  %142 = vmatpush1.msra.mxu0 0.0
  %143 = vmatprep.subr.mxu0 0.0
  %144 = vmatpush1.msra.mxu0 0.0
  %145 = vmatprep.subr.mxu0 0.0
  %146 = vmatpush1.msra.mxu0 0.0
  %147 = vmatprep.subr.mxu0 0.0
  %148 = vmatpush1.msra.mxu0 0.0
  %149 = vmatprep.subr.mxu0 0.0
  %150 = vmatpush1.msra.mxu0 0.0
  %151 = vmatprep.subr.mxu0 0.0
  %152 = vmatpush1.msra.mxu0 0.0
  %153 = vmatprep.mubr.f32.mxu0 0.0
  %154 = vmatmul.mubr.f32.gmra.mrb[0].mxu0 %v87
  %v155 = vpop.f32.mrb[0].mxu0
  %v156 = vadd.f32 %v68, %v155
  %v157 = vpop.f32.mrb[0].mxu0
  %v158 = vadd.f32 %v72, %v157
  %159 = vdwg.mxu0
  %160 = vmatprep.subr.mxu0 %v18
  %161 = vmatpush1.msra.mxu0 %v17
  %162 = vmatprep.subr.mxu0 %v22
  %163 = vmatpush1.msra.mxu0 %v21
  %164 = vmatprep.subr.mxu0 %v26
  %165 = vmatpush1.msra.mxu0 %v25
  %166 = vmatprep.subr.mxu0 %v30
  %167 = vmatpush1.msra.mxu0 %v29
  %168 = vmatprep.subr.mxu0 %v34
  %169 = vmatpush1.msra.mxu0 %v33
  %170 = vmatprep.subr.mxu0 %v38
  %171 = vmatpush1.msra.mxu0 %v37
  %172 = vmatprep.subr.mxu0 %v42
  %173 = vmatpush1.msra.mxu0 %v41
  %174 = vmatprep.subr.mxu0 %v46
  %175 = vmatpush1.msra.mxu0 %v45
  %176 = vmatprep.subr.mxu0 %v50
  %177 = vmatpush1.msra.mxu0 %v49
  %178 = vmatprep.subr.mxu0 %v54
  %179 = vmatpush1.msra.mxu0 %v53
  %180 = vmatprep.subr.mxu0 %v58
  %181 = vmatpush1.msra.mxu0 %v57
  %182 = vmatprep.subr.mxu0 %v62
  %183 = vmatpush1.msra.mxu0 %v61
  %184 = vmatprep.subr.mxu0 0.0
  %185 = vmatpush1.msra.mxu0 0.0
  %186 = vmatprep.subr.mxu0 0.0
  %187 = vmatpush1.msra.mxu0 0.0
  %188 = vmatprep.subr.mxu0 0.0
  %189 = vmatpush1.msra.mxu0 0.0
  %190 = vmatprep.subr.mxu0 0.0
  %191 = vmatpush1.msra.mxu0 0.0
  %192 = vmatprep.subr.mxu0 0.0
  %193 = vmatpush1.msra.mxu0 0.0
  %194 = vmatprep.subr.mxu0 0.0
  %195 = vmatpush1.msra.mxu0 0.0
  %196 = vmatprep.subr.mxu0 0.0
  %197 = vmatpush1.msra.mxu0 0.0
  %198 = vmatprep.subr.mxu0 0.0
  %199 = vmatpush1.msra.mxu0 0.0
  %200 = vmatprep.subr.mxu0 0.0
  %201 = vmatpush1.msra.mxu0 0.0
  %202 = vmatprep.subr.mxu0 0.0
  %203 = vmatpush1.msra.mxu0 0.0
  %204 = vmatprep.subr.mxu0 0.0
  %205 = vmatpush1.msra.mxu0 0.0
  %206 = vmatprep.subr.mxu0 0.0
  %207 = vmatpush1.msra.mxu0 0.0
  %208 = vmatprep.subr.mxu0 0.0
  %209 = vmatpush1.msra.mxu0 0.0
  %210 = vmatprep.subr.mxu0 0.0
  %211 = vmatpush1.msra.mxu0 0.0
  %212 = vmatprep.subr.mxu0 0.0
  %213 = vmatpush1.msra.mxu0 0.0
  %214 = vmatprep.subr.mxu0 0.0
  %215 = vmatpush1.msra.mxu0 0.0
  %216 = vmatprep.subr.mxu0 0.0
  %217 = vmatpush1.msra.mxu0 0.0
  %218 = vmatprep.subr.mxu0 0.0
  %219 = vmatpush1.msra.mxu0 0.0
  %220 = vmatprep.subr.mxu0 0.0
  %221 = vmatpush1.msra.mxu0 0.0
  %222 = vmatprep.subr.mxu0 0.0
  %223 = vmatpush1.msra.mxu0 0.0
  %224 = vmatprep.mubr.f32.mxu0 0.0
  %225 = vmatmul.mubr.f32.gmra.mrb[0].mxu0 %v87
  %v226 = vpop.f32.mrb[0].mxu0
  %v227 = vadd.f32 %v76, %v226
  %v228 = vpop.f32.mrb[0].mxu0
  %v229 = vadd.f32 %v80, %v228
  %230 = vdwg.mxu0
  %231 = vst [vmem:[%s3] sm:$0xff] %v156
  %232 = vst [vmem:[%s3 + $0x8] sm:$0xff] %v158
  %233 = vst [vmem:[%s3 + $0x10] sm:$0xff] %v227
  %234 = vst [vmem:[%s3 + $0x18] sm:$0xff] %v229
  %s235 = scalar_lea.vmem %s1, 384
  %v236 = vld [vmem:[%s235] sm:$0xff]
  %v237 = vld [vmem:[%s235 + $0x8] sm:$0xff]
  %v238 = vld [vmem:[%s235 + $0x10] sm:$0xff]
  %v239 = vld [vmem:[%s235 + $0x18] sm:$0xff]
  %v240 = vld [vmem:[%s235 + $0x20] sm:$0xff]
  %v241 = vld [vmem:[%s235 + $0x28] sm:$0xff]
  %v242 = vld [vmem:[%s235 + $0x30] sm:$0xff]
  %v243 = vld [vmem:[%s235 + $0x38] sm:$0xff]
  %v244 = vld [vmem:[%s235 + $0x40] sm:$0xff]
  %v245 = vld [vmem:[%s235 + $0x48] sm:$0xff]
  %v246 = vld [vmem:[%s235 + $0x50] sm:$0xff]
  %v247 = vld [vmem:[%s235 + $0x58] sm:$0xff]
  %v248 = vld [vmem:[%s235 + $0x60] sm:$0xff]
  %v249 = vld [vmem:[%s235 + $0x68] sm:$0xff]
  %v250 = vld [vmem:[%s235 + $0x70] sm:$0xff]
  %v251 = vld [vmem:[%s235 + $0x78] sm:$0xff]
  %v252 = vld [vmem:[%s235 + $0x80] sm:$0xff]
  %v253 = vld [vmem:[%s235 + $0x88] sm:$0xff]
  %v254 = vld [vmem:[%s235 + $0x90] sm:$0xff]
  %v255 = vld [vmem:[%s235 + $0x98] sm:$0xff]
  %v256 = vld [vmem:[%s235 + $0xa0] sm:$0xff]
  %v257 = vld [vmem:[%s235 + $0xa8] sm:$0xff]
  %v258 = vld [vmem:[%s235 + $0xb0] sm:$0xff]
  %v259 = vld [vmem:[%s235 + $0xb8] sm:$0xff]
  %v260 = vld [vmem:[%s235 + $0xc0] sm:$0xff]
  %v261 = vld [vmem:[%s235 + $0xc8] sm:$0xff]
  %v262 = vld [vmem:[%s235 + $0xd0] sm:$0xff]
  %v263 = vld [vmem:[%s235 + $0xd8] sm:$0xff]
  %v264 = vld [vmem:[%s235 + $0xe0] sm:$0xff]
  %v265 = vld [vmem:[%s235 + $0xe8] sm:$0xff]
  %v266 = vld [vmem:[%s235 + $0xf0] sm:$0xff]
  %v267 = vld [vmem:[%s235 + $0xf8] sm:$0xff]
  %v268 = vld [vmem:[%s235 + $0x100] sm:$0xff]
  %v269 = vld [vmem:[%s235 + $0x108] sm:$0xff]
  %v270 = vld [vmem:[%s235 + $0x110] sm:$0xff]
  %v271 = vld [vmem:[%s235 + $0x118] sm:$0xff]
  %v272 = vld [vmem:[%s235 + $0x120] sm:$0xff]
  %v273 = vld [vmem:[%s235 + $0x128] sm:$0xff]
  %v274 = vld [vmem:[%s235 + $0x130] sm:$0xff]
  %v275 = vld [vmem:[%s235 + $0x138] sm:$0xff]
  %v276 = vld [vmem:[%s235 + $0x140] sm:$0xff]
  %v277 = vld [vmem:[%s235 + $0x148] sm:$0xff]
  %v278 = vld [vmem:[%s235 + $0x150] sm:$0xff]
  %v279 = vld [vmem:[%s235 + $0x158] sm:$0xff]
  %v280 = vld [vmem:[%s235 + $0x160] sm:$0xff]
  %v281 = vld [vmem:[%s235 + $0x168] sm:$0xff]
  %v282 = vld [vmem:[%s235 + $0x170] sm:$0xff]
  %v283 = vld [vmem:[%s235 + $0x178] sm:$0xff]
  %s284 = scalar_lea.vmem %s2, 4
  %v285 = vld [vmem:[%s284] sm:$0xf]
  %v287 = vlaneseq
  %v288 = vshrl.u32 %v287, 7
  %v289 = vsub.s32 0, %v288
  %v290 = vrot.slane %v285, %v289
  %v291 = vlaneseq
  %v292 = vshrl.u32 %v291, 7
  %v293 = vsub.s32 1, %v292
  %v294 = vrot.slane %v285, %v293
  %v295 = vlaneseq
  %v296 = vshrl.u32 %v295, 7
  %v297 = vsub.s32 2, %v296
  %v298 = vrot.slane %v285, %v297
  %v299 = vlaneseq
  %v300 = vshrl.u32 %v299, 7
  %v301 = vsub.s32 3, %v300
  %v302 = vrot.slane %v285, %v301
  %307 = vmatprep.subr.mxu0 %v237
  %308 = vmatpush1.msra.mxu0 %v236
  %309 = vmatprep.subr.mxu0 %v241
  %310 = vmatpush1.msra.mxu0 %v240
  %311 = vmatprep.subr.mxu0 %v245
  %312 = vmatpush1.msra.mxu0 %v244
  %313 = vmatprep.subr.mxu0 %v249
  %314 = vmatpush1.msra.mxu0 %v248
  %315 = vmatprep.subr.mxu0 %v253
  %316 = vmatpush1.msra.mxu0 %v252
  %317 = vmatprep.subr.mxu0 %v257
  %318 = vmatpush1.msra.mxu0 %v256
  %319 = vmatprep.subr.mxu0 %v261
  %320 = vmatpush1.msra.mxu0 %v260
  %321 = vmatprep.subr.mxu0 %v265
  %322 = vmatpush1.msra.mxu0 %v264
  %323 = vmatprep.subr.mxu0 %v269
  %324 = vmatpush1.msra.mxu0 %v268
  %325 = vmatprep.subr.mxu0 %v273
  %326 = vmatpush1.msra.mxu0 %v272
  %327 = vmatprep.subr.mxu0 %v277
  %328 = vmatpush1.msra.mxu0 %v276
  %329 = vmatprep.subr.mxu0 %v281
  %330 = vmatpush1.msra.mxu0 %v280
  %331 = vmatprep.subr.mxu0 0.0
  %332 = vmatpush1.msra.mxu0 0.0
  %333 = vmatprep.subr.mxu0 0.0
  %334 = vmatpush1.msra.mxu0 0.0
  %335 = vmatprep.subr.mxu0 0.0
  %336 = vmatpush1.msra.mxu0 0.0
  %337 = vmatprep.subr.mxu0 0.0
  %338 = vmatpush1.msra.mxu0 0.0
  %339 = vmatprep.subr.mxu0 0.0
  %340 = vmatpush1.msra.mxu0 0.0
  %341 = vmatprep.subr.mxu0 0.0
  %342 = vmatpush1.msra.mxu0 0.0
  %343 = vmatprep.subr.mxu0 0.0
  %344 = vmatpush1.msra.mxu0 0.0
  %345 = vmatprep.subr.mxu0 0.0
  %346 = vmatpush1.msra.mxu0 0.0
  %347 = vmatprep.subr.mxu0 0.0
  %348 = vmatpush1.msra.mxu0 0.0
  %349 = vmatprep.subr.mxu0 0.0
  %350 = vmatpush1.msra.mxu0 0.0
  %351 = vmatprep.subr.mxu0 0.0
  %352 = vmatpush1.msra.mxu0 0.0
  %353 = vmatprep.subr.mxu0 0.0
  %354 = vmatpush1.msra.mxu0 0.0
  %355 = vmatprep.subr.mxu0 0.0
  %356 = vmatpush1.msra.mxu0 0.0
  %357 = vmatprep.subr.mxu0 0.0
  %358 = vmatpush1.msra.mxu0 0.0
  %359 = vmatprep.subr.mxu0 0.0
  %360 = vmatpush1.msra.mxu0 0.0
  %361 = vmatprep.subr.mxu0 0.0
  %362 = vmatpush1.msra.mxu0 0.0
  %363 = vmatprep.subr.mxu0 0.0
  %364 = vmatpush1.msra.mxu0 0.0
  %365 = vmatprep.subr.mxu0 0.0
  %366 = vmatpush1.msra.mxu0 0.0
  %367 = vmatprep.subr.mxu0 0.0
  %368 = vmatpush1.msra.mxu0 0.0
  %369 = vmatprep.subr.mxu0 0.0
  %370 = vmatpush1.msra.mxu0 0.0
  %371 = vmatprep.mubr.f32.mxu0 0.0
  %372 = vmatmul.mubr.f32.gmra.mrb[0].mxu0 %v87
  %v373 = vpop.f32.mrb[0].mxu0
  %v374 = vadd.f32 %v290, %v373
  %v375 = vpop.f32.mrb[0].mxu0
  %v376 = vadd.f32 %v294, %v375
  %377 = vdwg.mxu0
  %378 = vmatprep.subr.mxu0 %v239
  %379 = vmatpush1.msra.mxu0 %v238
  %380 = vmatprep.subr.mxu0 %v243
  %381 = vmatpush1.msra.mxu0 %v242
  %382 = vmatprep.subr.mxu0 %v247
  %383 = vmatpush1.msra.mxu0 %v246
  %384 = vmatprep.subr.mxu0 %v251
  %385 = vmatpush1.msra.mxu0 %v250
  %386 = vmatprep.subr.mxu0 %v255
  %387 = vmatpush1.msra.mxu0 %v254
  %388 = vmatprep.subr.mxu0 %v259
  %389 = vmatpush1.msra.mxu0 %v258
  %390 = vmatprep.subr.mxu0 %v263
  %391 = vmatpush1.msra.mxu0 %v262
  %392 = vmatprep.subr.mxu0 %v267
  %393 = vmatpush1.msra.mxu0 %v266
  %394 = vmatprep.subr.mxu0 %v271
  %395 = vmatpush1.msra.mxu0 %v270
  %396 = vmatprep.subr.mxu0 %v275
  %397 = vmatpush1.msra.mxu0 %v274
  %398 = vmatprep.subr.mxu0 %v279
  %399 = vmatpush1.msra.mxu0 %v278
  %400 = vmatprep.subr.mxu0 %v283
  %401 = vmatpush1.msra.mxu0 %v282
  %402 = vmatprep.subr.mxu0 0.0
  %403 = vmatpush1.msra.mxu0 0.0
  %404 = vmatprep.subr.mxu0 0.0
  %405 = vmatpush1.msra.mxu0 0.0
  %406 = vmatprep.subr.mxu0 0.0
  %407 = vmatpush1.msra.mxu0 0.0
  %408 = vmatprep.subr.mxu0 0.0
  %409 = vmatpush1.msra.mxu0 0.0
  %410 = vmatprep.subr.mxu0 0.0
  %411 = vmatpush1.msra.mxu0 0.0
  %412 = vmatprep.subr.mxu0 0.0
  %413 = vmatpush1.msra.mxu0 0.0
  %414 = vmatprep.subr.mxu0 0.0
  %415 = vmatpush1.msra.mxu0 0.0
  %416 = vmatprep.subr.mxu0 0.0
  %417 = vmatpush1.msra.mxu0 0.0
  %418 = vmatprep.subr.mxu0 0.0
  %419 = vmatpush1.msra.mxu0 0.0
  %420 = vmatprep.subr.mxu0 0.0
  %421 = vmatpush1.msra.mxu0 0.0
  %422 = vmatprep.subr.mxu0 0.0
  %423 = vmatpush1.msra.mxu0 0.0
  %424 = vmatprep.subr.mxu0 0.0
  %425 = vmatpush1.msra.mxu0 0.0
  %426 = vmatprep.subr.mxu0 0.0
  %427 = vmatpush1.msra.mxu0 0.0
  %428 = vmatprep.subr.mxu0 0.0
  %429 = vmatpush1.msra.mxu0 0.0
  %430 = vmatprep.subr.mxu0 0.0
  %431 = vmatpush1.msra.mxu0 0.0
  %432 = vmatprep.subr.mxu0 0.0
  %433 = vmatpush1.msra.mxu0 0.0
  %434 = vmatprep.subr.mxu0 0.0
  %435 = vmatpush1.msra.mxu0 0.0
  %436 = vmatprep.subr.mxu0 0.0
  %437 = vmatpush1.msra.mxu0 0.0
  %438 = vmatprep.subr.mxu0 0.0
  %439 = vmatpush1.msra.mxu0 0.0
  %440 = vmatprep.subr.mxu0 0.0
  %441 = vmatpush1.msra.mxu0 0.0
  %442 = vmatprep.mubr.f32.mxu0 0.0
  %443 = vmatmul.mubr.f32.gmra.mrb[0].mxu0 %v87
  %v444 = vpop.f32.mrb[0].mxu0
  %v445 = vadd.f32 %v298, %v444
  %v446 = vpop.f32.mrb[0].mxu0
  %v447 = vadd.f32 %v302, %v446
  %448 = vdwg.mxu0
  %s449 = scalar_lea.vmem %s3, 32
  %450 = vst [vmem:[%s449] sm:$0xff] %v374
  %451 = vst [vmem:[%s449 + $0x8] sm:$0xff] %v376
  %452 = vst [vmem:[%s449 + $0x10] sm:$0xff] %v445
  %453 = vst [vmem:[%s449 + $0x18] sm:$0xff] %v447
  // Predicated region
  $region14: #{vr_pct_forward.12} parent=0 // pred_check
    _
  $region15: #{vr_pct_forward.12} parent=0 // pred_check_branch
    %455 = sbr.rel (0) target = $region17
  $region16: #{vr_pct_forward.12} parent=0 // pred_region
    _
  $region17: #{vr_pct_forward.12} parent=0 // pred_fallthru
    _
  // Predicated region
  $region18: #{vr_pct_forward.12} parent=0 // pred_check
    _
  $region19: #{vr_pct_forward.12} parent=0 // pred_check_branch
    %457 = sbr.rel (0) target = $region21
  $region20: #{vr_pct_forward.12} parent=0 // pred_region
    _
  $region21: #{vr_pct_forward.12} parent=0 // pred_fallthru
    _

// kernel: vr_pct_forward.13
$region0: #{vr_pct_forward.13}
  #allocation0 [shape = 'u32[]', space=smem, size = 0x4, offset = 0x4, fixed_abs, tag = 'smem constant byte address 0x4 - core index']
  #allocation1 [shape = 'u32[144,128]{1,0:T(1,128)}', space=vmem, size = 0x12000, scoped, tag = 'internal scratch']
  %s0 = inlined_call_operand.vmem [shape: f32[2,4,2,512], index: 0, kind: input, shape index: {}]
  %s1 = inlined_call_operand.vmem [shape: f32[2,48,512], index: 1, kind: input, shape index: {}]
  %s2 = inlined_call_operand.vmem [shape: f32[2,2,48], index: 2, kind: input, shape index: {}, may-alias: {2,3}]
  %s3 = inlined_call_operand.vmem [shape: f32[2,2,48], index: 3, kind: input, shape index: {}, may-alias: {2,3}]
  %s4 = inlined_call_operand.vmem [shape: f32[2,4,2,48], index: 4, kind: output, shape index: {}]
  %s5 = sld [smem:[#allocation0]]
  $region49: #{vr_pct_forward.13} parent=0
    _
  %s7 = ssub.s32 1, %s5
  %s8 = scalar_select 0, %s7, %s5
  loop: start=0, step=1, limit=4
  $region2: #{vr_pct_forward.13} parent=0 // loop_pre_header
    _
  $region3: #{vr_pct_forward.13} parent=0 // loop_header
    %s10 = sphi 0, %s14
    %p11 = scmp.ge.s32.totalorder %s10, 4
    %s20 = sphi 0, %s22
    %s23 = sphi 0, %s20
    %s24 = sphi 0, %s23
    %s40 = sphi 0, %s24
    %s46 = sphi 0, %s48
    %s49 = sphi 0, %s46
    %s50 = sphi 0, %s49
    %s66 = sphi 0, %s50
    %s72 = sphi 0, %s74
    %s75 = sphi 0, %s72
    %s76 = sphi 0, %s75
    %s92 = sphi 0, %s76
    %s98 = sphi 0, %s100
    %s101 = sphi 0, %s98
    %s102 = sphi 0, %s101
    %s118 = sphi 0, %s102
    %s124 = sphi 0, %s126
    %s127 = sphi 0, %s124
    %s128 = sphi 0, %s127
    %s144 = sphi 0, %s128
  $region4: #{vr_pct_forward.13} parent=0 // loop_header_branch
    %13 = sbr.rel (%p11) target = $region8
  $region5: #{vr_pct_forward.13} parent=0 // loop_body
    %s15 = ssub.s32 %s10, 1
    %s16 = ssub.s32 %s10, 2
    %s17 = sadd.s32 %s10, 1
    %s18 = ssub.s32 %s10, %s17
    %p19 = scmp.eq.s32.totalorder %s18, 0
    %s21 = sadd.s32 %s20, 1
    %s22 = scalar_select %p19, %s20, %s21
    %p25 = pneg %p19
    %p26 = scmp.eq.s32.totalorder %s10, 1
    %p27 = por %p25, %p26
    %p28 = scmp.ne.s32.totalorder %s20, %s23
    %p29 = scmp.eq.s32.totalorder %s10, 0
    %p30 = por %p28, %p29
    %p31 = scmp.ne.s32.totalorder %s20, %s23
    %p32 = scmp.eq.s32.totalorder %s15, 1
    %p33 = por %p31, %p32
    %p34 = scmp.ne.s32.totalorder %s23, %s24
    %p35 = scmp.eq.s32.totalorder %s15, 0
    %p36 = por %p34, %p35
    %p37 = scmp.ne.s32.totalorder %s23, %s24
    %p38 = scmp.eq.s32.totalorder %s16, 1
    %p39 = por %p37, %p38
    %p41 = scmp.ne.s32.totalorder %s24, %s40
    %p42 = scmp.eq.s32.totalorder %s16, 0
    %p43 = por %p41, %p42
    %s44 = ssub.s32 %s10, %s17
    %p45 = scmp.eq.s32.totalorder %s44, 0
    %s47 = sadd.s32 %s46, 1
    %s48 = scalar_select %p45, %s46, %s47
    %p51 = pneg %p45
    %p52 = scmp.eq.s32.totalorder %s10, 1
    %p53 = por %p51, %p52
    %p54 = scmp.ne.s32.totalorder %s46, %s49
    %p55 = scmp.eq.s32.totalorder %s10, 0
    %p56 = por %p54, %p55
    %p57 = scmp.ne.s32.totalorder %s46, %s49
    %p58 = scmp.eq.s32.totalorder %s15, 1
    %p59 = por %p57, %p58
    %p60 = scmp.ne.s32.totalorder %s49, %s50
    %p61 = scmp.eq.s32.totalorder %s15, 0
    %p62 = por %p60, %p61
    %p63 = scmp.ne.s32.totalorder %s49, %s50
    %p64 = scmp.eq.s32.totalorder %s16, 1
    %p65 = por %p63, %p64
    %p67 = scmp.ne.s32.totalorder %s50, %s66
    %p68 = scmp.eq.s32.totalorder %s16, 0
    %p69 = por %p67, %p68
    %s70 = ssub.s32 %s10, %s17
    %p71 = scmp.eq.s32.totalorder %s70, 0
    %s73 = sadd.s32 %s72, 1
    %s74 = scalar_select %p71, %s72, %s73
    %p77 = pneg %p71
    %p78 = scmp.eq.s32.totalorder %s10, 1
    %p79 = por %p77, %p78
    %p80 = scmp.ne.s32.totalorder %s72, %s75
    %p81 = scmp.eq.s32.totalorder %s10, 0
    %p82 = por %p80, %p81
    %p83 = scmp.ne.s32.totalorder %s72, %s75
    %p84 = scmp.eq.s32.totalorder %s15, 1
    %p85 = por %p83, %p84
    %p86 = scmp.ne.s32.totalorder %s75, %s76
    %p87 = scmp.eq.s32.totalorder %s15, 0
    %p88 = por %p86, %p87
    %p89 = scmp.ne.s32.totalorder %s75, %s76
    %p90 = scmp.eq.s32.totalorder %s16, 1
    %p91 = por %p89, %p90
    %p93 = scmp.ne.s32.totalorder %s76, %s92
    %p94 = scmp.eq.s32.totalorder %s16, 0
    %p95 = por %p93, %p94
    %s96 = ssub.s32 %s10, %s17
    %p97 = scmp.eq.s32.totalorder %s96, 0
    %s99 = sadd.s32 %s98, 1
    %s100 = scalar_select %p97, %s98, %s99
    %p103 = pneg %p97
    %p104 = scmp.eq.s32.totalorder %s10, 1
    %p105 = por %p103, %p104
    %p106 = scmp.ne.s32.totalorder %s98, %s101
    %p107 = scmp.eq.s32.totalorder %s10, 0
    %p108 = por %p106, %p107
    %p109 = scmp.ne.s32.totalorder %s98, %s101
    %p110 = scmp.eq.s32.totalorder %s15, 1
    %p111 = por %p109, %p110
    %p112 = scmp.ne.s32.totalorder %s101, %s102
    %p113 = scmp.eq.s32.totalorder %s15, 0
    %p114 = por %p112, %p113
    %p115 = scmp.ne.s32.totalorder %s101, %s102
    %p116 = scmp.eq.s32.totalorder %s16, 1
    %p117 = por %p115, %p116
    %p119 = scmp.ne.s32.totalorder %s102, %s118
    %p120 = scmp.eq.s32.totalorder %s16, 0
    %p121 = por %p119, %p120
    %s122 = ssub.s32 %s10, %s17
    %p123 = scmp.eq.s32.totalorder %s122, 0
    %s125 = sadd.s32 %s124, 1
    %s126 = scalar_select %p123, %s124, %s125
    %p129 = pneg %p123
    %p130 = scmp.eq.s32.totalorder %s10, 1
    %p131 = por %p129, %p130
    %p132 = scmp.ne.s32.totalorder %s124, %s127
    %p133 = scmp.eq.s32.totalorder %s10, 0
    %p134 = por %p132, %p133
    %p135 = scmp.ne.s32.totalorder %s124, %s127
    %p136 = scmp.eq.s32.totalorder %s15, 1
    %p137 = por %p135, %p136
    %p138 = scmp.ne.s32.totalorder %s127, %s128
    %p139 = scmp.eq.s32.totalorder %s15, 0
    %p140 = por %p138, %p139
    %p141 = scmp.ne.s32.totalorder %s127, %s128
    %p142 = scmp.eq.s32.totalorder %s16, 1
    %p143 = por %p141, %p142
    %p145 = scmp.ne.s32.totalorder %s128, %s144
    %p146 = scmp.eq.s32.totalorder %s16, 0
    %p147 = por %p145, %p146
    %p148 = scmp.le.s32.totalorder 1, %s10
    %p149 = scmp.lt.s32.totalorder %s10, 3
    %p150 = pnand %p148, %p149
    %p151 = pneg %p150
    // Predicated region
    $region9: #{vr_pct_forward.13} parent=5 // pred_check
      _
    $region10: #{vr_pct_forward.13} parent=5 // pred_check_branch
      %153 = sbr.rel (%p150) target = $region12
    $region11: #{vr_pct_forward.13} parent=5 // pred_region
      %s154 = ssub.s32 %s10, 1
    $region12: #{vr_pct_forward.13} parent=5 // pred_fallthru
      _
    %p155 = scmp.lt.s32.totalorder %s10, 2
    // Predicated region
    $region13: #{vr_pct_forward.13} parent=5 // pred_check
      %p156 = pneg %p155
    $region14: #{vr_pct_forward.13} parent=5 // pred_check_branch
      %158 = sbr.rel (%p156) target = $region16
    $region15: #{vr_pct_forward.13} parent=5 // pred_region
      // Predicated region
      $region17: #{vr_pct_forward.13} parent=15 // pred_check
        %p159 = pneg %p30
      $region18: #{vr_pct_forward.13} parent=15 // pred_check_branch
        %161 = sbr.rel (%p159) target = $region20
      $region19: #{vr_pct_forward.13} parent=15 // pred_region
        %p162 = scmp.lt.s32.totalorder %s10, 1
        %s163 = scalar_select %p162, %s10, 1
        %s164 = smul.addr %s163, 16
        %s165 = smul.addr %s164, 2
        %s166 = scalar_lea.vmem %s0, %s165
      $region20: #{vr_pct_forward.13} parent=15 // pred_fallthru
        _
      // Predicated region
      $region21: #{vr_pct_forward.13} parent=15 // pred_check
        %p167 = pneg %p56
      $region22: #{vr_pct_forward.13} parent=15 // pred_check_branch
        %169 = sbr.rel (%p167) target = $region24
      $region23: #{vr_pct_forward.13} parent=15 // pred_region
        %p170 = scmp.lt.s32.totalorder %s10, 1
        %s171 = scalar_select %p170, %s10, 1
        %s172 = smul.addr %s171, 24
        %s173 = smul.addr %s172, 8
        %s174 = scalar_lea.vmem %s1, %s173
      $region24: #{vr_pct_forward.13} parent=15 // pred_fallthru
        _
      // Predicated region
      $region25: #{vr_pct_forward.13} parent=15 // pred_check
        %p175 = pneg %p82
      $region26: #{vr_pct_forward.13} parent=15 // pred_check_branch
        %177 = sbr.rel (%p175) target = $region28
      $region27: #{vr_pct_forward.13} parent=15 // pred_region
        %p178 = scmp.lt.s32.totalorder %s10, 1
        %s179 = scalar_select %p178, %s10, 1
        %s180 = smul.addr %s179, 2
        %s181 = scalar_lea.vmem %s2, %s180
      $region28: #{vr_pct_forward.13} parent=15 // pred_fallthru
        _
      // Predicated region
      $region29: #{vr_pct_forward.13} parent=15 // pred_check
        %p182 = pneg %p108
      $region30: #{vr_pct_forward.13} parent=15 // pred_check_branch
        %184 = sbr.rel (%p182) target = $region32
      $region31: #{vr_pct_forward.13} parent=15 // pred_region
        %p185 = scmp.lt.s32.totalorder %s10, 1
        %s186 = scalar_select %p185, %s10, 1
        %s187 = smul.addr %s186, 2
        %s188 = scalar_lea.vmem %s3, %s187
      $region32: #{vr_pct_forward.13} parent=15 // pred_fallthru
        _
    $region16: #{vr_pct_forward.13} parent=5 // pred_fallthru
      _
    %p189 = scmp.le.s32.totalorder 1, %s10
    %p190 = scmp.lt.s32.totalorder %s10, 3
    %p191 = pnand %p189, %p190
    %p192 = pneg %p191
    // Predicated region
    $region33: #{vr_pct_forward.13} parent=5 // pred_check
      _
    $region34: #{vr_pct_forward.13} parent=5 // pred_check_branch
      %194 = sbr.rel (%p191) target = $region36
    $region35: #{vr_pct_forward.13} parent=5 // pred_region
      %s195 = ssub.s32 %s10, 1
      %p196 = scmp.lt.s32.totalorder %s15, 1
      %s197 = scalar_select %p196, %s15, 1
      %s198 = smul.addr %s197, 16
      %s199 = smul.addr %s198, 2
      %s200 = scalar_lea.vmem %s0, %s199
      %p201 = pneg %p36
      %p202 = pneg %p33
      %p203 = scmp.lt.s32.totalorder %s15, 1
      %s204 = scalar_select %p203, %s15, 1
      %s205 = smul.addr %s204, 24
      %s206 = smul.addr %s205, 8
      %s207 = scalar_lea.vmem %s1, %s206
      %p208 = pneg %p62
      %p209 = pneg %p59
      %p210 = scmp.lt.s32.totalorder %s15, 1
      %s211 = scalar_select %p210, %s15, 1
      %s212 = smul.addr %s211, 2
      %s213 = scalar_lea.vmem %s2, %s212
      %p214 = pneg %p88
      %p215 = pneg %p85
      %p216 = scmp.lt.s32.totalorder %s15, 1
      %s217 = scalar_select %p216, %s15, 1
      %s218 = smul.addr %s217, 2
      %s219 = scalar_lea.vmem %s3, %s218
      %p220 = pneg %p114
      %p221 = pneg %p111
      %p222 = pneg %p140
      %p223 = pneg %p137
      %p224 = scmp.lt.s32.totalorder %s15, 1
      %s225 = scalar_select %p224, %s15, 1
      %s226 = smul.addr %s225, 4
      %s227 = smul.addr %s226, 2
      %s228 = scalar_lea.vmem %s4, %s227
      %p229 = scmp.lt.s32.totalorder %s15, 1
      %s230 = scalar_select %p229, %s15, 1
      %s231 = smul.addr %s230, 16
      %s232 = smul.addr %s231, 2
      %s233 = scalar_lea.vmem %s0, %s232
      %p234 = scmp.lt.s32.totalorder %s15, 1
      %s235 = scalar_select %p234, %s15, 1
      %s236 = smul.addr %s235, 24
      %s237 = smul.addr %s236, 8
      %s238 = scalar_lea.vmem %s1, %s237
      %p239 = scmp.lt.s32.totalorder %s15, 1
      %s240 = scalar_select %p239, %s15, 1
      %s241 = smul.addr %s240, 2
      %s242 = scalar_lea.vmem %s2, %s241
      %p243 = scmp.lt.s32.totalorder %s15, 1
      %s244 = scalar_select %p243, %s15, 1
      %s245 = smul.addr %s244, 2
      %s246 = scalar_lea.vmem %s3, %s245
      %p247 = scmp.lt.s32.totalorder %s15, 1
      %s248 = scalar_select %p247, %s15, 1
      %s249 = smul.addr %s248, 4
      %s250 = smul.addr %s249, 2
      %s251 = scalar_lea.vmem %s4, %s250
      %v252 = vld [vmem:[%s238] sm:$0xff]
      %v253 = vld [vmem:[%s238 + $0x8] sm:$0xff]
      %v254 = vld [vmem:[%s238 + $0x10] sm:$0xff]
      %v255 = vld [vmem:[%s238 + $0x18] sm:$0xff]
      %v256 = vld [vmem:[%s238 + $0x20] sm:$0xff]
      %v257 = vld [vmem:[%s238 + $0x28] sm:$0xff]
      %v258 = vld [vmem:[%s238 + $0x30] sm:$0xff]
      %v259 = vld [vmem:[%s238 + $0x38] sm:$0xff]
      %v260 = vld [vmem:[%s238 + $0x40] sm:$0xff]
      %v261 = vld [vmem:[%s238 + $0x48] sm:$0xff]
      %v262 = vld [vmem:[%s238 + $0x50] sm:$0xff]
      %v263 = vld [vmem:[%s238 + $0x58] sm:$0xff]
      %v264 = vld [vmem:[%s238 + $0x60] sm:$0xff]
      %v265 = vld [vmem:[%s238 + $0x68] sm:$0xff]
      %v266 = vld [vmem:[%s238 + $0x70] sm:$0xff]
      %v267 = vld [vmem:[%s238 + $0x78] sm:$0xff]
      %v268 = vld [vmem:[%s238 + $0x80] sm:$0xff]
      %v269 = vld [vmem:[%s238 + $0x88] sm:$0xff]
      %v270 = vld [vmem:[%s238 + $0x90] sm:$0xff]
      %v271 = vld [vmem:[%s238 + $0x98] sm:$0xff]
      %v272 = vld [vmem:[%s238 + $0xa0] sm:$0xff]
      %v273 = vld [vmem:[%s238 + $0xa8] sm:$0xff]
      %v274 = vld [vmem:[%s238 + $0xb0] sm:$0xff]
      %v275 = vld [vmem:[%s238 + $0xb8] sm:$0xff]
      %v276 = vld [vmem:[%s242] sm:$0x3]
      %v277 = vld [vmem:[%s246] sm:$0x3]
      %s278 = smul.u32 %s15, 3
      %s279 = smul.u32 %s278, 4
      %s280 = smul.addr %s279, 2
      %s281 = scalar_lea.vmem %s233, %s280
      %v282 = vld [vmem:[%s281] sm:$0xff]
      %vm283 = vcmask 392192
      %v285 = vsel %vm283, %v276, 0
      %287 = vmatprep.subr.mxu0 %v253
      %288 = vmatpush1.msra.mxu0 %v252
      %289 = vmatprep.subr.mxu0 %v257
      %290 = vmatpush1.msra.mxu0 %v256
      %291 = vmatprep.subr.mxu0 %v261
      %292 = vmatpush1.msra.mxu0 %v260
      %293 = vmatprep.subr.mxu0 %v265
      %294 = vmatpush1.msra.mxu0 %v264
      %295 = vmatprep.subr.mxu0 %v269
      %296 = vmatpush1.msra.mxu0 %v268
      %297 = vmatprep.subr.mxu0 %v273
      %298 = vmatpush1.msra.mxu0 %v272
      %299 = vmatprep.subr.mxu0 0.0
      %300 = vmatpush1.msra.mxu0 0.0
      %301 = vmatprep.subr.mxu0 0.0
      %302 = vmatpush1.msra.mxu0 0.0
      %303 = vmatprep.subr.mxu0 0.0
      %304 = vmatpush1.msra.mxu0 0.0
      %305 = vmatprep.subr.mxu0 0.0
      %306 = vmatpush1.msra.mxu0 0.0
      %307 = vmatprep.subr.mxu0 0.0
      %308 = vmatpush1.msra.mxu0 0.0
      %309 = vmatprep.subr.mxu0 0.0
      %310 = vmatpush1.msra.mxu0 0.0
      %311 = vmatprep.subr.mxu0 0.0
      %312 = vmatpush1.msra.mxu0 0.0
      %313 = vmatprep.subr.mxu0 0.0
      %314 = vmatpush1.msra.mxu0 0.0
      %315 = vmatprep.subr.mxu0 0.0
      %316 = vmatpush1.msra.mxu0 0.0
      %317 = vmatprep.subr.mxu0 0.0
      %318 = vmatpush1.msra.mxu0 0.0
      %319 = vmatprep.subr.mxu0 0.0
      %320 = vmatpush1.msra.mxu0 0.0
      %321 = vmatprep.subr.mxu0 0.0
      %322 = vmatpush1.msra.mxu0 0.0
      %323 = vmatprep.subr.mxu0 0.0
      %324 = vmatpush1.msra.mxu0 0.0
      %325 = vmatprep.subr.mxu0 0.0
      %326 = vmatpush1.msra.mxu0 0.0
      %327 = vmatprep.subr.mxu0 0.0
      %328 = vmatpush1.msra.mxu0 0.0
      %329 = vmatprep.subr.mxu0 0.0
      %330 = vmatpush1.msra.mxu0 0.0
      %331 = vmatprep.subr.mxu0 0.0
      %332 = vmatpush1.msra.mxu0 0.0
      %333 = vmatprep.subr.mxu0 0.0
      %334 = vmatpush1.msra.mxu0 0.0
      %335 = vmatprep.subr.mxu0 0.0
      %336 = vmatpush1.msra.mxu0 0.0
      %337 = vmatprep.subr.mxu0 0.0
      %338 = vmatpush1.msra.mxu0 0.0
      %339 = vmatprep.subr.mxu0 0.0
      %340 = vmatpush1.msra.mxu0 0.0
      %341 = vmatprep.subr.mxu0 0.0
      %342 = vmatpush1.msra.mxu0 0.0
      %343 = vmatprep.subr.mxu0 0.0
      %344 = vmatpush1.msra.mxu0 0.0
      %345 = vmatprep.subr.mxu0 0.0
      %346 = vmatpush1.msra.mxu0 0.0
      %347 = vmatprep.subr.mxu0 0.0
      %348 = vmatpush1.msra.mxu0 0.0
      %349 = vmatprep.subr.mxu0 0.0
      %350 = vmatpush1.msra.mxu0 0.0
      %351 = vmatprep.mubr.f32.mxu0 0.0
      %352 = vmatmul.mubr.f32.gmra.mrb[0].mxu0 %v285
      %v353 = vpop.f32.mrb[0].mxu0
      %v354 = vadd.f32 0.0, %v353
      %v355 = vpop.f32.mrb[0].mxu0
      %v356 = vadd.f32 0.0, %v355
      %357 = vdwg.mxu0
      %358 = vmatprep.subr.mxu0 %v255
      %359 = vmatpush1.msra.mxu0 %v254
      %360 = vmatprep.subr.mxu0 %v259
      %361 = vmatpush1.msra.mxu0 %v258
      %362 = vmatprep.subr.mxu0 %v263
      %363 = vmatpush1.msra.mxu0 %v262
      %364 = vmatprep.subr.mxu0 %v267
      %365 = vmatpush1.msra.mxu0 %v266
      %366 = vmatprep.subr.mxu0 %v271
      %367 = vmatpush1.msra.mxu0 %v270
      %368 = vmatprep.subr.mxu0 %v275
      %369 = vmatpush1.msra.mxu0 %v274
      %370 = vmatprep.subr.mxu0 0.0
      %371 = vmatpush1.msra.mxu0 0.0
      %372 = vmatprep.subr.mxu0 0.0
      %373 = vmatpush1.msra.mxu0 0.0
      %374 = vmatprep.subr.mxu0 0.0
      %375 = vmatpush1.msra.mxu0 0.0
      %376 = vmatprep.subr.mxu0 0.0
      %377 = vmatpush1.msra.mxu0 0.0
      %378 = vmatprep.subr.mxu0 0.0
      %379 = vmatpush1.msra.mxu0 0.0
      %380 = vmatprep.subr.mxu0 0.0
      %381 = vmatpush1.msra.mxu0 0.0
      %382 = vmatprep.subr.mxu0 0.0
      %383 = vmatpush1.msra.mxu0 0.0
      %384 = vmatprep.subr.mxu0 0.0
      %385 = vmatpush1.msra.mxu0 0.0
      %386 = vmatprep.subr.mxu0 0.0
      %387 = vmatpush1.msra.mxu0 0.0
      %388 = vmatprep.subr.mxu0 0.0
      %389 = vmatpush1.msra.mxu0 0.0
      %390 = vmatprep.subr.mxu0 0.0
      %391 = vmatpush1.msra.mxu0 0.0
      %392 = vmatprep.subr.mxu0 0.0
      %393 = vmatpush1.msra.mxu0 0.0
      %394 = vmatprep.subr.mxu0 0.0
      %395 = vmatpush1.msra.mxu0 0.0
      %396 = vmatprep.subr.mxu0 0.0
      %397 = vmatpush1.msra.mxu0 0.0
      %398 = vmatprep.subr.mxu0 0.0
      %399 = vmatpush1.msra.mxu0 0.0
      %400 = vmatprep.subr.mxu0 0.0
      %401 = vmatpush1.msra.mxu0 0.0
      %402 = vmatprep.subr.mxu0 0.0
      %403 = vmatpush1.msra.mxu0 0.0
      %404 = vmatprep.subr.mxu0 0.0
      %405 = vmatpush1.msra.mxu0 0.0
      %406 = vmatprep.subr.mxu0 0.0
      %407 = vmatpush1.msra.mxu0 0.0
      %408 = vmatprep.subr.mxu0 0.0
      %409 = vmatpush1.msra.mxu0 0.0
      %410 = vmatprep.subr.mxu0 0.0
      %411 = vmatpush1.msra.mxu0 0.0
      %412 = vmatprep.subr.mxu0 0.0
      %413 = vmatpush1.msra.mxu0 0.0
      %414 = vmatprep.subr.mxu0 0.0
      %415 = vmatpush1.msra.mxu0 0.0
      %416 = vmatprep.subr.mxu0 0.0
      %417 = vmatpush1.msra.mxu0 0.0
      %418 = vmatprep.subr.mxu0 0.0
      %419 = vmatpush1.msra.mxu0 0.0
      %420 = vmatprep.subr.mxu0 0.0
      %421 = vmatpush1.msra.mxu0 0.0
      %422 = vmatprep.mubr.f32.mxu0 0.0
      %423 = vmatmul.mubr.f32.gmra.mrb[0].mxu0 %v285
      %v424 = vpop.f32.mrb[0].mxu0
      %v425 = vadd.f32 0.0, %v424
      %v426 = vpop.f32.mrb[0].mxu0
      %v427 = vadd.f32 0.0, %v426
      %428 = vdwg.mxu0
      %v433 = vcombine.low %v354, %v356
      %v434 = vcombine.low %v425, %v427
      %v436 = vunpack.c.l.s4 1983009808
      %v437 = vunpack.c.0.s8 %v436
      %v438 = vlaneseq
      %v439 = vshrl.u32 %v438, 7
      %v440 = vsub.s32 %v437, %v439
      %v441 = vrot.slane %v433, %v440
      %v443 = vunpack.c.l.s4 1983009808
      %v444 = vunpack.c.0.s8 %v443
      %v445 = vlaneseq
      %v446 = vshrl.u32 %v445, 7
      %v447 = vsub.s32 %v444, %v446
      %v448 = vrot.slane %v434, %v447
      %v449 = vcombine.low %v441, %v448
      %v451 = vadd.f32 %v282, %v449
      %v452 = vxor.u32 %v451, 2147483648
      %v453 = vmul.f32 %v452, 1.442695
      %v454 = vpow.pop %v453
      %v455 = vadd.f32 %v454, 1.0
      %v456 = vrcp.pop %v455
      %v457 = vmul.f32 1.0, %v456
      %v459 = vrot.slane %v451, 2
      %v461 = vxor.u32 %v459, 2147483648
      %v462 = vmul.f32 %v461, 1.442695
      %v463 = vpow.pop %v462
      %v464 = vadd.f32 %v463, 1.0
      %v465 = vrcp.pop %v464
      %v466 = vmul.f32 1.0, %v465
      %v467 = vrot.slane %v451, 4
      %v469 = vtanh.pop %v467
      %v470 = vrot.slane %v451, 6
      %v472 = vxor.u32 %v470, 2147483648
      %v473 = vmul.f32 %v472, 1.442695
      %v474 = vpow.pop %v473
      %v475 = vadd.f32 %v474, 1.0
      %v476 = vrcp.pop %v475
      %v477 = vmul.f32 1.0, %v476
      %v478 = vmul.f32 %v466, %v277
      %v479 = vmul.f32 %v457, %v469
      %v480 = vadd.f32 %v478, %v479
      %v481 = vtanh.pop %v480
      %v482 = vmul.f32 %v477, %v481
      %s483 = smul.u32 %s278, 2
      %s484 = scalar_lea.vmem %s251, %s483
      %vm485 = vcmask 386048
      %486 = vst.msk [vmem:[%s484] sm:$0x3] %vm485, %v482
      %s487 = ssub.s32 1, %s15
      %s488 = smul.u32 %s15, 2
      %s489 = sadd.s32 %s487, %s488
      %s490 = smul.u32 %s489, 4
      %s491 = smul.addr %s490, 2
      %s492 = scalar_lea.vmem %s233, %s491
      %v493 = vld [vmem:[%s492] sm:$0xff]
      %v495 = vsel %vm283, %v482, 0
      %497 = vmatprep.subr.mxu0 %v253
      %498 = vmatpush1.msra.mxu0 %v252
      %499 = vmatprep.subr.mxu0 %v257
      %500 = vmatpush1.msra.mxu0 %v256
      %501 = vmatprep.subr.mxu0 %v261
      %502 = vmatpush1.msra.mxu0 %v260
      %503 = vmatprep.subr.mxu0 %v265
      %504 = vmatpush1.msra.mxu0 %v264
      %505 = vmatprep.subr.mxu0 %v269
      %506 = vmatpush1.msra.mxu0 %v268
      %507 = vmatprep.subr.mxu0 %v273
      %508 = vmatpush1.msra.mxu0 %v272
      %509 = vmatprep.subr.mxu0 0.0
      %510 = vmatpush1.msra.mxu0 0.0
      %511 = vmatprep.subr.mxu0 0.0
      %512 = vmatpush1.msra.mxu0 0.0
      %513 = vmatprep.subr.mxu0 0.0
      %514 = vmatpush1.msra.mxu0 0.0
      %515 = vmatprep.subr.mxu0 0.0
      %516 = vmatpush1.msra.mxu0 0.0
      %517 = vmatprep.subr.mxu0 0.0
      %518 = vmatpush1.msra.mxu0 0.0
      %519 = vmatprep.subr.mxu0 0.0
      %520 = vmatpush1.msra.mxu0 0.0
      %521 = vmatprep.subr.mxu0 0.0
      %522 = vmatpush1.msra.mxu0 0.0
      %523 = vmatprep.subr.mxu0 0.0
      %524 = vmatpush1.msra.mxu0 0.0
      %525 = vmatprep.subr.mxu0 0.0
      %526 = vmatpush1.msra.mxu0 0.0
      %527 = vmatprep.subr.mxu0 0.0
      %528 = vmatpush1.msra.mxu0 0.0
      %529 = vmatprep.subr.mxu0 0.0
      %530 = vmatpush1.msra.mxu0 0.0
      %531 = vmatprep.subr.mxu0 0.0
      %532 = vmatpush1.msra.mxu0 0.0
      %533 = vmatprep.subr.mxu0 0.0
      %534 = vmatpush1.msra.mxu0 0.0
      %535 = vmatprep.subr.mxu0 0.0
      %536 = vmatpush1.msra.mxu0 0.0
      %537 = vmatprep.subr.mxu0 0.0
      %538 = vmatpush1.msra.mxu0 0.0
      %539 = vmatprep.subr.mxu0 0.0
      %540 = vmatpush1.msra.mxu0 0.0
      %541 = vmatprep.subr.mxu0 0.0
      %542 = vmatpush1.msra.mxu0 0.0
      %543 = vmatprep.subr.mxu0 0.0
      %544 = vmatpush1.msra.mxu0 0.0
      %545 = vmatprep.subr.mxu0 0.0
      %546 = vmatpush1.msra.mxu0 0.0
      %547 = vmatprep.subr.mxu0 0.0
      %548 = vmatpush1.msra.mxu0 0.0
      %549 = vmatprep.subr.mxu0 0.0
      %550 = vmatpush1.msra.mxu0 0.0
      %551 = vmatprep.subr.mxu0 0.0
      %552 = vmatpush1.msra.mxu0 0.0
      %553 = vmatprep.subr.mxu0 0.0
      %554 = vmatpush1.msra.mxu0 0.0
      %555 = vmatprep.subr.mxu0 0.0
      %556 = vmatpush1.msra.mxu0 0.0
      %557 = vmatprep.subr.mxu0 0.0
      %558 = vmatpush1.msra.mxu0 0.0
      %559 = vmatprep.subr.mxu0 0.0
      %560 = vmatpush1.msra.mxu0 0.0
      %561 = vmatprep.mubr.f32.mxu0 0.0
      %562 = vmatmul.mubr.f32.gmra.mrb[0].mxu0 %v495
      %v563 = vpop.f32.mrb[0].mxu0
      %v564 = vadd.f32 0.0, %v563
      %v565 = vpop.f32.mrb[0].mxu0
      %v566 = vadd.f32 0.0, %v565
      %567 = vdwg.mxu0
      %568 = vmatprep.subr.mxu0 %v255
      %569 = vmatpush1.msra.mxu0 %v254
      %570 = vmatprep.subr.mxu0 %v259
      %571 = vmatpush1.msra.mxu0 %v258
      %572 = vmatprep.subr.mxu0 %v263
      %573 = vmatpush1.msra.mxu0 %v262
      %574 = vmatprep.subr.mxu0 %v267
      %575 = vmatpush1.msra.mxu0 %v266
      %576 = vmatprep.subr.mxu0 %v271
      %577 = vmatpush1.msra.mxu0 %v270
      %578 = vmatprep.subr.mxu0 %v275
      %579 = vmatpush1.msra.mxu0 %v274
      %580 = vmatprep.subr.mxu0 0.0
      %581 = vmatpush1.msra.mxu0 0.0
      %582 = vmatprep.subr.mxu0 0.0
      %583 = vmatpush1.msra.mxu0 0.0
      %584 = vmatprep.subr.mxu0 0.0
      %585 = vmatpush1.msra.mxu0 0.0
      %586 = vmatprep.subr.mxu0 0.0
      %587 = vmatpush1.msra.mxu0 0.0
      %588 = vmatprep.subr.mxu0 0.0
      %589 = vmatpush1.msra.mxu0 0.0
      %590 = vmatprep.subr.mxu0 0.0
      %591 = vmatpush1.msra.mxu0 0.0
      %592 = vmatprep.subr.mxu0 0.0
      %593 = vmatpush1.msra.mxu0 0.0
      %594 = vmatprep.subr.mxu0 0.0
      %595 = vmatpush1.msra.mxu0 0.0
      %596 = vmatprep.subr.mxu0 0.0
      %597 = vmatpush1.msra.mxu0 0.0
      %598 = vmatprep.subr.mxu0 0.0
      %599 = vmatpush1.msra.mxu0 0.0
      %600 = vmatprep.subr.mxu0 0.0
      %601 = vmatpush1.msra.mxu0 0.0
      %602 = vmatprep.subr.mxu0 0.0
      %603 = vmatpush1.msra.mxu0 0.0
      %604 = vmatprep.subr.mxu0 0.0
      %605 = vmatpush1.msra.mxu0 0.0
      %606 = vmatprep.subr.mxu0 0.0
      %607 = vmatpush1.msra.mxu0 0.0
      %608 = vmatprep.subr.mxu0 0.0
      %609 = vmatpush1.msra.mxu0 0.0
      %610 = vmatprep.subr.mxu0 0.0
      %611 = vmatpush1.msra.mxu0 0.0
      %612 = vmatprep.subr.mxu0 0.0
      %613 = vmatpush1.msra.mxu0 0.0
      %614 = vmatprep.subr.mxu0 0.0
      %615 = vmatpush1.msra.mxu0 0.0
      %616 = vmatprep.subr.mxu0 0.0
      %617 = vmatpush1.msra.mxu0 0.0
      %618 = vmatprep.subr.mxu0 0.0
      %619 = vmatpush1.msra.mxu0 0.0
      %620 = vmatprep.subr.mxu0 0.0
      %621 = vmatpush1.msra.mxu0 0.0
      %622 = vmatprep.subr.mxu0 0.0
      %623 = vmatpush1.msra.mxu0 0.0
      %624 = vmatprep.subr.mxu0 0.0
      %625 = vmatpush1.msra.mxu0 0.0
      %626 = vmatprep.subr.mxu0 0.0
      %627 = vmatpush1.msra.mxu0 0.0
      %628 = vmatprep.subr.mxu0 0.0
      %629 = vmatpush1.msra.mxu0 0.0
      %630 = vmatprep.subr.mxu0 0.0
      %631 = vmatpush1.msra.mxu0 0.0
      %632 = vmatprep.mubr.f32.mxu0 0.0
      %633 = vmatmul.mubr.f32.gmra.mrb[0].mxu0 %v495
      %v634 = vpop.f32.mrb[0].mxu0
      %v635 = vadd.f32 0.0, %v634
      %v636 = vpop.f32.mrb[0].mxu0
      %v637 = vadd.f32 0.0, %v636
      %638 = vdwg.mxu0
      %v643 = vcombine.low %v564, %v566
      %v644 = vcombine.low %v635, %v637
      %v646 = vunpack.c.l.s4 1983009808
      %v647 = vunpack.c.0.s8 %v646
      %v648 = vlaneseq
      %v649 = vshrl.u32 %v648, 7
      %v650 = vsub.s32 %v647, %v649
      %v651 = vrot.slane %v643, %v650
      %v653 = vunpack.c.l.s4 1983009808
      %v654 = vunpack.c.0.s8 %v653
      %v655 = vlaneseq
      %v656 = vshrl.u32 %v655, 7
      %v657 = vsub.s32 %v654, %v656
      %v658 = vrot.slane %v644, %v657
      %v659 = vcombine.low %v651, %v658
      %v661 = vadd.f32 %v493, %v659
      %v662 = vxor.u32 %v661, 2147483648
      %v663 = vmul.f32 %v662, 1.442695
      %v664 = vpow.pop %v663
      %v665 = vadd.f32 %v664, 1.0
      %v666 = vrcp.pop %v665
      %v667 = vmul.f32 1.0, %v666
      %v669 = vrot.slane %v661, 2
      %v671 = vxor.u32 %v669, 2147483648
      %v672 = vmul.f32 %v671, 1.442695
      %v673 = vpow.pop %v672
      %v674 = vadd.f32 %v673, 1.0
      %v675 = vrcp.pop %v674
      %v676 = vmul.f32 1.0, %v675
      %v677 = vrot.slane %v661, 4
      %v679 = vtanh.pop %v677
      %v680 = vrot.slane %v661, 6
      %v682 = vxor.u32 %v680, 2147483648
      %v683 = vmul.f32 %v682, 1.442695
      %v684 = vpow.pop %v683
      %v685 = vadd.f32 %v684, 1.0
      %v686 = vrcp.pop %v685
      %v687 = vmul.f32 1.0, %v686
      %v688 = vmul.f32 %v676, %v480
      %v689 = vmul.f32 %v667, %v679
      %v690 = vadd.f32 %v688, %v689
      %v691 = vtanh.pop %v690
      %v692 = vmul.f32 %v687, %v691
      %s693 = smul.u32 %s489, 2
      %s694 = scalar_lea.vmem %s251, %s693
      %695 = vst.msk [vmem:[%s694] sm:$0x3] %vm485, %v692
      %s696 = smul.u32 %s487, 2
      %s697 = sadd.s32 %s696, %s15
      %s698 = smul.u32 %s697, 4
      %s699 = smul.addr %s698, 2
      %s700 = scalar_lea.vmem %s233, %s699
      %v701 = vld [vmem:[%s700] sm:$0xff]
      %v703 = vsel %vm283, %v692, 0
      %705 = vmatprep.subr.mxu0 %v253
      %706 = vmatpush1.msra.mxu0 %v252
      %707 = vmatprep.subr.mxu0 %v257
      %708 = vmatpush1.msra.mxu0 %v256
      %709 = vmatprep.subr.mxu0 %v261
      %710 = vmatpush1.msra.mxu0 %v260
      %711 = vmatprep.subr.mxu0 %v265
      %712 = vmatpush1.msra.mxu0 %v264
      %713 = vmatprep.subr.mxu0 %v269
      %714 = vmatpush1.msra.mxu0 %v268
      %715 = vmatprep.subr.mxu0 %v273
      %716 = vmatpush1.msra.mxu0 %v272
      %717 = vmatprep.subr.mxu0 0.0
      %718 = vmatpush1.msra.mxu0 0.0
      %719 = vmatprep.subr.mxu0 0.0
      %720 = vmatpush1.msra.mxu0 0.0
      %721 = vmatprep.subr.mxu0 0.0
      %722 = vmatpush1.msra.mxu0 0.0
      %723 = vmatprep.subr.mxu0 0.0
      %724 = vmatpush1.msra.mxu0 0.0
      %725 = vmatprep.subr.mxu0 0.0
      %726 = vmatpush1.msra.mxu0 0.0
      %727 = vmatprep.subr.mxu0 0.0
      %728 = vmatpush1.msra.mxu0 0.0
      %729 = vmatprep.subr.mxu0 0.0
      %730 = vmatpush1.msra.mxu0 0.0
      %731 = vmatprep.subr.mxu0 0.0
      %732 = vmatpush1.msra.mxu0 0.0
      %733 = vmatprep.subr.mxu0 0.0
      %734 = vmatpush1.msra.mxu0 0.0
      %735 = vmatprep.subr.mxu0 0.0
      %736 = vmatpush1.msra.mxu0 0.0
      %737 = vmatprep.subr.mxu0 0.0
      %738 = vmatpush1.msra.mxu0 0.0
      %739 = vmatprep.subr.mxu0 0.0
      %740 = vmatpush1.msra.mxu0 0.0
      %741 = vmatprep.subr.mxu0 0.0
      %742 = vmatpush1.msra.mxu0 0.0
      %743 = vmatprep.subr.mxu0 0.0
      %744 = vmatpush1.msra.mxu0 0.0
      %745 = vmatprep.subr.mxu0 0.0
      %746 = vmatpush1.msra.mxu0 0.0
      %747 = vmatprep.subr.mxu0 0.0
      %748 = vmatpush1.msra.mxu0 0.0
      %749 = vmatprep.subr.mxu0 0.0
      %750 = vmatpush1.msra.mxu0 0.0
      %751 = vmatprep.subr.mxu0 0.0
      %752 = vmatpush1.msra.mxu0 0.0
      %753 = vmatprep.subr.mxu0 0.0
      %754 = vmatpush1.msra.mxu0 0.0
      %755 = vmatprep.subr.mxu0 0.0
      %756 = vmatpush1.msra.mxu0 0.0
      %757 = vmatprep.subr.mxu0 0.0
      %758 = vmatpush1.msra.mxu0 0.0
      %759 = vmatprep.subr.mxu0 0.0
      %760 = vmatpush1.msra.mxu0 0.0
      %761 = vmatprep.subr.mxu0 0.0
      %762 = vmatpush1.msra.mxu0 0.0
      %763 = vmatprep.subr.mxu0 0.0
      %764 = vmatpush1.msra.mxu0 0.0
      %765 = vmatprep.subr.mxu0 0.0
      %766 = vmatpush1.msra.mxu0 0.0
      %767 = vmatprep.subr.mxu0 0.0
      %768 = vmatpush1.msra.mxu0 0.0
      %769 = vmatprep.mubr.f32.mxu0 0.0
      %770 = vmatmul.mubr.f32.gmra.mrb[0].mxu0 %v703
      %v771 = vpop.f32.mrb[0].mxu0
      %v772 = vadd.f32 0.0, %v771
      %v773 = vpop.f32.mrb[0].mxu0
      %v774 = vadd.f32 0.0, %v773
      %775 = vdwg.mxu0
      %776 = vmatprep.subr.mxu0 %v255
      %777 = vmatpush1.msra.mxu0 %v254
      %778 = vmatprep.subr.mxu0 %v259
      %779 = vmatpush1.msra.mxu0 %v258
      %780 = vmatprep.subr.mxu0 %v263
      %781 = vmatpush1.msra.mxu0 %v262
      %782 = vmatprep.subr.mxu0 %v267
      %783 = vmatpush1.msra.mxu0 %v266
      %784 = vmatprep.subr.mxu0 %v271
      %785 = vmatpush1.msra.mxu0 %v270
      %786 = vmatprep.subr.mxu0 %v275
      %787 = vmatpush1.msra.mxu0 %v274
      %788 = vmatprep.subr.mxu0 0.0
      %789 = vmatpush1.msra.mxu0 0.0
      %790 = vmatprep.subr.mxu0 0.0
      %791 = vmatpush1.msra.mxu0 0.0
      %792 = vmatprep.subr.mxu0 0.0
      %793 = vmatpush1.msra.mxu0 0.0
      %794 = vmatprep.subr.mxu0 0.0
      %795 = vmatpush1.msra.mxu0 0.0
      %796 = vmatprep.subr.mxu0 0.0
      %797 = vmatpush1.msra.mxu0 0.0
      %798 = vmatprep.subr.mxu0 0.0
      %799 = vmatpush1.msra.mxu0 0.0
      %800 = vmatprep.subr.mxu0 0.0
      %801 = vmatpush1.msra.mxu0 0.0
      %802 = vmatprep.subr.mxu0 0.0
      %803 = vmatpush1.msra.mxu0 0.0
      %804 = vmatprep.subr.mxu0 0.0
      %805 = vmatpush1.msra.mxu0 0.0
      %806 = vmatprep.subr.mxu0 0.0
      %807 = vmatpush1.msra.mxu0 0.0
      %808 = vmatprep.subr.mxu0 0.0
      %809 = vmatpush1.msra.mxu0 0.0
      %810 = vmatprep.subr.mxu0 0.0
      %811 = vmatpush1.msra.mxu0 0.0
      %812 = vmatprep.subr.mxu0 0.0
      %813 = vmatpush1.msra.mxu0 0.0
      %814 = vmatprep.subr.mxu0 0.0
      %815 = vmatpush1.msra.mxu0 0.0
      %816 = vmatprep.subr.mxu0 0.0
      %817 = vmatpush1.msra.mxu0 0.0
      %818 = vmatprep.subr.mxu0 0.0
      %819 = vmatpush1.msra.mxu0 0.0
      %820 = vmatprep.subr.mxu0 0.0
      %821 = vmatpush1.msra.mxu0 0.0
      %822 = vmatprep.subr.mxu0 0.0
      %823 = vmatpush1.msra.mxu0 0.0
      %824 = vmatprep.subr.mxu0 0.0
      %825 = vmatpush1.msra.mxu0 0.0
      %826 = vmatprep.subr.mxu0 0.0
      %827 = vmatpush1.msra.mxu0 0.0
      %828 = vmatprep.subr.mxu0 0.0
      %829 = vmatpush1.msra.mxu0 0.0
      %830 = vmatprep.subr.mxu0 0.0
      %831 = vmatpush1.msra.mxu0 0.0
      %832 = vmatprep.subr.mxu0 0.0
      %833 = vmatpush1.msra.mxu0 0.0
      %834 = vmatprep.subr.mxu0 0.0
      %835 = vmatpush1.msra.mxu0 0.0
      %836 = vmatprep.subr.mxu0 0.0
      %837 = vmatpush1.msra.mxu0 0.0
      %838 = vmatprep.subr.mxu0 0.0
      %839 = vmatpush1.msra.mxu0 0.0
      %840 = vmatprep.mubr.f32.mxu0 0.0
      %841 = vmatmul.mubr.f32.gmra.mrb[0].mxu0 %v703
      %v842 = vpop.f32.mrb[0].mxu0
      %v843 = vadd.f32 0.0, %v842
      %v844 = vpop.f32.mrb[0].mxu0
      %v845 = vadd.f32 0.0, %v844
      %846 = vdwg.mxu0
      %v851 = vcombine.low %v772, %v774
      %v852 = vcombine.low %v843, %v845
      %v854 = vunpack.c.l.s4 1983009808
      %v855 = vunpack.c.0.s8 %v854
      %v856 = vlaneseq
      %v857 = vshrl.u32 %v856, 7
      %v858 = vsub.s32 %v855, %v857
      %v859 = vrot.slane %v851, %v858
      %v861 = vunpack.c.l.s4 1983009808
      %v862 = vunpack.c.0.s8 %v861
      %v863 = vlaneseq
      %v864 = vshrl.u32 %v863, 7
      %v865 = vsub.s32 %v862, %v864
      %v866 = vrot.slane %v852, %v865
      %v867 = vcombine.low %v859, %v866
      %v869 = vadd.f32 %v701, %v867
      %v870 = vxor.u32 %v869, 2147483648
      %v871 = vmul.f32 %v870, 1.442695
      %v872 = vpow.pop %v871
      %v873 = vadd.f32 %v872, 1.0
      %v874 = vrcp.pop %v873
      %v875 = vmul.f32 1.0, %v874
      %v877 = vrot.slane %v869, 2
      %v879 = vxor.u32 %v877, 2147483648
      %v880 = vmul.f32 %v879, 1.442695
      %v881 = vpow.pop %v880
      %v882 = vadd.f32 %v881, 1.0
      %v883 = vrcp.pop %v882
      %v884 = vmul.f32 1.0, %v883
      %v885 = vrot.slane %v869, 4
      %v887 = vtanh.pop %v885
      %v888 = vrot.slane %v869, 6
      %v890 = vxor.u32 %v888, 2147483648
      %v891 = vmul.f32 %v890, 1.442695
      %v892 = vpow.pop %v891
      %v893 = vadd.f32 %v892, 1.0
      %v894 = vrcp.pop %v893
      %v895 = vmul.f32 1.0, %v894
      %v896 = vmul.f32 %v884, %v690
      %v897 = vmul.f32 %v875, %v887
      %v898 = vadd.f32 %v896, %v897
      %v899 = vtanh.pop %v898
      %v900 = vmul.f32 %v895, %v899
      %s901 = smul.u32 %s697, 2
      %s902 = scalar_lea.vmem %s251, %s901
      %903 = vst.msk [vmem:[%s902] sm:$0x3] %vm485, %v900
      %s904 = smul.u32 %s487, 3
      %s905 = smul.u32 %s904, 4
      %s906 = smul.addr %s905, 2
      %s907 = scalar_lea.vmem %s233, %s906
      %v908 = vld [vmem:[%s907] sm:$0xff]
      %v910 = vsel %vm283, %v900, 0
      %912 = vmatprep.subr.mxu0 %v253
      %913 = vmatpush1.msra.mxu0 %v252
      %914 = vmatprep.subr.mxu0 %v257
      %915 = vmatpush1.msra.mxu0 %v256
      %916 = vmatprep.subr.mxu0 %v261
      %917 = vmatpush1.msra.mxu0 %v260
      %918 = vmatprep.subr.mxu0 %v265
      %919 = vmatpush1.msra.mxu0 %v264
      %920 = vmatprep.subr.mxu0 %v269
      %921 = vmatpush1.msra.mxu0 %v268
      %922 = vmatprep.subr.mxu0 %v273
      %923 = vmatpush1.msra.mxu0 %v272
      %924 = vmatprep.subr.mxu0 0.0
      %925 = vmatpush1.msra.mxu0 0.0
      %926 = vmatprep.subr.mxu0 0.0
      %927 = vmatpush1.msra.mxu0 0.0
      %928 = vmatprep.subr.mxu0 0.0
      %929 = vmatpush1.msra.mxu0 0.0
      %930 = vmatprep.subr.mxu0 0.0
      %931 = vmatpush1.msra.mxu0 0.0
      %932 = vmatprep.subr.mxu0 0.0
      %933 = vmatpush1.msra.mxu0 0.0
      %934 = vmatprep.subr.mxu0 0.0
      %935 = vmatpush1.msra.mxu0 0.0
      %936 = vmatprep.subr.mxu0 0.0
      %937 = vmatpush1.msra.mxu0 0.0
      %938 = vmatprep.subr.mxu0 0.0
      %939 = vmatpush1.msra.mxu0 0.0
      %940 = vmatprep.subr.mxu0 0.0
      %941 = vmatpush1.msra.mxu0 0.0
      %942 = vmatprep.subr.mxu0 0.0
      %943 = vmatpush1.msra.mxu0 0.0
      %944 = vmatprep.subr.mxu0 0.0
      %945 = vmatpush1.msra.mxu0 0.0
      %946 = vmatprep.subr.mxu0 0.0
      %947 = vmatpush1.msra.mxu0 0.0
      %948 = vmatprep.subr.mxu0 0.0
      %949 = vmatpush1.msra.mxu0 0.0
      %950 = vmatprep.subr.mxu0 0.0
      %951 = vmatpush1.msra.mxu0 0.0
      %952 = vmatprep.subr.mxu0 0.0
      %953 = vmatpush1.msra.mxu0 0.0
      %954 = vmatprep.subr.mxu0 0.0
      %955 = vmatpush1.msra.mxu0 0.0
      %956 = vmatprep.subr.mxu0 0.0
      %957 = vmatpush1.msra.mxu0 0.0
      %958 = vmatprep.subr.mxu0 0.0
      %959 = vmatpush1.msra.mxu0 0.0
      %960 = vmatprep.subr.mxu0 0.0
      %961 = vmatpush1.msra.mxu0 0.0
      %962 = vmatprep.subr.mxu0 0.0
      %963 = vmatpush1.msra.mxu0 0.0
      %964 = vmatprep.subr.mxu0 0.0
      %965 = vmatpush1.msra.mxu0 0.0
      %966 = vmatprep.subr.mxu0 0.0
      %967 = vmatpush1.msra.mxu0 0.0
      %968 = vmatprep.subr.mxu0 0.0
      %969 = vmatpush1.msra.mxu0 0.0
      %970 = vmatprep.subr.mxu0 0.0
      %971 = vmatpush1.msra.mxu0 0.0
      %972 = vmatprep.subr.mxu0 0.0
      %973 = vmatpush1.msra.mxu0 0.0
      %974 = vmatprep.subr.mxu0 0.0
      %975 = vmatpush1.msra.mxu0 0.0
      %976 = vmatprep.mubr.f32.mxu0 0.0
      %977 = vmatmul.mubr.f32.gmra.mrb[0].mxu0 %v910
      %v978 = vpop.f32.mrb[0].mxu0
      %v979 = vadd.f32 0.0, %v978
      %v980 = vpop.f32.mrb[0].mxu0
      %v981 = vadd.f32 0.0, %v980
      %982 = vdwg.mxu0
      %983 = vmatprep.subr.mxu0 %v255
      %984 = vmatpush1.msra.mxu0 %v254
      %985 = vmatprep.subr.mxu0 %v259
      %986 = vmatpush1.msra.mxu0 %v258
      %987 = vmatprep.subr.mxu0 %v263
      %988 = vmatpush1.msra.mxu0 %v262
      %989 = vmatprep.subr.mxu0 %v267
      %990 = vmatpush1.msra.mxu0 %v266
      %991 = vmatprep.subr.mxu0 %v271
      %992 = vmatpush1.msra.mxu0 %v270
      %993 = vmatprep.subr.mxu0 %v275
      %994 = vmatpush1.msra.mxu0 %v274
      %995 = vmatprep.subr.mxu0 0.0
      %996 = vmatpush1.msra.mxu0 0.0
      %997 = vmatprep.subr.mxu0 0.0
      %998 = vmatpush1.msra.mxu0 0.0
      %999 = vmatprep.subr.mxu0 0.0
      %1000 = vmatpush1.msra.mxu0 0.0
      %1001 = vmatprep.subr.mxu0 0.0
      %1002 = vmatpush1.msra.mxu0 0.0
      %1003 = vmatprep.subr.mxu0 0.0
      %1004 = vmatpush1.msra.mxu0 0.0
      %1005 = vmatprep.subr.mxu0 0.0
      %1006 = vmatpush1.msra.mxu0 0.0
      %1007 = vmatprep.subr.mxu0 0.0
      %1008 = vmatpush1.msra.mxu0 0.0
      %1009 = vmatprep.subr.mxu0 0.0
      %1010 = vmatpush1.msra.mxu0 0.0
      %1011 = vmatprep.subr.mxu0 0.0
      %1012 = vmatpush1.msra.mxu0 0.0
      %1013 = vmatprep.subr.mxu0 0.0
      %1014 = vmatpush1.msra.mxu0 0.0
      %1015 = vmatprep.subr.mxu0 0.0
      %1016 = vmatpush1.msra.mxu0 0.0
      %1017 = vmatprep.subr.mxu0 0.0
      %1018 = vmatpush1.msra.mxu0 0.0
      %1019 = vmatprep.subr.mxu0 0.0
      %1020 = vmatpush1.msra.mxu0 0.0
      %1021 = vmatprep.subr.mxu0 0.0
      %1022 = vmatpush1.msra.mxu0 0.0
      %1023 = vmatprep.subr.mxu0 0.0
      %1024 = vmatpush1.msra.mxu0 0.0
      %1025 = vmatprep.subr.mxu0 0.0
      %1026 = vmatpush1.msra.mxu0 0.0
      %1027 = vmatprep.subr.mxu0 0.0
      %1028 = vmatpush1.msra.mxu0 0.0
      %1029 = vmatprep.subr.mxu0 0.0
      %1030 = vmatpush1.msra.mxu0 0.0
      %1031 = vmatprep.subr.mxu0 0.0
      %1032 = vmatpush1.msra.mxu0 0.0
      %1033 = vmatprep.subr.mxu0 0.0
      %1034 = vmatpush1.msra.mxu0 0.0
      %1035 = vmatprep.subr.mxu0 0.0
      %1036 = vmatpush1.msra.mxu0 0.0
      %1037 = vmatprep.subr.mxu0 0.0
      %1038 = vmatpush1.msra.mxu0 0.0
      %1039 = vmatprep.subr.mxu0 0.0
      %1040 = vmatpush1.msra.mxu0 0.0
      %1041 = vmatprep.subr.mxu0 0.0
      %1042 = vmatpush1.msra.mxu0 0.0
      %1043 = vmatprep.subr.mxu0 0.0
      %1044 = vmatpush1.msra.mxu0 0.0
      %1045 = vmatprep.subr.mxu0 0.0
      %1046 = vmatpush1.msra.mxu0 0.0
      %1047 = vmatprep.mubr.f32.mxu0 0.0
      %1048 = vmatmul.mubr.f32.gmra.mrb[0].mxu0 %v910
      %v1049 = vpop.f32.mrb[0].mxu0
      %v1050 = vadd.f32 0.0, %v1049
      %v1051 = vpop.f32.mrb[0].mxu0
      %v1052 = vadd.f32 0.0, %v1051
      %1053 = vdwg.mxu0
      %v1058 = vcombine.low %v979, %v981
      %v1059 = vcombine.low %v1050, %v1052
      %v1061 = vunpack.c.l.s4 1983009808
      %v1062 = vunpack.c.0.s8 %v1061
      %v1063 = vlaneseq
      %v1064 = vshrl.u32 %v1063, 7
      %v1065 = vsub.s32 %v1062, %v1064
      %v1066 = vrot.slane %v1058, %v1065
      %v1068 = vunpack.c.l.s4 1983009808
      %v1069 = vunpack.c.0.s8 %v1068
      %v1070 = vlaneseq
      %v1071 = vshrl.u32 %v1070, 7
      %v1072 = vsub.s32 %v1069, %v1071
      %v1073 = vrot.slane %v1059, %v1072
      %v1074 = vcombine.low %v1066, %v1073
      %v1076 = vadd.f32 %v908, %v1074
      %v1077 = vxor.u32 %v1076, 2147483648
      %v1078 = vmul.f32 %v1077, 1.442695
      %v1079 = vpow.pop %v1078
      %v1080 = vadd.f32 %v1079, 1.0
      %v1081 = vrcp.pop %v1080
      %v1082 = vmul.f32 1.0, %v1081
      %v1084 = vrot.slane %v1076, 2
      %v1086 = vxor.u32 %v1084, 2147483648
      %v1087 = vmul.f32 %v1086, 1.442695
      %v1088 = vpow.pop %v1087
      %v1089 = vadd.f32 %v1088, 1.0
      %v1090 = vrcp.pop %v1089
      %v1091 = vmul.f32 1.0, %v1090
      %v1092 = vrot.slane %v1076, 4
      %v1094 = vtanh.pop %v1092
      %v1095 = vrot.slane %v1076, 6
      %v1097 = vxor.u32 %v1095, 2147483648
      %v1098 = vmul.f32 %v1097, 1.442695
      %v1099 = vpow.pop %v1098
      %v1100 = vadd.f32 %v1099, 1.0
      %v1101 = vrcp.pop %v1100
      %v1102 = vmul.f32 1.0, %v1101
      %v1103 = vmul.f32 %v1091, %v898
      %v1104 = vmul.f32 %v1082, %v1094
      %v1105 = vadd.f32 %v1103, %v1104
      %v1106 = vtanh.pop %v1105
      %v1107 = vmul.f32 %v1102, %v1106
      %s1108 = smul.u32 %s904, 2
      %s1109 = scalar_lea.vmem %s251, %s1108
      %1110 = vst.msk [vmem:[%s1109] sm:$0x3] %vm485, %v1107
      %p1111 = scmp.lt.s32.totalorder %s15, 1
      %s1112 = scalar_select %p1111, %s15, 1
      %s1113 = smul.addr %s1112, 4
      %s1114 = smul.addr %s1113, 2
      %s1115 = scalar_lea.vmem %s4, %s1114
      // Predicated region
      $region37: #{vr_pct_forward.13} parent=35 // pred_check
        %p1116 = pneg %p137
      $region38: #{vr_pct_forward.13} parent=35 // pred_check_branch
        %1118 = sbr.rel (%p1116) target = $region40
      $region39: #{vr_pct_forward.13} parent=35 // pred_region
        _
      $region40: #{vr_pct_forward.13} parent=35 // pred_fallthru
        _
    $region36: #{vr_pct_forward.13} parent=5 // pred_fallthru
      _
    %p1119 = scmp.le.s32.totalorder 2, %s10
    // Predicated region
    $region41: #{vr_pct_forward.13} parent=5 // pred_check
      %p1120 = pneg %p1119
    $region42: #{vr_pct_forward.13} parent=5 // pred_check_branch
      %1122 = sbr.rel (%p1120) target = $region44
    $region43: #{vr_pct_forward.13} parent=5 // pred_region
      %s1123 = ssub.s32 %s10, 2
      // Predicated region
      $region45: #{vr_pct_forward.13} parent=43 // pred_check
        %p1124 = pneg %p143
      $region46: #{vr_pct_forward.13} parent=43 // pred_check_branch
        %1126 = sbr.rel (%p1124) target = $region48
      $region47: #{vr_pct_forward.13} parent=43 // pred_region
        %p1127 = scmp.lt.s32.totalorder %s16, 1
        %s1128 = scalar_select %p1127, %s16, 1
        %s1129 = smul.addr %s1128, 4
        %s1130 = smul.addr %s1129, 2
        %s1131 = scalar_lea.vmem %s4, %s1130
      $region48: #{vr_pct_forward.13} parent=43 // pred_fallthru
        _
    $region44: #{vr_pct_forward.13} parent=5 // pred_fallthru
      _
  $region6: #{vr_pct_forward.13} parent=0 // loop_footer
    %s14 = sadd.s32 1, %s10
  $region7: #{vr_pct_forward.13} parent=0 // loop_footer_branch
    %9 = sbr.rel target = $region3
  $region8: #{vr_pct_forward.13} parent=0 // loop_exit
    _

// kernel: squeeze.3
$region0: #{squeeze.3}
  %s0 = inlined_call_operand.vmem [shape: f32[1,8,512], index: 0, kind: input, shape index: {}]
  %s1 = inlined_call_operand.vmem [shape: f32[4,2,512], index: 1, kind: output, shape index: {}]
  $region1: #{squeeze.3} parent=0
    #allocation0 [shape = 'u8[65536]{0}', space=vmem, size = 0x10000, scoped, tag = 'scoped mem for output reshape']
    %v2 = vld [vmem:[%s0] sm:$0xff]
    %3 = vst [vmem:[#allocation0] sm:$0x3] %v2
    %s4 = scalar_lea.vmem [#allocation0], 30
    %5 = vst [vmem:[%s4] sm:$0xc] %v2
    %s6 = scalar_lea.vmem [#allocation0], 60
    %7 = vst [vmem:[%s6] sm:$0x30] %v2
    %s8 = scalar_lea.vmem [#allocation0], 90
    %9 = vst [vmem:[%s8] sm:$0xc0] %v2
    %s10 = scalar_lea.vmem %s0, 8
    %v11 = vld [vmem:[%s10] sm:$0xff]
    %s12 = scalar_lea.vmem [#allocation0], 8
    %13 = vst [vmem:[%s12] sm:$0x3] %v11
    %s14 = scalar_lea.vmem [#allocation0], 38
    %15 = vst [vmem:[%s14] sm:$0xc] %v11
    %s16 = scalar_lea.vmem [#allocation0], 68
    %17 = vst [vmem:[%s16] sm:$0x30] %v11
    %s18 = scalar_lea.vmem [#allocation0], 98
    %19 = vst [vmem:[%s18] sm:$0xc0] %v11
    %s20 = scalar_lea.vmem %s0, 16
    %v21 = vld [vmem:[%s20] sm:$0xff]
    %s22 = scalar_lea.vmem [#allocation0], 16
    %23 = vst [vmem:[%s22] sm:$0x3] %v21
    %s24 = scalar_lea.vmem [#allocation0], 46
    %25 = vst [vmem:[%s24] sm:$0xc] %v21
    %s26 = scalar_lea.vmem [#allocation0], 76
    %27 = vst [vmem:[%s26] sm:$0x30] %v21
    %s28 = scalar_lea.vmem [#allocation0], 106
    %29 = vst [vmem:[%s28] sm:$0xc0] %v21
    %s30 = scalar_lea.vmem %s0, 24
    %v31 = vld [vmem:[%s30] sm:$0xff]
    %s32 = scalar_lea.vmem [#allocation0], 24
    %33 = vst [vmem:[%s32] sm:$0x3] %v31
    %s34 = scalar_lea.vmem [#allocation0], 54
    %35 = vst [vmem:[%s34] sm:$0xc] %v31
    %s36 = scalar_lea.vmem [#allocation0], 84
    %37 = vst [vmem:[%s36] sm:$0x30] %v31
    %s38 = scalar_lea.vmem [#allocation0], 114
    %39 = vst [vmem:[%s38] sm:$0xc0] %v31
    %s41 = sshllo.u32 0, 2
    %v43 = vld [vmem:[#allocation0] sm:%s41]
    %s44 = sshllo.u32 0, 2
    %45 = vst [vmem:[%s1] sm:%s44] %v43
    %s46 = scalar_lea.vmem [#allocation0], 8
    %v47 = vld [vmem:[%s46] sm:%s41]
    %s48 = sshllo.u32 0, 2
    %s49 = scalar_lea.vmem %s1, 2
    %50 = vst [vmem:[%s49] sm:%s48] %v47
    %s51 = scalar_lea.vmem [#allocation0], 16
    %v52 = vld [vmem:[%s51] sm:%s41]
    %s53 = sshllo.u32 0, 2
    %s54 = smul.addr 2, 2
    %s55 = scalar_lea.vmem %s1, %s54
    %56 = vst [vmem:[%s55] sm:%s53] %v52
    %s57 = scalar_lea.vmem [#allocation0], 24
    %v58 = vld [vmem:[%s57] sm:%s41]
    %s59 = sshllo.u32 0, 2
    %s60 = smul.addr 2, 3
    %s61 = scalar_lea.vmem %s1, %s60
    %62 = vst [vmem:[%s61] sm:%s59] %v58
    %s63 = scalar_lea.vmem [#allocation0], 32
    %v64 = vld [vmem:[%s63] sm:%s41]
    %s65 = sshllo.u32 0, 2
    %s66 = smul.addr 2, 4
    %s67 = scalar_lea.vmem %s1, %s66
    %68 = vst [vmem:[%s67] sm:%s65] %v64
    %s69 = scalar_lea.vmem [#allocation0], 40
    %v70 = vld [vmem:[%s69] sm:%s41]
    %s71 = sshllo.u32 0, 2
    %s72 = smul.addr 2, 5
    %s73 = scalar_lea.vmem %s1, %s72
    %74 = vst [vmem:[%s73] sm:%s71] %v70
    %s75 = scalar_lea.vmem [#allocation0], 48
    %v76 = vld [vmem:[%s75] sm:%s41]
    %s77 = sshllo.u32 0, 2
    %s78 = smul.addr 2, 6
    %s79 = scalar_lea.vmem %s1, %s78
    %80 = vst [vmem:[%s79] sm:%s77] %v76
    %s81 = scalar_lea.vmem [#allocation0], 56
    %v82 = vld [vmem:[%s81] sm:%s41]
    %s83 = sshllo.u32 0, 2
    %s84 = smul.addr 2, 7
    %s85 = scalar_lea.vmem %s1, %s84
    %86 = vst [vmem:[%s85] sm:%s83] %v82
    %s87 = scalar_lea.vmem [#allocation0], 64
    %v88 = vld [vmem:[%s87] sm:%s41]
    %s89 = sshllo.u32 0, 2
    %s90 = smul.addr 2, 8
    %s91 = scalar_lea.vmem %s1, %s90
    %92 = vst [vmem:[%s91] sm:%s89] %v88
    %s93 = scalar_lea.vmem [#allocation0], 72
    %v94 = vld [vmem:[%s93] sm:%s41]
    %s95 = sshllo.u32 0, 2
    %s96 = smul.addr 2, 9
    %s97 = scalar_lea.vmem %s1, %s96
    %98 = vst [vmem:[%s97] sm:%s95] %v94
    %s99 = scalar_lea.vmem [#allocation0], 80
    %v100 = vld [vmem:[%s99] sm:%s41]
    %s101 = sshllo.u32 0, 2
    %s102 = smul.addr 2, 10
    %s103 = scalar_lea.vmem %s1, %s102
    %104 = vst [vmem:[%s103] sm:%s101] %v100
    %s105 = scalar_lea.vmem [#allocation0], 88
    %v106 = vld [vmem:[%s105] sm:%s41]
    %s107 = sshllo.u32 0, 2
    %s108 = smul.addr 2, 11
    %s109 = scalar_lea.vmem %s1, %s108
    %110 = vst [vmem:[%s109] sm:%s107] %v106
    %s111 = scalar_lea.vmem [#allocation0], 96
    %v112 = vld [vmem:[%s111] sm:%s41]
    %s113 = sshllo.u32 0, 2
    %s114 = smul.addr 2, 12
    %s115 = scalar_lea.vmem %s1, %s114
    %116 = vst [vmem:[%s115] sm:%s113] %v112
    %s117 = scalar_lea.vmem [#allocation0], 104
    %v118 = vld [vmem:[%s117] sm:%s41]
    %s119 = sshllo.u32 0, 2
    %s120 = smul.addr 2, 13
    %s121 = scalar_lea.vmem %s1, %s120
    %122 = vst [vmem:[%s121] sm:%s119] %v118
    %s123 = scalar_lea.vmem [#allocation0], 112
    %v124 = vld [vmem:[%s123] sm:%s41]
    %s125 = sshllo.u32 0, 2
    %s126 = smul.addr 2, 14
    %s127 = scalar_lea.vmem %s1, %s126
    %128 = vst [vmem:[%s127] sm:%s125] %v124
    %s129 = scalar_lea.vmem [#allocation0], 120
    %v130 = vld [vmem:[%s129] sm:%s41]
    %s131 = sshllo.u32 0, 2
    %s132 = smul.addr 2, 15
    %s133 = scalar_lea.vmem %s1, %s132
    %134 = vst [vmem:[%s133] sm:%s131] %v130

// kernel: vr_pct_forward.21
$region0: #{vr_pct_forward.21}
  #allocation0 [shape = 'u32[]', space=smem, size = 0x4, offset = 0x4, fixed_abs, tag = 'smem constant byte address 0x4 - core index']
  #allocation1 [shape = 'u32[144,128]{1,0:T(1,128)}', space=vmem, size = 0x12000, scoped, tag = 'internal scratch']
  %s0 = inlined_call_operand.vmem [shape: f32[4,2,512], index: 0, kind: input, shape index: {}]
  %s1 = inlined_call_operand.vmem [shape: f32[48,512], index: 1, kind: input, shape index: {}]
  %s2 = inlined_call_operand.vmem [shape: f32[2,512], index: 2, kind: input, shape index: {}]
  %s3 = inlined_call_operand.vmem [shape: f32[2,48,4], index: 3, kind: input, shape index: {}]
  %s4 = inlined_call_operand.vmem [shape: f32[1,4], index: 4, kind: input, shape index: {}]
  %s5 = inlined_call_operand.hbm [shape: f32[2,4], index: 5, kind: output, shape index: {}]
  %s6 = sld [smem:[#allocation0]]
  $region30: #{vr_pct_forward.21} parent=0
    _
  %s8 = ssub.s32 1, %s6
  %s9 = scalar_select 0, %s8, %s6
  $region1: #{vr_pct_forward.21} parent=0
    #allocation2 [shape = 'u8[1024]{0}', space=vmem, size = 0x400, scoped, tag = 'output window, operand 0, single buffered']
    #allocation3 [shape = 's32[1]{0}', space=sflag, size = 0x4, scoped, tag = 'scoped memory for vr_pct_forward.21']
    %10 = vsyncpa [#allocation3], 0
    // Predicated region
    $region2: #{vr_pct_forward.21} parent=1 // pred_check
      _
    $region3: #{vr_pct_forward.21} parent=1 // pred_check_branch
      %12 = sbr.rel (0) target = $region5
    $region4: #{vr_pct_forward.21} parent=1 // pred_region
      _
    $region5: #{vr_pct_forward.21} parent=1 // pred_fallthru
      _
    // Predicated region
    $region6: #{vr_pct_forward.21} parent=1 // pred_check
      _
    $region7: #{vr_pct_forward.21} parent=1 // pred_check_branch
      %14 = sbr.rel (0) target = $region9
    $region8: #{vr_pct_forward.21} parent=1 // pred_region
      _
    $region9: #{vr_pct_forward.21} parent=1 // pred_fallthru
      _
    // Predicated region
    $region10: #{vr_pct_forward.21} parent=1 // pred_check
      _
    $region11: #{vr_pct_forward.21} parent=1 // pred_check_branch
      %16 = sbr.rel (0) target = $region13
    $region12: #{vr_pct_forward.21} parent=1 // pred_region
      _
    $region13: #{vr_pct_forward.21} parent=1 // pred_fallthru
      _
    // Predicated region
    $region14: #{vr_pct_forward.21} parent=1 // pred_check
      _
    $region15: #{vr_pct_forward.21} parent=1 // pred_check_branch
      %18 = sbr.rel (0) target = $region17
    $region16: #{vr_pct_forward.21} parent=1 // pred_region
      _
    $region17: #{vr_pct_forward.21} parent=1 // pred_fallthru
      _
    // Predicated region
    $region18: #{vr_pct_forward.21} parent=1 // pred_check
      _
    $region19: #{vr_pct_forward.21} parent=1 // pred_check_branch
      %20 = sbr.rel (0) target = $region21
    $region20: #{vr_pct_forward.21} parent=1 // pred_region
      _
    $region21: #{vr_pct_forward.21} parent=1 // pred_fallthru
      _
    %v21 = vld [vmem:[%s1] sm:$0xff]
    %v22 = vld [vmem:[%s1 + $0x8] sm:$0xff]
    %v23 = vld [vmem:[%s1 + $0x10] sm:$0xff]
    %v24 = vld [vmem:[%s1 + $0x18] sm:$0xff]
    %v25 = vld [vmem:[%s1 + $0x20] sm:$0xff]
    %v26 = vld [vmem:[%s1 + $0x28] sm:$0xff]
    %v27 = vld [vmem:[%s1 + $0x30] sm:$0xff]
    %v28 = vld [vmem:[%s1 + $0x38] sm:$0xff]
    %v29 = vld [vmem:[%s1 + $0x40] sm:$0xff]
    %v30 = vld [vmem:[%s1 + $0x48] sm:$0xff]
    %v31 = vld [vmem:[%s1 + $0x50] sm:$0xff]
    %v32 = vld [vmem:[%s1 + $0x58] sm:$0xff]
    %v33 = vld [vmem:[%s1 + $0x60] sm:$0xff]
    %v34 = vld [vmem:[%s1 + $0x68] sm:$0xff]
    %v35 = vld [vmem:[%s1 + $0x70] sm:$0xff]
    %v36 = vld [vmem:[%s1 + $0x78] sm:$0xff]
    %v37 = vld [vmem:[%s1 + $0x80] sm:$0xff]
    %v38 = vld [vmem:[%s1 + $0x88] sm:$0xff]
    %v39 = vld [vmem:[%s1 + $0x90] sm:$0xff]
    %v40 = vld [vmem:[%s1 + $0x98] sm:$0xff]
    %v41 = vld [vmem:[%s1 + $0xa0] sm:$0xff]
    %v42 = vld [vmem:[%s1 + $0xa8] sm:$0xff]
    %v43 = vld [vmem:[%s1 + $0xb0] sm:$0xff]
    %v44 = vld [vmem:[%s1 + $0xb8] sm:$0xff]
    %v45 = vld [vmem:[%s0] sm:$0xff]
    %vm46 = vcmask 392192
    %v48 = vsel %vm46, 0.0, 0
    %50 = vmatprep.subr.mxu0 %v22
    %51 = vmatpush1.msra.mxu0 %v21
    %52 = vmatprep.subr.mxu0 %v26
    %53 = vmatpush1.msra.mxu0 %v25
    %54 = vmatprep.subr.mxu0 %v30
    %55 = vmatpush1.msra.mxu0 %v29
    %56 = vmatprep.subr.mxu0 %v34
    %57 = vmatpush1.msra.mxu0 %v33
    %58 = vmatprep.subr.mxu0 %v38
    %59 = vmatpush1.msra.mxu0 %v37
    %60 = vmatprep.subr.mxu0 %v42
    %61 = vmatpush1.msra.mxu0 %v41
    %62 = vmatprep.subr.mxu0 0.0
    %63 = vmatpush1.msra.mxu0 0.0
    %64 = vmatprep.subr.mxu0 0.0
    %65 = vmatpush1.msra.mxu0 0.0
    %66 = vmatprep.subr.mxu0 0.0
    %67 = vmatpush1.msra.mxu0 0.0
    %68 = vmatprep.subr.mxu0 0.0
    %69 = vmatpush1.msra.mxu0 0.0
    %70 = vmatprep.subr.mxu0 0.0
    %71 = vmatpush1.msra.mxu0 0.0
    %72 = vmatprep.subr.mxu0 0.0
    %73 = vmatpush1.msra.mxu0 0.0
    %74 = vmatprep.subr.mxu0 0.0
    %75 = vmatpush1.msra.mxu0 0.0
    %76 = vmatprep.subr.mxu0 0.0
    %77 = vmatpush1.msra.mxu0 0.0
    %78 = vmatprep.subr.mxu0 0.0
    %79 = vmatpush1.msra.mxu0 0.0
    %80 = vmatprep.subr.mxu0 0.0
    %81 = vmatpush1.msra.mxu0 0.0
    %82 = vmatprep.subr.mxu0 0.0
    %83 = vmatpush1.msra.mxu0 0.0
    %84 = vmatprep.subr.mxu0 0.0
    %85 = vmatpush1.msra.mxu0 0.0
    %86 = vmatprep.subr.mxu0 0.0
    %87 = vmatpush1.msra.mxu0 0.0
    %88 = vmatprep.subr.mxu0 0.0
    %89 = vmatpush1.msra.mxu0 0.0
    %90 = vmatprep.subr.mxu0 0.0
    %91 = vmatpush1.msra.mxu0 0.0
    %92 = vmatprep.subr.mxu0 0.0
    %93 = vmatpush1.msra.mxu0 0.0
    %94 = vmatprep.subr.mxu0 0.0
    %95 = vmatpush1.msra.mxu0 0.0
    %96 = vmatprep.subr.mxu0 0.0
    %97 = vmatpush1.msra.mxu0 0.0
    %98 = vmatprep.subr.mxu0 0.0
    %99 = vmatpush1.msra.mxu0 0.0
    %100 = vmatprep.subr.mxu0 0.0
    %101 = vmatpush1.msra.mxu0 0.0
    %102 = vmatprep.subr.mxu0 0.0
    %103 = vmatpush1.msra.mxu0 0.0
    %104 = vmatprep.subr.mxu0 0.0
    %105 = vmatpush1.msra.mxu0 0.0
    %106 = vmatprep.subr.mxu0 0.0
    %107 = vmatpush1.msra.mxu0 0.0
    %108 = vmatprep.subr.mxu0 0.0
    %109 = vmatpush1.msra.mxu0 0.0
    %110 = vmatprep.subr.mxu0 0.0
    %111 = vmatpush1.msra.mxu0 0.0
    %112 = vmatprep.subr.mxu0 0.0
    %113 = vmatpush1.msra.mxu0 0.0
    %114 = vmatprep.mubr.f32.mxu0 0.0
    %115 = vmatmul.mubr.f32.gmra.mrb[0].mxu0 %v48
    %v116 = vpop.f32.mrb[0].mxu0
    %v117 = vadd.f32 0.0, %v116
    %v118 = vpop.f32.mrb[0].mxu0
    %v119 = vadd.f32 0.0, %v118
    %120 = vdwg.mxu0
    %121 = vmatprep.subr.mxu0 %v24
    %122 = vmatpush1.msra.mxu0 %v23
    %123 = vmatprep.subr.mxu0 %v28
    %124 = vmatpush1.msra.mxu0 %v27
    %125 = vmatprep.subr.mxu0 %v32
    %126 = vmatpush1.msra.mxu0 %v31
    %127 = vmatprep.subr.mxu0 %v36
    %128 = vmatpush1.msra.mxu0 %v35
    %129 = vmatprep.subr.mxu0 %v40
    %130 = vmatpush1.msra.mxu0 %v39
    %131 = vmatprep.subr.mxu0 %v44
    %132 = vmatpush1.msra.mxu0 %v43
    %133 = vmatprep.subr.mxu0 0.0
    %134 = vmatpush1.msra.mxu0 0.0
    %135 = vmatprep.subr.mxu0 0.0
    %136 = vmatpush1.msra.mxu0 0.0
    %137 = vmatprep.subr.mxu0 0.0
    %138 = vmatpush1.msra.mxu0 0.0
    %139 = vmatprep.subr.mxu0 0.0
    %140 = vmatpush1.msra.mxu0 0.0
    %141 = vmatprep.subr.mxu0 0.0
    %142 = vmatpush1.msra.mxu0 0.0
    %143 = vmatprep.subr.mxu0 0.0
    %144 = vmatpush1.msra.mxu0 0.0
    %145 = vmatprep.subr.mxu0 0.0
    %146 = vmatpush1.msra.mxu0 0.0
    %147 = vmatprep.subr.mxu0 0.0
    %148 = vmatpush1.msra.mxu0 0.0
    %149 = vmatprep.subr.mxu0 0.0
    %150 = vmatpush1.msra.mxu0 0.0
    %151 = vmatprep.subr.mxu0 0.0
    %152 = vmatpush1.msra.mxu0 0.0
    %153 = vmatprep.subr.mxu0 0.0
    %154 = vmatpush1.msra.mxu0 0.0
    %155 = vmatprep.subr.mxu0 0.0
    %156 = vmatpush1.msra.mxu0 0.0
    %157 = vmatprep.subr.mxu0 0.0
    %158 = vmatpush1.msra.mxu0 0.0
    %159 = vmatprep.subr.mxu0 0.0
    %160 = vmatpush1.msra.mxu0 0.0
    %161 = vmatprep.subr.mxu0 0.0
    %162 = vmatpush1.msra.mxu0 0.0
    %163 = vmatprep.subr.mxu0 0.0
    %164 = vmatpush1.msra.mxu0 0.0
    %165 = vmatprep.subr.mxu0 0.0
    %166 = vmatpush1.msra.mxu0 0.0
    %167 = vmatprep.subr.mxu0 0.0
    %168 = vmatpush1.msra.mxu0 0.0
    %169 = vmatprep.subr.mxu0 0.0
    %170 = vmatpush1.msra.mxu0 0.0
    %171 = vmatprep.subr.mxu0 0.0
    %172 = vmatpush1.msra.mxu0 0.0
    %173 = vmatprep.subr.mxu0 0.0
    %174 = vmatpush1.msra.mxu0 0.0
    %175 = vmatprep.subr.mxu0 0.0
    %176 = vmatpush1.msra.mxu0 0.0
    %177 = vmatprep.subr.mxu0 0.0
    %178 = vmatpush1.msra.mxu0 0.0
    %179 = vmatprep.subr.mxu0 0.0
    %180 = vmatpush1.msra.mxu0 0.0
    %181 = vmatprep.subr.mxu0 0.0
    %182 = vmatpush1.msra.mxu0 0.0
    %183 = vmatprep.subr.mxu0 0.0
    %184 = vmatpush1.msra.mxu0 0.0
    %185 = vmatprep.mubr.f32.mxu0 0.0
    %186 = vmatmul.mubr.f32.gmra.mrb[0].mxu0 %v48
    %v187 = vpop.f32.mrb[0].mxu0
    %v188 = vadd.f32 0.0, %v187
    %v189 = vpop.f32.mrb[0].mxu0
    %v190 = vadd.f32 0.0, %v189
    %191 = vdwg.mxu0
    %v196 = vcombine.low %v117, %v119
    %v197 = vcombine.low %v188, %v190
    %v199 = vunpack.c.l.s4 1983009808
    %v200 = vunpack.c.0.s8 %v199
    %v201 = vlaneseq
    %v202 = vshrl.u32 %v201, 7
    %v203 = vsub.s32 %v200, %v202
    %v204 = vrot.slane %v196, %v203
    %v206 = vunpack.c.l.s4 1983009808
    %v207 = vunpack.c.0.s8 %v206
    %v208 = vlaneseq
    %v209 = vshrl.u32 %v208, 7
    %v210 = vsub.s32 %v207, %v209
    %v211 = vrot.slane %v197, %v210
    %v212 = vcombine.low %v204, %v211
    %v214 = vadd.f32 %v45, %v212
    %v215 = vxor.u32 %v214, 2147483648
    %v216 = vmul.f32 %v215, 1.442695
    %v217 = vpow.pop %v216
    %v218 = vadd.f32 %v217, 1.0
    %v219 = vrcp.pop %v218
    %v220 = vmul.f32 1.0, %v219
    %v222 = vrot.slane %v214, 2
    %v224 = vxor.u32 %v222, 2147483648
    %v225 = vmul.f32 %v224, 1.442695
    %v226 = vpow.pop %v225
    %v227 = vadd.f32 %v226, 1.0
    %v228 = vrcp.pop %v227
    %v229 = vmul.f32 1.0, %v228
    %v230 = vrot.slane %v214, 4
    %v232 = vtanh.pop %v230
    %v233 = vrot.slane %v214, 6
    %v235 = vxor.u32 %v233, 2147483648
    %v236 = vmul.f32 %v235, 1.442695
    %v237 = vpow.pop %v236
    %v238 = vadd.f32 %v237, 1.0
    %v239 = vrcp.pop %v238
    %v240 = vmul.f32 1.0, %v239
    %v241 = vmul.f32 %v229, 0.0
    %v242 = vmul.f32 %v220, %v232
    %v243 = vadd.f32 %v241, %v242
    %v244 = vtanh.pop %v243
    %v245 = vmul.f32 %v240, %v244
    %s246 = scalar_lea.vmem %s0, 8
    %v247 = vld [vmem:[%s246] sm:$0xff]
    %v249 = vsel %vm46, %v245, 0
    %251 = vmatprep.subr.mxu0 %v22
    %252 = vmatpush1.msra.mxu0 %v21
    %253 = vmatprep.subr.mxu0 %v26
    %254 = vmatpush1.msra.mxu0 %v25
    %255 = vmatprep.subr.mxu0 %v30
    %256 = vmatpush1.msra.mxu0 %v29
    %257 = vmatprep.subr.mxu0 %v34
    %258 = vmatpush1.msra.mxu0 %v33
    %259 = vmatprep.subr.mxu0 %v38
    %260 = vmatpush1.msra.mxu0 %v37
    %261 = vmatprep.subr.mxu0 %v42
    %262 = vmatpush1.msra.mxu0 %v41
    %263 = vmatprep.subr.mxu0 0.0
    %264 = vmatpush1.msra.mxu0 0.0
    %265 = vmatprep.subr.mxu0 0.0
    %266 = vmatpush1.msra.mxu0 0.0
    %267 = vmatprep.subr.mxu0 0.0
    %268 = vmatpush1.msra.mxu0 0.0
    %269 = vmatprep.subr.mxu0 0.0
    %270 = vmatpush1.msra.mxu0 0.0
    %271 = vmatprep.subr.mxu0 0.0
    %272 = vmatpush1.msra.mxu0 0.0
    %273 = vmatprep.subr.mxu0 0.0
    %274 = vmatpush1.msra.mxu0 0.0
    %275 = vmatprep.subr.mxu0 0.0
    %276 = vmatpush1.msra.mxu0 0.0
    %277 = vmatprep.subr.mxu0 0.0
    %278 = vmatpush1.msra.mxu0 0.0
    %279 = vmatprep.subr.mxu0 0.0
    %280 = vmatpush1.msra.mxu0 0.0
    %281 = vmatprep.subr.mxu0 0.0
    %282 = vmatpush1.msra.mxu0 0.0
    %283 = vmatprep.subr.mxu0 0.0
    %284 = vmatpush1.msra.mxu0 0.0
    %285 = vmatprep.subr.mxu0 0.0
    %286 = vmatpush1.msra.mxu0 0.0
    %287 = vmatprep.subr.mxu0 0.0
    %288 = vmatpush1.msra.mxu0 0.0
    %289 = vmatprep.subr.mxu0 0.0
    %290 = vmatpush1.msra.mxu0 0.0
    %291 = vmatprep.subr.mxu0 0.0
    %292 = vmatpush1.msra.mxu0 0.0
    %293 = vmatprep.subr.mxu0 0.0
    %294 = vmatpush1.msra.mxu0 0.0
    %295 = vmatprep.subr.mxu0 0.0
    %296 = vmatpush1.msra.mxu0 0.0
    %297 = vmatprep.subr.mxu0 0.0
    %298 = vmatpush1.msra.mxu0 0.0
    %299 = vmatprep.subr.mxu0 0.0
    %300 = vmatpush1.msra.mxu0 0.0
    %301 = vmatprep.subr.mxu0 0.0
    %302 = vmatpush1.msra.mxu0 0.0
    %303 = vmatprep.subr.mxu0 0.0
    %304 = vmatpush1.msra.mxu0 0.0
    %305 = vmatprep.subr.mxu0 0.0
    %306 = vmatpush1.msra.mxu0 0.0
    %307 = vmatprep.subr.mxu0 0.0
    %308 = vmatpush1.msra.mxu0 0.0
    %309 = vmatprep.subr.mxu0 0.0
    %310 = vmatpush1.msra.mxu0 0.0
    %311 = vmatprep.subr.mxu0 0.0
    %312 = vmatpush1.msra.mxu0 0.0
    %313 = vmatprep.subr.mxu0 0.0
    %314 = vmatpush1.msra.mxu0 0.0
    %315 = vmatprep.mubr.f32.mxu0 0.0
    %316 = vmatmul.mubr.f32.gmra.mrb[0].mxu0 %v249
    %v317 = vpop.f32.mrb[0].mxu0
    %v318 = vadd.f32 0.0, %v317
    %v319 = vpop.f32.mrb[0].mxu0
    %v320 = vadd.f32 0.0, %v319
    %321 = vdwg.mxu0
    %322 = vmatprep.subr.mxu0 %v24
    %323 = vmatpush1.msra.mxu0 %v23
    %324 = vmatprep.subr.mxu0 %v28
    %325 = vmatpush1.msra.mxu0 %v27
    %326 = vmatprep.subr.mxu0 %v32
    %327 = vmatpush1.msra.mxu0 %v31
    %328 = vmatprep.subr.mxu0 %v36
    %329 = vmatpush1.msra.mxu0 %v35
    %330 = vmatprep.subr.mxu0 %v40
    %331 = vmatpush1.msra.mxu0 %v39
    %332 = vmatprep.subr.mxu0 %v44
    %333 = vmatpush1.msra.mxu0 %v43
    %334 = vmatprep.subr.mxu0 0.0
    %335 = vmatpush1.msra.mxu0 0.0
    %336 = vmatprep.subr.mxu0 0.0
    %337 = vmatpush1.msra.mxu0 0.0
    %338 = vmatprep.subr.mxu0 0.0
    %339 = vmatpush1.msra.mxu0 0.0
    %340 = vmatprep.subr.mxu0 0.0
    %341 = vmatpush1.msra.mxu0 0.0
    %342 = vmatprep.subr.mxu0 0.0
    %343 = vmatpush1.msra.mxu0 0.0
    %344 = vmatprep.subr.mxu0 0.0
    %345 = vmatpush1.msra.mxu0 0.0
    %346 = vmatprep.subr.mxu0 0.0
    %347 = vmatpush1.msra.mxu0 0.0
    %348 = vmatprep.subr.mxu0 0.0
    %349 = vmatpush1.msra.mxu0 0.0
    %350 = vmatprep.subr.mxu0 0.0
    %351 = vmatpush1.msra.mxu0 0.0
    %352 = vmatprep.subr.mxu0 0.0
    %353 = vmatpush1.msra.mxu0 0.0
    %354 = vmatprep.subr.mxu0 0.0
    %355 = vmatpush1.msra.mxu0 0.0
    %356 = vmatprep.subr.mxu0 0.0
    %357 = vmatpush1.msra.mxu0 0.0
    %358 = vmatprep.subr.mxu0 0.0
    %359 = vmatpush1.msra.mxu0 0.0
    %360 = vmatprep.subr.mxu0 0.0
    %361 = vmatpush1.msra.mxu0 0.0
    %362 = vmatprep.subr.mxu0 0.0
    %363 = vmatpush1.msra.mxu0 0.0
    %364 = vmatprep.subr.mxu0 0.0
    %365 = vmatpush1.msra.mxu0 0.0
    %366 = vmatprep.subr.mxu0 0.0
    %367 = vmatpush1.msra.mxu0 0.0
    %368 = vmatprep.subr.mxu0 0.0
    %369 = vmatpush1.msra.mxu0 0.0
    %370 = vmatprep.subr.mxu0 0.0
    %371 = vmatpush1.msra.mxu0 0.0
    %372 = vmatprep.subr.mxu0 0.0
    %373 = vmatpush1.msra.mxu0 0.0
    %374 = vmatprep.subr.mxu0 0.0
    %375 = vmatpush1.msra.mxu0 0.0
    %376 = vmatprep.subr.mxu0 0.0
    %377 = vmatpush1.msra.mxu0 0.0
    %378 = vmatprep.subr.mxu0 0.0
    %379 = vmatpush1.msra.mxu0 0.0
    %380 = vmatprep.subr.mxu0 0.0
    %381 = vmatpush1.msra.mxu0 0.0
    %382 = vmatprep.subr.mxu0 0.0
    %383 = vmatpush1.msra.mxu0 0.0
    %384 = vmatprep.subr.mxu0 0.0
    %385 = vmatpush1.msra.mxu0 0.0
    %386 = vmatprep.mubr.f32.mxu0 0.0
    %387 = vmatmul.mubr.f32.gmra.mrb[0].mxu0 %v249
    %v388 = vpop.f32.mrb[0].mxu0
    %v389 = vadd.f32 0.0, %v388
    %v390 = vpop.f32.mrb[0].mxu0
    %v391 = vadd.f32 0.0, %v390
    %392 = vdwg.mxu0
    %v397 = vcombine.low %v318, %v320
    %v398 = vcombine.low %v389, %v391
    %v400 = vunpack.c.l.s4 1983009808
    %v401 = vunpack.c.0.s8 %v400
    %v402 = vlaneseq
    %v403 = vshrl.u32 %v402, 7
    %v404 = vsub.s32 %v401, %v403
    %v405 = vrot.slane %v397, %v404
    %v407 = vunpack.c.l.s4 1983009808
    %v408 = vunpack.c.0.s8 %v407
    %v409 = vlaneseq
    %v410 = vshrl.u32 %v409, 7
    %v411 = vsub.s32 %v408, %v410
    %v412 = vrot.slane %v398, %v411
    %v413 = vcombine.low %v405, %v412
    %v415 = vadd.f32 %v247, %v413
    %v416 = vxor.u32 %v415, 2147483648
    %v417 = vmul.f32 %v416, 1.442695
    %v418 = vpow.pop %v417
    %v419 = vadd.f32 %v418, 1.0
    %v420 = vrcp.pop %v419
    %v421 = vmul.f32 1.0, %v420
    %v423 = vrot.slane %v415, 2
    %v425 = vxor.u32 %v423, 2147483648
    %v426 = vmul.f32 %v425, 1.442695
    %v427 = vpow.pop %v426
    %v428 = vadd.f32 %v427, 1.0
    %v429 = vrcp.pop %v428
    %v430 = vmul.f32 1.0, %v429
    %v431 = vrot.slane %v415, 4
    %v433 = vtanh.pop %v431
    %v434 = vrot.slane %v415, 6
    %v436 = vxor.u32 %v434, 2147483648
    %v437 = vmul.f32 %v436, 1.442695
    %v438 = vpow.pop %v437
    %v439 = vadd.f32 %v438, 1.0
    %v440 = vrcp.pop %v439
    %v441 = vmul.f32 1.0, %v440
    %v442 = vmul.f32 %v430, %v243
    %v443 = vmul.f32 %v421, %v433
    %v444 = vadd.f32 %v442, %v443
    %v445 = vtanh.pop %v444
    %v446 = vmul.f32 %v441, %v445
    %s447 = scalar_lea.vmem %s0, 16
    %v448 = vld [vmem:[%s447] sm:$0xff]
    %v450 = vsel %vm46, %v446, 0
    %452 = vmatprep.subr.mxu0 %v22
    %453 = vmatpush1.msra.mxu0 %v21
    %454 = vmatprep.subr.mxu0 %v26
    %455 = vmatpush1.msra.mxu0 %v25
    %456 = vmatprep.subr.mxu0 %v30
    %457 = vmatpush1.msra.mxu0 %v29
    %458 = vmatprep.subr.mxu0 %v34
    %459 = vmatpush1.msra.mxu0 %v33
    %460 = vmatprep.subr.mxu0 %v38
    %461 = vmatpush1.msra.mxu0 %v37
    %462 = vmatprep.subr.mxu0 %v42
    %463 = vmatpush1.msra.mxu0 %v41
    %464 = vmatprep.subr.mxu0 0.0
    %465 = vmatpush1.msra.mxu0 0.0
    %466 = vmatprep.subr.mxu0 0.0
    %467 = vmatpush1.msra.mxu0 0.0
    %468 = vmatprep.subr.mxu0 0.0
    %469 = vmatpush1.msra.mxu0 0.0
    %470 = vmatprep.subr.mxu0 0.0
    %471 = vmatpush1.msra.mxu0 0.0
    %472 = vmatprep.subr.mxu0 0.0
    %473 = vmatpush1.msra.mxu0 0.0
    %474 = vmatprep.subr.mxu0 0.0
    %475 = vmatpush1.msra.mxu0 0.0
    %476 = vmatprep.subr.mxu0 0.0
    %477 = vmatpush1.msra.mxu0 0.0
    %478 = vmatprep.subr.mxu0 0.0
    %479 = vmatpush1.msra.mxu0 0.0
    %480 = vmatprep.subr.mxu0 0.0
    %481 = vmatpush1.msra.mxu0 0.0
    %482 = vmatprep.subr.mxu0 0.0
    %483 = vmatpush1.msra.mxu0 0.0
    %484 = vmatprep.subr.mxu0 0.0
    %485 = vmatpush1.msra.mxu0 0.0
    %486 = vmatprep.subr.mxu0 0.0
    %487 = vmatpush1.msra.mxu0 0.0
    %488 = vmatprep.subr.mxu0 0.0
    %489 = vmatpush1.msra.mxu0 0.0
    %490 = vmatprep.subr.mxu0 0.0
    %491 = vmatpush1.msra.mxu0 0.0
    %492 = vmatprep.subr.mxu0 0.0
    %493 = vmatpush1.msra.mxu0 0.0
    %494 = vmatprep.subr.mxu0 0.0
    %495 = vmatpush1.msra.mxu0 0.0
    %496 = vmatprep.subr.mxu0 0.0
    %497 = vmatpush1.msra.mxu0 0.0
    %498 = vmatprep.subr.mxu0 0.0
    %499 = vmatpush1.msra.mxu0 0.0
    %500 = vmatprep.subr.mxu0 0.0
    %501 = vmatpush1.msra.mxu0 0.0
    %502 = vmatprep.subr.mxu0 0.0
    %503 = vmatpush1.msra.mxu0 0.0
    %504 = vmatprep.subr.mxu0 0.0
    %505 = vmatpush1.msra.mxu0 0.0
    %506 = vmatprep.subr.mxu0 0.0
    %507 = vmatpush1.msra.mxu0 0.0
    %508 = vmatprep.subr.mxu0 0.0
    %509 = vmatpush1.msra.mxu0 0.0
    %510 = vmatprep.subr.mxu0 0.0
    %511 = vmatpush1.msra.mxu0 0.0
    %512 = vmatprep.subr.mxu0 0.0
    %513 = vmatpush1.msra.mxu0 0.0
    %514 = vmatprep.subr.mxu0 0.0
    %515 = vmatpush1.msra.mxu0 0.0
    %516 = vmatprep.mubr.f32.mxu0 0.0
    %517 = vmatmul.mubr.f32.gmra.mrb[0].mxu0 %v450
    %v518 = vpop.f32.mrb[0].mxu0
    %v519 = vadd.f32 0.0, %v518
    %v520 = vpop.f32.mrb[0].mxu0
    %v521 = vadd.f32 0.0, %v520
    %522 = vdwg.mxu0
    %523 = vmatprep.subr.mxu0 %v24
    %524 = vmatpush1.msra.mxu0 %v23
    %525 = vmatprep.subr.mxu0 %v28
    %526 = vmatpush1.msra.mxu0 %v27
    %527 = vmatprep.subr.mxu0 %v32
    %528 = vmatpush1.msra.mxu0 %v31
    %529 = vmatprep.subr.mxu0 %v36
    %530 = vmatpush1.msra.mxu0 %v35
    %531 = vmatprep.subr.mxu0 %v40
    %532 = vmatpush1.msra.mxu0 %v39
    %533 = vmatprep.subr.mxu0 %v44
    %534 = vmatpush1.msra.mxu0 %v43
    %535 = vmatprep.subr.mxu0 0.0
    %536 = vmatpush1.msra.mxu0 0.0
    %537 = vmatprep.subr.mxu0 0.0
    %538 = vmatpush1.msra.mxu0 0.0
    %539 = vmatprep.subr.mxu0 0.0
    %540 = vmatpush1.msra.mxu0 0.0
    %541 = vmatprep.subr.mxu0 0.0
    %542 = vmatpush1.msra.mxu0 0.0
    %543 = vmatprep.subr.mxu0 0.0
    %544 = vmatpush1.msra.mxu0 0.0
    %545 = vmatprep.subr.mxu0 0.0
    %546 = vmatpush1.msra.mxu0 0.0
    %547 = vmatprep.subr.mxu0 0.0
    %548 = vmatpush1.msra.mxu0 0.0
    %549 = vmatprep.subr.mxu0 0.0
    %550 = vmatpush1.msra.mxu0 0.0
    %551 = vmatprep.subr.mxu0 0.0
    %552 = vmatpush1.msra.mxu0 0.0
    %553 = vmatprep.subr.mxu0 0.0
    %554 = vmatpush1.msra.mxu0 0.0
    %555 = vmatprep.subr.mxu0 0.0
    %556 = vmatpush1.msra.mxu0 0.0
    %557 = vmatprep.subr.mxu0 0.0
    %558 = vmatpush1.msra.mxu0 0.0
    %559 = vmatprep.subr.mxu0 0.0
    %560 = vmatpush1.msra.mxu0 0.0
    %561 = vmatprep.subr.mxu0 0.0
    %562 = vmatpush1.msra.mxu0 0.0
    %563 = vmatprep.subr.mxu0 0.0
    %564 = vmatpush1.msra.mxu0 0.0
    %565 = vmatprep.subr.mxu0 0.0
    %566 = vmatpush1.msra.mxu0 0.0
    %567 = vmatprep.subr.mxu0 0.0
    %568 = vmatpush1.msra.mxu0 0.0
    %569 = vmatprep.subr.mxu0 0.0
    %570 = vmatpush1.msra.mxu0 0.0
    %571 = vmatprep.subr.mxu0 0.0
    %572 = vmatpush1.msra.mxu0 0.0
    %573 = vmatprep.subr.mxu0 0.0
    %574 = vmatpush1.msra.mxu0 0.0
    %575 = vmatprep.subr.mxu0 0.0
    %576 = vmatpush1.msra.mxu0 0.0
    %577 = vmatprep.subr.mxu0 0.0
    %578 = vmatpush1.msra.mxu0 0.0
    %579 = vmatprep.subr.mxu0 0.0
    %580 = vmatpush1.msra.mxu0 0.0
    %581 = vmatprep.subr.mxu0 0.0
    %582 = vmatpush1.msra.mxu0 0.0
    %583 = vmatprep.subr.mxu0 0.0
    %584 = vmatpush1.msra.mxu0 0.0
    %585 = vmatprep.subr.mxu0 0.0
    %586 = vmatpush1.msra.mxu0 0.0
    %587 = vmatprep.mubr.f32.mxu0 0.0
    %588 = vmatmul.mubr.f32.gmra.mrb[0].mxu0 %v450
    %v589 = vpop.f32.mrb[0].mxu0
    %v590 = vadd.f32 0.0, %v589
    %v591 = vpop.f32.mrb[0].mxu0
    %v592 = vadd.f32 0.0, %v591
    %593 = vdwg.mxu0
    %v598 = vcombine.low %v519, %v521
    %v599 = vcombine.low %v590, %v592
    %v601 = vunpack.c.l.s4 1983009808
    %v602 = vunpack.c.0.s8 %v601
    %v603 = vlaneseq
    %v604 = vshrl.u32 %v603, 7
    %v605 = vsub.s32 %v602, %v604
    %v606 = vrot.slane %v598, %v605
    %v608 = vunpack.c.l.s4 1983009808
    %v609 = vunpack.c.0.s8 %v608
    %v610 = vlaneseq
    %v611 = vshrl.u32 %v610, 7
    %v612 = vsub.s32 %v609, %v611
    %v613 = vrot.slane %v599, %v612
    %v614 = vcombine.low %v606, %v613
    %v616 = vadd.f32 %v448, %v614
    %v617 = vxor.u32 %v616, 2147483648
    %v618 = vmul.f32 %v617, 1.442695
    %v619 = vpow.pop %v618
    %v620 = vadd.f32 %v619, 1.0
    %v621 = vrcp.pop %v620
    %v622 = vmul.f32 1.0, %v621
    %v624 = vrot.slane %v616, 2
    %v626 = vxor.u32 %v624, 2147483648
    %v627 = vmul.f32 %v626, 1.442695
    %v628 = vpow.pop %v627
    %v629 = vadd.f32 %v628, 1.0
    %v630 = vrcp.pop %v629
    %v631 = vmul.f32 1.0, %v630
    %v632 = vrot.slane %v616, 4
    %v634 = vtanh.pop %v632
    %v635 = vrot.slane %v616, 6
    %v637 = vxor.u32 %v635, 2147483648
    %v638 = vmul.f32 %v637, 1.442695
    %v639 = vpow.pop %v638
    %v640 = vadd.f32 %v639, 1.0
    %v641 = vrcp.pop %v640
    %v642 = vmul.f32 1.0, %v641
    %v643 = vmul.f32 %v631, %v444
    %v644 = vmul.f32 %v622, %v634
    %v645 = vadd.f32 %v643, %v644
    %v646 = vtanh.pop %v645
    %v647 = vmul.f32 %v642, %v646
    %s648 = scalar_lea.vmem %s0, 24
    %v649 = vld [vmem:[%s648] sm:$0xff]
    %v651 = vsel %vm46, %v647, 0
    %653 = vmatprep.subr.mxu0 %v22
    %654 = vmatpush1.msra.mxu0 %v21
    %655 = vmatprep.subr.mxu0 %v26
    %656 = vmatpush1.msra.mxu0 %v25
    %657 = vmatprep.subr.mxu0 %v30
    %658 = vmatpush1.msra.mxu0 %v29
    %659 = vmatprep.subr.mxu0 %v34
    %660 = vmatpush1.msra.mxu0 %v33
    %661 = vmatprep.subr.mxu0 %v38
    %662 = vmatpush1.msra.mxu0 %v37
    %663 = vmatprep.subr.mxu0 %v42
    %664 = vmatpush1.msra.mxu0 %v41
    %665 = vmatprep.subr.mxu0 0.0
    %666 = vmatpush1.msra.mxu0 0.0
    %667 = vmatprep.subr.mxu0 0.0
    %668 = vmatpush1.msra.mxu0 0.0
    %669 = vmatprep.subr.mxu0 0.0
    %670 = vmatpush1.msra.mxu0 0.0
    %671 = vmatprep.subr.mxu0 0.0
    %672 = vmatpush1.msra.mxu0 0.0
    %673 = vmatprep.subr.mxu0 0.0
    %674 = vmatpush1.msra.mxu0 0.0
    %675 = vmatprep.subr.mxu0 0.0
    %676 = vmatpush1.msra.mxu0 0.0
    %677 = vmatprep.subr.mxu0 0.0
    %678 = vmatpush1.msra.mxu0 0.0
    %679 = vmatprep.subr.mxu0 0.0
    %680 = vmatpush1.msra.mxu0 0.0
    %681 = vmatprep.subr.mxu0 0.0
    %682 = vmatpush1.msra.mxu0 0.0
    %683 = vmatprep.subr.mxu0 0.0
    %684 = vmatpush1.msra.mxu0 0.0
    %685 = vmatprep.subr.mxu0 0.0
    %686 = vmatpush1.msra.mxu0 0.0
    %687 = vmatprep.subr.mxu0 0.0
    %688 = vmatpush1.msra.mxu0 0.0
    %689 = vmatprep.subr.mxu0 0.0
    %690 = vmatpush1.msra.mxu0 0.0
    %691 = vmatprep.subr.mxu0 0.0
    %692 = vmatpush1.msra.mxu0 0.0
    %693 = vmatprep.subr.mxu0 0.0
    %694 = vmatpush1.msra.mxu0 0.0
    %695 = vmatprep.subr.mxu0 0.0
    %696 = vmatpush1.msra.mxu0 0.0
    %697 = vmatprep.subr.mxu0 0.0
    %698 = vmatpush1.msra.mxu0 0.0
    %699 = vmatprep.subr.mxu0 0.0
    %700 = vmatpush1.msra.mxu0 0.0
    %701 = vmatprep.subr.mxu0 0.0
    %702 = vmatpush1.msra.mxu0 0.0
    %703 = vmatprep.subr.mxu0 0.0
    %704 = vmatpush1.msra.mxu0 0.0
    %705 = vmatprep.subr.mxu0 0.0
    %706 = vmatpush1.msra.mxu0 0.0
    %707 = vmatprep.subr.mxu0 0.0
    %708 = vmatpush1.msra.mxu0 0.0
    %709 = vmatprep.subr.mxu0 0.0
    %710 = vmatpush1.msra.mxu0 0.0
    %711 = vmatprep.subr.mxu0 0.0
    %712 = vmatpush1.msra.mxu0 0.0
    %713 = vmatprep.subr.mxu0 0.0
    %714 = vmatpush1.msra.mxu0 0.0
    %715 = vmatprep.subr.mxu0 0.0
    %716 = vmatpush1.msra.mxu0 0.0
    %717 = vmatprep.mubr.f32.mxu0 0.0
    %718 = vmatmul.mubr.f32.gmra.mrb[0].mxu0 %v651
    %v719 = vpop.f32.mrb[0].mxu0
    %v720 = vadd.f32 0.0, %v719
    %v721 = vpop.f32.mrb[0].mxu0
    %v722 = vadd.f32 0.0, %v721
    %723 = vdwg.mxu0
    %724 = vmatprep.subr.mxu0 %v24
    %725 = vmatpush1.msra.mxu0 %v23
    %726 = vmatprep.subr.mxu0 %v28
    %727 = vmatpush1.msra.mxu0 %v27
    %728 = vmatprep.subr.mxu0 %v32
    %729 = vmatpush1.msra.mxu0 %v31
    %730 = vmatprep.subr.mxu0 %v36
    %731 = vmatpush1.msra.mxu0 %v35
    %732 = vmatprep.subr.mxu0 %v40
    %733 = vmatpush1.msra.mxu0 %v39
    %734 = vmatprep.subr.mxu0 %v44
    %735 = vmatpush1.msra.mxu0 %v43
    %736 = vmatprep.subr.mxu0 0.0
    %737 = vmatpush1.msra.mxu0 0.0
    %738 = vmatprep.subr.mxu0 0.0
    %739 = vmatpush1.msra.mxu0 0.0
    %740 = vmatprep.subr.mxu0 0.0
    %741 = vmatpush1.msra.mxu0 0.0
    %742 = vmatprep.subr.mxu0 0.0
    %743 = vmatpush1.msra.mxu0 0.0
    %744 = vmatprep.subr.mxu0 0.0
    %745 = vmatpush1.msra.mxu0 0.0
    %746 = vmatprep.subr.mxu0 0.0
    %747 = vmatpush1.msra.mxu0 0.0
    %748 = vmatprep.subr.mxu0 0.0
    %749 = vmatpush1.msra.mxu0 0.0
    %750 = vmatprep.subr.mxu0 0.0
    %751 = vmatpush1.msra.mxu0 0.0
    %752 = vmatprep.subr.mxu0 0.0
    %753 = vmatpush1.msra.mxu0 0.0
    %754 = vmatprep.subr.mxu0 0.0
    %755 = vmatpush1.msra.mxu0 0.0
    %756 = vmatprep.subr.mxu0 0.0
    %757 = vmatpush1.msra.mxu0 0.0
    %758 = vmatprep.subr.mxu0 0.0
    %759 = vmatpush1.msra.mxu0 0.0
    %760 = vmatprep.subr.mxu0 0.0
    %761 = vmatpush1.msra.mxu0 0.0
    %762 = vmatprep.subr.mxu0 0.0
    %763 = vmatpush1.msra.mxu0 0.0
    %764 = vmatprep.subr.mxu0 0.0
    %765 = vmatpush1.msra.mxu0 0.0
    %766 = vmatprep.subr.mxu0 0.0
    %767 = vmatpush1.msra.mxu0 0.0
    %768 = vmatprep.subr.mxu0 0.0
    %769 = vmatpush1.msra.mxu0 0.0
    %770 = vmatprep.subr.mxu0 0.0
    %771 = vmatpush1.msra.mxu0 0.0
    %772 = vmatprep.subr.mxu0 0.0
    %773 = vmatpush1.msra.mxu0 0.0
    %774 = vmatprep.subr.mxu0 0.0
    %775 = vmatpush1.msra.mxu0 0.0
    %776 = vmatprep.subr.mxu0 0.0
    %777 = vmatpush1.msra.mxu0 0.0
    %778 = vmatprep.subr.mxu0 0.0
    %779 = vmatpush1.msra.mxu0 0.0
    %780 = vmatprep.subr.mxu0 0.0
    %781 = vmatpush1.msra.mxu0 0.0
    %782 = vmatprep.subr.mxu0 0.0
    %783 = vmatpush1.msra.mxu0 0.0
    %784 = vmatprep.subr.mxu0 0.0
    %785 = vmatpush1.msra.mxu0 0.0
    %786 = vmatprep.subr.mxu0 0.0
    %787 = vmatpush1.msra.mxu0 0.0
    %788 = vmatprep.mubr.f32.mxu0 0.0
    %789 = vmatmul.mubr.f32.gmra.mrb[0].mxu0 %v651
    %v790 = vpop.f32.mrb[0].mxu0
    %v791 = vadd.f32 0.0, %v790
    %v792 = vpop.f32.mrb[0].mxu0
    %v793 = vadd.f32 0.0, %v792
    %794 = vdwg.mxu0
    %v799 = vcombine.low %v720, %v722
    %v800 = vcombine.low %v791, %v793
    %v802 = vunpack.c.l.s4 1983009808
    %v803 = vunpack.c.0.s8 %v802
    %v804 = vlaneseq
    %v805 = vshrl.u32 %v804, 7
    %v806 = vsub.s32 %v803, %v805
    %v807 = vrot.slane %v799, %v806
    %v809 = vunpack.c.l.s4 1983009808
    %v810 = vunpack.c.0.s8 %v809
    %v811 = vlaneseq
    %v812 = vshrl.u32 %v811, 7
    %v813 = vsub.s32 %v810, %v812
    %v814 = vrot.slane %v800, %v813
    %v815 = vcombine.low %v807, %v814
    %v817 = vadd.f32 %v649, %v815
    %v818 = vxor.u32 %v817, 2147483648
    %v819 = vmul.f32 %v818, 1.442695
    %v820 = vpow.pop %v819
    %v821 = vadd.f32 %v820, 1.0
    %v822 = vrcp.pop %v821
    %v823 = vmul.f32 1.0, %v822
    %v825 = vrot.slane %v817, 2
    %v827 = vxor.u32 %v825, 2147483648
    %v828 = vmul.f32 %v827, 1.442695
    %v829 = vpow.pop %v828
    %v830 = vadd.f32 %v829, 1.0
    %v831 = vrcp.pop %v830
    %v832 = vmul.f32 1.0, %v831
    %v833 = vrot.slane %v817, 4
    %v835 = vtanh.pop %v833
    %v836 = vrot.slane %v817, 6
    %v838 = vxor.u32 %v836, 2147483648
    %v839 = vmul.f32 %v838, 1.442695
    %v840 = vpow.pop %v839
    %v841 = vadd.f32 %v840, 1.0
    %v842 = vrcp.pop %v841
    %v843 = vmul.f32 1.0, %v842
    %v844 = vmul.f32 %v832, %v645
    %v845 = vmul.f32 %v823, %v835
    %v846 = vadd.f32 %v844, %v845
    %v847 = vtanh.pop %v846
    %v848 = vmul.f32 %v843, %v847
    %v849 = vld [vmem:[%s2] sm:$0xff]
    %v850 = vxor.u32 %v849, 2147483648
    %v851 = vmul.f32 %v850, 1.442695
    %v852 = vpow.pop %v851
    %v853 = vadd.f32 %v852, 1.0
    %v854 = vrcp.pop %v853
    %v855 = vmul.f32 1.0, %v854
    %v857 = vrot.slane %v849, 4
    %v859 = vtanh.pop %v857
    %v860 = vrot.slane %v849, 6
    %v862 = vxor.u32 %v860, 2147483648
    %v863 = vmul.f32 %v862, 1.442695
    %v864 = vpow.pop %v863
    %v865 = vadd.f32 %v864, 1.0
    %v866 = vrcp.pop %v865
    %v867 = vmul.f32 1.0, %v866
    %v868 = vmul.f32 %v855, %v859
    %v869 = vtanh.pop %v868
    %v870 = vmul.f32 %v867, %v869
    %v871 = vld [vmem:[%s3] sm:$0xff]
    %v872 = vld [vmem:[%s3 + $0x8] sm:$0xff]
    %v873 = vld [vmem:[%s3 + $0x10] sm:$0xff]
    %v874 = vld [vmem:[%s3 + $0x18] sm:$0xff]
    %v875 = vld [vmem:[%s3 + $0x20] sm:$0xff]
    %v876 = vld [vmem:[%s3 + $0x28] sm:$0xff]
    %s877 = scalar_lea.vmem %s3, 48
    %v878 = vld [vmem:[%s877] sm:$0xff]
    %v879 = vld [vmem:[%s877 + $0x8] sm:$0xff]
    %v880 = vld [vmem:[%s877 + $0x10] sm:$0xff]
    %v881 = vld [vmem:[%s877 + $0x18] sm:$0xff]
    %v882 = vld [vmem:[%s877 + $0x20] sm:$0xff]
    %v883 = vld [vmem:[%s877 + $0x28] sm:$0xff]
    %v885 = vsel %vm46, %v870, 0
    %887 = vmatprep.subr.mxu0 0.0
    %888 = vmatpush1.msra.mxu0 %v878
    %889 = vmatprep.subr.mxu0 0.0
    %890 = vmatpush1.msra.mxu0 %v879
    %891 = vmatprep.subr.mxu0 0.0
    %892 = vmatpush1.msra.mxu0 %v880
    %893 = vmatprep.subr.mxu0 0.0
    %894 = vmatpush1.msra.mxu0 %v881
    %895 = vmatprep.subr.mxu0 0.0
    %896 = vmatpush1.msra.mxu0 %v882
    %897 = vmatprep.subr.mxu0 0.0
    %898 = vmatpush1.msra.mxu0 %v883
    %899 = vmatprep.subr.mxu0 0.0
    %900 = vmatpush1.msra.mxu0 0.0
    %901 = vmatprep.subr.mxu0 0.0
    %902 = vmatpush1.msra.mxu0 0.0
    %903 = vmatprep.subr.mxu0 0.0
    %904 = vmatpush1.msra.mxu0 0.0
    %905 = vmatprep.subr.mxu0 0.0
    %906 = vmatpush1.msra.mxu0 0.0
    %907 = vmatprep.subr.mxu0 0.0
    %908 = vmatpush1.msra.mxu0 0.0
    %909 = vmatprep.subr.mxu0 0.0
    %910 = vmatpush1.msra.mxu0 0.0
    %911 = vmatprep.subr.mxu0 0.0
    %912 = vmatpush1.msra.mxu0 0.0
    %913 = vmatprep.subr.mxu0 0.0
    %914 = vmatpush1.msra.mxu0 0.0
    %915 = vmatprep.subr.mxu0 0.0
    %916 = vmatpush1.msra.mxu0 0.0
    %917 = vmatprep.subr.mxu0 0.0
    %918 = vmatpush1.msra.mxu0 0.0
    %919 = vmatprep.subr.mxu0 0.0
    %920 = vmatpush1.msra.mxu0 0.0
    %921 = vmatprep.subr.mxu0 0.0
    %922 = vmatpush1.msra.mxu0 0.0
    %923 = vmatprep.subr.mxu0 0.0
    %924 = vmatpush1.msra.mxu0 0.0
    %925 = vmatprep.subr.mxu0 0.0
    %926 = vmatpush1.msra.mxu0 0.0
    %927 = vmatprep.subr.mxu0 0.0
    %928 = vmatpush1.msra.mxu0 0.0
    %929 = vmatprep.subr.mxu0 0.0
    %930 = vmatpush1.msra.mxu0 0.0
    %931 = vmatprep.subr.mxu0 0.0
    %932 = vmatpush1.msra.mxu0 0.0
    %933 = vmatprep.subr.mxu0 0.0
    %934 = vmatpush1.msra.mxu0 0.0
    %935 = vmatprep.subr.mxu0 0.0
    %936 = vmatpush1.msra.mxu0 0.0
    %937 = vmatprep.subr.mxu0 0.0
    %938 = vmatpush1.msra.mxu0 0.0
    %939 = vmatprep.subr.mxu0 0.0
    %940 = vmatpush1.msra.mxu0 0.0
    %941 = vmatprep.subr.mxu0 0.0
    %942 = vmatpush1.msra.mxu0 0.0
    %943 = vmatprep.subr.mxu0 0.0
    %944 = vmatpush1.msra.mxu0 0.0
    %945 = vmatprep.subr.mxu0 0.0
    %946 = vmatpush1.msra.mxu0 0.0
    %947 = vmatprep.subr.mxu0 0.0
    %948 = vmatpush1.msra.mxu0 0.0
    %949 = vmatprep.subr.mxu0 0.0
    %950 = vmatpush1.msra.mxu0 0.0
    %951 = vmatprep.mubr.f32.mxu0 0.0
    %952 = vmatmul.mubr.f32.gmra.mrb[0].mxu0 %v885
    %v953 = vpop.f32.mrb[0].mxu0
    %v954 = vadd.f32 0.0, %v953
    %v955 = vpop.f32.mrb[0].mxu0
    %956 = vdwg.mxu0
    %v958 = vsel %vm46, %v848, 0
    %960 = vmatprep.subr.mxu0 0.0
    %961 = vmatpush1.msra.mxu0 %v871
    %962 = vmatprep.subr.mxu0 0.0
    %963 = vmatpush1.msra.mxu0 %v872
    %964 = vmatprep.subr.mxu0 0.0
    %965 = vmatpush1.msra.mxu0 %v873
    %966 = vmatprep.subr.mxu0 0.0
    %967 = vmatpush1.msra.mxu0 %v874
    %968 = vmatprep.subr.mxu0 0.0
    %969 = vmatpush1.msra.mxu0 %v875
    %970 = vmatprep.subr.mxu0 0.0
    %971 = vmatpush1.msra.mxu0 %v876
    %972 = vmatprep.subr.mxu0 0.0
    %973 = vmatpush1.msra.mxu0 0.0
    %974 = vmatprep.subr.mxu0 0.0
    %975 = vmatpush1.msra.mxu0 0.0
    %976 = vmatprep.subr.mxu0 0.0
    %977 = vmatpush1.msra.mxu0 0.0
    %978 = vmatprep.subr.mxu0 0.0
    %979 = vmatpush1.msra.mxu0 0.0
    %980 = vmatprep.subr.mxu0 0.0
    %981 = vmatpush1.msra.mxu0 0.0
    %982 = vmatprep.subr.mxu0 0.0
    %983 = vmatpush1.msra.mxu0 0.0
    %984 = vmatprep.subr.mxu0 0.0
    %985 = vmatpush1.msra.mxu0 0.0
    %986 = vmatprep.subr.mxu0 0.0
    %987 = vmatpush1.msra.mxu0 0.0
    %988 = vmatprep.subr.mxu0 0.0
    %989 = vmatpush1.msra.mxu0 0.0
    %990 = vmatprep.subr.mxu0 0.0
    %991 = vmatpush1.msra.mxu0 0.0
    %992 = vmatprep.subr.mxu0 0.0
    %993 = vmatpush1.msra.mxu0 0.0
    %994 = vmatprep.subr.mxu0 0.0
    %995 = vmatpush1.msra.mxu0 0.0
    %996 = vmatprep.subr.mxu0 0.0
    %997 = vmatpush1.msra.mxu0 0.0
    %998 = vmatprep.subr.mxu0 0.0
    %999 = vmatpush1.msra.mxu0 0.0
    %1000 = vmatprep.subr.mxu0 0.0
    %1001 = vmatpush1.msra.mxu0 0.0
    %1002 = vmatprep.subr.mxu0 0.0
    %1003 = vmatpush1.msra.mxu0 0.0
    %1004 = vmatprep.subr.mxu0 0.0
    %1005 = vmatpush1.msra.mxu0 0.0
    %1006 = vmatprep.subr.mxu0 0.0
    %1007 = vmatpush1.msra.mxu0 0.0
    %1008 = vmatprep.subr.mxu0 0.0
    %1009 = vmatpush1.msra.mxu0 0.0
    %1010 = vmatprep.subr.mxu0 0.0
    %1011 = vmatpush1.msra.mxu0 0.0
    %1012 = vmatprep.subr.mxu0 0.0
    %1013 = vmatpush1.msra.mxu0 0.0
    %1014 = vmatprep.subr.mxu0 0.0
    %1015 = vmatpush1.msra.mxu0 0.0
    %1016 = vmatprep.subr.mxu0 0.0
    %1017 = vmatpush1.msra.mxu0 0.0
    %1018 = vmatprep.subr.mxu0 0.0
    %1019 = vmatpush1.msra.mxu0 0.0
    %1020 = vmatprep.subr.mxu0 0.0
    %1021 = vmatpush1.msra.mxu0 0.0
    %1022 = vmatprep.subr.mxu0 0.0
    %1023 = vmatpush1.msra.mxu0 0.0
    %1024 = vmatprep.mubr.f32.mxu0 0.0
    %1025 = vmatmul.mubr.f32.gmra.mrb[0].mxu0 %v958
    %v1026 = vpop.f32.mrb[0].mxu0
    %v1027 = vadd.f32 %v954, %v1026
    %v1028 = vpop.f32.mrb[0].mxu0
    %1029 = vdwg.mxu0
    %v1030 = vld [vmem:[%s4] sm:$0x1]
    %v1032 = vlaneseq
    %v1033 = vshrl.u32 %v1032, 7
    %v1034 = vsub.s32 0, %v1033
    %v1035 = vrot.slane %v1030, %v1034
    %v1037 = vadd.f32 %v1027, %v1035
    %vm1038 = vcmask 25600
    %v1039 = vsel %vm1038, %v1037, -inf
    %1040 = vmax.xlane.f32.xlu0 %v1039
    %v1041 = vpop.xlane.xlu0 %1040
    %v1042 = vsub.f32 %v1037, %v1041
    %v1043 = vmul.f32 %v1042, 1.442695
    %v1044 = vpow.pop %v1043
    %v1045 = vsel %vm1038, %v1044, 0.0
    %1046 = vadd.xlane.f32.xlu0 %v1045
    %v1047 = vpop.xlane.xlu0 %1046
    %v1048 = vlog2.pop %v1047
    %v1049 = vmul.f32 %v1048, 0.6931472
    %v1050 = vsub.f32 %v1042, %v1049
    %1051 = vst.msk [vmem:[#allocation2] sm:$0x3] %vm1038, %v1050
    // Predicated region
    $region22: #{vr_pct_forward.21} parent=1 // pred_check
      _
    $region23: #{vr_pct_forward.21} parent=1 // pred_check_branch
      %1053 = sbr.rel (0) target = $region25
    $region24: #{vr_pct_forward.21} parent=1 // pred_region
      %s1055 = ssub.s32 32, 32
      %1056 = vsyncadd [#allocation3], %s1055
      %s1058 = sshll.u32 [#allocation2], 4
      %s1059 = int_to_ptr.vmem [resolvable:$true] %s1058
      %1061 = dma.vmem_to_hbm [thread:$0]  %s1059, 32, %s5, [#allocation3]
    $region25: #{vr_pct_forward.21} parent=1 // pred_fallthru
      _
    // Predicated region
    $region26: #{vr_pct_forward.21} parent=1 // pred_check
      _
    $region27: #{vr_pct_forward.21} parent=1 // pred_check_branch
      %1063 = sbr.rel (0) target = $region29
    $region28: #{vr_pct_forward.21} parent=1 // pred_region
      %1064 = dma.done [#allocation3], 32
    $region29: #{vr_pct_forward.21} parent=1 // pred_fallthru
      _
    %1065 = vsyncpa [#allocation3], 1

// kernel: vr_pct_forward.11
$region0: #{vr_pct_forward.11}
  #allocation0 [shape = 'u32[]', space=smem, size = 0x4, offset = 0x4, fixed_abs, tag = 'smem constant byte address 0x4 - core index']
  #allocation1 [shape = 'u32[144,128]{1,0:T(1,128)}', space=vmem, size = 0x12000, scoped, tag = 'internal scratch']
  #allocation2 [shape = 'f32[1,1]{1,0:T(1,128)S(1)}', space=vmem, size = 0x200, scoped, tag = 'scoped memory for vr_pct_forward.11']
  %s0 = inlined_call_operand.vmem [shape: f32[768,5], index: 0, kind: input, shape index: {}]
  %s1 = inlined_call_operand.vmem [shape: f32[5,8], index: 1, kind: input, shape index: {}]
  %s2 = inlined_call_operand.vmem [shape: f32[1,8], index: 2, kind: input, shape index: {}]
  %s3 = inlined_call_operand.vmem [shape: f32[8,16], index: 3, kind: input, shape index: {}]
  %s4 = inlined_call_operand.vmem [shape: f32[1,16], index: 4, kind: input, shape index: {}]
  %s5 = inlined_call_operand.vmem [shape: f32[16,24], index: 5, kind: input, shape index: {}]
  %s6 = inlined_call_operand.vmem [shape: f32[1,24], index: 6, kind: input, shape index: {}]
  %s7 = inlined_call_operand.vmem [shape: f32[5,48], index: 7, kind: input, shape index: {}]
  %s8 = inlined_call_operand.vmem [shape: f32[24,48], index: 8, kind: input, shape index: {}]
  %s9 = inlined_call_operand.vmem [shape: f32[1,48], index: 9, kind: input, shape index: {}]
  %s10 = inlined_call_operand.vmem [shape: f32[48,72], index: 10, kind: input, shape index: {}]
  %s11 = inlined_call_operand.vmem [shape: f32[1,72], index: 11, kind: input, shape index: {}]
  %s12 = inlined_call_operand.vmem [shape: f32[72,96], index: 12, kind: input, shape index: {}]
  %s13 = inlined_call_operand.vmem [shape: f32[1,96], index: 13, kind: input, shape index: {}]
  %s14 = inlined_call_operand.vmem [shape: f32[96,1], index: 14, kind: input, shape index: {}]
  %s15 = inlined_call_operand.<no memory space> [shape: f32[1,1], index: 15, kind: input, shape index: {}]
  %s16 = inlined_call_operand.vmem [shape: f32[1,8,96], index: 16, kind: output, shape index: {}]
  %s17 = sld [smem:[#allocation0]]
  $region74: #{vr_pct_forward.11} parent=0
    _
  %s19 = ssub.s32 1, %s17
  %s20 = scalar_select 0, %s19, %s17
  %v21 = vstv %s15
  %22 = vst [vmem:[#allocation2] sm:$0x1] %v21
  // Predicated region
  $region2: #{vr_pct_forward.11} parent=0 // pred_check
    _
  $region3: #{vr_pct_forward.11} parent=0 // pred_check_branch
    %24 = sbr.rel (0) target = $region5
  $region4: #{vr_pct_forward.11} parent=0 // pred_region
    _
  $region5: #{vr_pct_forward.11} parent=0 // pred_fallthru
    _
  // Predicated region
  $region6: #{vr_pct_forward.11} parent=0 // pred_check
    _
  $region7: #{vr_pct_forward.11} parent=0 // pred_check_branch
    %26 = sbr.rel (0) target = $region9
  $region8: #{vr_pct_forward.11} parent=0 // pred_region
    _
  $region9: #{vr_pct_forward.11} parent=0 // pred_fallthru
    _
  // Predicated region
  $region10: #{vr_pct_forward.11} parent=0 // pred_check
    _
  $region11: #{vr_pct_forward.11} parent=0 // pred_check_branch
    %28 = sbr.rel (0) target = $region13
  $region12: #{vr_pct_forward.11} parent=0 // pred_region
    _
  $region13: #{vr_pct_forward.11} parent=0 // pred_fallthru
    _
  // Predicated region
  $region14: #{vr_pct_forward.11} parent=0 // pred_check
    _
  $region15: #{vr_pct_forward.11} parent=0 // pred_check_branch
    %30 = sbr.rel (0) target = $region17
  $region16: #{vr_pct_forward.11} parent=0 // pred_region
    _
  $region17: #{vr_pct_forward.11} parent=0 // pred_fallthru
    _
  // Predicated region
  $region18: #{vr_pct_forward.11} parent=0 // pred_check
    _
  $region19: #{vr_pct_forward.11} parent=0 // pred_check_branch
    %32 = sbr.rel (0) target = $region21
  $region20: #{vr_pct_forward.11} parent=0 // pred_region
    _
  $region21: #{vr_pct_forward.11} parent=0 // pred_fallthru
    _
  // Predicated region
  $region22: #{vr_pct_forward.11} parent=0 // pred_check
    _
  $region23: #{vr_pct_forward.11} parent=0 // pred_check_branch
    %34 = sbr.rel (0) target = $region25
  $region24: #{vr_pct_forward.11} parent=0 // pred_region
    _
  $region25: #{vr_pct_forward.11} parent=0 // pred_fallthru
    _
  // Predicated region
  $region26: #{vr_pct_forward.11} parent=0 // pred_check
    _
  $region27: #{vr_pct_forward.11} parent=0 // pred_check_branch
    %36 = sbr.rel (0) target = $region29
  $region28: #{vr_pct_forward.11} parent=0 // pred_region
    _
  $region29: #{vr_pct_forward.11} parent=0 // pred_fallthru
    _
  // Predicated region
  $region30: #{vr_pct_forward.11} parent=0 // pred_check
    _
  $region31: #{vr_pct_forward.11} parent=0 // pred_check_branch
    %38 = sbr.rel (0) target = $region33
  $region32: #{vr_pct_forward.11} parent=0 // pred_region
    _
  $region33: #{vr_pct_forward.11} parent=0 // pred_fallthru
    _
  // Predicated region
  $region34: #{vr_pct_forward.11} parent=0 // pred_check
    _
  $region35: #{vr_pct_forward.11} parent=0 // pred_check_branch
    %40 = sbr.rel (0) target = $region37
  $region36: #{vr_pct_forward.11} parent=0 // pred_region
    _
  $region37: #{vr_pct_forward.11} parent=0 // pred_fallthru
    _
  // Predicated region
  $region38: #{vr_pct_forward.11} parent=0 // pred_check
    _
  $region39: #{vr_pct_forward.11} parent=0 // pred_check_branch
    %42 = sbr.rel (0) target = $region41
  $region40: #{vr_pct_forward.11} parent=0 // pred_region
    _
  $region41: #{vr_pct_forward.11} parent=0 // pred_fallthru
    _
  // Predicated region
  $region42: #{vr_pct_forward.11} parent=0 // pred_check
    _
  $region43: #{vr_pct_forward.11} parent=0 // pred_check_branch
    %44 = sbr.rel (0) target = $region45
  $region44: #{vr_pct_forward.11} parent=0 // pred_region
    _
  $region45: #{vr_pct_forward.11} parent=0 // pred_fallthru
    _
  // Predicated region
  $region46: #{vr_pct_forward.11} parent=0 // pred_check
    _
  $region47: #{vr_pct_forward.11} parent=0 // pred_check_branch
    %46 = sbr.rel (0) target = $region49
  $region48: #{vr_pct_forward.11} parent=0 // pred_region
    _
  $region49: #{vr_pct_forward.11} parent=0 // pred_fallthru
    _
  // Predicated region
  $region50: #{vr_pct_forward.11} parent=0 // pred_check
    _
  $region51: #{vr_pct_forward.11} parent=0 // pred_check_branch
    %48 = sbr.rel (0) target = $region53
  $region52: #{vr_pct_forward.11} parent=0 // pred_region
    _
  $region53: #{vr_pct_forward.11} parent=0 // pred_fallthru
    _
  // Predicated region
  $region54: #{vr_pct_forward.11} parent=0 // pred_check
    _
  $region55: #{vr_pct_forward.11} parent=0 // pred_check_branch
    %50 = sbr.rel (0) target = $region57
  $region56: #{vr_pct_forward.11} parent=0 // pred_region
    _
  $region57: #{vr_pct_forward.11} parent=0 // pred_fallthru
    _
  // Predicated region
  $region58: #{vr_pct_forward.11} parent=0 // pred_check
    _
  $region59: #{vr_pct_forward.11} parent=0 // pred_check_branch
    %52 = sbr.rel (0) target = $region61
  $region60: #{vr_pct_forward.11} parent=0 // pred_region
    _
  $region61: #{vr_pct_forward.11} parent=0 // pred_fallthru
    _
  // Predicated region
  $region62: #{vr_pct_forward.11} parent=0 // pred_check
    _
  $region63: #{vr_pct_forward.11} parent=0 // pred_check_branch
    %54 = sbr.rel (0) target = $region65
  $region64: #{vr_pct_forward.11} parent=0 // pred_region
    _
  $region65: #{vr_pct_forward.11} parent=0 // pred_fallthru
    _
  %v55 = vld [vmem:[%s0] sm:$0xff]
  %v56 = vld [vmem:[%s0 + $0x8] sm:$0xff]
  %v57 = vld [vmem:[%s0 + $0x10] sm:$0xff]
  %v58 = vld [vmem:[%s0 + $0x18] sm:$0xff]
  %v59 = vld [vmem:[%s0 + $0x20] sm:$0xff]
  %v60 = vld [vmem:[%s0 + $0x28] sm:$0xff]
  %v61 = vld [vmem:[%s0 + $0x30] sm:$0xff]
  %v62 = vld [vmem:[%s0 + $0x38] sm:$0xff]
  %v63 = vld [vmem:[%s0 + $0x40] sm:$0xff]
  %v64 = vld [vmem:[%s0 + $0x48] sm:$0xff]
  %v65 = vld [vmem:[%s0 + $0x50] sm:$0xff]
  %v66 = vld [vmem:[%s0 + $0x58] sm:$0xff]
  %v67 = vld [vmem:[%s0 + $0x60] sm:$0xff]
  %v68 = vld [vmem:[%s0 + $0x68] sm:$0xff]
  %v69 = vld [vmem:[%s0 + $0x70] sm:$0xff]
  %v70 = vld [vmem:[%s0 + $0x78] sm:$0xff]
  %v71 = vld [vmem:[%s0 + $0x80] sm:$0xff]
  %v72 = vld [vmem:[%s0 + $0x88] sm:$0xff]
  %v73 = vld [vmem:[%s0 + $0x90] sm:$0xff]
  %v74 = vld [vmem:[%s0 + $0x98] sm:$0xff]
  %v75 = vld [vmem:[%s0 + $0xa0] sm:$0xff]
  %v76 = vld [vmem:[%s0 + $0xa8] sm:$0xff]
  %v77 = vld [vmem:[%s0 + $0xb0] sm:$0xff]
  %v78 = vld [vmem:[%s0 + $0xb8] sm:$0xff]
  %v79 = vld [vmem:[%s0 + $0xc0] sm:$0xff]
  %v80 = vld [vmem:[%s0 + $0xc8] sm:$0xff]
  %v81 = vld [vmem:[%s0 + $0xd0] sm:$0xff]
  %v82 = vld [vmem:[%s0 + $0xd8] sm:$0xff]
  %v83 = vld [vmem:[%s0 + $0xe0] sm:$0xff]
  %v84 = vld [vmem:[%s0 + $0xe8] sm:$0xff]
  %v85 = vld [vmem:[%s0 + $0xf0] sm:$0xff]
  %v86 = vld [vmem:[%s0 + $0xf8] sm:$0xff]
  %v87 = vld [vmem:[%s0 + $0x100] sm:$0xff]
  %v88 = vld [vmem:[%s0 + $0x108] sm:$0xff]
  %v89 = vld [vmem:[%s0 + $0x110] sm:$0xff]
  %v90 = vld [vmem:[%s0 + $0x118] sm:$0xff]
  %v91 = vld [vmem:[%s0 + $0x120] sm:$0xff]
  %v92 = vld [vmem:[%s0 + $0x128] sm:$0xff]
  %v93 = vld [vmem:[%s0 + $0x130] sm:$0xff]
  %v94 = vld [vmem:[%s0 + $0x138] sm:$0xff]
  %v95 = vld [vmem:[%s0 + $0x140] sm:$0xff]
  %v96 = vld [vmem:[%s0 + $0x148] sm:$0xff]
  %v97 = vld [vmem:[%s0 + $0x150] sm:$0xff]
  %v98 = vld [vmem:[%s0 + $0x158] sm:$0xff]
  %v99 = vld [vmem:[%s0 + $0x160] sm:$0xff]
  %v100 = vld [vmem:[%s0 + $0x168] sm:$0xff]
  %v101 = vld [vmem:[%s0 + $0x170] sm:$0xff]
  %v102 = vld [vmem:[%s0 + $0x178] sm:$0xff]
  %v103 = vld [vmem:[%s0 + $0x180] sm:$0xff]
  %v104 = vld [vmem:[%s0 + $0x188] sm:$0xff]
  %v105 = vld [vmem:[%s0 + $0x190] sm:$0xff]
  %v106 = vld [vmem:[%s0 + $0x198] sm:$0xff]
  %v107 = vld [vmem:[%s0 + $0x1a0] sm:$0xff]
  %v108 = vld [vmem:[%s0 + $0x1a8] sm:$0xff]
  %v109 = vld [vmem:[%s0 + $0x1b0] sm:$0xff]
  %v110 = vld [vmem:[%s0 + $0x1b8] sm:$0xff]
  %v111 = vld [vmem:[%s0 + $0x1c0] sm:$0xff]
  %v112 = vld [vmem:[%s0 + $0x1c8] sm:$0xff]
  %v113 = vld [vmem:[%s0 + $0x1d0] sm:$0xff]
  %v114 = vld [vmem:[%s0 + $0x1d8] sm:$0xff]
  %v115 = vld [vmem:[%s0 + $0x1e0] sm:$0xff]
  %v116 = vld [vmem:[%s0 + $0x1e8] sm:$0xff]
  %v117 = vld [vmem:[%s0 + $0x1f0] sm:$0xff]
  %v118 = vld [vmem:[%s0 + $0x1f8] sm:$0xff]
  %v119 = vld [vmem:[%s0 + $0x200] sm:$0xff]
  %v120 = vld [vmem:[%s0 + $0x208] sm:$0xff]
  %v121 = vld [vmem:[%s0 + $0x210] sm:$0xff]
  %v122 = vld [vmem:[%s0 + $0x218] sm:$0xff]
  %v123 = vld [vmem:[%s0 + $0x220] sm:$0xff]
  %v124 = vld [vmem:[%s0 + $0x228] sm:$0xff]
  %v125 = vld [vmem:[%s0 + $0x230] sm:$0xff]
  %v126 = vld [vmem:[%s0 + $0x238] sm:$0xff]
  %v127 = vld [vmem:[%s0 + $0x240] sm:$0xff]
  %v128 = vld [vmem:[%s0 + $0x248] sm:$0xff]
  %v129 = vld [vmem:[%s0 + $0x250] sm:$0xff]
  %v130 = vld [vmem:[%s0 + $0x258] sm:$0xff]
  %v131 = vld [vmem:[%s0 + $0x260] sm:$0xff]
  %v132 = vld [vmem:[%s0 + $0x268] sm:$0xff]
  %v133 = vld [vmem:[%s0 + $0x270] sm:$0xff]
  %v134 = vld [vmem:[%s0 + $0x278] sm:$0xff]
  %v135 = vld [vmem:[%s0 + $0x280] sm:$0xff]
  %v136 = vld [vmem:[%s0 + $0x288] sm:$0xff]
  %v137 = vld [vmem:[%s0 + $0x290] sm:$0xff]
  %v138 = vld [vmem:[%s0 + $0x298] sm:$0xff]
  %v139 = vld [vmem:[%s0 + $0x2a0] sm:$0xff]
  %v140 = vld [vmem:[%s0 + $0x2a8] sm:$0xff]
  %v141 = vld [vmem:[%s0 + $0x2b0] sm:$0xff]
  %v142 = vld [vmem:[%s0 + $0x2b8] sm:$0xff]
  %v143 = vld [vmem:[%s0 + $0x2c0] sm:$0xff]
  %v144 = vld [vmem:[%s0 + $0x2c8] sm:$0xff]
  %v145 = vld [vmem:[%s0 + $0x2d0] sm:$0xff]
  %v146 = vld [vmem:[%s0 + $0x2d8] sm:$0xff]
  %v147 = vld [vmem:[%s0 + $0x2e0] sm:$0xff]
  %v148 = vld [vmem:[%s0 + $0x2e8] sm:$0xff]
  %v149 = vld [vmem:[%s0 + $0x2f0] sm:$0xff]
  %v150 = vld [vmem:[%s0 + $0x2f8] sm:$0xff]
  %v151 = vld [vmem:[%s1] sm:$0x1f]
  %v152 = vld [vmem:[%s2] sm:$0x1]
  %v154 = vlaneseq
  %v155 = vshrl.u32 %v154, 7
  %v156 = vsub.s32 0, %v155
  %v157 = vrot.slane %v152, %v156
  %vm159 = vcmask 39936
  %v161 = vsel %vm159, %v55, 0
  %v164 = vsel %vm159, %v56, 0
  %v167 = vsel %vm159, %v57, 0
  %v170 = vsel %vm159, %v58, 0
  %v173 = vsel %vm159, %v59, 0
  %v176 = vsel %vm159, %v60, 0
  %v179 = vsel %vm159, %v61, 0
  %v182 = vsel %vm159, %v62, 0
  %v185 = vsel %vm159, %v63, 0
  %v188 = vsel %vm159, %v64, 0
  %v191 = vsel %vm159, %v65, 0
  %v194 = vsel %vm159, %v66, 0
  %v197 = vsel %vm159, %v67, 0
  %v200 = vsel %vm159, %v68, 0
  %v203 = vsel %vm159, %v69, 0
  %v206 = vsel %vm159, %v70, 0
  %v209 = vsel %vm159, %v71, 0
  %v212 = vsel %vm159, %v72, 0
  %v215 = vsel %vm159, %v73, 0
  %v218 = vsel %vm159, %v74, 0
  %v221 = vsel %vm159, %v75, 0
  %v224 = vsel %vm159, %v76, 0
  %v227 = vsel %vm159, %v77, 0
  %v230 = vsel %vm159, %v78, 0
  %v233 = vsel %vm159, %v79, 0
  %v236 = vsel %vm159, %v80, 0
  %v239 = vsel %vm159, %v81, 0
  %v242 = vsel %vm159, %v82, 0
  %v245 = vsel %vm159, %v83, 0
  %v248 = vsel %vm159, %v84, 0
  %v251 = vsel %vm159, %v85, 0
  %v254 = vsel %vm159, %v86, 0
  %v257 = vsel %vm159, %v87, 0
  %v260 = vsel %vm159, %v88, 0
  %v263 = vsel %vm159, %v89, 0
  %v266 = vsel %vm159, %v90, 0
  %v269 = vsel %vm159, %v91, 0
  %v272 = vsel %vm159, %v92, 0
  %v275 = vsel %vm159, %v93, 0
  %v278 = vsel %vm159, %v94, 0
  %v281 = vsel %vm159, %v95, 0
  %v284 = vsel %vm159, %v96, 0
  %v287 = vsel %vm159, %v97, 0
  %v290 = vsel %vm159, %v98, 0
  %v293 = vsel %vm159, %v99, 0
  %v296 = vsel %vm159, %v100, 0
  %v299 = vsel %vm159, %v101, 0
  %v302 = vsel %vm159, %v102, 0
  %v305 = vsel %vm159, %v103, 0
  %v308 = vsel %vm159, %v104, 0
  %v311 = vsel %vm159, %v105, 0
  %v314 = vsel %vm159, %v106, 0
  %v317 = vsel %vm159, %v107, 0
  %v320 = vsel %vm159, %v108, 0
  %v323 = vsel %vm159, %v109, 0
  %v326 = vsel %vm159, %v110, 0
  %v329 = vsel %vm159, %v111, 0
  %v332 = vsel %vm159, %v112, 0
  %v335 = vsel %vm159, %v113, 0
  %v338 = vsel %vm159, %v114, 0
  %v341 = vsel %vm159, %v115, 0
  %v344 = vsel %vm159, %v116, 0
  %v347 = vsel %vm159, %v117, 0
  %v350 = vsel %vm159, %v118, 0
  %v353 = vsel %vm159, %v119, 0
  %v356 = vsel %vm159, %v120, 0
  %v359 = vsel %vm159, %v121, 0
  %v362 = vsel %vm159, %v122, 0
  %v365 = vsel %vm159, %v123, 0
  %v368 = vsel %vm159, %v124, 0
  %v371 = vsel %vm159, %v125, 0
  %v374 = vsel %vm159, %v126, 0
  %v377 = vsel %vm159, %v127, 0
  %v380 = vsel %vm159, %v128, 0
  %v383 = vsel %vm159, %v129, 0
  %v386 = vsel %vm159, %v130, 0
  %v389 = vsel %vm159, %v131, 0
  %v392 = vsel %vm159, %v132, 0
  %v395 = vsel %vm159, %v133, 0
  %v398 = vsel %vm159, %v134, 0
  %v401 = vsel %vm159, %v135, 0
  %v404 = vsel %vm159, %v136, 0
  %v407 = vsel %vm159, %v137, 0
  %v410 = vsel %vm159, %v138, 0
  %v413 = vsel %vm159, %v139, 0
  %v416 = vsel %vm159, %v140, 0
  %v419 = vsel %vm159, %v141, 0
  %v422 = vsel %vm159, %v142, 0
  %v425 = vsel %vm159, %v143, 0
  %v428 = vsel %vm159, %v144, 0
  %v431 = vsel %vm159, %v145, 0
  %v434 = vsel %vm159, %v146, 0
  %v437 = vsel %vm159, %v147, 0
  %v440 = vsel %vm159, %v148, 0
  %v443 = vsel %vm159, %v149, 0
  %v446 = vsel %vm159, %v150, 0
  %vm448 = vcmask 1044480
  %v450 = vsel %vm448, %v151, 0
  %452 = vmatprep.subr.mxu0 0.0
  %453 = vmatpush1.msra.mxu0 %v450
  %454 = vmatprep.subr.mxu0 0.0
  %455 = vmatpush1.msra.mxu0 0.0
  %456 = vmatprep.subr.mxu0 0.0
  %457 = vmatpush1.msra.mxu0 0.0
  %458 = vmatprep.subr.mxu0 0.0
  %459 = vmatpush1.msra.mxu0 0.0
  %460 = vmatprep.subr.mxu0 0.0
  %461 = vmatpush1.msra.mxu0 0.0
  %462 = vmatprep.subr.mxu0 0.0
  %463 = vmatpush1.msra.mxu0 0.0
  %464 = vmatprep.subr.mxu0 0.0
  %465 = vmatpush1.msra.mxu0 0.0
  %466 = vmatprep.subr.mxu0 0.0
  %467 = vmatpush1.msra.mxu0 0.0
  %468 = vmatprep.subr.mxu0 0.0
  %469 = vmatpush1.msra.mxu0 0.0
  %470 = vmatprep.subr.mxu0 0.0
  %471 = vmatpush1.msra.mxu0 0.0
  %472 = vmatprep.subr.mxu0 0.0
  %473 = vmatpush1.msra.mxu0 0.0
  %474 = vmatprep.subr.mxu0 0.0
  %475 = vmatpush1.msra.mxu0 0.0
  %476 = vmatprep.subr.mxu0 0.0
  %477 = vmatpush1.msra.mxu0 0.0
  %478 = vmatprep.subr.mxu0 0.0
  %479 = vmatpush1.msra.mxu0 0.0
  %480 = vmatprep.subr.mxu0 0.0
  %481 = vmatpush1.msra.mxu0 0.0
  %482 = vmatprep.subr.mxu0 0.0
  %483 = vmatpush1.msra.mxu0 0.0
  %484 = vmatprep.subr.mxu0 0.0
  %485 = vmatpush1.msra.mxu0 0.0
  %486 = vmatprep.subr.mxu0 0.0
  %487 = vmatpush1.msra.mxu0 0.0
  %488 = vmatprep.subr.mxu0 0.0
  %489 = vmatpush1.msra.mxu0 0.0
  %490 = vmatprep.subr.mxu0 0.0
  %491 = vmatpush1.msra.mxu0 0.0
  %492 = vmatprep.subr.mxu0 0.0
  %493 = vmatpush1.msra.mxu0 0.0
  %494 = vmatprep.subr.mxu0 0.0
  %495 = vmatpush1.msra.mxu0 0.0
  %496 = vmatprep.subr.mxu0 0.0
  %497 = vmatpush1.msra.mxu0 0.0
  %498 = vmatprep.subr.mxu0 0.0
  %499 = vmatpush1.msra.mxu0 0.0
  %500 = vmatprep.subr.mxu0 0.0
  %501 = vmatpush1.msra.mxu0 0.0
  %502 = vmatprep.subr.mxu0 0.0
  %503 = vmatpush1.msra.mxu0 0.0
  %504 = vmatprep.subr.mxu0 0.0
  %505 = vmatpush1.msra.mxu0 0.0
  %506 = vmatprep.subr.mxu0 0.0
  %507 = vmatpush1.msra.mxu0 0.0
  %508 = vmatprep.subr.mxu0 0.0
  %509 = vmatpush1.msra.mxu0 0.0
  %510 = vmatprep.subr.mxu0 0.0
  %511 = vmatpush1.msra.mxu0 0.0
  %512 = vmatprep.subr.mxu0 0.0
  %513 = vmatpush1.msra.mxu0 0.0
  %514 = vmatprep.subr.mxu0 0.0
  %515 = vmatpush1.msra.mxu0 0.0
  %516 = vmatprep.mubr.f32.mxu0 0.0
  %517 = vmatmul.mubr.f32.gmra.mrb[0].mxu0 %v161
  %v518 = vpop.f32.mrb[0].mxu0
  %v519 = vadd.f32 %v157, %v518
  %v520 = vpop.f32.mrb[0].mxu0
  %521 = vmatprep.mubr.f32.mxu0 0.0
  %522 = vmatmul.mubr.f32.gmra.mrb[0].mxu0 %v164
  %v523 = vpop.f32.mrb[0].mxu0
  %v524 = vadd.f32 %v157, %v523
  %v525 = vpop.f32.mrb[0].mxu0
  %526 = vmatprep.mubr.f32.mxu0 0.0
  %527 = vmatmul.mubr.f32.gmra.mrb[0].mxu0 %v167
  %v528 = vpop.f32.mrb[0].mxu0
  %v529 = vadd.f32 %v157, %v528
  %v530 = vpop.f32.mrb[0].mxu0
  %531 = vmatprep.mubr.f32.mxu0 0.0
  %532 = vmatmul.mubr.f32.gmra.mrb[0].mxu0 %v170
  %v533 = vpop.f32.mrb[0].mxu0
  %v534 = vadd.f32 %v157, %v533
  %v535 = vpop.f32.mrb[0].mxu0
  %536 = vmatprep.mubr.f32.mxu0 0.0
  %537 = vmatmul.mubr.f32.gmra.mrb[0].mxu0 %v173
  %v538 = vpop.f32.mrb[0].mxu0
  %v539 = vadd.f32 %v157, %v538
  %v540 = vpop.f32.mrb[0].mxu0
  %541 = vmatprep.mubr.f32.mxu0 0.0
  %542 = vmatmul.mubr.f32.gmra.mrb[0].mxu0 %v176
  %v543 = vpop.f32.mrb[0].mxu0
  %v544 = vadd.f32 %v157, %v543
  %v545 = vpop.f32.mrb[0].mxu0
  %546 = vmatprep.mubr.f32.mxu0 0.0
  %547 = vmatmul.mubr.f32.gmra.mrb[0].mxu0 %v179
  %v548 = vpop.f32.mrb[0].mxu0
  %v549 = vadd.f32 %v157, %v548
  %v550 = vpop.f32.mrb[0].mxu0
  %551 = vmatprep.mubr.f32.mxu0 0.0
  %552 = vmatmul.mubr.f32.gmra.mrb[0].mxu0 %v182
  %v553 = vpop.f32.mrb[0].mxu0
  %v554 = vadd.f32 %v157, %v553
  %v555 = vpop.f32.mrb[0].mxu0
  %556 = vmatprep.mubr.f32.mxu0 0.0
  %557 = vmatmul.mubr.f32.gmra.mrb[0].mxu0 %v185
  %v558 = vpop.f32.mrb[0].mxu0
  %v559 = vadd.f32 %v157, %v558
  %v560 = vpop.f32.mrb[0].mxu0
  %561 = vmatprep.mubr.f32.mxu0 0.0
  %562 = vmatmul.mubr.f32.gmra.mrb[0].mxu0 %v188
  %v563 = vpop.f32.mrb[0].mxu0
  %v564 = vadd.f32 %v157, %v563
  %v565 = vpop.f32.mrb[0].mxu0
  %566 = vmatprep.mubr.f32.mxu0 0.0
  %567 = vmatmul.mubr.f32.gmra.mrb[0].mxu0 %v191
  %v568 = vpop.f32.mrb[0].mxu0
  %v569 = vadd.f32 %v157, %v568
  %v570 = vpop.f32.mrb[0].mxu0
  %571 = vmatprep.mubr.f32.mxu0 0.0
  %572 = vmatmul.mubr.f32.gmra.mrb[0].mxu0 %v194
  %v573 = vpop.f32.mrb[0].mxu0
  %v574 = vadd.f32 %v157, %v573
  %v575 = vpop.f32.mrb[0].mxu0
  %576 = vmatprep.mubr.f32.mxu0 0.0
  %577 = vmatmul.mubr.f32.gmra.mrb[0].mxu0 %v197
  %v578 = vpop.f32.mrb[0].mxu0
  %v579 = vadd.f32 %v157, %v578
  %v580 = vpop.f32.mrb[0].mxu0
  %581 = vmatprep.mubr.f32.mxu0 0.0
  %582 = vmatmul.mubr.f32.gmra.mrb[0].mxu0 %v200
  %v583 = vpop.f32.mrb[0].mxu0
  %v584 = vadd.f32 %v157, %v583
  %v585 = vpop.f32.mrb[0].mxu0
  %586 = vmatprep.mubr.f32.mxu0 0.0
  %587 = vmatmul.mubr.f32.gmra.mrb[0].mxu0 %v203
  %v588 = vpop.f32.mrb[0].mxu0
  %v589 = vadd.f32 %v157, %v588
  %v590 = vpop.f32.mrb[0].mxu0
  %591 = vmatprep.mubr.f32.mxu0 0.0
  %592 = vmatmul.mubr.f32.gmra.mrb[0].mxu0 %v206
  %v593 = vpop.f32.mrb[0].mxu0
  %v594 = vadd.f32 %v157, %v593
  %v595 = vpop.f32.mrb[0].mxu0
  %596 = vmatprep.mubr.f32.mxu0 0.0
  %597 = vmatmul.mubr.f32.gmra.mrb[0].mxu0 %v209
  %v598 = vpop.f32.mrb[0].mxu0
  %v599 = vadd.f32 %v157, %v598
  %v600 = vpop.f32.mrb[0].mxu0
  %601 = vmatprep.mubr.f32.mxu0 0.0
  %602 = vmatmul.mubr.f32.gmra.mrb[0].mxu0 %v212
  %v603 = vpop.f32.mrb[0].mxu0
  %v604 = vadd.f32 %v157, %v603
  %v605 = vpop.f32.mrb[0].mxu0
  %606 = vmatprep.mubr.f32.mxu0 0.0
  %607 = vmatmul.mubr.f32.gmra.mrb[0].mxu0 %v215
  %v608 = vpop.f32.mrb[0].mxu0
  %v609 = vadd.f32 %v157, %v608
  %v610 = vpop.f32.mrb[0].mxu0
  %611 = vmatprep.mubr.f32.mxu0 0.0
  %612 = vmatmul.mubr.f32.gmra.mrb[0].mxu0 %v218
  %v613 = vpop.f32.mrb[0].mxu0
  %v614 = vadd.f32 %v157, %v613
  %v615 = vpop.f32.mrb[0].mxu0
  %616 = vmatprep.mubr.f32.mxu0 0.0
  %617 = vmatmul.mubr.f32.gmra.mrb[0].mxu0 %v221
  %v618 = vpop.f32.mrb[0].mxu0
  %v619 = vadd.f32 %v157, %v618
  %v620 = vpop.f32.mrb[0].mxu0
  %621 = vmatprep.mubr.f32.mxu0 0.0
  %622 = vmatmul.mubr.f32.gmra.mrb[0].mxu0 %v224
  %v623 = vpop.f32.mrb[0].mxu0
  %v624 = vadd.f32 %v157, %v623
  %v625 = vpop.f32.mrb[0].mxu0
  %626 = vmatprep.mubr.f32.mxu0 0.0
  %627 = vmatmul.mubr.f32.gmra.mrb[0].mxu0 %v227
  %v628 = vpop.f32.mrb[0].mxu0
  %v629 = vadd.f32 %v157, %v628
  %v630 = vpop.f32.mrb[0].mxu0
  %631 = vmatprep.mubr.f32.mxu0 0.0
  %632 = vmatmul.mubr.f32.gmra.mrb[0].mxu0 %v230
  %v633 = vpop.f32.mrb[0].mxu0
  %v634 = vadd.f32 %v157, %v633
  %v635 = vpop.f32.mrb[0].mxu0
  %636 = vmatprep.mubr.f32.mxu0 0.0
  %637 = vmatmul.mubr.f32.gmra.mrb[0].mxu0 %v233
  %v638 = vpop.f32.mrb[0].mxu0
  %v639 = vadd.f32 %v157, %v638
  %v640 = vpop.f32.mrb[0].mxu0
  %641 = vmatprep.mubr.f32.mxu0 0.0
  %642 = vmatmul.mubr.f32.gmra.mrb[0].mxu0 %v236
  %v643 = vpop.f32.mrb[0].mxu0
  %v644 = vadd.f32 %v157, %v643
  %v645 = vpop.f32.mrb[0].mxu0
  %646 = vmatprep.mubr.f32.mxu0 0.0
  %647 = vmatmul.mubr.f32.gmra.mrb[0].mxu0 %v239
  %v648 = vpop.f32.mrb[0].mxu0
  %v649 = vadd.f32 %v157, %v648
  %v650 = vpop.f32.mrb[0].mxu0
  %651 = vmatprep.mubr.f32.mxu0 0.0
  %652 = vmatmul.mubr.f32.gmra.mrb[0].mxu0 %v242
  %v653 = vpop.f32.mrb[0].mxu0
  %v654 = vadd.f32 %v157, %v653
  %v655 = vpop.f32.mrb[0].mxu0
  %656 = vmatprep.mubr.f32.mxu0 0.0
  %657 = vmatmul.mubr.f32.gmra.mrb[0].mxu0 %v245
  %v658 = vpop.f32.mrb[0].mxu0
  %v659 = vadd.f32 %v157, %v658
  %v660 = vpop.f32.mrb[0].mxu0
  %661 = vmatprep.mubr.f32.mxu0 0.0
  %662 = vmatmul.mubr.f32.gmra.mrb[0].mxu0 %v248
  %v663 = vpop.f32.mrb[0].mxu0
  %v664 = vadd.f32 %v157, %v663
  %v665 = vpop.f32.mrb[0].mxu0
  %666 = vmatprep.mubr.f32.mxu0 0.0
  %667 = vmatmul.mubr.f32.gmra.mrb[0].mxu0 %v251
  %v668 = vpop.f32.mrb[0].mxu0
  %v669 = vadd.f32 %v157, %v668
  %v670 = vpop.f32.mrb[0].mxu0
  %671 = vmatprep.mubr.f32.mxu0 0.0
  %672 = vmatmul.mubr.f32.gmra.mrb[0].mxu0 %v254
  %v673 = vpop.f32.mrb[0].mxu0
  %v674 = vadd.f32 %v157, %v673
  %v675 = vpop.f32.mrb[0].mxu0
  %676 = vmatprep.mubr.f32.mxu0 0.0
  %677 = vmatmul.mubr.f32.gmra.mrb[0].mxu0 %v257
  %v678 = vpop.f32.mrb[0].mxu0
  %v679 = vadd.f32 %v157, %v678
  %v680 = vpop.f32.mrb[0].mxu0
  %681 = vmatprep.mubr.f32.mxu0 0.0
  %682 = vmatmul.mubr.f32.gmra.mrb[0].mxu0 %v260
  %v683 = vpop.f32.mrb[0].mxu0
  %v684 = vadd.f32 %v157, %v683
  %v685 = vpop.f32.mrb[0].mxu0
  %686 = vmatprep.mubr.f32.mxu0 0.0
  %687 = vmatmul.mubr.f32.gmra.mrb[0].mxu0 %v263
  %v688 = vpop.f32.mrb[0].mxu0
  %v689 = vadd.f32 %v157, %v688
  %v690 = vpop.f32.mrb[0].mxu0
  %691 = vmatprep.mubr.f32.mxu0 0.0
  %692 = vmatmul.mubr.f32.gmra.mrb[0].mxu0 %v266
  %v693 = vpop.f32.mrb[0].mxu0
  %v694 = vadd.f32 %v157, %v693
  %v695 = vpop.f32.mrb[0].mxu0
  %696 = vmatprep.mubr.f32.mxu0 0.0
  %697 = vmatmul.mubr.f32.gmra.mrb[0].mxu0 %v269
  %v698 = vpop.f32.mrb[0].mxu0
  %v699 = vadd.f32 %v157, %v698
  %v700 = vpop.f32.mrb[0].mxu0
  %701 = vmatprep.mubr.f32.mxu0 0.0
  %702 = vmatmul.mubr.f32.gmra.mrb[0].mxu0 %v272
  %v703 = vpop.f32.mrb[0].mxu0
  %v704 = vadd.f32 %v157, %v703
  %v705 = vpop.f32.mrb[0].mxu0
  %706 = vmatprep.mubr.f32.mxu0 0.0
  %707 = vmatmul.mubr.f32.gmra.mrb[0].mxu0 %v275
  %v708 = vpop.f32.mrb[0].mxu0
  %v709 = vadd.f32 %v157, %v708
  %v710 = vpop.f32.mrb[0].mxu0
  %711 = vmatprep.mubr.f32.mxu0 0.0
  %712 = vmatmul.mubr.f32.gmra.mrb[0].mxu0 %v278
  %v713 = vpop.f32.mrb[0].mxu0
  %v714 = vadd.f32 %v157, %v713
  %v715 = vpop.f32.mrb[0].mxu0
  %716 = vmatprep.mubr.f32.mxu0 0.0
  %717 = vmatmul.mubr.f32.gmra.mrb[0].mxu0 %v281
  %v718 = vpop.f32.mrb[0].mxu0
  %v719 = vadd.f32 %v157, %v718
  %v720 = vpop.f32.mrb[0].mxu0
  %721 = vmatprep.mubr.f32.mxu0 0.0
  %722 = vmatmul.mubr.f32.gmra.mrb[0].mxu0 %v284
  %v723 = vpop.f32.mrb[0].mxu0
  %v724 = vadd.f32 %v157, %v723
  %v725 = vpop.f32.mrb[0].mxu0
  %726 = vmatprep.mubr.f32.mxu0 0.0
  %727 = vmatmul.mubr.f32.gmra.mrb[0].mxu0 %v287
  %v728 = vpop.f32.mrb[0].mxu0
  %v729 = vadd.f32 %v157, %v728
  %v730 = vpop.f32.mrb[0].mxu0
  %731 = vmatprep.mubr.f32.mxu0 0.0
  %732 = vmatmul.mubr.f32.gmra.mrb[0].mxu0 %v290
  %v733 = vpop.f32.mrb[0].mxu0
  %v734 = vadd.f32 %v157, %v733
  %v735 = vpop.f32.mrb[0].mxu0
  %736 = vmatprep.mubr.f32.mxu0 0.0
  %737 = vmatmul.mubr.f32.gmra.mrb[0].mxu0 %v293
  %v738 = vpop.f32.mrb[0].mxu0
  %v739 = vadd.f32 %v157, %v738
  %v740 = vpop.f32.mrb[0].mxu0
  %741 = vmatprep.mubr.f32.mxu0 0.0
  %742 = vmatmul.mubr.f32.gmra.mrb[0].mxu0 %v296
  %v743 = vpop.f32.mrb[0].mxu0
  %v744 = vadd.f32 %v157, %v743
  %v745 = vpop.f32.mrb[0].mxu0
  %746 = vmatprep.mubr.f32.mxu0 0.0
  %747 = vmatmul.mubr.f32.gmra.mrb[0].mxu0 %v299
  %v748 = vpop.f32.mrb[0].mxu0
  %v749 = vadd.f32 %v157, %v748
  %v750 = vpop.f32.mrb[0].mxu0
  %751 = vmatprep.mubr.f32.mxu0 0.0
  %752 = vmatmul.mubr.f32.gmra.mrb[0].mxu0 %v302
  %v753 = vpop.f32.mrb[0].mxu0
  %v754 = vadd.f32 %v157, %v753
  %v755 = vpop.f32.mrb[0].mxu0
  %756 = vmatprep.mubr.f32.mxu0 0.0
  %757 = vmatmul.mubr.f32.gmra.mrb[0].mxu0 %v305
  %v758 = vpop.f32.mrb[0].mxu0
  %v759 = vadd.f32 %v157, %v758
  %v760 = vpop.f32.mrb[0].mxu0
  %761 = vmatprep.mubr.f32.mxu0 0.0
  %762 = vmatmul.mubr.f32.gmra.mrb[0].mxu0 %v308
  %v763 = vpop.f32.mrb[0].mxu0
  %v764 = vadd.f32 %v157, %v763
  %v765 = vpop.f32.mrb[0].mxu0
  %766 = vmatprep.mubr.f32.mxu0 0.0
  %767 = vmatmul.mubr.f32.gmra.mrb[0].mxu0 %v311
  %v768 = vpop.f32.mrb[0].mxu0
  %v769 = vadd.f32 %v157, %v768
  %v770 = vpop.f32.mrb[0].mxu0
  %771 = vmatprep.mubr.f32.mxu0 0.0
  %772 = vmatmul.mubr.f32.gmra.mrb[0].mxu0 %v314
  %v773 = vpop.f32.mrb[0].mxu0
  %v774 = vadd.f32 %v157, %v773
  %v775 = vpop.f32.mrb[0].mxu0
  %776 = vmatprep.mubr.f32.mxu0 0.0
  %777 = vmatmul.mubr.f32.gmra.mrb[0].mxu0 %v317
  %v778 = vpop.f32.mrb[0].mxu0
  %v779 = vadd.f32 %v157, %v778
  %v780 = vpop.f32.mrb[0].mxu0
  %781 = vmatprep.mubr.f32.mxu0 0.0
  %782 = vmatmul.mubr.f32.gmra.mrb[0].mxu0 %v320
  %v783 = vpop.f32.mrb[0].mxu0
  %v784 = vadd.f32 %v157, %v783
  %v785 = vpop.f32.mrb[0].mxu0
  %786 = vmatprep.mubr.f32.mxu0 0.0
  %787 = vmatmul.mubr.f32.gmra.mrb[0].mxu0 %v323
  %v788 = vpop.f32.mrb[0].mxu0
  %v789 = vadd.f32 %v157, %v788
  %v790 = vpop.f32.mrb[0].mxu0
  %791 = vmatprep.mubr.f32.mxu0 0.0
  %792 = vmatmul.mubr.f32.gmra.mrb[0].mxu0 %v326
  %v793 = vpop.f32.mrb[0].mxu0
  %v794 = vadd.f32 %v157, %v793
  %v795 = vpop.f32.mrb[0].mxu0
  %796 = vmatprep.mubr.f32.mxu0 0.0
  %797 = vmatmul.mubr.f32.gmra.mrb[0].mxu0 %v329
  %v798 = vpop.f32.mrb[0].mxu0
  %v799 = vadd.f32 %v157, %v798
  %v800 = vpop.f32.mrb[0].mxu0
  %801 = vmatprep.mubr.f32.mxu0 0.0
  %802 = vmatmul.mubr.f32.gmra.mrb[0].mxu0 %v332
  %v803 = vpop.f32.mrb[0].mxu0
  %v804 = vadd.f32 %v157, %v803
  %v805 = vpop.f32.mrb[0].mxu0
  %806 = vmatprep.mubr.f32.mxu0 0.0
  %807 = vmatmul.mubr.f32.gmra.mrb[0].mxu0 %v335
  %v808 = vpop.f32.mrb[0].mxu0
  %v809 = vadd.f32 %v157, %v808
  %v810 = vpop.f32.mrb[0].mxu0
  %811 = vmatprep.mubr.f32.mxu0 0.0
  %812 = vmatmul.mubr.f32.gmra.mrb[0].mxu0 %v338
  %v813 = vpop.f32.mrb[0].mxu0
  %v814 = vadd.f32 %v157, %v813
  %v815 = vpop.f32.mrb[0].mxu0
  %816 = vmatprep.mubr.f32.mxu0 0.0
  %817 = vmatmul.mubr.f32.gmra.mrb[0].mxu0 %v341
  %v818 = vpop.f32.mrb[0].mxu0
  %v819 = vadd.f32 %v157, %v818
  %v820 = vpop.f32.mrb[0].mxu0
  %821 = vmatprep.mubr.f32.mxu0 0.0
  %822 = vmatmul.mubr.f32.gmra.mrb[0].mxu0 %v344
  %v823 = vpop.f32.mrb[0].mxu0
  %v824 = vadd.f32 %v157, %v823
  %v825 = vpop.f32.mrb[0].mxu0
  %826 = vmatprep.mubr.f32.mxu0 0.0
  %827 = vmatmul.mubr.f32.gmra.mrb[0].mxu0 %v347
  %v828 = vpop.f32.mrb[0].mxu0
  %v829 = vadd.f32 %v157, %v828
  %v830 = vpop.f32.mrb[0].mxu0
  %831 = vmatprep.mubr.f32.mxu0 0.0
  %832 = vmatmul.mubr.f32.gmra.mrb[0].mxu0 %v350
  %v833 = vpop.f32.mrb[0].mxu0
  %v834 = vadd.f32 %v157, %v833
  %v835 = vpop.f32.mrb[0].mxu0
  %836 = vmatprep.mubr.f32.mxu0 0.0
  %837 = vmatmul.mubr.f32.gmra.mrb[0].mxu0 %v353
  %v838 = vpop.f32.mrb[0].mxu0
  %v839 = vadd.f32 %v157, %v838
  %v840 = vpop.f32.mrb[0].mxu0
  %841 = vmatprep.mubr.f32.mxu0 0.0
  %842 = vmatmul.mubr.f32.gmra.mrb[0].mxu0 %v356
  %v843 = vpop.f32.mrb[0].mxu0
  %v844 = vadd.f32 %v157, %v843
  %v845 = vpop.f32.mrb[0].mxu0
  %846 = vmatprep.mubr.f32.mxu0 0.0
  %847 = vmatmul.mubr.f32.gmra.mrb[0].mxu0 %v359
  %v848 = vpop.f32.mrb[0].mxu0
  %v849 = vadd.f32 %v157, %v848
  %v850 = vpop.f32.mrb[0].mxu0
  %851 = vmatprep.mubr.f32.mxu0 0.0
  %852 = vmatmul.mubr.f32.gmra.mrb[0].mxu0 %v362
  %v853 = vpop.f32.mrb[0].mxu0
  %v854 = vadd.f32 %v157, %v853
  %v855 = vpop.f32.mrb[0].mxu0
  %856 = vmatprep.mubr.f32.mxu0 0.0
  %857 = vmatmul.mubr.f32.gmra.mrb[0].mxu0 %v365
  %v858 = vpop.f32.mrb[0].mxu0
  %v859 = vadd.f32 %v157, %v858
  %v860 = vpop.f32.mrb[0].mxu0
  %861 = vmatprep.mubr.f32.mxu0 0.0
  %862 = vmatmul.mubr.f32.gmra.mrb[0].mxu0 %v368
  %v863 = vpop.f32.mrb[0].mxu0
  %v864 = vadd.f32 %v157, %v863
  %v865 = vpop.f32.mrb[0].mxu0
  %866 = vmatprep.mubr.f32.mxu0 0.0
  %867 = vmatmul.mubr.f32.gmra.mrb[0].mxu0 %v371
  %v868 = vpop.f32.mrb[0].mxu0
  %v869 = vadd.f32 %v157, %v868
  %v870 = vpop.f32.mrb[0].mxu0
  %871 = vmatprep.mubr.f32.mxu0 0.0
  %872 = vmatmul.mubr.f32.gmra.mrb[0].mxu0 %v374
  %v873 = vpop.f32.mrb[0].mxu0
  %v874 = vadd.f32 %v157, %v873
  %v875 = vpop.f32.mrb[0].mxu0
  %876 = vmatprep.mubr.f32.mxu0 0.0
  %877 = vmatmul.mubr.f32.gmra.mrb[0].mxu0 %v377
  %v878 = vpop.f32.mrb[0].mxu0
  %v879 = vadd.f32 %v157, %v878
  %v880 = vpop.f32.mrb[0].mxu0
  %881 = vmatprep.mubr.f32.mxu0 0.0
  %882 = vmatmul.mubr.f32.gmra.mrb[0].mxu0 %v380
  %v883 = vpop.f32.mrb[0].mxu0
  %v884 = vadd.f32 %v157, %v883
  %v885 = vpop.f32.mrb[0].mxu0
  %886 = vmatprep.mubr.f32.mxu0 0.0
  %887 = vmatmul.mubr.f32.gmra.mrb[0].mxu0 %v383
  %v888 = vpop.f32.mrb[0].mxu0
  %v889 = vadd.f32 %v157, %v888
  %v890 = vpop.f32.mrb[0].mxu0
  %891 = vmatprep.mubr.f32.mxu0 0.0
  %892 = vmatmul.mubr.f32.gmra.mrb[0].mxu0 %v386
  %v893 = vpop.f32.mrb[0].mxu0
  %v894 = vadd.f32 %v157, %v893
  %v895 = vpop.f32.mrb[0].mxu0
  %896 = vmatprep.mubr.f32.mxu0 0.0
  %897 = vmatmul.mubr.f32.gmra.mrb[0].mxu0 %v389
  %v898 = vpop.f32.mrb[0].mxu0
  %v899 = vadd.f32 %v157, %v898
  %v900 = vpop.f32.mrb[0].mxu0
  %901 = vmatprep.mubr.f32.mxu0 0.0
  %902 = vmatmul.mubr.f32.gmra.mrb[0].mxu0 %v392
  %v903 = vpop.f32.mrb[0].mxu0
  %v904 = vadd.f32 %v157, %v903
  %v905 = vpop.f32.mrb[0].mxu0
  %906 = vmatprep.mubr.f32.mxu0 0.0
  %907 = vmatmul.mubr.f32.gmra.mrb[0].mxu0 %v395
  %v908 = vpop.f32.mrb[0].mxu0
  %v909 = vadd.f32 %v157, %v908
  %v910 = vpop.f32.mrb[0].mxu0
  %911 = vmatprep.mubr.f32.mxu0 0.0
  %912 = vmatmul.mubr.f32.gmra.mrb[0].mxu0 %v398
  %v913 = vpop.f32.mrb[0].mxu0
  %v914 = vadd.f32 %v157, %v913
  %v915 = vpop.f32.mrb[0].mxu0
  %916 = vmatprep.mubr.f32.mxu0 0.0
  %917 = vmatmul.mubr.f32.gmra.mrb[0].mxu0 %v401
  %v918 = vpop.f32.mrb[0].mxu0
  %v919 = vadd.f32 %v157, %v918
  %v920 = vpop.f32.mrb[0].mxu0
  %921 = vmatprep.mubr.f32.mxu0 0.0
  %922 = vmatmul.mubr.f32.gmra.mrb[0].mxu0 %v404
  %v923 = vpop.f32.mrb[0].mxu0
  %v924 = vadd.f32 %v157, %v923
  %v925 = vpop.f32.mrb[0].mxu0
  %926 = vmatprep.mubr.f32.mxu0 0.0
  %927 = vmatmul.mubr.f32.gmra.mrb[0].mxu0 %v407
  %v928 = vpop.f32.mrb[0].mxu0
  %v929 = vadd.f32 %v157, %v928
  %v930 = vpop.f32.mrb[0].mxu0
  %931 = vmatprep.mubr.f32.mxu0 0.0
  %932 = vmatmul.mubr.f32.gmra.mrb[0].mxu0 %v410
  %v933 = vpop.f32.mrb[0].mxu0
  %v934 = vadd.f32 %v157, %v933
  %v935 = vpop.f32.mrb[0].mxu0
  %936 = vmatprep.mubr.f32.mxu0 0.0
  %937 = vmatmul.mubr.f32.gmra.mrb[0].mxu0 %v413
  %v938 = vpop.f32.mrb[0].mxu0
  %v939 = vadd.f32 %v157, %v938
  %v940 = vpop.f32.mrb[0].mxu0
  %941 = vmatprep.mubr.f32.mxu0 0.0
  %942 = vmatmul.mubr.f32.gmra.mrb[0].mxu0 %v416
  %v943 = vpop.f32.mrb[0].mxu0
  %v944 = vadd.f32 %v157, %v943
  %v945 = vpop.f32.mrb[0].mxu0
  %946 = vmatprep.mubr.f32.mxu0 0.0
  %947 = vmatmul.mubr.f32.gmra.mrb[0].mxu0 %v419
  %v948 = vpop.f32.mrb[0].mxu0
  %v949 = vadd.f32 %v157, %v948
  %v950 = vpop.f32.mrb[0].mxu0
  %951 = vmatprep.mubr.f32.mxu0 0.0
  %952 = vmatmul.mubr.f32.gmra.mrb[0].mxu0 %v422
  %v953 = vpop.f32.mrb[0].mxu0
  %v954 = vadd.f32 %v157, %v953
  %v955 = vpop.f32.mrb[0].mxu0
  %956 = vmatprep.mubr.f32.mxu0 0.0
  %957 = vmatmul.mubr.f32.gmra.mrb[0].mxu0 %v425
  %v958 = vpop.f32.mrb[0].mxu0
  %v959 = vadd.f32 %v157, %v958
  %v960 = vpop.f32.mrb[0].mxu0
  %961 = vmatprep.mubr.f32.mxu0 0.0
  %962 = vmatmul.mubr.f32.gmra.mrb[0].mxu0 %v428
  %v963 = vpop.f32.mrb[0].mxu0
  %v964 = vadd.f32 %v157, %v963
  %v965 = vpop.f32.mrb[0].mxu0
  %966 = vmatprep.mubr.f32.mxu0 0.0
  %967 = vmatmul.mubr.f32.gmra.mrb[0].mxu0 %v431
  %v968 = vpop.f32.mrb[0].mxu0
  %v969 = vadd.f32 %v157, %v968
  %v970 = vpop.f32.mrb[0].mxu0
  %971 = vmatprep.mubr.f32.mxu0 0.0
  %972 = vmatmul.mubr.f32.gmra.mrb[0].mxu0 %v434
  %v973 = vpop.f32.mrb[0].mxu0
  %v974 = vadd.f32 %v157, %v973
  %v975 = vpop.f32.mrb[0].mxu0
  %976 = vmatprep.mubr.f32.mxu0 0.0
  %977 = vmatmul.mubr.f32.gmra.mrb[0].mxu0 %v437
  %v978 = vpop.f32.mrb[0].mxu0
  %v979 = vadd.f32 %v157, %v978
  %v980 = vpop.f32.mrb[0].mxu0
  %981 = vmatprep.mubr.f32.mxu0 0.0
  %982 = vmatmul.mubr.f32.gmra.mrb[0].mxu0 %v440
  %v983 = vpop.f32.mrb[0].mxu0
  %v984 = vadd.f32 %v157, %v983
  %v985 = vpop.f32.mrb[0].mxu0
  %986 = vmatprep.mubr.f32.mxu0 0.0
  %987 = vmatmul.mubr.f32.gmra.mrb[0].mxu0 %v443
  %v988 = vpop.f32.mrb[0].mxu0
  %v989 = vadd.f32 %v157, %v988
  %v990 = vpop.f32.mrb[0].mxu0
  %991 = vmatprep.mubr.f32.mxu0 0.0
  %992 = vmatmul.mubr.f32.gmra.mrb[0].mxu0 %v446
  %v993 = vpop.f32.mrb[0].mxu0
  %v994 = vadd.f32 %v157, %v993
  %v995 = vpop.f32.mrb[0].mxu0
  %996 = vdwg.mxu0
  %v997 = vmax.f32 %v519, 0.0
  %v998 = vmax.f32 %v524, 0.0
  %v999 = vmax.f32 %v529, 0.0
  %v1000 = vmax.f32 %v534, 0.0
  %v1001 = vmax.f32 %v539, 0.0
  %v1002 = vmax.f32 %v544, 0.0
  %v1003 = vmax.f32 %v549, 0.0
  %v1004 = vmax.f32 %v554, 0.0
  %v1005 = vmax.f32 %v559, 0.0
  %v1006 = vmax.f32 %v564, 0.0
  %v1007 = vmax.f32 %v569, 0.0
  %v1008 = vmax.f32 %v574, 0.0
  %v1009 = vmax.f32 %v579, 0.0
  %v1010 = vmax.f32 %v584, 0.0
  %v1011 = vmax.f32 %v589, 0.0
  %v1012 = vmax.f32 %v594, 0.0
  %v1013 = vmax.f32 %v599, 0.0
  %v1014 = vmax.f32 %v604, 0.0
  %v1015 = vmax.f32 %v609, 0.0
  %v1016 = vmax.f32 %v614, 0.0
  %v1017 = vmax.f32 %v619, 0.0
  %v1018 = vmax.f32 %v624, 0.0
  %v1019 = vmax.f32 %v629, 0.0
  %v1020 = vmax.f32 %v634, 0.0
  %v1021 = vmax.f32 %v639, 0.0
  %v1022 = vmax.f32 %v644, 0.0
  %v1023 = vmax.f32 %v649, 0.0
  %v1024 = vmax.f32 %v654, 0.0
  %v1025 = vmax.f32 %v659, 0.0
  %v1026 = vmax.f32 %v664, 0.0
  %v1027 = vmax.f32 %v669, 0.0
  %v1028 = vmax.f32 %v674, 0.0
  %v1029 = vmax.f32 %v679, 0.0
  %v1030 = vmax.f32 %v684, 0.0
  %v1031 = vmax.f32 %v689, 0.0
  %v1032 = vmax.f32 %v694, 0.0
  %v1033 = vmax.f32 %v699, 0.0
  %v1034 = vmax.f32 %v704, 0.0
  %v1035 = vmax.f32 %v709, 0.0
  %v1036 = vmax.f32 %v714, 0.0
  %v1037 = vmax.f32 %v719, 0.0
  %v1038 = vmax.f32 %v724, 0.0
  %v1039 = vmax.f32 %v729, 0.0
  %v1040 = vmax.f32 %v734, 0.0
  %v1041 = vmax.f32 %v739, 0.0
  %v1042 = vmax.f32 %v744, 0.0
  %v1043 = vmax.f32 %v749, 0.0
  %v1044 = vmax.f32 %v754, 0.0
  %v1045 = vmax.f32 %v759, 0.0
  %v1046 = vmax.f32 %v764, 0.0
  %v1047 = vmax.f32 %v769, 0.0
  %v1048 = vmax.f32 %v774, 0.0
  %v1049 = vmax.f32 %v779, 0.0
  %v1050 = vmax.f32 %v784, 0.0
  %v1051 = vmax.f32 %v789, 0.0
  %v1052 = vmax.f32 %v794, 0.0
  %v1053 = vmax.f32 %v799, 0.0
  %v1054 = vmax.f32 %v804, 0.0
  %v1055 = vmax.f32 %v809, 0.0
  %v1056 = vmax.f32 %v814, 0.0
  %v1057 = vmax.f32 %v819, 0.0
  %v1058 = vmax.f32 %v824, 0.0
  %v1059 = vmax.f32 %v829, 0.0
  %v1060 = vmax.f32 %v834, 0.0
  %v1061 = vmax.f32 %v839, 0.0
  %v1062 = vmax.f32 %v844, 0.0
  %v1063 = vmax.f32 %v849, 0.0
  %v1064 = vmax.f32 %v854, 0.0
  %v1065 = vmax.f32 %v859, 0.0
  %v1066 = vmax.f32 %v864, 0.0
  %v1067 = vmax.f32 %v869, 0.0
  %v1068 = vmax.f32 %v874, 0.0
  %v1069 = vmax.f32 %v879, 0.0
  %v1070 = vmax.f32 %v884, 0.0
  %v1071 = vmax.f32 %v889, 0.0
  %v1072 = vmax.f32 %v894, 0.0
  %v1073 = vmax.f32 %v899, 0.0
  %v1074 = vmax.f32 %v904, 0.0
  %v1075 = vmax.f32 %v909, 0.0
  %v1076 = vmax.f32 %v914, 0.0
  %v1077 = vmax.f32 %v919, 0.0
  %v1078 = vmax.f32 %v924, 0.0
  %v1079 = vmax.f32 %v929, 0.0
  %v1080 = vmax.f32 %v934, 0.0
  %v1081 = vmax.f32 %v939, 0.0
  %v1082 = vmax.f32 %v944, 0.0
  %v1083 = vmax.f32 %v949, 0.0
  %v1084 = vmax.f32 %v954, 0.0
  %v1085 = vmax.f32 %v959, 0.0
  %v1086 = vmax.f32 %v964, 0.0
  %v1087 = vmax.f32 %v969, 0.0
  %v1088 = vmax.f32 %v974, 0.0
  %v1089 = vmax.f32 %v979, 0.0
  %v1090 = vmax.f32 %v984, 0.0
  %v1091 = vmax.f32 %v989, 0.0
  %v1092 = vmax.f32 %v994, 0.0
  %v1093 = vld [vmem:[%s3] sm:$0xff]
  %v1094 = vld [vmem:[%s4] sm:$0x1]
  %v1096 = vlaneseq
  %v1097 = vshrl.u32 %v1096, 7
  %v1098 = vsub.s32 0, %v1097
  %v1099 = vrot.slane %v1094, %v1098
  %vm1101 = vcmask 64512
  %v1103 = vsel %vm1101, %v997, 0
  %v1106 = vsel %vm1101, %v998, 0
  %v1109 = vsel %vm1101, %v999, 0
  %v1112 = vsel %vm1101, %v1000, 0
  %v1115 = vsel %vm1101, %v1001, 0
  %v1118 = vsel %vm1101, %v1002, 0
  %v1121 = vsel %vm1101, %v1003, 0
  %v1124 = vsel %vm1101, %v1004, 0
  %v1127 = vsel %vm1101, %v1005, 0
  %v1130 = vsel %vm1101, %v1006, 0
  %v1133 = vsel %vm1101, %v1007, 0
  %v1136 = vsel %vm1101, %v1008, 0
  %v1139 = vsel %vm1101, %v1009, 0
  %v1142 = vsel %vm1101, %v1010, 0
  %v1145 = vsel %vm1101, %v1011, 0
  %v1148 = vsel %vm1101, %v1012, 0
  %v1151 = vsel %vm1101, %v1013, 0
  %v1154 = vsel %vm1101, %v1014, 0
  %v1157 = vsel %vm1101, %v1015, 0
  %v1160 = vsel %vm1101, %v1016, 0
  %v1163 = vsel %vm1101, %v1017, 0
  %v1166 = vsel %vm1101, %v1018, 0
  %v1169 = vsel %vm1101, %v1019, 0
  %v1172 = vsel %vm1101, %v1020, 0
  %v1175 = vsel %vm1101, %v1021, 0
  %v1178 = vsel %vm1101, %v1022, 0
  %v1181 = vsel %vm1101, %v1023, 0
  %v1184 = vsel %vm1101, %v1024, 0
  %v1187 = vsel %vm1101, %v1025, 0
  %v1190 = vsel %vm1101, %v1026, 0
  %v1193 = vsel %vm1101, %v1027, 0
  %v1196 = vsel %vm1101, %v1028, 0
  %v1199 = vsel %vm1101, %v1029, 0
  %v1202 = vsel %vm1101, %v1030, 0
  %v1205 = vsel %vm1101, %v1031, 0
  %v1208 = vsel %vm1101, %v1032, 0
  %v1211 = vsel %vm1101, %v1033, 0
  %v1214 = vsel %vm1101, %v1034, 0
  %v1217 = vsel %vm1101, %v1035, 0
  %v1220 = vsel %vm1101, %v1036, 0
  %v1223 = vsel %vm1101, %v1037, 0
  %v1226 = vsel %vm1101, %v1038, 0
  %v1229 = vsel %vm1101, %v1039, 0
  %v1232 = vsel %vm1101, %v1040, 0
  %v1235 = vsel %vm1101, %v1041, 0
  %v1238 = vsel %vm1101, %v1042, 0
  %v1241 = vsel %vm1101, %v1043, 0
  %v1244 = vsel %vm1101, %v1044, 0
  %v1247 = vsel %vm1101, %v1045, 0
  %v1250 = vsel %vm1101, %v1046, 0
  %v1253 = vsel %vm1101, %v1047, 0
  %v1256 = vsel %vm1101, %v1048, 0
  %v1259 = vsel %vm1101, %v1049, 0
  %v1262 = vsel %vm1101, %v1050, 0
  %v1265 = vsel %vm1101, %v1051, 0
  %v1268 = vsel %vm1101, %v1052, 0
  %v1271 = vsel %vm1101, %v1053, 0
  %v1274 = vsel %vm1101, %v1054, 0
  %v1277 = vsel %vm1101, %v1055, 0
  %v1280 = vsel %vm1101, %v1056, 0
  %v1283 = vsel %vm1101, %v1057, 0
  %v1286 = vsel %vm1101, %v1058, 0
  %v1289 = vsel %vm1101, %v1059, 0
  %v1292 = vsel %vm1101, %v1060, 0
  %v1295 = vsel %vm1101, %v1061, 0
  %v1298 = vsel %vm1101, %v1062, 0
  %v1301 = vsel %vm1101, %v1063, 0
  %v1304 = vsel %vm1101, %v1064, 0
  %v1307 = vsel %vm1101, %v1065, 0
  %v1310 = vsel %vm1101, %v1066, 0
  %v1313 = vsel %vm1101, %v1067, 0
  %v1316 = vsel %vm1101, %v1068, 0
  %v1319 = vsel %vm1101, %v1069, 0
  %v1322 = vsel %vm1101, %v1070, 0
  %v1325 = vsel %vm1101, %v1071, 0
  %v1328 = vsel %vm1101, %v1072, 0
  %v1331 = vsel %vm1101, %v1073, 0
  %v1334 = vsel %vm1101, %v1074, 0
  %v1337 = vsel %vm1101, %v1075, 0
  %v1340 = vsel %vm1101, %v1076, 0
  %v1343 = vsel %vm1101, %v1077, 0
  %v1346 = vsel %vm1101, %v1078, 0
  %v1349 = vsel %vm1101, %v1079, 0
  %v1352 = vsel %vm1101, %v1080, 0
  %v1355 = vsel %vm1101, %v1081, 0
  %v1358 = vsel %vm1101, %v1082, 0
  %v1361 = vsel %vm1101, %v1083, 0
  %v1364 = vsel %vm1101, %v1084, 0
  %v1367 = vsel %vm1101, %v1085, 0
  %v1370 = vsel %vm1101, %v1086, 0
  %v1373 = vsel %vm1101, %v1087, 0
  %v1376 = vsel %vm1101, %v1088, 0
  %v1379 = vsel %vm1101, %v1089, 0
  %v1382 = vsel %vm1101, %v1090, 0
  %v1385 = vsel %vm1101, %v1091, 0
  %v1388 = vsel %vm1101, %v1092, 0
  %1390 = vmatprep.subr.mxu0 0.0
  %1391 = vmatpush1.msra.mxu0 %v1093
  %1392 = vmatprep.subr.mxu0 0.0
  %1393 = vmatpush1.msra.mxu0 0.0
  %1394 = vmatprep.subr.mxu0 0.0
  %1395 = vmatpush1.msra.mxu0 0.0
  %1396 = vmatprep.subr.mxu0 0.0
  %1397 = vmatpush1.msra.mxu0 0.0
  %1398 = vmatprep.subr.mxu0 0.0
  %1399 = vmatpush1.msra.mxu0 0.0
  %1400 = vmatprep.subr.mxu0 0.0
  %1401 = vmatpush1.msra.mxu0 0.0
  %1402 = vmatprep.subr.mxu0 0.0
  %1403 = vmatpush1.msra.mxu0 0.0
  %1404 = vmatprep.subr.mxu0 0.0
  %1405 = vmatpush1.msra.mxu0 0.0
  %1406 = vmatprep.subr.mxu0 0.0
  %1407 = vmatpush1.msra.mxu0 0.0
  %1408 = vmatprep.subr.mxu0 0.0
  %1409 = vmatpush1.msra.mxu0 0.0
  %1410 = vmatprep.subr.mxu0 0.0
  %1411 = vmatpush1.msra.mxu0 0.0
  %1412 = vmatprep.subr.mxu0 0.0
  %1413 = vmatpush1.msra.mxu0 0.0
  %1414 = vmatprep.subr.mxu0 0.0
  %1415 = vmatpush1.msra.mxu0 0.0
  %1416 = vmatprep.subr.mxu0 0.0
  %1417 = vmatpush1.msra.mxu0 0.0
  %1418 = vmatprep.subr.mxu0 0.0
  %1419 = vmatpush1.msra.mxu0 0.0
  %1420 = vmatprep.subr.mxu0 0.0
  %1421 = vmatpush1.msra.mxu0 0.0
  %1422 = vmatprep.subr.mxu0 0.0
  %1423 = vmatpush1.msra.mxu0 0.0
  %1424 = vmatprep.subr.mxu0 0.0
  %1425 = vmatpush1.msra.mxu0 0.0
  %1426 = vmatprep.subr.mxu0 0.0
  %1427 = vmatpush1.msra.mxu0 0.0
  %1428 = vmatprep.subr.mxu0 0.0
  %1429 = vmatpush1.msra.mxu0 0.0
  %1430 = vmatprep.subr.mxu0 0.0
  %1431 = vmatpush1.msra.mxu0 0.0
  %1432 = vmatprep.subr.mxu0 0.0
  %1433 = vmatpush1.msra.mxu0 0.0
  %1434 = vmatprep.subr.mxu0 0.0
  %1435 = vmatpush1.msra.mxu0 0.0
  %1436 = vmatprep.subr.mxu0 0.0
  %1437 = vmatpush1.msra.mxu0 0.0
  %1438 = vmatprep.subr.mxu0 0.0
  %1439 = vmatpush1.msra.mxu0 0.0
  %1440 = vmatprep.subr.mxu0 0.0
  %1441 = vmatpush1.msra.mxu0 0.0
  %1442 = vmatprep.subr.mxu0 0.0
  %1443 = vmatpush1.msra.mxu0 0.0
  %1444 = vmatprep.subr.mxu0 0.0
  %1445 = vmatpush1.msra.mxu0 0.0
  %1446 = vmatprep.subr.mxu0 0.0
  %1447 = vmatpush1.msra.mxu0 0.0
  %1448 = vmatprep.subr.mxu0 0.0
  %1449 = vmatpush1.msra.mxu0 0.0
  %1450 = vmatprep.subr.mxu0 0.0
  %1451 = vmatpush1.msra.mxu0 0.0
  %1452 = vmatprep.subr.mxu0 0.0
  %1453 = vmatpush1.msra.mxu0 0.0
  %1454 = vmatprep.mubr.f32.mxu0 0.0
  %1455 = vmatmul.mubr.f32.gmra.mrb[0].mxu0 %v1103
  %v1456 = vpop.f32.mrb[0].mxu0
  %v1457 = vadd.f32 %v1099, %v1456
  %v1458 = vpop.f32.mrb[0].mxu0
  %1459 = vmatprep.mubr.f32.mxu0 0.0
  %1460 = vmatmul.mubr.f32.gmra.mrb[0].mxu0 %v1106
  %v1461 = vpop.f32.mrb[0].mxu0
  %v1462 = vadd.f32 %v1099, %v1461
  %v1463 = vpop.f32.mrb[0].mxu0
  %1464 = vmatprep.mubr.f32.mxu0 0.0
  %1465 = vmatmul.mubr.f32.gmra.mrb[0].mxu0 %v1109
  %v1466 = vpop.f32.mrb[0].mxu0
  %v1467 = vadd.f32 %v1099, %v1466
  %v1468 = vpop.f32.mrb[0].mxu0
  %1469 = vmatprep.mubr.f32.mxu0 0.0
  %1470 = vmatmul.mubr.f32.gmra.mrb[0].mxu0 %v1112
  %v1471 = vpop.f32.mrb[0].mxu0
  %v1472 = vadd.f32 %v1099, %v1471
  %v1473 = vpop.f32.mrb[0].mxu0
  %1474 = vmatprep.mubr.f32.mxu0 0.0
  %1475 = vmatmul.mubr.f32.gmra.mrb[0].mxu0 %v1115
  %v1476 = vpop.f32.mrb[0].mxu0
  %v1477 = vadd.f32 %v1099, %v1476
  %v1478 = vpop.f32.mrb[0].mxu0
  %1479 = vmatprep.mubr.f32.mxu0 0.0
  %1480 = vmatmul.mubr.f32.gmra.mrb[0].mxu0 %v1118
  %v1481 = vpop.f32.mrb[0].mxu0
  %v1482 = vadd.f32 %v1099, %v1481
  %v1483 = vpop.f32.mrb[0].mxu0
  %1484 = vmatprep.mubr.f32.mxu0 0.0
  %1485 = vmatmul.mubr.f32.gmra.mrb[0].mxu0 %v1121
  %v1486 = vpop.f32.mrb[0].mxu0
  %v1487 = vadd.f32 %v1099, %v1486
  %v1488 = vpop.f32.mrb[0].mxu0
  %1489 = vmatprep.mubr.f32.mxu0 0.0
  %1490 = vmatmul.mubr.f32.gmra.mrb[0].mxu0 %v1124
  %v1491 = vpop.f32.mrb[0].mxu0
  %v1492 = vadd.f32 %v1099, %v1491
  %v1493 = vpop.f32.mrb[0].mxu0
  %1494 = vmatprep.mubr.f32.mxu0 0.0
  %1495 = vmatmul.mubr.f32.gmra.mrb[0].mxu0 %v1127
  %v1496 = vpop.f32.mrb[0].mxu0
  %v1497 = vadd.f32 %v1099, %v1496
  %v1498 = vpop.f32.mrb[0].mxu0
  %1499 = vmatprep.mubr.f32.mxu0 0.0
  %1500 = vmatmul.mubr.f32.gmra.mrb[0].mxu0 %v1130
  %v1501 = vpop.f32.mrb[0].mxu0
  %v1502 = vadd.f32 %v1099, %v1501
  %v1503 = vpop.f32.mrb[0].mxu0
  %1504 = vmatprep.mubr.f32.mxu0 0.0
  %1505 = vmatmul.mubr.f32.gmra.mrb[0].mxu0 %v1133
  %v1506 = vpop.f32.mrb[0].mxu0
  %v1507 = vadd.f32 %v1099, %v1506
  %v1508 = vpop.f32.mrb[0].mxu0
  %1509 = vmatprep.mubr.f32.mxu0 0.0
  %1510 = vmatmul.mubr.f32.gmra.mrb[0].mxu0 %v1136
  %v1511 = vpop.f32.mrb[0].mxu0
  %v1512 = vadd.f32 %v1099, %v1511
  %v1513 = vpop.f32.mrb[0].mxu0
  %1514 = vmatprep.mubr.f32.mxu0 0.0
  %1515 = vmatmul.mubr.f32.gmra.mrb[0].mxu0 %v1139
  %v1516 = vpop.f32.mrb[0].mxu0
  %v1517 = vadd.f32 %v1099, %v1516
  %v1518 = vpop.f32.mrb[0].mxu0
  %1519 = vmatprep.mubr.f32.mxu0 0.0
  %1520 = vmatmul.mubr.f32.gmra.mrb[0].mxu0 %v1142
  %v1521 = vpop.f32.mrb[0].mxu0
  %v1522 = vadd.f32 %v1099, %v1521
  %v1523 = vpop.f32.mrb[0].mxu0
  %1524 = vmatprep.mubr.f32.mxu0 0.0
  %1525 = vmatmul.mubr.f32.gmra.mrb[0].mxu0 %v1145
  %v1526 = vpop.f32.mrb[0].mxu0
  %v1527 = vadd.f32 %v1099, %v1526
  %v1528 = vpop.f32.mrb[0].mxu0
  %1529 = vmatprep.mubr.f32.mxu0 0.0
  %1530 = vmatmul.mubr.f32.gmra.mrb[0].mxu0 %v1148
  %v1531 = vpop.f32.mrb[0].mxu0
  %v1532 = vadd.f32 %v1099, %v1531
  %v1533 = vpop.f32.mrb[0].mxu0
  %1534 = vmatprep.mubr.f32.mxu0 0.0
  %1535 = vmatmul.mubr.f32.gmra.mrb[0].mxu0 %v1151
  %v1536 = vpop.f32.mrb[0].mxu0
  %v1537 = vadd.f32 %v1099, %v1536
  %v1538 = vpop.f32.mrb[0].mxu0
  %1539 = vmatprep.mubr.f32.mxu0 0.0
  %1540 = vmatmul.mubr.f32.gmra.mrb[0].mxu0 %v1154
  %v1541 = vpop.f32.mrb[0].mxu0
  %v1542 = vadd.f32 %v1099, %v1541
  %v1543 = vpop.f32.mrb[0].mxu0
  %1544 = vmatprep.mubr.f32.mxu0 0.0
  %1545 = vmatmul.mubr.f32.gmra.mrb[0].mxu0 %v1157
  %v1546 = vpop.f32.mrb[0].mxu0
  %v1547 = vadd.f32 %v1099, %v1546
  %v1548 = vpop.f32.mrb[0].mxu0
  %1549 = vmatprep.mubr.f32.mxu0 0.0
  %1550 = vmatmul.mubr.f32.gmra.mrb[0].mxu0 %v1160
  %v1551 = vpop.f32.mrb[0].mxu0
  %v1552 = vadd.f32 %v1099, %v1551
  %v1553 = vpop.f32.mrb[0].mxu0
  %1554 = vmatprep.mubr.f32.mxu0 0.0
  %1555 = vmatmul.mubr.f32.gmra.mrb[0].mxu0 %v1163
  %v1556 = vpop.f32.mrb[0].mxu0
  %v1557 = vadd.f32 %v1099, %v1556
  %v1558 = vpop.f32.mrb[0].mxu0
  %1559 = vmatprep.mubr.f32.mxu0 0.0
  %1560 = vmatmul.mubr.f32.gmra.mrb[0].mxu0 %v1166
  %v1561 = vpop.f32.mrb[0].mxu0
  %v1562 = vadd.f32 %v1099, %v1561
  %v1563 = vpop.f32.mrb[0].mxu0
  %1564 = vmatprep.mubr.f32.mxu0 0.0
  %1565 = vmatmul.mubr.f32.gmra.mrb[0].mxu0 %v1169
  %v1566 = vpop.f32.mrb[0].mxu0
  %v1567 = vadd.f32 %v1099, %v1566
  %v1568 = vpop.f32.mrb[0].mxu0
  %1569 = vmatprep.mubr.f32.mxu0 0.0
  %1570 = vmatmul.mubr.f32.gmra.mrb[0].mxu0 %v1172
  %v1571 = vpop.f32.mrb[0].mxu0
  %v1572 = vadd.f32 %v1099, %v1571
  %v1573 = vpop.f32.mrb[0].mxu0
  %1574 = vmatprep.mubr.f32.mxu0 0.0
  %1575 = vmatmul.mubr.f32.gmra.mrb[0].mxu0 %v1175
  %v1576 = vpop.f32.mrb[0].mxu0
  %v1577 = vadd.f32 %v1099, %v1576
  %v1578 = vpop.f32.mrb[0].mxu0
  %1579 = vmatprep.mubr.f32.mxu0 0.0
  %1580 = vmatmul.mubr.f32.gmra.mrb[0].mxu0 %v1178
  %v1581 = vpop.f32.mrb[0].mxu0
  %v1582 = vadd.f32 %v1099, %v1581
  %v1583 = vpop.f32.mrb[0].mxu0
  %1584 = vmatprep.mubr.f32.mxu0 0.0
  %1585 = vmatmul.mubr.f32.gmra.mrb[0].mxu0 %v1181
  %v1586 = vpop.f32.mrb[0].mxu0
  %v1587 = vadd.f32 %v1099, %v1586
  %v1588 = vpop.f32.mrb[0].mxu0
  %1589 = vmatprep.mubr.f32.mxu0 0.0
  %1590 = vmatmul.mubr.f32.gmra.mrb[0].mxu0 %v1184
  %v1591 = vpop.f32.mrb[0].mxu0
  %v1592 = vadd.f32 %v1099, %v1591
  %v1593 = vpop.f32.mrb[0].mxu0
  %1594 = vmatprep.mubr.f32.mxu0 0.0
  %1595 = vmatmul.mubr.f32.gmra.mrb[0].mxu0 %v1187
  %v1596 = vpop.f32.mrb[0].mxu0
  %v1597 = vadd.f32 %v1099, %v1596
  %v1598 = vpop.f32.mrb[0].mxu0
  %1599 = vmatprep.mubr.f32.mxu0 0.0
  %1600 = vmatmul.mubr.f32.gmra.mrb[0].mxu0 %v1190
  %v1601 = vpop.f32.mrb[0].mxu0
  %v1602 = vadd.f32 %v1099, %v1601
  %v1603 = vpop.f32.mrb[0].mxu0
  %1604 = vmatprep.mubr.f32.mxu0 0.0
  %1605 = vmatmul.mubr.f32.gmra.mrb[0].mxu0 %v1193
  %v1606 = vpop.f32.mrb[0].mxu0
  %v1607 = vadd.f32 %v1099, %v1606
  %v1608 = vpop.f32.mrb[0].mxu0
  %1609 = vmatprep.mubr.f32.mxu0 0.0
  %1610 = vmatmul.mubr.f32.gmra.mrb[0].mxu0 %v1196
  %v1611 = vpop.f32.mrb[0].mxu0
  %v1612 = vadd.f32 %v1099, %v1611
  %v1613 = vpop.f32.mrb[0].mxu0
  %1614 = vmatprep.mubr.f32.mxu0 0.0
  %1615 = vmatmul.mubr.f32.gmra.mrb[0].mxu0 %v1199
  %v1616 = vpop.f32.mrb[0].mxu0
  %v1617 = vadd.f32 %v1099, %v1616
  %v1618 = vpop.f32.mrb[0].mxu0
  %1619 = vmatprep.mubr.f32.mxu0 0.0
  %1620 = vmatmul.mubr.f32.gmra.mrb[0].mxu0 %v1202
  %v1621 = vpop.f32.mrb[0].mxu0
  %v1622 = vadd.f32 %v1099, %v1621
  %v1623 = vpop.f32.mrb[0].mxu0
  %1624 = vmatprep.mubr.f32.mxu0 0.0
  %1625 = vmatmul.mubr.f32.gmra.mrb[0].mxu0 %v1205
  %v1626 = vpop.f32.mrb[0].mxu0
  %v1627 = vadd.f32 %v1099, %v1626
  %v1628 = vpop.f32.mrb[0].mxu0
  %1629 = vmatprep.mubr.f32.mxu0 0.0
  %1630 = vmatmul.mubr.f32.gmra.mrb[0].mxu0 %v1208
  %v1631 = vpop.f32.mrb[0].mxu0
  %v1632 = vadd.f32 %v1099, %v1631
  %v1633 = vpop.f32.mrb[0].mxu0
  %1634 = vmatprep.mubr.f32.mxu0 0.0
  %1635 = vmatmul.mubr.f32.gmra.mrb[0].mxu0 %v1211
  %v1636 = vpop.f32.mrb[0].mxu0
  %v1637 = vadd.f32 %v1099, %v1636
  %v1638 = vpop.f32.mrb[0].mxu0
  %1639 = vmatprep.mubr.f32.mxu0 0.0
  %1640 = vmatmul.mubr.f32.gmra.mrb[0].mxu0 %v1214
  %v1641 = vpop.f32.mrb[0].mxu0
  %v1642 = vadd.f32 %v1099, %v1641
  %v1643 = vpop.f32.mrb[0].mxu0
  %1644 = vmatprep.mubr.f32.mxu0 0.0
  %1645 = vmatmul.mubr.f32.gmra.mrb[0].mxu0 %v1217
  %v1646 = vpop.f32.mrb[0].mxu0
  %v1647 = vadd.f32 %v1099, %v1646
  %v1648 = vpop.f32.mrb[0].mxu0
  %1649 = vmatprep.mubr.f32.mxu0 0.0
  %1650 = vmatmul.mubr.f32.gmra.mrb[0].mxu0 %v1220
  %v1651 = vpop.f32.mrb[0].mxu0
  %v1652 = vadd.f32 %v1099, %v1651
  %v1653 = vpop.f32.mrb[0].mxu0
  %1654 = vmatprep.mubr.f32.mxu0 0.0
  %1655 = vmatmul.mubr.f32.gmra.mrb[0].mxu0 %v1223
  %v1656 = vpop.f32.mrb[0].mxu0
  %v1657 = vadd.f32 %v1099, %v1656
  %v1658 = vpop.f32.mrb[0].mxu0
  %1659 = vmatprep.mubr.f32.mxu0 0.0
  %1660 = vmatmul.mubr.f32.gmra.mrb[0].mxu0 %v1226
  %v1661 = vpop.f32.mrb[0].mxu0
  %v1662 = vadd.f32 %v1099, %v1661
  %v1663 = vpop.f32.mrb[0].mxu0
  %1664 = vmatprep.mubr.f32.mxu0 0.0
  %1665 = vmatmul.mubr.f32.gmra.mrb[0].mxu0 %v1229
  %v1666 = vpop.f32.mrb[0].mxu0
  %v1667 = vadd.f32 %v1099, %v1666
  %v1668 = vpop.f32.mrb[0].mxu0
  %1669 = vmatprep.mubr.f32.mxu0 0.0
  %1670 = vmatmul.mubr.f32.gmra.mrb[0].mxu0 %v1232
  %v1671 = vpop.f32.mrb[0].mxu0
  %v1672 = vadd.f32 %v1099, %v1671
  %v1673 = vpop.f32.mrb[0].mxu0
  %1674 = vmatprep.mubr.f32.mxu0 0.0
  %1675 = vmatmul.mubr.f32.gmra.mrb[0].mxu0 %v1235
  %v1676 = vpop.f32.mrb[0].mxu0
  %v1677 = vadd.f32 %v1099, %v1676
  %v1678 = vpop.f32.mrb[0].mxu0
  %1679 = vmatprep.mubr.f32.mxu0 0.0
  %1680 = vmatmul.mubr.f32.gmra.mrb[0].mxu0 %v1238
  %v1681 = vpop.f32.mrb[0].mxu0
  %v1682 = vadd.f32 %v1099, %v1681
  %v1683 = vpop.f32.mrb[0].mxu0
  %1684 = vmatprep.mubr.f32.mxu0 0.0
  %1685 = vmatmul.mubr.f32.gmra.mrb[0].mxu0 %v1241
  %v1686 = vpop.f32.mrb[0].mxu0
  %v1687 = vadd.f32 %v1099, %v1686
  %v1688 = vpop.f32.mrb[0].mxu0
  %1689 = vmatprep.mubr.f32.mxu0 0.0
  %1690 = vmatmul.mubr.f32.gmra.mrb[0].mxu0 %v1244
  %v1691 = vpop.f32.mrb[0].mxu0
  %v1692 = vadd.f32 %v1099, %v1691
  %v1693 = vpop.f32.mrb[0].mxu0
  %1694 = vmatprep.mubr.f32.mxu0 0.0
  %1695 = vmatmul.mubr.f32.gmra.mrb[0].mxu0 %v1247
  %v1696 = vpop.f32.mrb[0].mxu0
  %v1697 = vadd.f32 %v1099, %v1696
  %v1698 = vpop.f32.mrb[0].mxu0
  %1699 = vmatprep.mubr.f32.mxu0 0.0
  %1700 = vmatmul.mubr.f32.gmra.mrb[0].mxu0 %v1250
  %v1701 = vpop.f32.mrb[0].mxu0
  %v1702 = vadd.f32 %v1099, %v1701
  %v1703 = vpop.f32.mrb[0].mxu0
  %1704 = vmatprep.mubr.f32.mxu0 0.0
  %1705 = vmatmul.mubr.f32.gmra.mrb[0].mxu0 %v1253
  %v1706 = vpop.f32.mrb[0].mxu0
  %v1707 = vadd.f32 %v1099, %v1706
  %v1708 = vpop.f32.mrb[0].mxu0
  %1709 = vmatprep.mubr.f32.mxu0 0.0
  %1710 = vmatmul.mubr.f32.gmra.mrb[0].mxu0 %v1256
  %v1711 = vpop.f32.mrb[0].mxu0
  %v1712 = vadd.f32 %v1099, %v1711
  %v1713 = vpop.f32.mrb[0].mxu0
  %1714 = vmatprep.mubr.f32.mxu0 0.0
  %1715 = vmatmul.mubr.f32.gmra.mrb[0].mxu0 %v1259
  %v1716 = vpop.f32.mrb[0].mxu0
  %v1717 = vadd.f32 %v1099, %v1716
  %v1718 = vpop.f32.mrb[0].mxu0
  %1719 = vmatprep.mubr.f32.mxu0 0.0
  %1720 = vmatmul.mubr.f32.gmra.mrb[0].mxu0 %v1262
  %v1721 = vpop.f32.mrb[0].mxu0
  %v1722 = vadd.f32 %v1099, %v1721
  %v1723 = vpop.f32.mrb[0].mxu0
  %1724 = vmatprep.mubr.f32.mxu0 0.0
  %1725 = vmatmul.mubr.f32.gmra.mrb[0].mxu0 %v1265
  %v1726 = vpop.f32.mrb[0].mxu0
  %v1727 = vadd.f32 %v1099, %v1726
  %v1728 = vpop.f32.mrb[0].mxu0
  %1729 = vmatprep.mubr.f32.mxu0 0.0
  %1730 = vmatmul.mubr.f32.gmra.mrb[0].mxu0 %v1268
  %v1731 = vpop.f32.mrb[0].mxu0
  %v1732 = vadd.f32 %v1099, %v1731
  %v1733 = vpop.f32.mrb[0].mxu0
  %1734 = vmatprep.mubr.f32.mxu0 0.0
  %1735 = vmatmul.mubr.f32.gmra.mrb[0].mxu0 %v1271
  %v1736 = vpop.f32.mrb[0].mxu0
  %v1737 = vadd.f32 %v1099, %v1736
  %v1738 = vpop.f32.mrb[0].mxu0
  %1739 = vmatprep.mubr.f32.mxu0 0.0
  %1740 = vmatmul.mubr.f32.gmra.mrb[0].mxu0 %v1274
  %v1741 = vpop.f32.mrb[0].mxu0
  %v1742 = vadd.f32 %v1099, %v1741
  %v1743 = vpop.f32.mrb[0].mxu0
  %1744 = vmatprep.mubr.f32.mxu0 0.0
  %1745 = vmatmul.mubr.f32.gmra.mrb[0].mxu0 %v1277
  %v1746 = vpop.f32.mrb[0].mxu0
  %v1747 = vadd.f32 %v1099, %v1746
  %v1748 = vpop.f32.mrb[0].mxu0
  %1749 = vmatprep.mubr.f32.mxu0 0.0
  %1750 = vmatmul.mubr.f32.gmra.mrb[0].mxu0 %v1280
  %v1751 = vpop.f32.mrb[0].mxu0
  %v1752 = vadd.f32 %v1099, %v1751
  %v1753 = vpop.f32.mrb[0].mxu0
  %1754 = vmatprep.mubr.f32.mxu0 0.0
  %1755 = vmatmul.mubr.f32.gmra.mrb[0].mxu0 %v1283
  %v1756 = vpop.f32.mrb[0].mxu0
  %v1757 = vadd.f32 %v1099, %v1756
  %v1758 = vpop.f32.mrb[0].mxu0
  %1759 = vmatprep.mubr.f32.mxu0 0.0
  %1760 = vmatmul.mubr.f32.gmra.mrb[0].mxu0 %v1286
  %v1761 = vpop.f32.mrb[0].mxu0
  %v1762 = vadd.f32 %v1099, %v1761
  %v1763 = vpop.f32.mrb[0].mxu0
  %1764 = vmatprep.mubr.f32.mxu0 0.0
  %1765 = vmatmul.mubr.f32.gmra.mrb[0].mxu0 %v1289
  %v1766 = vpop.f32.mrb[0].mxu0
  %v1767 = vadd.f32 %v1099, %v1766
  %v1768 = vpop.f32.mrb[0].mxu0
  %1769 = vmatprep.mubr.f32.mxu0 0.0
  %1770 = vmatmul.mubr.f32.gmra.mrb[0].mxu0 %v1292
  %v1771 = vpop.f32.mrb[0].mxu0
  %v1772 = vadd.f32 %v1099, %v1771
  %v1773 = vpop.f32.mrb[0].mxu0
  %1774 = vmatprep.mubr.f32.mxu0 0.0
  %1775 = vmatmul.mubr.f32.gmra.mrb[0].mxu0 %v1295
  %v1776 = vpop.f32.mrb[0].mxu0
  %v1777 = vadd.f32 %v1099, %v1776
  %v1778 = vpop.f32.mrb[0].mxu0
  %1779 = vmatprep.mubr.f32.mxu0 0.0
  %1780 = vmatmul.mubr.f32.gmra.mrb[0].mxu0 %v1298
  %v1781 = vpop.f32.mrb[0].mxu0
  %v1782 = vadd.f32 %v1099, %v1781
  %v1783 = vpop.f32.mrb[0].mxu0
  %1784 = vmatprep.mubr.f32.mxu0 0.0
  %1785 = vmatmul.mubr.f32.gmra.mrb[0].mxu0 %v1301
  %v1786 = vpop.f32.mrb[0].mxu0
  %v1787 = vadd.f32 %v1099, %v1786
  %v1788 = vpop.f32.mrb[0].mxu0
  %1789 = vmatprep.mubr.f32.mxu0 0.0
  %1790 = vmatmul.mubr.f32.gmra.mrb[0].mxu0 %v1304
  %v1791 = vpop.f32.mrb[0].mxu0
  %v1792 = vadd.f32 %v1099, %v1791
  %v1793 = vpop.f32.mrb[0].mxu0
  %1794 = vmatprep.mubr.f32.mxu0 0.0
  %1795 = vmatmul.mubr.f32.gmra.mrb[0].mxu0 %v1307
  %v1796 = vpop.f32.mrb[0].mxu0
  %v1797 = vadd.f32 %v1099, %v1796
  %v1798 = vpop.f32.mrb[0].mxu0
  %1799 = vmatprep.mubr.f32.mxu0 0.0
  %1800 = vmatmul.mubr.f32.gmra.mrb[0].mxu0 %v1310
  %v1801 = vpop.f32.mrb[0].mxu0
  %v1802 = vadd.f32 %v1099, %v1801
  %v1803 = vpop.f32.mrb[0].mxu0
  %1804 = vmatprep.mubr.f32.mxu0 0.0
  %1805 = vmatmul.mubr.f32.gmra.mrb[0].mxu0 %v1313
  %v1806 = vpop.f32.mrb[0].mxu0
  %v1807 = vadd.f32 %v1099, %v1806
  %v1808 = vpop.f32.mrb[0].mxu0
  %1809 = vmatprep.mubr.f32.mxu0 0.0
  %1810 = vmatmul.mubr.f32.gmra.mrb[0].mxu0 %v1316
  %v1811 = vpop.f32.mrb[0].mxu0
  %v1812 = vadd.f32 %v1099, %v1811
  %v1813 = vpop.f32.mrb[0].mxu0
  %1814 = vmatprep.mubr.f32.mxu0 0.0
  %1815 = vmatmul.mubr.f32.gmra.mrb[0].mxu0 %v1319
  %v1816 = vpop.f32.mrb[0].mxu0
  %v1817 = vadd.f32 %v1099, %v1816
  %v1818 = vpop.f32.mrb[0].mxu0
  %1819 = vmatprep.mubr.f32.mxu0 0.0
  %1820 = vmatmul.mubr.f32.gmra.mrb[0].mxu0 %v1322
  %v1821 = vpop.f32.mrb[0].mxu0
  %v1822 = vadd.f32 %v1099, %v1821
  %v1823 = vpop.f32.mrb[0].mxu0
  %1824 = vmatprep.mubr.f32.mxu0 0.0
  %1825 = vmatmul.mubr.f32.gmra.mrb[0].mxu0 %v1325
  %v1826 = vpop.f32.mrb[0].mxu0
  %v1827 = vadd.f32 %v1099, %v1826
  %v1828 = vpop.f32.mrb[0].mxu0
  %1829 = vmatprep.mubr.f32.mxu0 0.0
  %1830 = vmatmul.mubr.f32.gmra.mrb[0].mxu0 %v1328
  %v1831 = vpop.f32.mrb[0].mxu0
  %v1832 = vadd.f32 %v1099, %v1831
  %v1833 = vpop.f32.mrb[0].mxu0
  %1834 = vmatprep.mubr.f32.mxu0 0.0
  %1835 = vmatmul.mubr.f32.gmra.mrb[0].mxu0 %v1331
  %v1836 = vpop.f32.mrb[0].mxu0
  %v1837 = vadd.f32 %v1099, %v1836
  %v1838 = vpop.f32.mrb[0].mxu0
  %1839 = vmatprep.mubr.f32.mxu0 0.0
  %1840 = vmatmul.mubr.f32.gmra.mrb[0].mxu0 %v1334
  %v1841 = vpop.f32.mrb[0].mxu0
  %v1842 = vadd.f32 %v1099, %v1841
  %v1843 = vpop.f32.mrb[0].mxu0
  %1844 = vmatprep.mubr.f32.mxu0 0.0
  %1845 = vmatmul.mubr.f32.gmra.mrb[0].mxu0 %v1337
  %v1846 = vpop.f32.mrb[0].mxu0
  %v1847 = vadd.f32 %v1099, %v1846
  %v1848 = vpop.f32.mrb[0].mxu0
  %1849 = vmatprep.mubr.f32.mxu0 0.0
  %1850 = vmatmul.mubr.f32.gmra.mrb[0].mxu0 %v1340
  %v1851 = vpop.f32.mrb[0].mxu0
  %v1852 = vadd.f32 %v1099, %v1851
  %v1853 = vpop.f32.mrb[0].mxu0
  %1854 = vmatprep.mubr.f32.mxu0 0.0
  %1855 = vmatmul.mubr.f32.gmra.mrb[0].mxu0 %v1343
  %v1856 = vpop.f32.mrb[0].mxu0
  %v1857 = vadd.f32 %v1099, %v1856
  %v1858 = vpop.f32.mrb[0].mxu0
  %1859 = vmatprep.mubr.f32.mxu0 0.0
  %1860 = vmatmul.mubr.f32.gmra.mrb[0].mxu0 %v1346
  %v1861 = vpop.f32.mrb[0].mxu0
  %v1862 = vadd.f32 %v1099, %v1861
  %v1863 = vpop.f32.mrb[0].mxu0
  %1864 = vmatprep.mubr.f32.mxu0 0.0
  %1865 = vmatmul.mubr.f32.gmra.mrb[0].mxu0 %v1349
  %v1866 = vpop.f32.mrb[0].mxu0
  %v1867 = vadd.f32 %v1099, %v1866
  %v1868 = vpop.f32.mrb[0].mxu0
  %1869 = vmatprep.mubr.f32.mxu0 0.0
  %1870 = vmatmul.mubr.f32.gmra.mrb[0].mxu0 %v1352
  %v1871 = vpop.f32.mrb[0].mxu0
  %v1872 = vadd.f32 %v1099, %v1871
  %v1873 = vpop.f32.mrb[0].mxu0
  %1874 = vmatprep.mubr.f32.mxu0 0.0
  %1875 = vmatmul.mubr.f32.gmra.mrb[0].mxu0 %v1355
  %v1876 = vpop.f32.mrb[0].mxu0
  %v1877 = vadd.f32 %v1099, %v1876
  %v1878 = vpop.f32.mrb[0].mxu0
  %1879 = vmatprep.mubr.f32.mxu0 0.0
  %1880 = vmatmul.mubr.f32.gmra.mrb[0].mxu0 %v1358
  %v1881 = vpop.f32.mrb[0].mxu0
  %v1882 = vadd.f32 %v1099, %v1881
  %v1883 = vpop.f32.mrb[0].mxu0
  %1884 = vmatprep.mubr.f32.mxu0 0.0
  %1885 = vmatmul.mubr.f32.gmra.mrb[0].mxu0 %v1361
  %v1886 = vpop.f32.mrb[0].mxu0
  %v1887 = vadd.f32 %v1099, %v1886
  %v1888 = vpop.f32.mrb[0].mxu0
  %1889 = vmatprep.mubr.f32.mxu0 0.0
  %1890 = vmatmul.mubr.f32.gmra.mrb[0].mxu0 %v1364
  %v1891 = vpop.f32.mrb[0].mxu0
  %v1892 = vadd.f32 %v1099, %v1891
  %v1893 = vpop.f32.mrb[0].mxu0
  %1894 = vmatprep.mubr.f32.mxu0 0.0
  %1895 = vmatmul.mubr.f32.gmra.mrb[0].mxu0 %v1367
  %v1896 = vpop.f32.mrb[0].mxu0
  %v1897 = vadd.f32 %v1099, %v1896
  %v1898 = vpop.f32.mrb[0].mxu0
  %1899 = vmatprep.mubr.f32.mxu0 0.0
  %1900 = vmatmul.mubr.f32.gmra.mrb[0].mxu0 %v1370
  %v1901 = vpop.f32.mrb[0].mxu0
  %v1902 = vadd.f32 %v1099, %v1901
  %v1903 = vpop.f32.mrb[0].mxu0
  %1904 = vmatprep.mubr.f32.mxu0 0.0
  %1905 = vmatmul.mubr.f32.gmra.mrb[0].mxu0 %v1373
  %v1906 = vpop.f32.mrb[0].mxu0
  %v1907 = vadd.f32 %v1099, %v1906
  %v1908 = vpop.f32.mrb[0].mxu0
  %1909 = vmatprep.mubr.f32.mxu0 0.0
  %1910 = vmatmul.mubr.f32.gmra.mrb[0].mxu0 %v1376
  %v1911 = vpop.f32.mrb[0].mxu0
  %v1912 = vadd.f32 %v1099, %v1911
  %v1913 = vpop.f32.mrb[0].mxu0
  %1914 = vmatprep.mubr.f32.mxu0 0.0
  %1915 = vmatmul.mubr.f32.gmra.mrb[0].mxu0 %v1379
  %v1916 = vpop.f32.mrb[0].mxu0
  %v1917 = vadd.f32 %v1099, %v1916
  %v1918 = vpop.f32.mrb[0].mxu0
  %1919 = vmatprep.mubr.f32.mxu0 0.0
  %1920 = vmatmul.mubr.f32.gmra.mrb[0].mxu0 %v1382
  %v1921 = vpop.f32.mrb[0].mxu0
  %v1922 = vadd.f32 %v1099, %v1921
  %v1923 = vpop.f32.mrb[0].mxu0
  %1924 = vmatprep.mubr.f32.mxu0 0.0
  %1925 = vmatmul.mubr.f32.gmra.mrb[0].mxu0 %v1385
  %v1926 = vpop.f32.mrb[0].mxu0
  %v1927 = vadd.f32 %v1099, %v1926
  %v1928 = vpop.f32.mrb[0].mxu0
  %1929 = vmatprep.mubr.f32.mxu0 0.0
  %1930 = vmatmul.mubr.f32.gmra.mrb[0].mxu0 %v1388
  %v1931 = vpop.f32.mrb[0].mxu0
  %v1932 = vadd.f32 %v1099, %v1931
  %v1933 = vpop.f32.mrb[0].mxu0
  %1934 = vdwg.mxu0
  %v1935 = vmax.f32 %v1457, 0.0
  %v1936 = vmax.f32 %v1462, 0.0
  %v1937 = vmax.f32 %v1467, 0.0
  %v1938 = vmax.f32 %v1472, 0.0
  %v1939 = vmax.f32 %v1477, 0.0
  %v1940 = vmax.f32 %v1482, 0.0
  %v1941 = vmax.f32 %v1487, 0.0
  %v1942 = vmax.f32 %v1492, 0.0
  %v1943 = vmax.f32 %v1497, 0.0
  %v1944 = vmax.f32 %v1502, 0.0
  %v1945 = vmax.f32 %v1507, 0.0
  %v1946 = vmax.f32 %v1512, 0.0
  %v1947 = vmax.f32 %v1517, 0.0
  %v1948 = vmax.f32 %v1522, 0.0
  %v1949 = vmax.f32 %v1527, 0.0
  %v1950 = vmax.f32 %v1532, 0.0
  %v1951 = vmax.f32 %v1537, 0.0
  %v1952 = vmax.f32 %v1542, 0.0
  %v1953 = vmax.f32 %v1547, 0.0
  %v1954 = vmax.f32 %v1552, 0.0
  %v1955 = vmax.f32 %v1557, 0.0
  %v1956 = vmax.f32 %v1562, 0.0
  %v1957 = vmax.f32 %v1567, 0.0
  %v1958 = vmax.f32 %v1572, 0.0
  %v1959 = vmax.f32 %v1577, 0.0
  %v1960 = vmax.f32 %v1582, 0.0
  %v1961 = vmax.f32 %v1587, 0.0
  %v1962 = vmax.f32 %v1592, 0.0
  %v1963 = vmax.f32 %v1597, 0.0
  %v1964 = vmax.f32 %v1602, 0.0
  %v1965 = vmax.f32 %v1607, 0.0
  %v1966 = vmax.f32 %v1612, 0.0
  %v1967 = vmax.f32 %v1617, 0.0
  %v1968 = vmax.f32 %v1622, 0.0
  %v1969 = vmax.f32 %v1627, 0.0
  %v1970 = vmax.f32 %v1632, 0.0
  %v1971 = vmax.f32 %v1637, 0.0
  %v1972 = vmax.f32 %v1642, 0.0
  %v1973 = vmax.f32 %v1647, 0.0
  %v1974 = vmax.f32 %v1652, 0.0
  %v1975 = vmax.f32 %v1657, 0.0
  %v1976 = vmax.f32 %v1662, 0.0
  %v1977 = vmax.f32 %v1667, 0.0
  %v1978 = vmax.f32 %v1672, 0.0
  %v1979 = vmax.f32 %v1677, 0.0
  %v1980 = vmax.f32 %v1682, 0.0
  %v1981 = vmax.f32 %v1687, 0.0
  %v1982 = vmax.f32 %v1692, 0.0
  %v1983 = vmax.f32 %v1697, 0.0
  %v1984 = vmax.f32 %v1702, 0.0
  %v1985 = vmax.f32 %v1707, 0.0
  %v1986 = vmax.f32 %v1712, 0.0
  %v1987 = vmax.f32 %v1717, 0.0
  %v1988 = vmax.f32 %v1722, 0.0
  %v1989 = vmax.f32 %v1727, 0.0
  %v1990 = vmax.f32 %v1732, 0.0
  %v1991 = vmax.f32 %v1737, 0.0
  %v1992 = vmax.f32 %v1742, 0.0
  %v1993 = vmax.f32 %v1747, 0.0
  %v1994 = vmax.f32 %v1752, 0.0
  %v1995 = vmax.f32 %v1757, 0.0
  %v1996 = vmax.f32 %v1762, 0.0
  %v1997 = vmax.f32 %v1767, 0.0
  %v1998 = vmax.f32 %v1772, 0.0
  %v1999 = vmax.f32 %v1777, 0.0
  %v2000 = vmax.f32 %v1782, 0.0
  %v2001 = vmax.f32 %v1787, 0.0
  %v2002 = vmax.f32 %v1792, 0.0
  %v2003 = vmax.f32 %v1797, 0.0
  %v2004 = vmax.f32 %v1802, 0.0
  %v2005 = vmax.f32 %v1807, 0.0
  %v2006 = vmax.f32 %v1812, 0.0
  %v2007 = vmax.f32 %v1817, 0.0
  %v2008 = vmax.f32 %v1822, 0.0
  %v2009 = vmax.f32 %v1827, 0.0
  %v2010 = vmax.f32 %v1832, 0.0
  %v2011 = vmax.f32 %v1837, 0.0
  %v2012 = vmax.f32 %v1842, 0.0
  %v2013 = vmax.f32 %v1847, 0.0
  %v2014 = vmax.f32 %v1852, 0.0
  %v2015 = vmax.f32 %v1857, 0.0
  %v2016 = vmax.f32 %v1862, 0.0
  %v2017 = vmax.f32 %v1867, 0.0
  %v2018 = vmax.f32 %v1872, 0.0
  %v2019 = vmax.f32 %v1877, 0.0
  %v2020 = vmax.f32 %v1882, 0.0
  %v2021 = vmax.f32 %v1887, 0.0
  %v2022 = vmax.f32 %v1892, 0.0
  %v2023 = vmax.f32 %v1897, 0.0
  %v2024 = vmax.f32 %v1902, 0.0
  %v2025 = vmax.f32 %v1907, 0.0
  %v2026 = vmax.f32 %v1912, 0.0
  %v2027 = vmax.f32 %v1917, 0.0
  %v2028 = vmax.f32 %v1922, 0.0
  %v2029 = vmax.f32 %v1927, 0.0
  %v2030 = vmax.f32 %v1932, 0.0
  %v2031 = vld [vmem:[%s5] sm:$0xff]
  %v2032 = vld [vmem:[%s5 + $0x8] sm:$0xff]
  %v2033 = vld [vmem:[%s6] sm:$0x1]
  %v2035 = vlaneseq
  %v2036 = vshrl.u32 %v2035, 7
  %v2037 = vsub.s32 0, %v2036
  %v2038 = vrot.slane %v2033, %v2037
  %vm2040 = vcmask 130048
  %v2042 = vsel %vm2040, %v1935, 0
  %v2045 = vsel %vm2040, %v1936, 0
  %v2048 = vsel %vm2040, %v1937, 0
  %v2051 = vsel %vm2040, %v1938, 0
  %v2054 = vsel %vm2040, %v1939, 0
  %v2057 = vsel %vm2040, %v1940, 0
  %v2060 = vsel %vm2040, %v1941, 0
  %v2063 = vsel %vm2040, %v1942, 0
  %v2066 = vsel %vm2040, %v1943, 0
  %v2069 = vsel %vm2040, %v1944, 0
  %v2072 = vsel %vm2040, %v1945, 0
  %v2075 = vsel %vm2040, %v1946, 0
  %v2078 = vsel %vm2040, %v1947, 0
  %v2081 = vsel %vm2040, %v1948, 0
  %v2084 = vsel %vm2040, %v1949, 0
  %v2087 = vsel %vm2040, %v1950, 0
  %v2090 = vsel %vm2040, %v1951, 0
  %v2093 = vsel %vm2040, %v1952, 0
  %v2096 = vsel %vm2040, %v1953, 0
  %v2099 = vsel %vm2040, %v1954, 0
  %v2102 = vsel %vm2040, %v1955, 0
  %v2105 = vsel %vm2040, %v1956, 0
  %v2108 = vsel %vm2040, %v1957, 0
  %v2111 = vsel %vm2040, %v1958, 0
  %v2114 = vsel %vm2040, %v1959, 0
  %v2117 = vsel %vm2040, %v1960, 0
  %v2120 = vsel %vm2040, %v1961, 0
  %v2123 = vsel %vm2040, %v1962, 0
  %v2126 = vsel %vm2040, %v1963, 0
  %v2129 = vsel %vm2040, %v1964, 0
  %v2132 = vsel %vm2040, %v1965, 0
  %v2135 = vsel %vm2040, %v1966, 0
  %v2138 = vsel %vm2040, %v1967, 0
  %v2141 = vsel %vm2040, %v1968, 0
  %v2144 = vsel %vm2040, %v1969, 0
  %v2147 = vsel %vm2040, %v1970, 0
  %v2150 = vsel %vm2040, %v1971, 0
  %v2153 = vsel %vm2040, %v1972, 0
  %v2156 = vsel %vm2040, %v1973, 0
  %v2159 = vsel %vm2040, %v1974, 0
  %v2162 = vsel %vm2040, %v1975, 0
  %v2165 = vsel %vm2040, %v1976, 0
  %v2168 = vsel %vm2040, %v1977, 0
  %v2171 = vsel %vm2040, %v1978, 0
  %v2174 = vsel %vm2040, %v1979, 0
  %v2177 = vsel %vm2040, %v1980, 0
  %v2180 = vsel %vm2040, %v1981, 0
  %v2183 = vsel %vm2040, %v1982, 0
  %v2186 = vsel %vm2040, %v1983, 0
  %v2189 = vsel %vm2040, %v1984, 0
  %v2192 = vsel %vm2040, %v1985, 0
  %v2195 = vsel %vm2040, %v1986, 0
  %v2198 = vsel %vm2040, %v1987, 0
  %v2201 = vsel %vm2040, %v1988, 0
  %v2204 = vsel %vm2040, %v1989, 0
  %v2207 = vsel %vm2040, %v1990, 0
  %v2210 = vsel %vm2040, %v1991, 0
  %v2213 = vsel %vm2040, %v1992, 0
  %v2216 = vsel %vm2040, %v1993, 0
  %v2219 = vsel %vm2040, %v1994, 0
  %v2222 = vsel %vm2040, %v1995, 0
  %v2225 = vsel %vm2040, %v1996, 0
  %v2228 = vsel %vm2040, %v1997, 0
  %v2231 = vsel %vm2040, %v1998, 0
  %v2234 = vsel %vm2040, %v1999, 0
  %v2237 = vsel %vm2040, %v2000, 0
  %v2240 = vsel %vm2040, %v2001, 0
  %v2243 = vsel %vm2040, %v2002, 0
  %v2246 = vsel %vm2040, %v2003, 0
  %v2249 = vsel %vm2040, %v2004, 0
  %v2252 = vsel %vm2040, %v2005, 0
  %v2255 = vsel %vm2040, %v2006, 0
  %v2258 = vsel %vm2040, %v2007, 0
  %v2261 = vsel %vm2040, %v2008, 0
  %v2264 = vsel %vm2040, %v2009, 0
  %v2267 = vsel %vm2040, %v2010, 0
  %v2270 = vsel %vm2040, %v2011, 0
  %v2273 = vsel %vm2040, %v2012, 0
  %v2276 = vsel %vm2040, %v2013, 0
  %v2279 = vsel %vm2040, %v2014, 0
  %v2282 = vsel %vm2040, %v2015, 0
  %v2285 = vsel %vm2040, %v2016, 0
  %v2288 = vsel %vm2040, %v2017, 0
  %v2291 = vsel %vm2040, %v2018, 0
  %v2294 = vsel %vm2040, %v2019, 0
  %v2297 = vsel %vm2040, %v2020, 0
  %v2300 = vsel %vm2040, %v2021, 0
  %v2303 = vsel %vm2040, %v2022, 0
  %v2306 = vsel %vm2040, %v2023, 0
  %v2309 = vsel %vm2040, %v2024, 0
  %v2312 = vsel %vm2040, %v2025, 0
  %v2315 = vsel %vm2040, %v2026, 0
  %v2318 = vsel %vm2040, %v2027, 0
  %v2321 = vsel %vm2040, %v2028, 0
  %v2324 = vsel %vm2040, %v2029, 0
  %v2327 = vsel %vm2040, %v2030, 0
  %2329 = vmatprep.subr.mxu0 0.0
  %2330 = vmatpush1.msra.mxu0 %v2031
  %2331 = vmatprep.subr.mxu0 0.0
  %2332 = vmatpush1.msra.mxu0 %v2032
  %2333 = vmatprep.subr.mxu0 0.0
  %2334 = vmatpush1.msra.mxu0 0.0
  %2335 = vmatprep.subr.mxu0 0.0
  %2336 = vmatpush1.msra.mxu0 0.0
  %2337 = vmatprep.subr.mxu0 0.0
  %2338 = vmatpush1.msra.mxu0 0.0
  %2339 = vmatprep.subr.mxu0 0.0
  %2340 = vmatpush1.msra.mxu0 0.0
  %2341 = vmatprep.subr.mxu0 0.0
  %2342 = vmatpush1.msra.mxu0 0.0
  %2343 = vmatprep.subr.mxu0 0.0
  %2344 = vmatpush1.msra.mxu0 0.0
  %2345 = vmatprep.subr.mxu0 0.0
  %2346 = vmatpush1.msra.mxu0 0.0
  %2347 = vmatprep.subr.mxu0 0.0
  %2348 = vmatpush1.msra.mxu0 0.0
  %2349 = vmatprep.subr.mxu0 0.0
  %2350 = vmatpush1.msra.mxu0 0.0
  %2351 = vmatprep.subr.mxu0 0.0
  %2352 = vmatpush1.msra.mxu0 0.0
  %2353 = vmatprep.subr.mxu0 0.0
  %2354 = vmatpush1.msra.mxu0 0.0
  %2355 = vmatprep.subr.mxu0 0.0
  %2356 = vmatpush1.msra.mxu0 0.0
  %2357 = vmatprep.subr.mxu0 0.0
  %2358 = vmatpush1.msra.mxu0 0.0
  %2359 = vmatprep.subr.mxu0 0.0
  %2360 = vmatpush1.msra.mxu0 0.0
  %2361 = vmatprep.subr.mxu0 0.0
  %2362 = vmatpush1.msra.mxu0 0.0
  %2363 = vmatprep.subr.mxu0 0.0
  %2364 = vmatpush1.msra.mxu0 0.0
  %2365 = vmatprep.subr.mxu0 0.0
  %2366 = vmatpush1.msra.mxu0 0.0
  %2367 = vmatprep.subr.mxu0 0.0
  %2368 = vmatpush1.msra.mxu0 0.0
  %2369 = vmatprep.subr.mxu0 0.0
  %2370 = vmatpush1.msra.mxu0 0.0
  %2371 = vmatprep.subr.mxu0 0.0
  %2372 = vmatpush1.msra.mxu0 0.0
  %2373 = vmatprep.subr.mxu0 0.0
  %2374 = vmatpush1.msra.mxu0 0.0
  %2375 = vmatprep.subr.mxu0 0.0
  %2376 = vmatpush1.msra.mxu0 0.0
  %2377 = vmatprep.subr.mxu0 0.0
  %2378 = vmatpush1.msra.mxu0 0.0
  %2379 = vmatprep.subr.mxu0 0.0
  %2380 = vmatpush1.msra.mxu0 0.0
  %2381 = vmatprep.subr.mxu0 0.0
  %2382 = vmatpush1.msra.mxu0 0.0
  %2383 = vmatprep.subr.mxu0 0.0
  %2384 = vmatpush1.msra.mxu0 0.0
  %2385 = vmatprep.subr.mxu0 0.0
  %2386 = vmatpush1.msra.mxu0 0.0
  %2387 = vmatprep.subr.mxu0 0.0
  %2388 = vmatpush1.msra.mxu0 0.0
  %2389 = vmatprep.subr.mxu0 0.0
  %2390 = vmatpush1.msra.mxu0 0.0
  %2391 = vmatprep.subr.mxu0 0.0
  %2392 = vmatpush1.msra.mxu0 0.0
  %2393 = vmatprep.mubr.f32.mxu0 0.0
  %2394 = vmatmul.mubr.f32.gmra.mrb[0].mxu0 %v2042
  %v2395 = vpop.f32.mrb[0].mxu0
  %v2396 = vadd.f32 %v2038, %v2395
  %v2397 = vpop.f32.mrb[0].mxu0
  %2398 = vmatprep.mubr.f32.mxu0 0.0
  %2399 = vmatmul.mubr.f32.gmra.mrb[0].mxu0 %v2045
  %v2400 = vpop.f32.mrb[0].mxu0
  %v2401 = vadd.f32 %v2038, %v2400
  %v2402 = vpop.f32.mrb[0].mxu0
  %2403 = vmatprep.mubr.f32.mxu0 0.0
  %2404 = vmatmul.mubr.f32.gmra.mrb[0].mxu0 %v2048
  %v2405 = vpop.f32.mrb[0].mxu0
  %v2406 = vadd.f32 %v2038, %v2405
  %v2407 = vpop.f32.mrb[0].mxu0
  %2408 = vmatprep.mubr.f32.mxu0 0.0
  %2409 = vmatmul.mubr.f32.gmra.mrb[0].mxu0 %v2051
  %v2410 = vpop.f32.mrb[0].mxu0
  %v2411 = vadd.f32 %v2038, %v2410
  %v2412 = vpop.f32.mrb[0].mxu0
  %2413 = vmatprep.mubr.f32.mxu0 0.0
  %2414 = vmatmul.mubr.f32.gmra.mrb[0].mxu0 %v2054
  %v2415 = vpop.f32.mrb[0].mxu0
  %v2416 = vadd.f32 %v2038, %v2415
  %v2417 = vpop.f32.mrb[0].mxu0
  %2418 = vmatprep.mubr.f32.mxu0 0.0
  %2419 = vmatmul.mubr.f32.gmra.mrb[0].mxu0 %v2057
  %v2420 = vpop.f32.mrb[0].mxu0
  %v2421 = vadd.f32 %v2038, %v2420
  %v2422 = vpop.f32.mrb[0].mxu0
  %2423 = vmatprep.mubr.f32.mxu0 0.0
  %2424 = vmatmul.mubr.f32.gmra.mrb[0].mxu0 %v2060
  %v2425 = vpop.f32.mrb[0].mxu0
  %v2426 = vadd.f32 %v2038, %v2425
  %v2427 = vpop.f32.mrb[0].mxu0
  %2428 = vmatprep.mubr.f32.mxu0 0.0
  %2429 = vmatmul.mubr.f32.gmra.mrb[0].mxu0 %v2063
  %v2430 = vpop.f32.mrb[0].mxu0
  %v2431 = vadd.f32 %v2038, %v2430
  %v2432 = vpop.f32.mrb[0].mxu0
  %2433 = vmatprep.mubr.f32.mxu0 0.0
  %2434 = vmatmul.mubr.f32.gmra.mrb[0].mxu0 %v2066
  %v2435 = vpop.f32.mrb[0].mxu0
  %v2436 = vadd.f32 %v2038, %v2435
  %v2437 = vpop.f32.mrb[0].mxu0
  %2438 = vmatprep.mubr.f32.mxu0 0.0
  %2439 = vmatmul.mubr.f32.gmra.mrb[0].mxu0 %v2069
  %v2440 = vpop.f32.mrb[0].mxu0
  %v2441 = vadd.f32 %v2038, %v2440
  %v2442 = vpop.f32.mrb[0].mxu0
  %2443 = vmatprep.mubr.f32.mxu0 0.0
  %2444 = vmatmul.mubr.f32.gmra.mrb[0].mxu0 %v2072
  %v2445 = vpop.f32.mrb[0].mxu0
  %v2446 = vadd.f32 %v2038, %v2445
  %v2447 = vpop.f32.mrb[0].mxu0
  %2448 = vmatprep.mubr.f32.mxu0 0.0
  %2449 = vmatmul.mubr.f32.gmra.mrb[0].mxu0 %v2075
  %v2450 = vpop.f32.mrb[0].mxu0
  %v2451 = vadd.f32 %v2038, %v2450
  %v2452 = vpop.f32.mrb[0].mxu0
  %2453 = vmatprep.mubr.f32.mxu0 0.0
  %2454 = vmatmul.mubr.f32.gmra.mrb[0].mxu0 %v2078
  %v2455 = vpop.f32.mrb[0].mxu0
  %v2456 = vadd.f32 %v2038, %v2455
  %v2457 = vpop.f32.mrb[0].mxu0
  %2458 = vmatprep.mubr.f32.mxu0 0.0
  %2459 = vmatmul.mubr.f32.gmra.mrb[0].mxu0 %v2081
  %v2460 = vpop.f32.mrb[0].mxu0
  %v2461 = vadd.f32 %v2038, %v2460
  %v2462 = vpop.f32.mrb[0].mxu0
  %2463 = vmatprep.mubr.f32.mxu0 0.0
  %2464 = vmatmul.mubr.f32.gmra.mrb[0].mxu0 %v2084
  %v2465 = vpop.f32.mrb[0].mxu0
  %v2466 = vadd.f32 %v2038, %v2465
  %v2467 = vpop.f32.mrb[0].mxu0
  %2468 = vmatprep.mubr.f32.mxu0 0.0
  %2469 = vmatmul.mubr.f32.gmra.mrb[0].mxu0 %v2087
  %v2470 = vpop.f32.mrb[0].mxu0
  %v2471 = vadd.f32 %v2038, %v2470
  %v2472 = vpop.f32.mrb[0].mxu0
  %2473 = vmatprep.mubr.f32.mxu0 0.0
  %2474 = vmatmul.mubr.f32.gmra.mrb[0].mxu0 %v2090
  %v2475 = vpop.f32.mrb[0].mxu0
  %v2476 = vadd.f32 %v2038, %v2475
  %v2477 = vpop.f32.mrb[0].mxu0
  %2478 = vmatprep.mubr.f32.mxu0 0.0
  %2479 = vmatmul.mubr.f32.gmra.mrb[0].mxu0 %v2093
  %v2480 = vpop.f32.mrb[0].mxu0
  %v2481 = vadd.f32 %v2038, %v2480
  %v2482 = vpop.f32.mrb[0].mxu0
  %2483 = vmatprep.mubr.f32.mxu0 0.0
  %2484 = vmatmul.mubr.f32.gmra.mrb[0].mxu0 %v2096
  %v2485 = vpop.f32.mrb[0].mxu0
  %v2486 = vadd.f32 %v2038, %v2485
  %v2487 = vpop.f32.mrb[0].mxu0
  %2488 = vmatprep.mubr.f32.mxu0 0.0
  %2489 = vmatmul.mubr.f32.gmra.mrb[0].mxu0 %v2099
  %v2490 = vpop.f32.mrb[0].mxu0
  %v2491 = vadd.f32 %v2038, %v2490
  %v2492 = vpop.f32.mrb[0].mxu0
  %2493 = vmatprep.mubr.f32.mxu0 0.0
  %2494 = vmatmul.mubr.f32.gmra.mrb[0].mxu0 %v2102
  %v2495 = vpop.f32.mrb[0].mxu0
  %v2496 = vadd.f32 %v2038, %v2495
  %v2497 = vpop.f32.mrb[0].mxu0
  %2498 = vmatprep.mubr.f32.mxu0 0.0
  %2499 = vmatmul.mubr.f32.gmra.mrb[0].mxu0 %v2105
  %v2500 = vpop.f32.mrb[0].mxu0
  %v2501 = vadd.f32 %v2038, %v2500
  %v2502 = vpop.f32.mrb[0].mxu0
  %2503 = vmatprep.mubr.f32.mxu0 0.0
  %2504 = vmatmul.mubr.f32.gmra.mrb[0].mxu0 %v2108
  %v2505 = vpop.f32.mrb[0].mxu0
  %v2506 = vadd.f32 %v2038, %v2505
  %v2507 = vpop.f32.mrb[0].mxu0
  %2508 = vmatprep.mubr.f32.mxu0 0.0
  %2509 = vmatmul.mubr.f32.gmra.mrb[0].mxu0 %v2111
  %v2510 = vpop.f32.mrb[0].mxu0
  %v2511 = vadd.f32 %v2038, %v2510
  %v2512 = vpop.f32.mrb[0].mxu0
  %2513 = vmatprep.mubr.f32.mxu0 0.0
  %2514 = vmatmul.mubr.f32.gmra.mrb[0].mxu0 %v2114
  %v2515 = vpop.f32.mrb[0].mxu0
  %v2516 = vadd.f32 %v2038, %v2515
  %v2517 = vpop.f32.mrb[0].mxu0
  %2518 = vmatprep.mubr.f32.mxu0 0.0
  %2519 = vmatmul.mubr.f32.gmra.mrb[0].mxu0 %v2117
  %v2520 = vpop.f32.mrb[0].mxu0
  %v2521 = vadd.f32 %v2038, %v2520
  %v2522 = vpop.f32.mrb[0].mxu0
  %2523 = vmatprep.mubr.f32.mxu0 0.0
  %2524 = vmatmul.mubr.f32.gmra.mrb[0].mxu0 %v2120
  %v2525 = vpop.f32.mrb[0].mxu0
  %v2526 = vadd.f32 %v2038, %v2525
  %v2527 = vpop.f32.mrb[0].mxu0
  %2528 = vmatprep.mubr.f32.mxu0 0.0
  %2529 = vmatmul.mubr.f32.gmra.mrb[0].mxu0 %v2123
  %v2530 = vpop.f32.mrb[0].mxu0
  %v2531 = vadd.f32 %v2038, %v2530
  %v2532 = vpop.f32.mrb[0].mxu0
  %2533 = vmatprep.mubr.f32.mxu0 0.0
  %2534 = vmatmul.mubr.f32.gmra.mrb[0].mxu0 %v2126
  %v2535 = vpop.f32.mrb[0].mxu0
  %v2536 = vadd.f32 %v2038, %v2535
  %v2537 = vpop.f32.mrb[0].mxu0
  %2538 = vmatprep.mubr.f32.mxu0 0.0
  %2539 = vmatmul.mubr.f32.gmra.mrb[0].mxu0 %v2129
  %v2540 = vpop.f32.mrb[0].mxu0
  %v2541 = vadd.f32 %v2038, %v2540
  %v2542 = vpop.f32.mrb[0].mxu0
  %2543 = vmatprep.mubr.f32.mxu0 0.0
  %2544 = vmatmul.mubr.f32.gmra.mrb[0].mxu0 %v2132
  %v2545 = vpop.f32.mrb[0].mxu0
  %v2546 = vadd.f32 %v2038, %v2545
  %v2547 = vpop.f32.mrb[0].mxu0
  %2548 = vmatprep.mubr.f32.mxu0 0.0
  %2549 = vmatmul.mubr.f32.gmra.mrb[0].mxu0 %v2135
  %v2550 = vpop.f32.mrb[0].mxu0
  %v2551 = vadd.f32 %v2038, %v2550
  %v2552 = vpop.f32.mrb[0].mxu0
  %2553 = vmatprep.mubr.f32.mxu0 0.0
  %2554 = vmatmul.mubr.f32.gmra.mrb[0].mxu0 %v2138
  %v2555 = vpop.f32.mrb[0].mxu0
  %v2556 = vadd.f32 %v2038, %v2555
  %v2557 = vpop.f32.mrb[0].mxu0
  %2558 = vmatprep.mubr.f32.mxu0 0.0
  %2559 = vmatmul.mubr.f32.gmra.mrb[0].mxu0 %v2141
  %v2560 = vpop.f32.mrb[0].mxu0
  %v2561 = vadd.f32 %v2038, %v2560
  %v2562 = vpop.f32.mrb[0].mxu0
  %2563 = vmatprep.mubr.f32.mxu0 0.0
  %2564 = vmatmul.mubr.f32.gmra.mrb[0].mxu0 %v2144
  %v2565 = vpop.f32.mrb[0].mxu0
  %v2566 = vadd.f32 %v2038, %v2565
  %v2567 = vpop.f32.mrb[0].mxu0
  %2568 = vmatprep.mubr.f32.mxu0 0.0
  %2569 = vmatmul.mubr.f32.gmra.mrb[0].mxu0 %v2147
  %v2570 = vpop.f32.mrb[0].mxu0
  %v2571 = vadd.f32 %v2038, %v2570
  %v2572 = vpop.f32.mrb[0].mxu0
  %2573 = vmatprep.mubr.f32.mxu0 0.0
  %2574 = vmatmul.mubr.f32.gmra.mrb[0].mxu0 %v2150
  %v2575 = vpop.f32.mrb[0].mxu0
  %v2576 = vadd.f32 %v2038, %v2575
  %v2577 = vpop.f32.mrb[0].mxu0
  %2578 = vmatprep.mubr.f32.mxu0 0.0
  %2579 = vmatmul.mubr.f32.gmra.mrb[0].mxu0 %v2153
  %v2580 = vpop.f32.mrb[0].mxu0
  %v2581 = vadd.f32 %v2038, %v2580
  %v2582 = vpop.f32.mrb[0].mxu0
  %2583 = vmatprep.mubr.f32.mxu0 0.0
  %2584 = vmatmul.mubr.f32.gmra.mrb[0].mxu0 %v2156
  %v2585 = vpop.f32.mrb[0].mxu0
  %v2586 = vadd.f32 %v2038, %v2585
  %v2587 = vpop.f32.mrb[0].mxu0
  %2588 = vmatprep.mubr.f32.mxu0 0.0
  %2589 = vmatmul.mubr.f32.gmra.mrb[0].mxu0 %v2159
  %v2590 = vpop.f32.mrb[0].mxu0
  %v2591 = vadd.f32 %v2038, %v2590
  %v2592 = vpop.f32.mrb[0].mxu0
  %2593 = vmatprep.mubr.f32.mxu0 0.0
  %2594 = vmatmul.mubr.f32.gmra.mrb[0].mxu0 %v2162
  %v2595 = vpop.f32.mrb[0].mxu0
  %v2596 = vadd.f32 %v2038, %v2595
  %v2597 = vpop.f32.mrb[0].mxu0
  %2598 = vmatprep.mubr.f32.mxu0 0.0
  %2599 = vmatmul.mubr.f32.gmra.mrb[0].mxu0 %v2165
  %v2600 = vpop.f32.mrb[0].mxu0
  %v2601 = vadd.f32 %v2038, %v2600
  %v2602 = vpop.f32.mrb[0].mxu0
  %2603 = vmatprep.mubr.f32.mxu0 0.0
  %2604 = vmatmul.mubr.f32.gmra.mrb[0].mxu0 %v2168
  %v2605 = vpop.f32.mrb[0].mxu0
  %v2606 = vadd.f32 %v2038, %v2605
  %v2607 = vpop.f32.mrb[0].mxu0
  %2608 = vmatprep.mubr.f32.mxu0 0.0
  %2609 = vmatmul.mubr.f32.gmra.mrb[0].mxu0 %v2171
  %v2610 = vpop.f32.mrb[0].mxu0
  %v2611 = vadd.f32 %v2038, %v2610
  %v2612 = vpop.f32.mrb[0].mxu0
  %2613 = vmatprep.mubr.f32.mxu0 0.0
  %2614 = vmatmul.mubr.f32.gmra.mrb[0].mxu0 %v2174
  %v2615 = vpop.f32.mrb[0].mxu0
  %v2616 = vadd.f32 %v2038, %v2615
  %v2617 = vpop.f32.mrb[0].mxu0
  %2618 = vmatprep.mubr.f32.mxu0 0.0
  %2619 = vmatmul.mubr.f32.gmra.mrb[0].mxu0 %v2177
  %v2620 = vpop.f32.mrb[0].mxu0
  %v2621 = vadd.f32 %v2038, %v2620
  %v2622 = vpop.f32.mrb[0].mxu0
  %2623 = vmatprep.mubr.f32.mxu0 0.0
  %2624 = vmatmul.mubr.f32.gmra.mrb[0].mxu0 %v2180
  %v2625 = vpop.f32.mrb[0].mxu0
  %v2626 = vadd.f32 %v2038, %v2625
  %v2627 = vpop.f32.mrb[0].mxu0
  %2628 = vmatprep.mubr.f32.mxu0 0.0
  %2629 = vmatmul.mubr.f32.gmra.mrb[0].mxu0 %v2183
  %v2630 = vpop.f32.mrb[0].mxu0
  %v2631 = vadd.f32 %v2038, %v2630
  %v2632 = vpop.f32.mrb[0].mxu0
  %2633 = vmatprep.mubr.f32.mxu0 0.0
  %2634 = vmatmul.mubr.f32.gmra.mrb[0].mxu0 %v2186
  %v2635 = vpop.f32.mrb[0].mxu0
  %v2636 = vadd.f32 %v2038, %v2635
  %v2637 = vpop.f32.mrb[0].mxu0
  %2638 = vmatprep.mubr.f32.mxu0 0.0
  %2639 = vmatmul.mubr.f32.gmra.mrb[0].mxu0 %v2189
  %v2640 = vpop.f32.mrb[0].mxu0
  %v2641 = vadd.f32 %v2038, %v2640
  %v2642 = vpop.f32.mrb[0].mxu0
  %2643 = vmatprep.mubr.f32.mxu0 0.0
  %2644 = vmatmul.mubr.f32.gmra.mrb[0].mxu0 %v2192
  %v2645 = vpop.f32.mrb[0].mxu0
  %v2646 = vadd.f32 %v2038, %v2645
  %v2647 = vpop.f32.mrb[0].mxu0
  %2648 = vmatprep.mubr.f32.mxu0 0.0
  %2649 = vmatmul.mubr.f32.gmra.mrb[0].mxu0 %v2195
  %v2650 = vpop.f32.mrb[0].mxu0
  %v2651 = vadd.f32 %v2038, %v2650
  %v2652 = vpop.f32.mrb[0].mxu0
  %2653 = vmatprep.mubr.f32.mxu0 0.0
  %2654 = vmatmul.mubr.f32.gmra.mrb[0].mxu0 %v2198
  %v2655 = vpop.f32.mrb[0].mxu0
  %v2656 = vadd.f32 %v2038, %v2655
  %v2657 = vpop.f32.mrb[0].mxu0
  %2658 = vmatprep.mubr.f32.mxu0 0.0
  %2659 = vmatmul.mubr.f32.gmra.mrb[0].mxu0 %v2201
  %v2660 = vpop.f32.mrb[0].mxu0
  %v2661 = vadd.f32 %v2038, %v2660
  %v2662 = vpop.f32.mrb[0].mxu0
  %2663 = vmatprep.mubr.f32.mxu0 0.0
  %2664 = vmatmul.mubr.f32.gmra.mrb[0].mxu0 %v2204
  %v2665 = vpop.f32.mrb[0].mxu0
  %v2666 = vadd.f32 %v2038, %v2665
  %v2667 = vpop.f32.mrb[0].mxu0
  %2668 = vmatprep.mubr.f32.mxu0 0.0
  %2669 = vmatmul.mubr.f32.gmra.mrb[0].mxu0 %v2207
  %v2670 = vpop.f32.mrb[0].mxu0
  %v2671 = vadd.f32 %v2038, %v2670
  %v2672 = vpop.f32.mrb[0].mxu0
  %2673 = vmatprep.mubr.f32.mxu0 0.0
  %2674 = vmatmul.mubr.f32.gmra.mrb[0].mxu0 %v2210
  %v2675 = vpop.f32.mrb[0].mxu0
  %v2676 = vadd.f32 %v2038, %v2675
  %v2677 = vpop.f32.mrb[0].mxu0
  %2678 = vmatprep.mubr.f32.mxu0 0.0
  %2679 = vmatmul.mubr.f32.gmra.mrb[0].mxu0 %v2213
  %v2680 = vpop.f32.mrb[0].mxu0
  %v2681 = vadd.f32 %v2038, %v2680
  %v2682 = vpop.f32.mrb[0].mxu0
  %2683 = vmatprep.mubr.f32.mxu0 0.0
  %2684 = vmatmul.mubr.f32.gmra.mrb[0].mxu0 %v2216
  %v2685 = vpop.f32.mrb[0].mxu0
  %v2686 = vadd.f32 %v2038, %v2685
  %v2687 = vpop.f32.mrb[0].mxu0
  %2688 = vmatprep.mubr.f32.mxu0 0.0
  %2689 = vmatmul.mubr.f32.gmra.mrb[0].mxu0 %v2219
  %v2690 = vpop.f32.mrb[0].mxu0
  %v2691 = vadd.f32 %v2038, %v2690
  %v2692 = vpop.f32.mrb[0].mxu0
  %2693 = vmatprep.mubr.f32.mxu0 0.0
  %2694 = vmatmul.mubr.f32.gmra.mrb[0].mxu0 %v2222
  %v2695 = vpop.f32.mrb[0].mxu0
  %v2696 = vadd.f32 %v2038, %v2695
  %v2697 = vpop.f32.mrb[0].mxu0
  %2698 = vmatprep.mubr.f32.mxu0 0.0
  %2699 = vmatmul.mubr.f32.gmra.mrb[0].mxu0 %v2225
  %v2700 = vpop.f32.mrb[0].mxu0
  %v2701 = vadd.f32 %v2038, %v2700
  %v2702 = vpop.f32.mrb[0].mxu0
  %2703 = vmatprep.mubr.f32.mxu0 0.0
  %2704 = vmatmul.mubr.f32.gmra.mrb[0].mxu0 %v2228
  %v2705 = vpop.f32.mrb[0].mxu0
  %v2706 = vadd.f32 %v2038, %v2705
  %v2707 = vpop.f32.mrb[0].mxu0
  %2708 = vmatprep.mubr.f32.mxu0 0.0
  %2709 = vmatmul.mubr.f32.gmra.mrb[0].mxu0 %v2231
  %v2710 = vpop.f32.mrb[0].mxu0
  %v2711 = vadd.f32 %v2038, %v2710
  %v2712 = vpop.f32.mrb[0].mxu0
  %2713 = vmatprep.mubr.f32.mxu0 0.0
  %2714 = vmatmul.mubr.f32.gmra.mrb[0].mxu0 %v2234
  %v2715 = vpop.f32.mrb[0].mxu0
  %v2716 = vadd.f32 %v2038, %v2715
  %v2717 = vpop.f32.mrb[0].mxu0
  %2718 = vmatprep.mubr.f32.mxu0 0.0
  %2719 = vmatmul.mubr.f32.gmra.mrb[0].mxu0 %v2237
  %v2720 = vpop.f32.mrb[0].mxu0
  %v2721 = vadd.f32 %v2038, %v2720
  %v2722 = vpop.f32.mrb[0].mxu0
  %2723 = vmatprep.mubr.f32.mxu0 0.0
  %2724 = vmatmul.mubr.f32.gmra.mrb[0].mxu0 %v2240
  %v2725 = vpop.f32.mrb[0].mxu0
  %v2726 = vadd.f32 %v2038, %v2725
  %v2727 = vpop.f32.mrb[0].mxu0
  %2728 = vmatprep.mubr.f32.mxu0 0.0
  %2729 = vmatmul.mubr.f32.gmra.mrb[0].mxu0 %v2243
  %v2730 = vpop.f32.mrb[0].mxu0
  %v2731 = vadd.f32 %v2038, %v2730
  %v2732 = vpop.f32.mrb[0].mxu0
  %2733 = vmatprep.mubr.f32.mxu0 0.0
  %2734 = vmatmul.mubr.f32.gmra.mrb[0].mxu0 %v2246
  %v2735 = vpop.f32.mrb[0].mxu0
  %v2736 = vadd.f32 %v2038, %v2735
  %v2737 = vpop.f32.mrb[0].mxu0
  %2738 = vmatprep.mubr.f32.mxu0 0.0
  %2739 = vmatmul.mubr.f32.gmra.mrb[0].mxu0 %v2249
  %v2740 = vpop.f32.mrb[0].mxu0
  %v2741 = vadd.f32 %v2038, %v2740
  %v2742 = vpop.f32.mrb[0].mxu0
  %2743 = vmatprep.mubr.f32.mxu0 0.0
  %2744 = vmatmul.mubr.f32.gmra.mrb[0].mxu0 %v2252
  %v2745 = vpop.f32.mrb[0].mxu0
  %v2746 = vadd.f32 %v2038, %v2745
  %v2747 = vpop.f32.mrb[0].mxu0
  %2748 = vmatprep.mubr.f32.mxu0 0.0
  %2749 = vmatmul.mubr.f32.gmra.mrb[0].mxu0 %v2255
  %v2750 = vpop.f32.mrb[0].mxu0
  %v2751 = vadd.f32 %v2038, %v2750
  %v2752 = vpop.f32.mrb[0].mxu0
  %2753 = vmatprep.mubr.f32.mxu0 0.0
  %2754 = vmatmul.mubr.f32.gmra.mrb[0].mxu0 %v2258
  %v2755 = vpop.f32.mrb[0].mxu0
  %v2756 = vadd.f32 %v2038, %v2755
  %v2757 = vpop.f32.mrb[0].mxu0
  %2758 = vmatprep.mubr.f32.mxu0 0.0
  %2759 = vmatmul.mubr.f32.gmra.mrb[0].mxu0 %v2261
  %v2760 = vpop.f32.mrb[0].mxu0
  %v2761 = vadd.f32 %v2038, %v2760
  %v2762 = vpop.f32.mrb[0].mxu0
  %2763 = vmatprep.mubr.f32.mxu0 0.0
  %2764 = vmatmul.mubr.f32.gmra.mrb[0].mxu0 %v2264
  %v2765 = vpop.f32.mrb[0].mxu0
  %v2766 = vadd.f32 %v2038, %v2765
  %v2767 = vpop.f32.mrb[0].mxu0
  %2768 = vmatprep.mubr.f32.mxu0 0.0
  %2769 = vmatmul.mubr.f32.gmra.mrb[0].mxu0 %v2267
  %v2770 = vpop.f32.mrb[0].mxu0
  %v2771 = vadd.f32 %v2038, %v2770
  %v2772 = vpop.f32.mrb[0].mxu0
  %2773 = vmatprep.mubr.f32.mxu0 0.0
  %2774 = vmatmul.mubr.f32.gmra.mrb[0].mxu0 %v2270
  %v2775 = vpop.f32.mrb[0].mxu0
  %v2776 = vadd.f32 %v2038, %v2775
  %v2777 = vpop.f32.mrb[0].mxu0
  %2778 = vmatprep.mubr.f32.mxu0 0.0
  %2779 = vmatmul.mubr.f32.gmra.mrb[0].mxu0 %v2273
  %v2780 = vpop.f32.mrb[0].mxu0
  %v2781 = vadd.f32 %v2038, %v2780
  %v2782 = vpop.f32.mrb[0].mxu0
  %2783 = vmatprep.mubr.f32.mxu0 0.0
  %2784 = vmatmul.mubr.f32.gmra.mrb[0].mxu0 %v2276
  %v2785 = vpop.f32.mrb[0].mxu0
  %v2786 = vadd.f32 %v2038, %v2785
  %v2787 = vpop.f32.mrb[0].mxu0
  %2788 = vmatprep.mubr.f32.mxu0 0.0
  %2789 = vmatmul.mubr.f32.gmra.mrb[0].mxu0 %v2279
  %v2790 = vpop.f32.mrb[0].mxu0
  %v2791 = vadd.f32 %v2038, %v2790
  %v2792 = vpop.f32.mrb[0].mxu0
  %2793 = vmatprep.mubr.f32.mxu0 0.0
  %2794 = vmatmul.mubr.f32.gmra.mrb[0].mxu0 %v2282
  %v2795 = vpop.f32.mrb[0].mxu0
  %v2796 = vadd.f32 %v2038, %v2795
  %v2797 = vpop.f32.mrb[0].mxu0
  %2798 = vmatprep.mubr.f32.mxu0 0.0
  %2799 = vmatmul.mubr.f32.gmra.mrb[0].mxu0 %v2285
  %v2800 = vpop.f32.mrb[0].mxu0
  %v2801 = vadd.f32 %v2038, %v2800
  %v2802 = vpop.f32.mrb[0].mxu0
  %2803 = vmatprep.mubr.f32.mxu0 0.0
  %2804 = vmatmul.mubr.f32.gmra.mrb[0].mxu0 %v2288
  %v2805 = vpop.f32.mrb[0].mxu0
  %v2806 = vadd.f32 %v2038, %v2805
  %v2807 = vpop.f32.mrb[0].mxu0
  %2808 = vmatprep.mubr.f32.mxu0 0.0
  %2809 = vmatmul.mubr.f32.gmra.mrb[0].mxu0 %v2291
  %v2810 = vpop.f32.mrb[0].mxu0
  %v2811 = vadd.f32 %v2038, %v2810
  %v2812 = vpop.f32.mrb[0].mxu0
  %2813 = vmatprep.mubr.f32.mxu0 0.0
  %2814 = vmatmul.mubr.f32.gmra.mrb[0].mxu0 %v2294
  %v2815 = vpop.f32.mrb[0].mxu0
  %v2816 = vadd.f32 %v2038, %v2815
  %v2817 = vpop.f32.mrb[0].mxu0
  %2818 = vmatprep.mubr.f32.mxu0 0.0
  %2819 = vmatmul.mubr.f32.gmra.mrb[0].mxu0 %v2297
  %v2820 = vpop.f32.mrb[0].mxu0
  %v2821 = vadd.f32 %v2038, %v2820
  %v2822 = vpop.f32.mrb[0].mxu0
  %2823 = vmatprep.mubr.f32.mxu0 0.0
  %2824 = vmatmul.mubr.f32.gmra.mrb[0].mxu0 %v2300
  %v2825 = vpop.f32.mrb[0].mxu0
  %v2826 = vadd.f32 %v2038, %v2825
  %v2827 = vpop.f32.mrb[0].mxu0
  %2828 = vmatprep.mubr.f32.mxu0 0.0
  %2829 = vmatmul.mubr.f32.gmra.mrb[0].mxu0 %v2303
  %v2830 = vpop.f32.mrb[0].mxu0
  %v2831 = vadd.f32 %v2038, %v2830
  %v2832 = vpop.f32.mrb[0].mxu0
  %2833 = vmatprep.mubr.f32.mxu0 0.0
  %2834 = vmatmul.mubr.f32.gmra.mrb[0].mxu0 %v2306
  %v2835 = vpop.f32.mrb[0].mxu0
  %v2836 = vadd.f32 %v2038, %v2835
  %v2837 = vpop.f32.mrb[0].mxu0
  %2838 = vmatprep.mubr.f32.mxu0 0.0
  %2839 = vmatmul.mubr.f32.gmra.mrb[0].mxu0 %v2309
  %v2840 = vpop.f32.mrb[0].mxu0
  %v2841 = vadd.f32 %v2038, %v2840
  %v2842 = vpop.f32.mrb[0].mxu0
  %2843 = vmatprep.mubr.f32.mxu0 0.0
  %2844 = vmatmul.mubr.f32.gmra.mrb[0].mxu0 %v2312
  %v2845 = vpop.f32.mrb[0].mxu0
  %v2846 = vadd.f32 %v2038, %v2845
  %v2847 = vpop.f32.mrb[0].mxu0
  %2848 = vmatprep.mubr.f32.mxu0 0.0
  %2849 = vmatmul.mubr.f32.gmra.mrb[0].mxu0 %v2315
  %v2850 = vpop.f32.mrb[0].mxu0
  %v2851 = vadd.f32 %v2038, %v2850
  %v2852 = vpop.f32.mrb[0].mxu0
  %2853 = vmatprep.mubr.f32.mxu0 0.0
  %2854 = vmatmul.mubr.f32.gmra.mrb[0].mxu0 %v2318
  %v2855 = vpop.f32.mrb[0].mxu0
  %v2856 = vadd.f32 %v2038, %v2855
  %v2857 = vpop.f32.mrb[0].mxu0
  %2858 = vmatprep.mubr.f32.mxu0 0.0
  %2859 = vmatmul.mubr.f32.gmra.mrb[0].mxu0 %v2321
  %v2860 = vpop.f32.mrb[0].mxu0
  %v2861 = vadd.f32 %v2038, %v2860
  %v2862 = vpop.f32.mrb[0].mxu0
  %2863 = vmatprep.mubr.f32.mxu0 0.0
  %2864 = vmatmul.mubr.f32.gmra.mrb[0].mxu0 %v2324
  %v2865 = vpop.f32.mrb[0].mxu0
  %v2866 = vadd.f32 %v2038, %v2865
  %v2867 = vpop.f32.mrb[0].mxu0
  %2868 = vmatprep.mubr.f32.mxu0 0.0
  %2869 = vmatmul.mubr.f32.gmra.mrb[0].mxu0 %v2327
  %v2870 = vpop.f32.mrb[0].mxu0
  %v2871 = vadd.f32 %v2038, %v2870
  %v2872 = vpop.f32.mrb[0].mxu0
  %2873 = vdwg.mxu0
  %v2874 = vmax.f32 %v2396, 0.0
  %v2875 = vmax.f32 %v2401, 0.0
  %v2876 = vmax.f32 %v2406, 0.0
  %v2877 = vmax.f32 %v2411, 0.0
  %v2878 = vmax.f32 %v2416, 0.0
  %v2879 = vmax.f32 %v2421, 0.0
  %v2880 = vmax.f32 %v2426, 0.0
  %v2881 = vmax.f32 %v2431, 0.0
  %v2882 = vmax.f32 %v2436, 0.0
  %v2883 = vmax.f32 %v2441, 0.0
  %v2884 = vmax.f32 %v2446, 0.0
  %v2885 = vmax.f32 %v2451, 0.0
  %v2886 = vmax.f32 %v2456, 0.0
  %v2887 = vmax.f32 %v2461, 0.0
  %v2888 = vmax.f32 %v2466, 0.0
  %v2889 = vmax.f32 %v2471, 0.0
  %v2890 = vmax.f32 %v2476, 0.0
  %v2891 = vmax.f32 %v2481, 0.0
  %v2892 = vmax.f32 %v2486, 0.0
  %v2893 = vmax.f32 %v2491, 0.0
  %v2894 = vmax.f32 %v2496, 0.0
  %v2895 = vmax.f32 %v2501, 0.0
  %v2896 = vmax.f32 %v2506, 0.0
  %v2897 = vmax.f32 %v2511, 0.0
  %v2898 = vmax.f32 %v2516, 0.0
  %v2899 = vmax.f32 %v2521, 0.0
  %v2900 = vmax.f32 %v2526, 0.0
  %v2901 = vmax.f32 %v2531, 0.0
  %v2902 = vmax.f32 %v2536, 0.0
  %v2903 = vmax.f32 %v2541, 0.0
  %v2904 = vmax.f32 %v2546, 0.0
  %v2905 = vmax.f32 %v2551, 0.0
  %v2906 = vmax.f32 %v2556, 0.0
  %v2907 = vmax.f32 %v2561, 0.0
  %v2908 = vmax.f32 %v2566, 0.0
  %v2909 = vmax.f32 %v2571, 0.0
  %v2910 = vmax.f32 %v2576, 0.0
  %v2911 = vmax.f32 %v2581, 0.0
  %v2912 = vmax.f32 %v2586, 0.0
  %v2913 = vmax.f32 %v2591, 0.0
  %v2914 = vmax.f32 %v2596, 0.0
  %v2915 = vmax.f32 %v2601, 0.0
  %v2916 = vmax.f32 %v2606, 0.0
  %v2917 = vmax.f32 %v2611, 0.0
  %v2918 = vmax.f32 %v2616, 0.0
  %v2919 = vmax.f32 %v2621, 0.0
  %v2920 = vmax.f32 %v2626, 0.0
  %v2921 = vmax.f32 %v2631, 0.0
  %v2922 = vmax.f32 %v2636, 0.0
  %v2923 = vmax.f32 %v2641, 0.0
  %v2924 = vmax.f32 %v2646, 0.0
  %v2925 = vmax.f32 %v2651, 0.0
  %v2926 = vmax.f32 %v2656, 0.0
  %v2927 = vmax.f32 %v2661, 0.0
  %v2928 = vmax.f32 %v2666, 0.0
  %v2929 = vmax.f32 %v2671, 0.0
  %v2930 = vmax.f32 %v2676, 0.0
  %v2931 = vmax.f32 %v2681, 0.0
  %v2932 = vmax.f32 %v2686, 0.0
  %v2933 = vmax.f32 %v2691, 0.0
  %v2934 = vmax.f32 %v2696, 0.0
  %v2935 = vmax.f32 %v2701, 0.0
  %v2936 = vmax.f32 %v2706, 0.0
  %v2937 = vmax.f32 %v2711, 0.0
  %v2938 = vmax.f32 %v2716, 0.0
  %v2939 = vmax.f32 %v2721, 0.0
  %v2940 = vmax.f32 %v2726, 0.0
  %v2941 = vmax.f32 %v2731, 0.0
  %v2942 = vmax.f32 %v2736, 0.0
  %v2943 = vmax.f32 %v2741, 0.0
  %v2944 = vmax.f32 %v2746, 0.0
  %v2945 = vmax.f32 %v2751, 0.0
  %v2946 = vmax.f32 %v2756, 0.0
  %v2947 = vmax.f32 %v2761, 0.0
  %v2948 = vmax.f32 %v2766, 0.0
  %v2949 = vmax.f32 %v2771, 0.0
  %v2950 = vmax.f32 %v2776, 0.0
  %v2951 = vmax.f32 %v2781, 0.0
  %v2952 = vmax.f32 %v2786, 0.0
  %v2953 = vmax.f32 %v2791, 0.0
  %v2954 = vmax.f32 %v2796, 0.0
  %v2955 = vmax.f32 %v2801, 0.0
  %v2956 = vmax.f32 %v2806, 0.0
  %v2957 = vmax.f32 %v2811, 0.0
  %v2958 = vmax.f32 %v2816, 0.0
  %v2959 = vmax.f32 %v2821, 0.0
  %v2960 = vmax.f32 %v2826, 0.0
  %v2961 = vmax.f32 %v2831, 0.0
  %v2962 = vmax.f32 %v2836, 0.0
  %v2963 = vmax.f32 %v2841, 0.0
  %v2964 = vmax.f32 %v2846, 0.0
  %v2965 = vmax.f32 %v2851, 0.0
  %v2966 = vmax.f32 %v2856, 0.0
  %v2967 = vmax.f32 %v2861, 0.0
  %v2968 = vmax.f32 %v2866, 0.0
  %v2969 = vmax.f32 %v2871, 0.0
  %v2970 = vld [vmem:[%s7] sm:$0x1f]
  %v2971 = vld [vmem:[%s8] sm:$0xff]
  %v2972 = vld [vmem:[%s8 + $0x8] sm:$0xff]
  %v2973 = vld [vmem:[%s8 + $0x10] sm:$0xff]
  %vm2974 = vcmask 195584
  %v2976 = vsel %vm2974, %v2874, 0
  %v2979 = vsel %vm2974, %v2875, 0
  %v2982 = vsel %vm2974, %v2876, 0
  %v2985 = vsel %vm2974, %v2877, 0
  %v2988 = vsel %vm2974, %v2878, 0
  %v2991 = vsel %vm2974, %v2879, 0
  %v2994 = vsel %vm2974, %v2880, 0
  %v2997 = vsel %vm2974, %v2881, 0
  %v3000 = vsel %vm2974, %v2882, 0
  %v3003 = vsel %vm2974, %v2883, 0
  %v3006 = vsel %vm2974, %v2884, 0
  %v3009 = vsel %vm2974, %v2885, 0
  %v3012 = vsel %vm2974, %v2886, 0
  %v3015 = vsel %vm2974, %v2887, 0
  %v3018 = vsel %vm2974, %v2888, 0
  %v3021 = vsel %vm2974, %v2889, 0
  %v3024 = vsel %vm2974, %v2890, 0
  %v3027 = vsel %vm2974, %v2891, 0
  %v3030 = vsel %vm2974, %v2892, 0
  %v3033 = vsel %vm2974, %v2893, 0
  %v3036 = vsel %vm2974, %v2894, 0
  %v3039 = vsel %vm2974, %v2895, 0
  %v3042 = vsel %vm2974, %v2896, 0
  %v3045 = vsel %vm2974, %v2897, 0
  %v3048 = vsel %vm2974, %v2898, 0
  %v3051 = vsel %vm2974, %v2899, 0
  %v3054 = vsel %vm2974, %v2900, 0
  %v3057 = vsel %vm2974, %v2901, 0
  %v3060 = vsel %vm2974, %v2902, 0
  %v3063 = vsel %vm2974, %v2903, 0
  %v3066 = vsel %vm2974, %v2904, 0
  %v3069 = vsel %vm2974, %v2905, 0
  %v3072 = vsel %vm2974, %v2906, 0
  %v3075 = vsel %vm2974, %v2907, 0
  %v3078 = vsel %vm2974, %v2908, 0
  %v3081 = vsel %vm2974, %v2909, 0
  %v3084 = vsel %vm2974, %v2910, 0
  %v3087 = vsel %vm2974, %v2911, 0
  %v3090 = vsel %vm2974, %v2912, 0
  %v3093 = vsel %vm2974, %v2913, 0
  %v3096 = vsel %vm2974, %v2914, 0
  %v3099 = vsel %vm2974, %v2915, 0
  %v3102 = vsel %vm2974, %v2916, 0
  %v3105 = vsel %vm2974, %v2917, 0
  %v3108 = vsel %vm2974, %v2918, 0
  %v3111 = vsel %vm2974, %v2919, 0
  %v3114 = vsel %vm2974, %v2920, 0
  %v3117 = vsel %vm2974, %v2921, 0
  %v3120 = vsel %vm2974, %v2922, 0
  %v3123 = vsel %vm2974, %v2923, 0
  %v3126 = vsel %vm2974, %v2924, 0
  %v3129 = vsel %vm2974, %v2925, 0
  %v3132 = vsel %vm2974, %v2926, 0
  %v3135 = vsel %vm2974, %v2927, 0
  %v3138 = vsel %vm2974, %v2928, 0
  %v3141 = vsel %vm2974, %v2929, 0
  %v3144 = vsel %vm2974, %v2930, 0
  %v3147 = vsel %vm2974, %v2931, 0
  %v3150 = vsel %vm2974, %v2932, 0
  %v3153 = vsel %vm2974, %v2933, 0
  %v3156 = vsel %vm2974, %v2934, 0
  %v3159 = vsel %vm2974, %v2935, 0
  %v3162 = vsel %vm2974, %v2936, 0
  %v3165 = vsel %vm2974, %v2937, 0
  %v3168 = vsel %vm2974, %v2938, 0
  %v3171 = vsel %vm2974, %v2939, 0
  %v3174 = vsel %vm2974, %v2940, 0
  %v3177 = vsel %vm2974, %v2941, 0
  %v3180 = vsel %vm2974, %v2942, 0
  %v3183 = vsel %vm2974, %v2943, 0
  %v3186 = vsel %vm2974, %v2944, 0
  %v3189 = vsel %vm2974, %v2945, 0
  %v3192 = vsel %vm2974, %v2946, 0
  %v3195 = vsel %vm2974, %v2947, 0
  %v3198 = vsel %vm2974, %v2948, 0
  %v3201 = vsel %vm2974, %v2949, 0
  %v3204 = vsel %vm2974, %v2950, 0
  %v3207 = vsel %vm2974, %v2951, 0
  %v3210 = vsel %vm2974, %v2952, 0
  %v3213 = vsel %vm2974, %v2953, 0
  %v3216 = vsel %vm2974, %v2954, 0
  %v3219 = vsel %vm2974, %v2955, 0
  %v3222 = vsel %vm2974, %v2956, 0
  %v3225 = vsel %vm2974, %v2957, 0
  %v3228 = vsel %vm2974, %v2958, 0
  %v3231 = vsel %vm2974, %v2959, 0
  %v3234 = vsel %vm2974, %v2960, 0
  %v3237 = vsel %vm2974, %v2961, 0
  %v3240 = vsel %vm2974, %v2962, 0
  %v3243 = vsel %vm2974, %v2963, 0
  %v3246 = vsel %vm2974, %v2964, 0
  %v3249 = vsel %vm2974, %v2965, 0
  %v3252 = vsel %vm2974, %v2966, 0
  %v3255 = vsel %vm2974, %v2967, 0
  %v3258 = vsel %vm2974, %v2968, 0
  %v3261 = vsel %vm2974, %v2969, 0
  %3263 = vmatprep.subr.mxu0 0.0
  %3264 = vmatpush1.msra.mxu0 %v2971
  %3265 = vmatprep.subr.mxu0 0.0
  %3266 = vmatpush1.msra.mxu0 %v2972
  %3267 = vmatprep.subr.mxu0 0.0
  %3268 = vmatpush1.msra.mxu0 %v2973
  %3269 = vmatprep.subr.mxu0 0.0
  %3270 = vmatpush1.msra.mxu0 0.0
  %3271 = vmatprep.subr.mxu0 0.0
  %3272 = vmatpush1.msra.mxu0 0.0
  %3273 = vmatprep.subr.mxu0 0.0
  %3274 = vmatpush1.msra.mxu0 0.0
  %3275 = vmatprep.subr.mxu0 0.0
  %3276 = vmatpush1.msra.mxu0 0.0
  %3277 = vmatprep.subr.mxu0 0.0
  %3278 = vmatpush1.msra.mxu0 0.0
  %3279 = vmatprep.subr.mxu0 0.0
  %3280 = vmatpush1.msra.mxu0 0.0
  %3281 = vmatprep.subr.mxu0 0.0
  %3282 = vmatpush1.msra.mxu0 0.0
  %3283 = vmatprep.subr.mxu0 0.0
  %3284 = vmatpush1.msra.mxu0 0.0
  %3285 = vmatprep.subr.mxu0 0.0
  %3286 = vmatpush1.msra.mxu0 0.0
  %3287 = vmatprep.subr.mxu0 0.0
  %3288 = vmatpush1.msra.mxu0 0.0
  %3289 = vmatprep.subr.mxu0 0.0
  %3290 = vmatpush1.msra.mxu0 0.0
  %3291 = vmatprep.subr.mxu0 0.0
  %3292 = vmatpush1.msra.mxu0 0.0
  %3293 = vmatprep.subr.mxu0 0.0
  %3294 = vmatpush1.msra.mxu0 0.0
  %3295 = vmatprep.subr.mxu0 0.0
  %3296 = vmatpush1.msra.mxu0 0.0
  %3297 = vmatprep.subr.mxu0 0.0
  %3298 = vmatpush1.msra.mxu0 0.0
  %3299 = vmatprep.subr.mxu0 0.0
  %3300 = vmatpush1.msra.mxu0 0.0
  %3301 = vmatprep.subr.mxu0 0.0
  %3302 = vmatpush1.msra.mxu0 0.0
  %3303 = vmatprep.subr.mxu0 0.0
  %3304 = vmatpush1.msra.mxu0 0.0
  %3305 = vmatprep.subr.mxu0 0.0
  %3306 = vmatpush1.msra.mxu0 0.0
  %3307 = vmatprep.subr.mxu0 0.0
  %3308 = vmatpush1.msra.mxu0 0.0
  %3309 = vmatprep.subr.mxu0 0.0
  %3310 = vmatpush1.msra.mxu0 0.0
  %3311 = vmatprep.subr.mxu0 0.0
  %3312 = vmatpush1.msra.mxu0 0.0
  %3313 = vmatprep.subr.mxu0 0.0
  %3314 = vmatpush1.msra.mxu0 0.0
  %3315 = vmatprep.subr.mxu0 0.0
  %3316 = vmatpush1.msra.mxu0 0.0
  %3317 = vmatprep.subr.mxu0 0.0
  %3318 = vmatpush1.msra.mxu0 0.0
  %3319 = vmatprep.subr.mxu0 0.0
  %3320 = vmatpush1.msra.mxu0 0.0
  %3321 = vmatprep.subr.mxu0 0.0
  %3322 = vmatpush1.msra.mxu0 0.0
  %3323 = vmatprep.subr.mxu0 0.0
  %3324 = vmatpush1.msra.mxu0 0.0
  %3325 = vmatprep.subr.mxu0 0.0
  %3326 = vmatpush1.msra.mxu0 0.0
  %3327 = vmatprep.mubr.f32.mxu0 0.0
  %3328 = vmatmul.mubr.f32.gmra.mrb[0].mxu0 %v2976
  %v3329 = vpop.f32.mrb[0].mxu0
  %v3330 = vadd.f32 0.0, %v3329
  %v3331 = vpop.f32.mrb[0].mxu0
  %3332 = vmatprep.mubr.f32.mxu0 0.0
  %3333 = vmatmul.mubr.f32.gmra.mrb[0].mxu0 %v2979
  %v3334 = vpop.f32.mrb[0].mxu0
  %v3335 = vadd.f32 0.0, %v3334
  %v3336 = vpop.f32.mrb[0].mxu0
  %3337 = vmatprep.mubr.f32.mxu0 0.0
  %3338 = vmatmul.mubr.f32.gmra.mrb[0].mxu0 %v2982
  %v3339 = vpop.f32.mrb[0].mxu0
  %v3340 = vadd.f32 0.0, %v3339
  %v3341 = vpop.f32.mrb[0].mxu0
  %3342 = vmatprep.mubr.f32.mxu0 0.0
  %3343 = vmatmul.mubr.f32.gmra.mrb[0].mxu0 %v2985
  %v3344 = vpop.f32.mrb[0].mxu0
  %v3345 = vadd.f32 0.0, %v3344
  %v3346 = vpop.f32.mrb[0].mxu0
  %3347 = vmatprep.mubr.f32.mxu0 0.0
  %3348 = vmatmul.mubr.f32.gmra.mrb[0].mxu0 %v2988
  %v3349 = vpop.f32.mrb[0].mxu0
  %v3350 = vadd.f32 0.0, %v3349
  %v3351 = vpop.f32.mrb[0].mxu0
  %3352 = vmatprep.mubr.f32.mxu0 0.0
  %3353 = vmatmul.mubr.f32.gmra.mrb[0].mxu0 %v2991
  %v3354 = vpop.f32.mrb[0].mxu0
  %v3355 = vadd.f32 0.0, %v3354
  %v3356 = vpop.f32.mrb[0].mxu0
  %3357 = vmatprep.mubr.f32.mxu0 0.0
  %3358 = vmatmul.mubr.f32.gmra.mrb[0].mxu0 %v2994
  %v3359 = vpop.f32.mrb[0].mxu0
  %v3360 = vadd.f32 0.0, %v3359
  %v3361 = vpop.f32.mrb[0].mxu0
  %3362 = vmatprep.mubr.f32.mxu0 0.0
  %3363 = vmatmul.mubr.f32.gmra.mrb[0].mxu0 %v2997
  %v3364 = vpop.f32.mrb[0].mxu0
  %v3365 = vadd.f32 0.0, %v3364
  %v3366 = vpop.f32.mrb[0].mxu0
  %3367 = vmatprep.mubr.f32.mxu0 0.0
  %3368 = vmatmul.mubr.f32.gmra.mrb[0].mxu0 %v3000
  %v3369 = vpop.f32.mrb[0].mxu0
  %v3370 = vadd.f32 0.0, %v3369
  %v3371 = vpop.f32.mrb[0].mxu0
  %3372 = vmatprep.mubr.f32.mxu0 0.0
  %3373 = vmatmul.mubr.f32.gmra.mrb[0].mxu0 %v3003
  %v3374 = vpop.f32.mrb[0].mxu0
  %v3375 = vadd.f32 0.0, %v3374
  %v3376 = vpop.f32.mrb[0].mxu0
  %3377 = vmatprep.mubr.f32.mxu0 0.0
  %3378 = vmatmul.mubr.f32.gmra.mrb[0].mxu0 %v3006
  %v3379 = vpop.f32.mrb[0].mxu0
  %v3380 = vadd.f32 0.0, %v3379
  %v3381 = vpop.f32.mrb[0].mxu0
  %3382 = vmatprep.mubr.f32.mxu0 0.0
  %3383 = vmatmul.mubr.f32.gmra.mrb[0].mxu0 %v3009
  %v3384 = vpop.f32.mrb[0].mxu0
  %v3385 = vadd.f32 0.0, %v3384
  %v3386 = vpop.f32.mrb[0].mxu0
  %3387 = vmatprep.mubr.f32.mxu0 0.0
  %3388 = vmatmul.mubr.f32.gmra.mrb[0].mxu0 %v3012
  %v3389 = vpop.f32.mrb[0].mxu0
  %v3390 = vadd.f32 0.0, %v3389
  %v3391 = vpop.f32.mrb[0].mxu0
  %3392 = vmatprep.mubr.f32.mxu0 0.0
  %3393 = vmatmul.mubr.f32.gmra.mrb[0].mxu0 %v3015
  %v3394 = vpop.f32.mrb[0].mxu0
  %v3395 = vadd.f32 0.0, %v3394
  %v3396 = vpop.f32.mrb[0].mxu0
  %3397 = vmatprep.mubr.f32.mxu0 0.0
  %3398 = vmatmul.mubr.f32.gmra.mrb[0].mxu0 %v3018
  %v3399 = vpop.f32.mrb[0].mxu0
  %v3400 = vadd.f32 0.0, %v3399
  %v3401 = vpop.f32.mrb[0].mxu0
  %3402 = vmatprep.mubr.f32.mxu0 0.0
  %3403 = vmatmul.mubr.f32.gmra.mrb[0].mxu0 %v3021
  %v3404 = vpop.f32.mrb[0].mxu0
  %v3405 = vadd.f32 0.0, %v3404
  %v3406 = vpop.f32.mrb[0].mxu0
  %3407 = vmatprep.mubr.f32.mxu0 0.0
  %3408 = vmatmul.mubr.f32.gmra.mrb[0].mxu0 %v3024
  %v3409 = vpop.f32.mrb[0].mxu0
  %v3410 = vadd.f32 0.0, %v3409
  %v3411 = vpop.f32.mrb[0].mxu0
  %3412 = vmatprep.mubr.f32.mxu0 0.0
  %3413 = vmatmul.mubr.f32.gmra.mrb[0].mxu0 %v3027
  %v3414 = vpop.f32.mrb[0].mxu0
  %v3415 = vadd.f32 0.0, %v3414
  %v3416 = vpop.f32.mrb[0].mxu0
  %3417 = vmatprep.mubr.f32.mxu0 0.0
  %3418 = vmatmul.mubr.f32.gmra.mrb[0].mxu0 %v3030
  %v3419 = vpop.f32.mrb[0].mxu0
  %v3420 = vadd.f32 0.0, %v3419
  %v3421 = vpop.f32.mrb[0].mxu0
  %3422 = vmatprep.mubr.f32.mxu0 0.0
  %3423 = vmatmul.mubr.f32.gmra.mrb[0].mxu0 %v3033
  %v3424 = vpop.f32.mrb[0].mxu0
  %v3425 = vadd.f32 0.0, %v3424
  %v3426 = vpop.f32.mrb[0].mxu0
  %3427 = vmatprep.mubr.f32.mxu0 0.0
  %3428 = vmatmul.mubr.f32.gmra.mrb[0].mxu0 %v3036
  %v3429 = vpop.f32.mrb[0].mxu0
  %v3430 = vadd.f32 0.0, %v3429
  %v3431 = vpop.f32.mrb[0].mxu0
  %3432 = vmatprep.mubr.f32.mxu0 0.0
  %3433 = vmatmul.mubr.f32.gmra.mrb[0].mxu0 %v3039
  %v3434 = vpop.f32.mrb[0].mxu0
  %v3435 = vadd.f32 0.0, %v3434
  %v3436 = vpop.f32.mrb[0].mxu0
  %3437 = vmatprep.mubr.f32.mxu0 0.0
  %3438 = vmatmul.mubr.f32.gmra.mrb[0].mxu0 %v3042
  %v3439 = vpop.f32.mrb[0].mxu0
  %v3440 = vadd.f32 0.0, %v3439
  %v3441 = vpop.f32.mrb[0].mxu0
  %3442 = vmatprep.mubr.f32.mxu0 0.0
  %3443 = vmatmul.mubr.f32.gmra.mrb[0].mxu0 %v3045
  %v3444 = vpop.f32.mrb[0].mxu0
  %v3445 = vadd.f32 0.0, %v3444
  %v3446 = vpop.f32.mrb[0].mxu0
  %3447 = vmatprep.mubr.f32.mxu0 0.0
  %3448 = vmatmul.mubr.f32.gmra.mrb[0].mxu0 %v3048
  %v3449 = vpop.f32.mrb[0].mxu0
  %v3450 = vadd.f32 0.0, %v3449
  %v3451 = vpop.f32.mrb[0].mxu0
  %3452 = vmatprep.mubr.f32.mxu0 0.0
  %3453 = vmatmul.mubr.f32.gmra.mrb[0].mxu0 %v3051
  %v3454 = vpop.f32.mrb[0].mxu0
  %v3455 = vadd.f32 0.0, %v3454
  %v3456 = vpop.f32.mrb[0].mxu0
  %3457 = vmatprep.mubr.f32.mxu0 0.0
  %3458 = vmatmul.mubr.f32.gmra.mrb[0].mxu0 %v3054
  %v3459 = vpop.f32.mrb[0].mxu0
  %v3460 = vadd.f32 0.0, %v3459
  %v3461 = vpop.f32.mrb[0].mxu0
  %3462 = vmatprep.mubr.f32.mxu0 0.0
  %3463 = vmatmul.mubr.f32.gmra.mrb[0].mxu0 %v3057
  %v3464 = vpop.f32.mrb[0].mxu0
  %v3465 = vadd.f32 0.0, %v3464
  %v3466 = vpop.f32.mrb[0].mxu0
  %3467 = vmatprep.mubr.f32.mxu0 0.0
  %3468 = vmatmul.mubr.f32.gmra.mrb[0].mxu0 %v3060
  %v3469 = vpop.f32.mrb[0].mxu0
  %v3470 = vadd.f32 0.0, %v3469
  %v3471 = vpop.f32.mrb[0].mxu0
  %3472 = vmatprep.mubr.f32.mxu0 0.0
  %3473 = vmatmul.mubr.f32.gmra.mrb[0].mxu0 %v3063
  %v3474 = vpop.f32.mrb[0].mxu0
  %v3475 = vadd.f32 0.0, %v3474
  %v3476 = vpop.f32.mrb[0].mxu0
  %3477 = vmatprep.mubr.f32.mxu0 0.0
  %3478 = vmatmul.mubr.f32.gmra.mrb[0].mxu0 %v3066
  %v3479 = vpop.f32.mrb[0].mxu0
  %v3480 = vadd.f32 0.0, %v3479
  %v3481 = vpop.f32.mrb[0].mxu0
  %3482 = vmatprep.mubr.f32.mxu0 0.0
  %3483 = vmatmul.mubr.f32.gmra.mrb[0].mxu0 %v3069
  %v3484 = vpop.f32.mrb[0].mxu0
  %v3485 = vadd.f32 0.0, %v3484
  %v3486 = vpop.f32.mrb[0].mxu0
  %3487 = vmatprep.mubr.f32.mxu0 0.0
  %3488 = vmatmul.mubr.f32.gmra.mrb[0].mxu0 %v3072
  %v3489 = vpop.f32.mrb[0].mxu0
  %v3490 = vadd.f32 0.0, %v3489
  %v3491 = vpop.f32.mrb[0].mxu0
  %3492 = vmatprep.mubr.f32.mxu0 0.0
  %3493 = vmatmul.mubr.f32.gmra.mrb[0].mxu0 %v3075
  %v3494 = vpop.f32.mrb[0].mxu0
  %v3495 = vadd.f32 0.0, %v3494
  %v3496 = vpop.f32.mrb[0].mxu0
  %3497 = vmatprep.mubr.f32.mxu0 0.0
  %3498 = vmatmul.mubr.f32.gmra.mrb[0].mxu0 %v3078
  %v3499 = vpop.f32.mrb[0].mxu0
  %v3500 = vadd.f32 0.0, %v3499
  %v3501 = vpop.f32.mrb[0].mxu0
  %3502 = vmatprep.mubr.f32.mxu0 0.0
  %3503 = vmatmul.mubr.f32.gmra.mrb[0].mxu0 %v3081
  %v3504 = vpop.f32.mrb[0].mxu0
  %v3505 = vadd.f32 0.0, %v3504
  %v3506 = vpop.f32.mrb[0].mxu0
  %3507 = vmatprep.mubr.f32.mxu0 0.0
  %3508 = vmatmul.mubr.f32.gmra.mrb[0].mxu0 %v3084
  %v3509 = vpop.f32.mrb[0].mxu0
  %v3510 = vadd.f32 0.0, %v3509
  %v3511 = vpop.f32.mrb[0].mxu0
  %3512 = vmatprep.mubr.f32.mxu0 0.0
  %3513 = vmatmul.mubr.f32.gmra.mrb[0].mxu0 %v3087
  %v3514 = vpop.f32.mrb[0].mxu0
  %v3515 = vadd.f32 0.0, %v3514
  %v3516 = vpop.f32.mrb[0].mxu0
  %3517 = vmatprep.mubr.f32.mxu0 0.0
  %3518 = vmatmul.mubr.f32.gmra.mrb[0].mxu0 %v3090
  %v3519 = vpop.f32.mrb[0].mxu0
  %v3520 = vadd.f32 0.0, %v3519
  %v3521 = vpop.f32.mrb[0].mxu0
  %3522 = vmatprep.mubr.f32.mxu0 0.0
  %3523 = vmatmul.mubr.f32.gmra.mrb[0].mxu0 %v3093
  %v3524 = vpop.f32.mrb[0].mxu0
  %v3525 = vadd.f32 0.0, %v3524
  %v3526 = vpop.f32.mrb[0].mxu0
  %3527 = vmatprep.mubr.f32.mxu0 0.0
  %3528 = vmatmul.mubr.f32.gmra.mrb[0].mxu0 %v3096
  %v3529 = vpop.f32.mrb[0].mxu0
  %v3530 = vadd.f32 0.0, %v3529
  %v3531 = vpop.f32.mrb[0].mxu0
  %3532 = vmatprep.mubr.f32.mxu0 0.0
  %3533 = vmatmul.mubr.f32.gmra.mrb[0].mxu0 %v3099
  %v3534 = vpop.f32.mrb[0].mxu0
  %v3535 = vadd.f32 0.0, %v3534
  %v3536 = vpop.f32.mrb[0].mxu0
  %3537 = vmatprep.mubr.f32.mxu0 0.0
  %3538 = vmatmul.mubr.f32.gmra.mrb[0].mxu0 %v3102
  %v3539 = vpop.f32.mrb[0].mxu0
  %v3540 = vadd.f32 0.0, %v3539
  %v3541 = vpop.f32.mrb[0].mxu0
  %3542 = vmatprep.mubr.f32.mxu0 0.0
  %3543 = vmatmul.mubr.f32.gmra.mrb[0].mxu0 %v3105
  %v3544 = vpop.f32.mrb[0].mxu0
  %v3545 = vadd.f32 0.0, %v3544
  %v3546 = vpop.f32.mrb[0].mxu0
  %3547 = vmatprep.mubr.f32.mxu0 0.0
  %3548 = vmatmul.mubr.f32.gmra.mrb[0].mxu0 %v3108
  %v3549 = vpop.f32.mrb[0].mxu0
  %v3550 = vadd.f32 0.0, %v3549
  %v3551 = vpop.f32.mrb[0].mxu0
  %3552 = vmatprep.mubr.f32.mxu0 0.0
  %3553 = vmatmul.mubr.f32.gmra.mrb[0].mxu0 %v3111
  %v3554 = vpop.f32.mrb[0].mxu0
  %v3555 = vadd.f32 0.0, %v3554
  %v3556 = vpop.f32.mrb[0].mxu0
  %3557 = vmatprep.mubr.f32.mxu0 0.0
  %3558 = vmatmul.mubr.f32.gmra.mrb[0].mxu0 %v3114
  %v3559 = vpop.f32.mrb[0].mxu0
  %v3560 = vadd.f32 0.0, %v3559
  %v3561 = vpop.f32.mrb[0].mxu0
  %3562 = vmatprep.mubr.f32.mxu0 0.0
  %3563 = vmatmul.mubr.f32.gmra.mrb[0].mxu0 %v3117
  %v3564 = vpop.f32.mrb[0].mxu0
  %v3565 = vadd.f32 0.0, %v3564
  %v3566 = vpop.f32.mrb[0].mxu0
  %3567 = vmatprep.mubr.f32.mxu0 0.0
  %3568 = vmatmul.mubr.f32.gmra.mrb[0].mxu0 %v3120
  %v3569 = vpop.f32.mrb[0].mxu0
  %v3570 = vadd.f32 0.0, %v3569
  %v3571 = vpop.f32.mrb[0].mxu0
  %3572 = vmatprep.mubr.f32.mxu0 0.0
  %3573 = vmatmul.mubr.f32.gmra.mrb[0].mxu0 %v3123
  %v3574 = vpop.f32.mrb[0].mxu0
  %v3575 = vadd.f32 0.0, %v3574
  %v3576 = vpop.f32.mrb[0].mxu0
  %3577 = vmatprep.mubr.f32.mxu0 0.0
  %3578 = vmatmul.mubr.f32.gmra.mrb[0].mxu0 %v3126
  %v3579 = vpop.f32.mrb[0].mxu0
  %v3580 = vadd.f32 0.0, %v3579
  %v3581 = vpop.f32.mrb[0].mxu0
  %3582 = vmatprep.mubr.f32.mxu0 0.0
  %3583 = vmatmul.mubr.f32.gmra.mrb[0].mxu0 %v3129
  %v3584 = vpop.f32.mrb[0].mxu0
  %v3585 = vadd.f32 0.0, %v3584
  %v3586 = vpop.f32.mrb[0].mxu0
  %3587 = vmatprep.mubr.f32.mxu0 0.0
  %3588 = vmatmul.mubr.f32.gmra.mrb[0].mxu0 %v3132
  %v3589 = vpop.f32.mrb[0].mxu0
  %v3590 = vadd.f32 0.0, %v3589
  %v3591 = vpop.f32.mrb[0].mxu0
  %3592 = vmatprep.mubr.f32.mxu0 0.0
  %3593 = vmatmul.mubr.f32.gmra.mrb[0].mxu0 %v3135
  %v3594 = vpop.f32.mrb[0].mxu0
  %v3595 = vadd.f32 0.0, %v3594
  %v3596 = vpop.f32.mrb[0].mxu0
  %3597 = vmatprep.mubr.f32.mxu0 0.0
  %3598 = vmatmul.mubr.f32.gmra.mrb[0].mxu0 %v3138
  %v3599 = vpop.f32.mrb[0].mxu0
  %v3600 = vadd.f32 0.0, %v3599
  %v3601 = vpop.f32.mrb[0].mxu0
  %3602 = vmatprep.mubr.f32.mxu0 0.0
  %3603 = vmatmul.mubr.f32.gmra.mrb[0].mxu0 %v3141
  %v3604 = vpop.f32.mrb[0].mxu0
  %v3605 = vadd.f32 0.0, %v3604
  %v3606 = vpop.f32.mrb[0].mxu0
  %3607 = vmatprep.mubr.f32.mxu0 0.0
  %3608 = vmatmul.mubr.f32.gmra.mrb[0].mxu0 %v3144
  %v3609 = vpop.f32.mrb[0].mxu0
  %v3610 = vadd.f32 0.0, %v3609
  %v3611 = vpop.f32.mrb[0].mxu0
  %3612 = vmatprep.mubr.f32.mxu0 0.0
  %3613 = vmatmul.mubr.f32.gmra.mrb[0].mxu0 %v3147
  %v3614 = vpop.f32.mrb[0].mxu0
  %v3615 = vadd.f32 0.0, %v3614
  %v3616 = vpop.f32.mrb[0].mxu0
  %3617 = vmatprep.mubr.f32.mxu0 0.0
  %3618 = vmatmul.mubr.f32.gmra.mrb[0].mxu0 %v3150
  %v3619 = vpop.f32.mrb[0].mxu0
  %v3620 = vadd.f32 0.0, %v3619
  %v3621 = vpop.f32.mrb[0].mxu0
  %3622 = vmatprep.mubr.f32.mxu0 0.0
  %3623 = vmatmul.mubr.f32.gmra.mrb[0].mxu0 %v3153
  %v3624 = vpop.f32.mrb[0].mxu0
  %v3625 = vadd.f32 0.0, %v3624
  %v3626 = vpop.f32.mrb[0].mxu0
  %3627 = vmatprep.mubr.f32.mxu0 0.0
  %3628 = vmatmul.mubr.f32.gmra.mrb[0].mxu0 %v3156
  %v3629 = vpop.f32.mrb[0].mxu0
  %v3630 = vadd.f32 0.0, %v3629
  %v3631 = vpop.f32.mrb[0].mxu0
  %3632 = vmatprep.mubr.f32.mxu0 0.0
  %3633 = vmatmul.mubr.f32.gmra.mrb[0].mxu0 %v3159
  %v3634 = vpop.f32.mrb[0].mxu0
  %v3635 = vadd.f32 0.0, %v3634
  %v3636 = vpop.f32.mrb[0].mxu0
  %3637 = vmatprep.mubr.f32.mxu0 0.0
  %3638 = vmatmul.mubr.f32.gmra.mrb[0].mxu0 %v3162
  %v3639 = vpop.f32.mrb[0].mxu0
  %v3640 = vadd.f32 0.0, %v3639
  %v3641 = vpop.f32.mrb[0].mxu0
  %3642 = vmatprep.mubr.f32.mxu0 0.0
  %3643 = vmatmul.mubr.f32.gmra.mrb[0].mxu0 %v3165
  %v3644 = vpop.f32.mrb[0].mxu0
  %v3645 = vadd.f32 0.0, %v3644
  %v3646 = vpop.f32.mrb[0].mxu0
  %3647 = vmatprep.mubr.f32.mxu0 0.0
  %3648 = vmatmul.mubr.f32.gmra.mrb[0].mxu0 %v3168
  %v3649 = vpop.f32.mrb[0].mxu0
  %v3650 = vadd.f32 0.0, %v3649
  %v3651 = vpop.f32.mrb[0].mxu0
  %3652 = vmatprep.mubr.f32.mxu0 0.0
  %3653 = vmatmul.mubr.f32.gmra.mrb[0].mxu0 %v3171
  %v3654 = vpop.f32.mrb[0].mxu0
  %v3655 = vadd.f32 0.0, %v3654
  %v3656 = vpop.f32.mrb[0].mxu0
  %3657 = vmatprep.mubr.f32.mxu0 0.0
  %3658 = vmatmul.mubr.f32.gmra.mrb[0].mxu0 %v3174
  %v3659 = vpop.f32.mrb[0].mxu0
  %v3660 = vadd.f32 0.0, %v3659
  %v3661 = vpop.f32.mrb[0].mxu0
  %3662 = vmatprep.mubr.f32.mxu0 0.0
  %3663 = vmatmul.mubr.f32.gmra.mrb[0].mxu0 %v3177
  %v3664 = vpop.f32.mrb[0].mxu0
  %v3665 = vadd.f32 0.0, %v3664
  %v3666 = vpop.f32.mrb[0].mxu0
  %3667 = vmatprep.mubr.f32.mxu0 0.0
  %3668 = vmatmul.mubr.f32.gmra.mrb[0].mxu0 %v3180
  %v3669 = vpop.f32.mrb[0].mxu0
  %v3670 = vadd.f32 0.0, %v3669
  %v3671 = vpop.f32.mrb[0].mxu0
  %3672 = vmatprep.mubr.f32.mxu0 0.0
  %3673 = vmatmul.mubr.f32.gmra.mrb[0].mxu0 %v3183
  %v3674 = vpop.f32.mrb[0].mxu0
  %v3675 = vadd.f32 0.0, %v3674
  %v3676 = vpop.f32.mrb[0].mxu0
  %3677 = vmatprep.mubr.f32.mxu0 0.0
  %3678 = vmatmul.mubr.f32.gmra.mrb[0].mxu0 %v3186
  %v3679 = vpop.f32.mrb[0].mxu0
  %v3680 = vadd.f32 0.0, %v3679
  %v3681 = vpop.f32.mrb[0].mxu0
  %3682 = vmatprep.mubr.f32.mxu0 0.0
  %3683 = vmatmul.mubr.f32.gmra.mrb[0].mxu0 %v3189
  %v3684 = vpop.f32.mrb[0].mxu0
  %v3685 = vadd.f32 0.0, %v3684
  %v3686 = vpop.f32.mrb[0].mxu0
  %3687 = vmatprep.mubr.f32.mxu0 0.0
  %3688 = vmatmul.mubr.f32.gmra.mrb[0].mxu0 %v3192
  %v3689 = vpop.f32.mrb[0].mxu0
  %v3690 = vadd.f32 0.0, %v3689
  %v3691 = vpop.f32.mrb[0].mxu0
  %3692 = vmatprep.mubr.f32.mxu0 0.0
  %3693 = vmatmul.mubr.f32.gmra.mrb[0].mxu0 %v3195
  %v3694 = vpop.f32.mrb[0].mxu0
  %v3695 = vadd.f32 0.0, %v3694
  %v3696 = vpop.f32.mrb[0].mxu0
  %3697 = vmatprep.mubr.f32.mxu0 0.0
  %3698 = vmatmul.mubr.f32.gmra.mrb[0].mxu0 %v3198
  %v3699 = vpop.f32.mrb[0].mxu0
  %v3700 = vadd.f32 0.0, %v3699
  %v3701 = vpop.f32.mrb[0].mxu0
  %3702 = vmatprep.mubr.f32.mxu0 0.0
  %3703 = vmatmul.mubr.f32.gmra.mrb[0].mxu0 %v3201
  %v3704 = vpop.f32.mrb[0].mxu0
  %v3705 = vadd.f32 0.0, %v3704
  %v3706 = vpop.f32.mrb[0].mxu0
  %3707 = vmatprep.mubr.f32.mxu0 0.0
  %3708 = vmatmul.mubr.f32.gmra.mrb[0].mxu0 %v3204
  %v3709 = vpop.f32.mrb[0].mxu0
  %v3710 = vadd.f32 0.0, %v3709
  %v3711 = vpop.f32.mrb[0].mxu0
  %3712 = vmatprep.mubr.f32.mxu0 0.0
  %3713 = vmatmul.mubr.f32.gmra.mrb[0].mxu0 %v3207
  %v3714 = vpop.f32.mrb[0].mxu0
  %v3715 = vadd.f32 0.0, %v3714
  %v3716 = vpop.f32.mrb[0].mxu0
  %3717 = vmatprep.mubr.f32.mxu0 0.0
  %3718 = vmatmul.mubr.f32.gmra.mrb[0].mxu0 %v3210
  %v3719 = vpop.f32.mrb[0].mxu0
  %v3720 = vadd.f32 0.0, %v3719
  %v3721 = vpop.f32.mrb[0].mxu0
  %3722 = vmatprep.mubr.f32.mxu0 0.0
  %3723 = vmatmul.mubr.f32.gmra.mrb[0].mxu0 %v3213
  %v3724 = vpop.f32.mrb[0].mxu0
  %v3725 = vadd.f32 0.0, %v3724
  %v3726 = vpop.f32.mrb[0].mxu0
  %3727 = vmatprep.mubr.f32.mxu0 0.0
  %3728 = vmatmul.mubr.f32.gmra.mrb[0].mxu0 %v3216
  %v3729 = vpop.f32.mrb[0].mxu0
  %v3730 = vadd.f32 0.0, %v3729
  %v3731 = vpop.f32.mrb[0].mxu0
  %3732 = vmatprep.mubr.f32.mxu0 0.0
  %3733 = vmatmul.mubr.f32.gmra.mrb[0].mxu0 %v3219
  %v3734 = vpop.f32.mrb[0].mxu0
  %v3735 = vadd.f32 0.0, %v3734
  %v3736 = vpop.f32.mrb[0].mxu0
  %3737 = vmatprep.mubr.f32.mxu0 0.0
  %3738 = vmatmul.mubr.f32.gmra.mrb[0].mxu0 %v3222
  %v3739 = vpop.f32.mrb[0].mxu0
  %v3740 = vadd.f32 0.0, %v3739
  %v3741 = vpop.f32.mrb[0].mxu0
  %3742 = vmatprep.mubr.f32.mxu0 0.0
  %3743 = vmatmul.mubr.f32.gmra.mrb[0].mxu0 %v3225
  %v3744 = vpop.f32.mrb[0].mxu0
  %v3745 = vadd.f32 0.0, %v3744
  %v3746 = vpop.f32.mrb[0].mxu0
  %3747 = vmatprep.mubr.f32.mxu0 0.0
  %3748 = vmatmul.mubr.f32.gmra.mrb[0].mxu0 %v3228
  %v3749 = vpop.f32.mrb[0].mxu0
  %v3750 = vadd.f32 0.0, %v3749
  %v3751 = vpop.f32.mrb[0].mxu0
  %3752 = vmatprep.mubr.f32.mxu0 0.0
  %3753 = vmatmul.mubr.f32.gmra.mrb[0].mxu0 %v3231
  %v3754 = vpop.f32.mrb[0].mxu0
  %v3755 = vadd.f32 0.0, %v3754
  %v3756 = vpop.f32.mrb[0].mxu0
  %3757 = vmatprep.mubr.f32.mxu0 0.0
  %3758 = vmatmul.mubr.f32.gmra.mrb[0].mxu0 %v3234
  %v3759 = vpop.f32.mrb[0].mxu0
  %v3760 = vadd.f32 0.0, %v3759
  %v3761 = vpop.f32.mrb[0].mxu0
  %3762 = vmatprep.mubr.f32.mxu0 0.0
  %3763 = vmatmul.mubr.f32.gmra.mrb[0].mxu0 %v3237
  %v3764 = vpop.f32.mrb[0].mxu0
  %v3765 = vadd.f32 0.0, %v3764
  %v3766 = vpop.f32.mrb[0].mxu0
  %3767 = vmatprep.mubr.f32.mxu0 0.0
  %3768 = vmatmul.mubr.f32.gmra.mrb[0].mxu0 %v3240
  %v3769 = vpop.f32.mrb[0].mxu0
  %v3770 = vadd.f32 0.0, %v3769
  %v3771 = vpop.f32.mrb[0].mxu0
  %3772 = vmatprep.mubr.f32.mxu0 0.0
  %3773 = vmatmul.mubr.f32.gmra.mrb[0].mxu0 %v3243
  %v3774 = vpop.f32.mrb[0].mxu0
  %v3775 = vadd.f32 0.0, %v3774
  %v3776 = vpop.f32.mrb[0].mxu0
  %3777 = vmatprep.mubr.f32.mxu0 0.0
  %3778 = vmatmul.mubr.f32.gmra.mrb[0].mxu0 %v3246
  %v3779 = vpop.f32.mrb[0].mxu0
  %v3780 = vadd.f32 0.0, %v3779
  %v3781 = vpop.f32.mrb[0].mxu0
  %3782 = vmatprep.mubr.f32.mxu0 0.0
  %3783 = vmatmul.mubr.f32.gmra.mrb[0].mxu0 %v3249
  %v3784 = vpop.f32.mrb[0].mxu0
  %v3785 = vadd.f32 0.0, %v3784
  %v3786 = vpop.f32.mrb[0].mxu0
  %3787 = vmatprep.mubr.f32.mxu0 0.0
  %3788 = vmatmul.mubr.f32.gmra.mrb[0].mxu0 %v3252
  %v3789 = vpop.f32.mrb[0].mxu0
  %v3790 = vadd.f32 0.0, %v3789
  %v3791 = vpop.f32.mrb[0].mxu0
  %3792 = vmatprep.mubr.f32.mxu0 0.0
  %3793 = vmatmul.mubr.f32.gmra.mrb[0].mxu0 %v3255
  %v3794 = vpop.f32.mrb[0].mxu0
  %v3795 = vadd.f32 0.0, %v3794
  %v3796 = vpop.f32.mrb[0].mxu0
  %3797 = vmatprep.mubr.f32.mxu0 0.0
  %3798 = vmatmul.mubr.f32.gmra.mrb[0].mxu0 %v3258
  %v3799 = vpop.f32.mrb[0].mxu0
  %v3800 = vadd.f32 0.0, %v3799
  %v3801 = vpop.f32.mrb[0].mxu0
  %3802 = vmatprep.mubr.f32.mxu0 0.0
  %3803 = vmatmul.mubr.f32.gmra.mrb[0].mxu0 %v3261
  %v3804 = vpop.f32.mrb[0].mxu0
  %v3805 = vadd.f32 0.0, %v3804
  %v3806 = vpop.f32.mrb[0].mxu0
  %3807 = vdwg.mxu0
  %v3809 = vsel %vm448, %v2970, 0
  %3811 = vmatprep.subr.mxu0 0.0
  %3812 = vmatpush1.msra.mxu0 %v3809
  %3813 = vmatprep.subr.mxu0 0.0
  %3814 = vmatpush1.msra.mxu0 0.0
  %3815 = vmatprep.subr.mxu0 0.0
  %3816 = vmatpush1.msra.mxu0 0.0
  %3817 = vmatprep.subr.mxu0 0.0
  %3818 = vmatpush1.msra.mxu0 0.0
  %3819 = vmatprep.subr.mxu0 0.0
  %3820 = vmatpush1.msra.mxu0 0.0
  %3821 = vmatprep.subr.mxu0 0.0
  %3822 = vmatpush1.msra.mxu0 0.0
  %3823 = vmatprep.subr.mxu0 0.0
  %3824 = vmatpush1.msra.mxu0 0.0
  %3825 = vmatprep.subr.mxu0 0.0
  %3826 = vmatpush1.msra.mxu0 0.0
  %3827 = vmatprep.subr.mxu0 0.0
  %3828 = vmatpush1.msra.mxu0 0.0
  %3829 = vmatprep.subr.mxu0 0.0
  %3830 = vmatpush1.msra.mxu0 0.0
  %3831 = vmatprep.subr.mxu0 0.0
  %3832 = vmatpush1.msra.mxu0 0.0
  %3833 = vmatprep.subr.mxu0 0.0
  %3834 = vmatpush1.msra.mxu0 0.0
  %3835 = vmatprep.subr.mxu0 0.0
  %3836 = vmatpush1.msra.mxu0 0.0
  %3837 = vmatprep.subr.mxu0 0.0
  %3838 = vmatpush1.msra.mxu0 0.0
  %3839 = vmatprep.subr.mxu0 0.0
  %3840 = vmatpush1.msra.mxu0 0.0
  %3841 = vmatprep.subr.mxu0 0.0
  %3842 = vmatpush1.msra.mxu0 0.0
  %3843 = vmatprep.subr.mxu0 0.0
  %3844 = vmatpush1.msra.mxu0 0.0
  %3845 = vmatprep.subr.mxu0 0.0
  %3846 = vmatpush1.msra.mxu0 0.0
  %3847 = vmatprep.subr.mxu0 0.0
  %3848 = vmatpush1.msra.mxu0 0.0
  %3849 = vmatprep.subr.mxu0 0.0
  %3850 = vmatpush1.msra.mxu0 0.0
  %3851 = vmatprep.subr.mxu0 0.0
  %3852 = vmatpush1.msra.mxu0 0.0
  %3853 = vmatprep.subr.mxu0 0.0
  %3854 = vmatpush1.msra.mxu0 0.0
  %3855 = vmatprep.subr.mxu0 0.0
  %3856 = vmatpush1.msra.mxu0 0.0
  %3857 = vmatprep.subr.mxu0 0.0
  %3858 = vmatpush1.msra.mxu0 0.0
  %3859 = vmatprep.subr.mxu0 0.0
  %3860 = vmatpush1.msra.mxu0 0.0
  %3861 = vmatprep.subr.mxu0 0.0
  %3862 = vmatpush1.msra.mxu0 0.0
  %3863 = vmatprep.subr.mxu0 0.0
  %3864 = vmatpush1.msra.mxu0 0.0
  %3865 = vmatprep.subr.mxu0 0.0
  %3866 = vmatpush1.msra.mxu0 0.0
  %3867 = vmatprep.subr.mxu0 0.0
  %3868 = vmatpush1.msra.mxu0 0.0
  %3869 = vmatprep.subr.mxu0 0.0
  %3870 = vmatpush1.msra.mxu0 0.0
  %3871 = vmatprep.subr.mxu0 0.0
  %3872 = vmatpush1.msra.mxu0 0.0
  %3873 = vmatprep.subr.mxu0 0.0
  %3874 = vmatpush1.msra.mxu0 0.0
  %3875 = vmatprep.mubr.f32.mxu0 0.0
  %3876 = vmatmul.mubr.f32.gmra.mrb[0].mxu0 %v161
  %v3877 = vpop.f32.mrb[0].mxu0
  %v3878 = vadd.f32 %v3330, %v3877
  %v3879 = vpop.f32.mrb[0].mxu0
  %3880 = vmatprep.mubr.f32.mxu0 0.0
  %3881 = vmatmul.mubr.f32.gmra.mrb[0].mxu0 %v164
  %v3882 = vpop.f32.mrb[0].mxu0
  %v3883 = vadd.f32 %v3335, %v3882
  %v3884 = vpop.f32.mrb[0].mxu0
  %3885 = vmatprep.mubr.f32.mxu0 0.0
  %3886 = vmatmul.mubr.f32.gmra.mrb[0].mxu0 %v167
  %v3887 = vpop.f32.mrb[0].mxu0
  %v3888 = vadd.f32 %v3340, %v3887
  %v3889 = vpop.f32.mrb[0].mxu0
  %3890 = vmatprep.mubr.f32.mxu0 0.0
  %3891 = vmatmul.mubr.f32.gmra.mrb[0].mxu0 %v170
  %v3892 = vpop.f32.mrb[0].mxu0
  %v3893 = vadd.f32 %v3345, %v3892
  %v3894 = vpop.f32.mrb[0].mxu0
  %3895 = vmatprep.mubr.f32.mxu0 0.0
  %3896 = vmatmul.mubr.f32.gmra.mrb[0].mxu0 %v173
  %v3897 = vpop.f32.mrb[0].mxu0
  %v3898 = vadd.f32 %v3350, %v3897
  %v3899 = vpop.f32.mrb[0].mxu0
  %3900 = vmatprep.mubr.f32.mxu0 0.0
  %3901 = vmatmul.mubr.f32.gmra.mrb[0].mxu0 %v176
  %v3902 = vpop.f32.mrb[0].mxu0
  %v3903 = vadd.f32 %v3355, %v3902
  %v3904 = vpop.f32.mrb[0].mxu0
  %3905 = vmatprep.mubr.f32.mxu0 0.0
  %3906 = vmatmul.mubr.f32.gmra.mrb[0].mxu0 %v179
  %v3907 = vpop.f32.mrb[0].mxu0
  %v3908 = vadd.f32 %v3360, %v3907
  %v3909 = vpop.f32.mrb[0].mxu0
  %3910 = vmatprep.mubr.f32.mxu0 0.0
  %3911 = vmatmul.mubr.f32.gmra.mrb[0].mxu0 %v182
  %v3912 = vpop.f32.mrb[0].mxu0
  %v3913 = vadd.f32 %v3365, %v3912
  %v3914 = vpop.f32.mrb[0].mxu0
  %3915 = vmatprep.mubr.f32.mxu0 0.0
  %3916 = vmatmul.mubr.f32.gmra.mrb[0].mxu0 %v185
  %v3917 = vpop.f32.mrb[0].mxu0
  %v3918 = vadd.f32 %v3370, %v3917
  %v3919 = vpop.f32.mrb[0].mxu0
  %3920 = vmatprep.mubr.f32.mxu0 0.0
  %3921 = vmatmul.mubr.f32.gmra.mrb[0].mxu0 %v188
  %v3922 = vpop.f32.mrb[0].mxu0
  %v3923 = vadd.f32 %v3375, %v3922
  %v3924 = vpop.f32.mrb[0].mxu0
  %3925 = vmatprep.mubr.f32.mxu0 0.0
  %3926 = vmatmul.mubr.f32.gmra.mrb[0].mxu0 %v191
  %v3927 = vpop.f32.mrb[0].mxu0
  %v3928 = vadd.f32 %v3380, %v3927
  %v3929 = vpop.f32.mrb[0].mxu0
  %3930 = vmatprep.mubr.f32.mxu0 0.0
  %3931 = vmatmul.mubr.f32.gmra.mrb[0].mxu0 %v194
  %v3932 = vpop.f32.mrb[0].mxu0
  %v3933 = vadd.f32 %v3385, %v3932
  %v3934 = vpop.f32.mrb[0].mxu0
  %3935 = vmatprep.mubr.f32.mxu0 0.0
  %3936 = vmatmul.mubr.f32.gmra.mrb[0].mxu0 %v197
  %v3937 = vpop.f32.mrb[0].mxu0
  %v3938 = vadd.f32 %v3390, %v3937
  %v3939 = vpop.f32.mrb[0].mxu0
  %3940 = vmatprep.mubr.f32.mxu0 0.0
  %3941 = vmatmul.mubr.f32.gmra.mrb[0].mxu0 %v200
  %v3942 = vpop.f32.mrb[0].mxu0
  %v3943 = vadd.f32 %v3395, %v3942
  %v3944 = vpop.f32.mrb[0].mxu0
  %3945 = vmatprep.mubr.f32.mxu0 0.0
  %3946 = vmatmul.mubr.f32.gmra.mrb[0].mxu0 %v203
  %v3947 = vpop.f32.mrb[0].mxu0
  %v3948 = vadd.f32 %v3400, %v3947
  %v3949 = vpop.f32.mrb[0].mxu0
  %3950 = vmatprep.mubr.f32.mxu0 0.0
  %3951 = vmatmul.mubr.f32.gmra.mrb[0].mxu0 %v206
  %v3952 = vpop.f32.mrb[0].mxu0
  %v3953 = vadd.f32 %v3405, %v3952
  %v3954 = vpop.f32.mrb[0].mxu0
  %3955 = vmatprep.mubr.f32.mxu0 0.0
  %3956 = vmatmul.mubr.f32.gmra.mrb[0].mxu0 %v209
  %v3957 = vpop.f32.mrb[0].mxu0
  %v3958 = vadd.f32 %v3410, %v3957
  %v3959 = vpop.f32.mrb[0].mxu0
  %3960 = vmatprep.mubr.f32.mxu0 0.0
  %3961 = vmatmul.mubr.f32.gmra.mrb[0].mxu0 %v212
  %v3962 = vpop.f32.mrb[0].mxu0
  %v3963 = vadd.f32 %v3415, %v3962
  %v3964 = vpop.f32.mrb[0].mxu0
  %3965 = vmatprep.mubr.f32.mxu0 0.0
  %3966 = vmatmul.mubr.f32.gmra.mrb[0].mxu0 %v215
  %v3967 = vpop.f32.mrb[0].mxu0
  %v3968 = vadd.f32 %v3420, %v3967
  %v3969 = vpop.f32.mrb[0].mxu0
  %3970 = vmatprep.mubr.f32.mxu0 0.0
  %3971 = vmatmul.mubr.f32.gmra.mrb[0].mxu0 %v218
  %v3972 = vpop.f32.mrb[0].mxu0
  %v3973 = vadd.f32 %v3425, %v3972
  %v3974 = vpop.f32.mrb[0].mxu0
  %3975 = vmatprep.mubr.f32.mxu0 0.0
  %3976 = vmatmul.mubr.f32.gmra.mrb[0].mxu0 %v221
  %v3977 = vpop.f32.mrb[0].mxu0
  %v3978 = vadd.f32 %v3430, %v3977
  %v3979 = vpop.f32.mrb[0].mxu0
  %3980 = vmatprep.mubr.f32.mxu0 0.0
  %3981 = vmatmul.mubr.f32.gmra.mrb[0].mxu0 %v224
  %v3982 = vpop.f32.mrb[0].mxu0
  %v3983 = vadd.f32 %v3435, %v3982
  %v3984 = vpop.f32.mrb[0].mxu0
  %3985 = vmatprep.mubr.f32.mxu0 0.0
  %3986 = vmatmul.mubr.f32.gmra.mrb[0].mxu0 %v227
  %v3987 = vpop.f32.mrb[0].mxu0
  %v3988 = vadd.f32 %v3440, %v3987
  %v3989 = vpop.f32.mrb[0].mxu0
  %3990 = vmatprep.mubr.f32.mxu0 0.0
  %3991 = vmatmul.mubr.f32.gmra.mrb[0].mxu0 %v230
  %v3992 = vpop.f32.mrb[0].mxu0
  %v3993 = vadd.f32 %v3445, %v3992
  %v3994 = vpop.f32.mrb[0].mxu0
  %3995 = vmatprep.mubr.f32.mxu0 0.0
  %3996 = vmatmul.mubr.f32.gmra.mrb[0].mxu0 %v233
  %v3997 = vpop.f32.mrb[0].mxu0
  %v3998 = vadd.f32 %v3450, %v3997
  %v3999 = vpop.f32.mrb[0].mxu0
  %4000 = vmatprep.mubr.f32.mxu0 0.0
  %4001 = vmatmul.mubr.f32.gmra.mrb[0].mxu0 %v236
  %v4002 = vpop.f32.mrb[0].mxu0
  %v4003 = vadd.f32 %v3455, %v4002
  %v4004 = vpop.f32.mrb[0].mxu0
  %4005 = vmatprep.mubr.f32.mxu0 0.0
  %4006 = vmatmul.mubr.f32.gmra.mrb[0].mxu0 %v239
  %v4007 = vpop.f32.mrb[0].mxu0
  %v4008 = vadd.f32 %v3460, %v4007
  %v4009 = vpop.f32.mrb[0].mxu0
  %4010 = vmatprep.mubr.f32.mxu0 0.0
  %4011 = vmatmul.mubr.f32.gmra.mrb[0].mxu0 %v242
  %v4012 = vpop.f32.mrb[0].mxu0
  %v4013 = vadd.f32 %v3465, %v4012
  %v4014 = vpop.f32.mrb[0].mxu0
  %4015 = vmatprep.mubr.f32.mxu0 0.0
  %4016 = vmatmul.mubr.f32.gmra.mrb[0].mxu0 %v245
  %v4017 = vpop.f32.mrb[0].mxu0
  %v4018 = vadd.f32 %v3470, %v4017
  %v4019 = vpop.f32.mrb[0].mxu0
  %4020 = vmatprep.mubr.f32.mxu0 0.0
  %4021 = vmatmul.mubr.f32.gmra.mrb[0].mxu0 %v248
  %v4022 = vpop.f32.mrb[0].mxu0
  %v4023 = vadd.f32 %v3475, %v4022
  %v4024 = vpop.f32.mrb[0].mxu0
  %4025 = vmatprep.mubr.f32.mxu0 0.0
  %4026 = vmatmul.mubr.f32.gmra.mrb[0].mxu0 %v251
  %v4027 = vpop.f32.mrb[0].mxu0
  %v4028 = vadd.f32 %v3480, %v4027
  %v4029 = vpop.f32.mrb[0].mxu0
  %4030 = vmatprep.mubr.f32.mxu0 0.0
  %4031 = vmatmul.mubr.f32.gmra.mrb[0].mxu0 %v254
  %v4032 = vpop.f32.mrb[0].mxu0
  %v4033 = vadd.f32 %v3485, %v4032
  %v4034 = vpop.f32.mrb[0].mxu0
  %4035 = vmatprep.mubr.f32.mxu0 0.0
  %4036 = vmatmul.mubr.f32.gmra.mrb[0].mxu0 %v257
  %v4037 = vpop.f32.mrb[0].mxu0
  %v4038 = vadd.f32 %v3490, %v4037
  %v4039 = vpop.f32.mrb[0].mxu0
  %4040 = vmatprep.mubr.f32.mxu0 0.0
  %4041 = vmatmul.mubr.f32.gmra.mrb[0].mxu0 %v260
  %v4042 = vpop.f32.mrb[0].mxu0
  %v4043 = vadd.f32 %v3495, %v4042
  %v4044 = vpop.f32.mrb[0].mxu0
  %4045 = vmatprep.mubr.f32.mxu0 0.0
  %4046 = vmatmul.mubr.f32.gmra.mrb[0].mxu0 %v263
  %v4047 = vpop.f32.mrb[0].mxu0
  %v4048 = vadd.f32 %v3500, %v4047
  %v4049 = vpop.f32.mrb[0].mxu0
  %4050 = vmatprep.mubr.f32.mxu0 0.0
  %4051 = vmatmul.mubr.f32.gmra.mrb[0].mxu0 %v266
  %v4052 = vpop.f32.mrb[0].mxu0
  %v4053 = vadd.f32 %v3505, %v4052
  %v4054 = vpop.f32.mrb[0].mxu0
  %4055 = vmatprep.mubr.f32.mxu0 0.0
  %4056 = vmatmul.mubr.f32.gmra.mrb[0].mxu0 %v269
  %v4057 = vpop.f32.mrb[0].mxu0
  %v4058 = vadd.f32 %v3510, %v4057
  %v4059 = vpop.f32.mrb[0].mxu0
  %4060 = vmatprep.mubr.f32.mxu0 0.0
  %4061 = vmatmul.mubr.f32.gmra.mrb[0].mxu0 %v272
  %v4062 = vpop.f32.mrb[0].mxu0
  %v4063 = vadd.f32 %v3515, %v4062
  %v4064 = vpop.f32.mrb[0].mxu0
  %4065 = vmatprep.mubr.f32.mxu0 0.0
  %4066 = vmatmul.mubr.f32.gmra.mrb[0].mxu0 %v275
  %v4067 = vpop.f32.mrb[0].mxu0
  %v4068 = vadd.f32 %v3520, %v4067
  %v4069 = vpop.f32.mrb[0].mxu0
  %4070 = vmatprep.mubr.f32.mxu0 0.0
  %4071 = vmatmul.mubr.f32.gmra.mrb[0].mxu0 %v278
  %v4072 = vpop.f32.mrb[0].mxu0
  %v4073 = vadd.f32 %v3525, %v4072
  %v4074 = vpop.f32.mrb[0].mxu0
  %4075 = vmatprep.mubr.f32.mxu0 0.0
  %4076 = vmatmul.mubr.f32.gmra.mrb[0].mxu0 %v281
  %v4077 = vpop.f32.mrb[0].mxu0
  %v4078 = vadd.f32 %v3530, %v4077
  %v4079 = vpop.f32.mrb[0].mxu0
  %4080 = vmatprep.mubr.f32.mxu0 0.0
  %4081 = vmatmul.mubr.f32.gmra.mrb[0].mxu0 %v284
  %v4082 = vpop.f32.mrb[0].mxu0
  %v4083 = vadd.f32 %v3535, %v4082
  %v4084 = vpop.f32.mrb[0].mxu0
  %4085 = vmatprep.mubr.f32.mxu0 0.0
  %4086 = vmatmul.mubr.f32.gmra.mrb[0].mxu0 %v287
  %v4087 = vpop.f32.mrb[0].mxu0
  %v4088 = vadd.f32 %v3540, %v4087
  %v4089 = vpop.f32.mrb[0].mxu0
  %4090 = vmatprep.mubr.f32.mxu0 0.0
  %4091 = vmatmul.mubr.f32.gmra.mrb[0].mxu0 %v290
  %v4092 = vpop.f32.mrb[0].mxu0
  %v4093 = vadd.f32 %v3545, %v4092
  %v4094 = vpop.f32.mrb[0].mxu0
  %4095 = vmatprep.mubr.f32.mxu0 0.0
  %4096 = vmatmul.mubr.f32.gmra.mrb[0].mxu0 %v293
  %v4097 = vpop.f32.mrb[0].mxu0
  %v4098 = vadd.f32 %v3550, %v4097
  %v4099 = vpop.f32.mrb[0].mxu0
  %4100 = vmatprep.mubr.f32.mxu0 0.0
  %4101 = vmatmul.mubr.f32.gmra.mrb[0].mxu0 %v296
  %v4102 = vpop.f32.mrb[0].mxu0
  %v4103 = vadd.f32 %v3555, %v4102
  %v4104 = vpop.f32.mrb[0].mxu0
  %4105 = vmatprep.mubr.f32.mxu0 0.0
  %4106 = vmatmul.mubr.f32.gmra.mrb[0].mxu0 %v299
  %v4107 = vpop.f32.mrb[0].mxu0
  %v4108 = vadd.f32 %v3560, %v4107
  %v4109 = vpop.f32.mrb[0].mxu0
  %4110 = vmatprep.mubr.f32.mxu0 0.0
  %4111 = vmatmul.mubr.f32.gmra.mrb[0].mxu0 %v302
  %v4112 = vpop.f32.mrb[0].mxu0
  %v4113 = vadd.f32 %v3565, %v4112
  %v4114 = vpop.f32.mrb[0].mxu0
  %4115 = vmatprep.mubr.f32.mxu0 0.0
  %4116 = vmatmul.mubr.f32.gmra.mrb[0].mxu0 %v305
  %v4117 = vpop.f32.mrb[0].mxu0
  %v4118 = vadd.f32 %v3570, %v4117
  %v4119 = vpop.f32.mrb[0].mxu0
  %4120 = vmatprep.mubr.f32.mxu0 0.0
  %4121 = vmatmul.mubr.f32.gmra.mrb[0].mxu0 %v308
  %v4122 = vpop.f32.mrb[0].mxu0
  %v4123 = vadd.f32 %v3575, %v4122
  %v4124 = vpop.f32.mrb[0].mxu0
  %4125 = vmatprep.mubr.f32.mxu0 0.0
  %4126 = vmatmul.mubr.f32.gmra.mrb[0].mxu0 %v311
  %v4127 = vpop.f32.mrb[0].mxu0
  %v4128 = vadd.f32 %v3580, %v4127
  %v4129 = vpop.f32.mrb[0].mxu0
  %4130 = vmatprep.mubr.f32.mxu0 0.0
  %4131 = vmatmul.mubr.f32.gmra.mrb[0].mxu0 %v314
  %v4132 = vpop.f32.mrb[0].mxu0
  %v4133 = vadd.f32 %v3585, %v4132
  %v4134 = vpop.f32.mrb[0].mxu0
  %4135 = vmatprep.mubr.f32.mxu0 0.0
  %4136 = vmatmul.mubr.f32.gmra.mrb[0].mxu0 %v317
  %v4137 = vpop.f32.mrb[0].mxu0
  %v4138 = vadd.f32 %v3590, %v4137
  %v4139 = vpop.f32.mrb[0].mxu0
  %4140 = vmatprep.mubr.f32.mxu0 0.0
  %4141 = vmatmul.mubr.f32.gmra.mrb[0].mxu0 %v320
  %v4142 = vpop.f32.mrb[0].mxu0
  %v4143 = vadd.f32 %v3595, %v4142
  %v4144 = vpop.f32.mrb[0].mxu0
  %4145 = vmatprep.mubr.f32.mxu0 0.0
  %4146 = vmatmul.mubr.f32.gmra.mrb[0].mxu0 %v323
  %v4147 = vpop.f32.mrb[0].mxu0
  %v4148 = vadd.f32 %v3600, %v4147
  %v4149 = vpop.f32.mrb[0].mxu0
  %4150 = vmatprep.mubr.f32.mxu0 0.0
  %4151 = vmatmul.mubr.f32.gmra.mrb[0].mxu0 %v326
  %v4152 = vpop.f32.mrb[0].mxu0
  %v4153 = vadd.f32 %v3605, %v4152
  %v4154 = vpop.f32.mrb[0].mxu0
  %4155 = vmatprep.mubr.f32.mxu0 0.0
  %4156 = vmatmul.mubr.f32.gmra.mrb[0].mxu0 %v329
  %v4157 = vpop.f32.mrb[0].mxu0
  %v4158 = vadd.f32 %v3610, %v4157
  %v4159 = vpop.f32.mrb[0].mxu0
  %4160 = vmatprep.mubr.f32.mxu0 0.0
  %4161 = vmatmul.mubr.f32.gmra.mrb[0].mxu0 %v332
  %v4162 = vpop.f32.mrb[0].mxu0
  %v4163 = vadd.f32 %v3615, %v4162
  %v4164 = vpop.f32.mrb[0].mxu0
  %4165 = vmatprep.mubr.f32.mxu0 0.0
  %4166 = vmatmul.mubr.f32.gmra.mrb[0].mxu0 %v335
  %v4167 = vpop.f32.mrb[0].mxu0
  %v4168 = vadd.f32 %v3620, %v4167
  %v4169 = vpop.f32.mrb[0].mxu0
  %4170 = vmatprep.mubr.f32.mxu0 0.0
  %4171 = vmatmul.mubr.f32.gmra.mrb[0].mxu0 %v338
  %v4172 = vpop.f32.mrb[0].mxu0
  %v4173 = vadd.f32 %v3625, %v4172
  %v4174 = vpop.f32.mrb[0].mxu0
  %4175 = vmatprep.mubr.f32.mxu0 0.0
  %4176 = vmatmul.mubr.f32.gmra.mrb[0].mxu0 %v341
  %v4177 = vpop.f32.mrb[0].mxu0
  %v4178 = vadd.f32 %v3630, %v4177
  %v4179 = vpop.f32.mrb[0].mxu0
  %4180 = vmatprep.mubr.f32.mxu0 0.0
  %4181 = vmatmul.mubr.f32.gmra.mrb[0].mxu0 %v344
  %v4182 = vpop.f32.mrb[0].mxu0
  %v4183 = vadd.f32 %v3635, %v4182
  %v4184 = vpop.f32.mrb[0].mxu0
  %4185 = vmatprep.mubr.f32.mxu0 0.0
  %4186 = vmatmul.mubr.f32.gmra.mrb[0].mxu0 %v347
  %v4187 = vpop.f32.mrb[0].mxu0
  %v4188 = vadd.f32 %v3640, %v4187
  %v4189 = vpop.f32.mrb[0].mxu0
  %4190 = vmatprep.mubr.f32.mxu0 0.0
  %4191 = vmatmul.mubr.f32.gmra.mrb[0].mxu0 %v350
  %v4192 = vpop.f32.mrb[0].mxu0
  %v4193 = vadd.f32 %v3645, %v4192
  %v4194 = vpop.f32.mrb[0].mxu0
  %4195 = vmatprep.mubr.f32.mxu0 0.0
  %4196 = vmatmul.mubr.f32.gmra.mrb[0].mxu0 %v353
  %v4197 = vpop.f32.mrb[0].mxu0
  %v4198 = vadd.f32 %v3650, %v4197
  %v4199 = vpop.f32.mrb[0].mxu0
  %4200 = vmatprep.mubr.f32.mxu0 0.0
  %4201 = vmatmul.mubr.f32.gmra.mrb[0].mxu0 %v356
  %v4202 = vpop.f32.mrb[0].mxu0
  %v4203 = vadd.f32 %v3655, %v4202
  %v4204 = vpop.f32.mrb[0].mxu0
  %4205 = vmatprep.mubr.f32.mxu0 0.0
  %4206 = vmatmul.mubr.f32.gmra.mrb[0].mxu0 %v359
  %v4207 = vpop.f32.mrb[0].mxu0
  %v4208 = vadd.f32 %v3660, %v4207
  %v4209 = vpop.f32.mrb[0].mxu0
  %4210 = vmatprep.mubr.f32.mxu0 0.0
  %4211 = vmatmul.mubr.f32.gmra.mrb[0].mxu0 %v362
  %v4212 = vpop.f32.mrb[0].mxu0
  %v4213 = vadd.f32 %v3665, %v4212
  %v4214 = vpop.f32.mrb[0].mxu0
  %4215 = vmatprep.mubr.f32.mxu0 0.0
  %4216 = vmatmul.mubr.f32.gmra.mrb[0].mxu0 %v365
  %v4217 = vpop.f32.mrb[0].mxu0
  %v4218 = vadd.f32 %v3670, %v4217
  %v4219 = vpop.f32.mrb[0].mxu0
  %4220 = vmatprep.mubr.f32.mxu0 0.0
  %4221 = vmatmul.mubr.f32.gmra.mrb[0].mxu0 %v368
  %v4222 = vpop.f32.mrb[0].mxu0
  %v4223 = vadd.f32 %v3675, %v4222
  %v4224 = vpop.f32.mrb[0].mxu0
  %4225 = vmatprep.mubr.f32.mxu0 0.0
  %4226 = vmatmul.mubr.f32.gmra.mrb[0].mxu0 %v371
  %v4227 = vpop.f32.mrb[0].mxu0
  %v4228 = vadd.f32 %v3680, %v4227
  %v4229 = vpop.f32.mrb[0].mxu0
  %4230 = vmatprep.mubr.f32.mxu0 0.0
  %4231 = vmatmul.mubr.f32.gmra.mrb[0].mxu0 %v374
  %v4232 = vpop.f32.mrb[0].mxu0
  %v4233 = vadd.f32 %v3685, %v4232
  %v4234 = vpop.f32.mrb[0].mxu0
  %4235 = vmatprep.mubr.f32.mxu0 0.0
  %4236 = vmatmul.mubr.f32.gmra.mrb[0].mxu0 %v377
  %v4237 = vpop.f32.mrb[0].mxu0
  %v4238 = vadd.f32 %v3690, %v4237
  %v4239 = vpop.f32.mrb[0].mxu0
  %4240 = vmatprep.mubr.f32.mxu0 0.0
  %4241 = vmatmul.mubr.f32.gmra.mrb[0].mxu0 %v380
  %v4242 = vpop.f32.mrb[0].mxu0
  %v4243 = vadd.f32 %v3695, %v4242
  %v4244 = vpop.f32.mrb[0].mxu0
  %4245 = vmatprep.mubr.f32.mxu0 0.0
  %4246 = vmatmul.mubr.f32.gmra.mrb[0].mxu0 %v383
  %v4247 = vpop.f32.mrb[0].mxu0
  %v4248 = vadd.f32 %v3700, %v4247
  %v4249 = vpop.f32.mrb[0].mxu0
  %4250 = vmatprep.mubr.f32.mxu0 0.0
  %4251 = vmatmul.mubr.f32.gmra.mrb[0].mxu0 %v386
  %v4252 = vpop.f32.mrb[0].mxu0
  %v4253 = vadd.f32 %v3705, %v4252
  %v4254 = vpop.f32.mrb[0].mxu0
  %4255 = vmatprep.mubr.f32.mxu0 0.0
  %4256 = vmatmul.mubr.f32.gmra.mrb[0].mxu0 %v389
  %v4257 = vpop.f32.mrb[0].mxu0
  %v4258 = vadd.f32 %v3710, %v4257
  %v4259 = vpop.f32.mrb[0].mxu0
  %4260 = vmatprep.mubr.f32.mxu0 0.0
  %4261 = vmatmul.mubr.f32.gmra.mrb[0].mxu0 %v392
  %v4262 = vpop.f32.mrb[0].mxu0
  %v4263 = vadd.f32 %v3715, %v4262
  %v4264 = vpop.f32.mrb[0].mxu0
  %4265 = vmatprep.mubr.f32.mxu0 0.0
  %4266 = vmatmul.mubr.f32.gmra.mrb[0].mxu0 %v395
  %v4267 = vpop.f32.mrb[0].mxu0
  %v4268 = vadd.f32 %v3720, %v4267
  %v4269 = vpop.f32.mrb[0].mxu0
  %4270 = vmatprep.mubr.f32.mxu0 0.0
  %4271 = vmatmul.mubr.f32.gmra.mrb[0].mxu0 %v398
  %v4272 = vpop.f32.mrb[0].mxu0
  %v4273 = vadd.f32 %v3725, %v4272
  %v4274 = vpop.f32.mrb[0].mxu0
  %4275 = vmatprep.mubr.f32.mxu0 0.0
  %4276 = vmatmul.mubr.f32.gmra.mrb[0].mxu0 %v401
  %v4277 = vpop.f32.mrb[0].mxu0
  %v4278 = vadd.f32 %v3730, %v4277
  %v4279 = vpop.f32.mrb[0].mxu0
  %4280 = vmatprep.mubr.f32.mxu0 0.0
  %4281 = vmatmul.mubr.f32.gmra.mrb[0].mxu0 %v404
  %v4282 = vpop.f32.mrb[0].mxu0
  %v4283 = vadd.f32 %v3735, %v4282
  %v4284 = vpop.f32.mrb[0].mxu0
  %4285 = vmatprep.mubr.f32.mxu0 0.0
  %4286 = vmatmul.mubr.f32.gmra.mrb[0].mxu0 %v407
  %v4287 = vpop.f32.mrb[0].mxu0
  %v4288 = vadd.f32 %v3740, %v4287
  %v4289 = vpop.f32.mrb[0].mxu0
  %4290 = vmatprep.mubr.f32.mxu0 0.0
  %4291 = vmatmul.mubr.f32.gmra.mrb[0].mxu0 %v410
  %v4292 = vpop.f32.mrb[0].mxu0
  %v4293 = vadd.f32 %v3745, %v4292
  %v4294 = vpop.f32.mrb[0].mxu0
  %4295 = vmatprep.mubr.f32.mxu0 0.0
  %4296 = vmatmul.mubr.f32.gmra.mrb[0].mxu0 %v413
  %v4297 = vpop.f32.mrb[0].mxu0
  %v4298 = vadd.f32 %v3750, %v4297
  %v4299 = vpop.f32.mrb[0].mxu0
  %4300 = vmatprep.mubr.f32.mxu0 0.0
  %4301 = vmatmul.mubr.f32.gmra.mrb[0].mxu0 %v416
  %v4302 = vpop.f32.mrb[0].mxu0
  %v4303 = vadd.f32 %v3755, %v4302
  %v4304 = vpop.f32.mrb[0].mxu0
  %4305 = vmatprep.mubr.f32.mxu0 0.0
  %4306 = vmatmul.mubr.f32.gmra.mrb[0].mxu0 %v419
  %v4307 = vpop.f32.mrb[0].mxu0
  %v4308 = vadd.f32 %v3760, %v4307
  %v4309 = vpop.f32.mrb[0].mxu0
  %4310 = vmatprep.mubr.f32.mxu0 0.0
  %4311 = vmatmul.mubr.f32.gmra.mrb[0].mxu0 %v422
  %v4312 = vpop.f32.mrb[0].mxu0
  %v4313 = vadd.f32 %v3765, %v4312
  %v4314 = vpop.f32.mrb[0].mxu0
  %4315 = vmatprep.mubr.f32.mxu0 0.0
  %4316 = vmatmul.mubr.f32.gmra.mrb[0].mxu0 %v425
  %v4317 = vpop.f32.mrb[0].mxu0
  %v4318 = vadd.f32 %v3770, %v4317
  %v4319 = vpop.f32.mrb[0].mxu0
  %4320 = vmatprep.mubr.f32.mxu0 0.0
  %4321 = vmatmul.mubr.f32.gmra.mrb[0].mxu0 %v428
  %v4322 = vpop.f32.mrb[0].mxu0
  %v4323 = vadd.f32 %v3775, %v4322
  %v4324 = vpop.f32.mrb[0].mxu0
  %4325 = vmatprep.mubr.f32.mxu0 0.0
  %4326 = vmatmul.mubr.f32.gmra.mrb[0].mxu0 %v431
  %v4327 = vpop.f32.mrb[0].mxu0
  %v4328 = vadd.f32 %v3780, %v4327
  %v4329 = vpop.f32.mrb[0].mxu0
  %4330 = vmatprep.mubr.f32.mxu0 0.0
  %4331 = vmatmul.mubr.f32.gmra.mrb[0].mxu0 %v434
  %v4332 = vpop.f32.mrb[0].mxu0
  %v4333 = vadd.f32 %v3785, %v4332
  %v4334 = vpop.f32.mrb[0].mxu0
  %4335 = vmatprep.mubr.f32.mxu0 0.0
  %4336 = vmatmul.mubr.f32.gmra.mrb[0].mxu0 %v437
  %v4337 = vpop.f32.mrb[0].mxu0
  %v4338 = vadd.f32 %v3790, %v4337
  %v4339 = vpop.f32.mrb[0].mxu0
  %4340 = vmatprep.mubr.f32.mxu0 0.0
  %4341 = vmatmul.mubr.f32.gmra.mrb[0].mxu0 %v440
  %v4342 = vpop.f32.mrb[0].mxu0
  %v4343 = vadd.f32 %v3795, %v4342
  %v4344 = vpop.f32.mrb[0].mxu0
  %4345 = vmatprep.mubr.f32.mxu0 0.0
  %4346 = vmatmul.mubr.f32.gmra.mrb[0].mxu0 %v443
  %v4347 = vpop.f32.mrb[0].mxu0
  %v4348 = vadd.f32 %v3800, %v4347
  %v4349 = vpop.f32.mrb[0].mxu0
  %4350 = vmatprep.mubr.f32.mxu0 0.0
  %4351 = vmatmul.mubr.f32.gmra.mrb[0].mxu0 %v446
  %v4352 = vpop.f32.mrb[0].mxu0
  %v4353 = vadd.f32 %v3805, %v4352
  %v4354 = vpop.f32.mrb[0].mxu0
  %4355 = vdwg.mxu0
  %v4356 = vld [vmem:[%s9] sm:$0x1]
  %v4358 = vlaneseq
  %v4359 = vshrl.u32 %v4358, 7
  %v4360 = vsub.s32 0, %v4359
  %v4361 = vrot.slane %v4356, %v4360
  %v4363 = vadd.f32 %v3878, %v4361
  %v4364 = vadd.f32 %v3883, %v4361
  %v4365 = vadd.f32 %v3888, %v4361
  %v4366 = vadd.f32 %v3893, %v4361
  %v4367 = vadd.f32 %v3898, %v4361
  %v4368 = vadd.f32 %v3903, %v4361
  %v4369 = vadd.f32 %v3908, %v4361
  %v4370 = vadd.f32 %v3913, %v4361
  %v4371 = vadd.f32 %v3918, %v4361
  %v4372 = vadd.f32 %v3923, %v4361
  %v4373 = vadd.f32 %v3928, %v4361
  %v4374 = vadd.f32 %v3933, %v4361
  %v4375 = vadd.f32 %v3938, %v4361
  %v4376 = vadd.f32 %v3943, %v4361
  %v4377 = vadd.f32 %v3948, %v4361
  %v4378 = vadd.f32 %v3953, %v4361
  %v4379 = vadd.f32 %v3958, %v4361
  %v4380 = vadd.f32 %v3963, %v4361
  %v4381 = vadd.f32 %v3968, %v4361
  %v4382 = vadd.f32 %v3973, %v4361
  %v4383 = vadd.f32 %v3978, %v4361
  %v4384 = vadd.f32 %v3983, %v4361
  %v4385 = vadd.f32 %v3988, %v4361
  %v4386 = vadd.f32 %v3993, %v4361
  %v4387 = vadd.f32 %v3998, %v4361
  %v4388 = vadd.f32 %v4003, %v4361
  %v4389 = vadd.f32 %v4008, %v4361
  %v4390 = vadd.f32 %v4013, %v4361
  %v4391 = vadd.f32 %v4018, %v4361
  %v4392 = vadd.f32 %v4023, %v4361
  %v4393 = vadd.f32 %v4028, %v4361
  %v4394 = vadd.f32 %v4033, %v4361
  %v4395 = vadd.f32 %v4038, %v4361
  %v4396 = vadd.f32 %v4043, %v4361
  %v4397 = vadd.f32 %v4048, %v4361
  %v4398 = vadd.f32 %v4053, %v4361
  %v4399 = vadd.f32 %v4058, %v4361
  %v4400 = vadd.f32 %v4063, %v4361
  %v4401 = vadd.f32 %v4068, %v4361
  %v4402 = vadd.f32 %v4073, %v4361
  %v4403 = vadd.f32 %v4078, %v4361
  %v4404 = vadd.f32 %v4083, %v4361
  %v4405 = vadd.f32 %v4088, %v4361
  %v4406 = vadd.f32 %v4093, %v4361
  %v4407 = vadd.f32 %v4098, %v4361
  %v4408 = vadd.f32 %v4103, %v4361
  %v4409 = vadd.f32 %v4108, %v4361
  %v4410 = vadd.f32 %v4113, %v4361
  %v4411 = vadd.f32 %v4118, %v4361
  %v4412 = vadd.f32 %v4123, %v4361
  %v4413 = vadd.f32 %v4128, %v4361
  %v4414 = vadd.f32 %v4133, %v4361
  %v4415 = vadd.f32 %v4138, %v4361
  %v4416 = vadd.f32 %v4143, %v4361
  %v4417 = vadd.f32 %v4148, %v4361
  %v4418 = vadd.f32 %v4153, %v4361
  %v4419 = vadd.f32 %v4158, %v4361
  %v4420 = vadd.f32 %v4163, %v4361
  %v4421 = vadd.f32 %v4168, %v4361
  %v4422 = vadd.f32 %v4173, %v4361
  %v4423 = vadd.f32 %v4178, %v4361
  %v4424 = vadd.f32 %v4183, %v4361
  %v4425 = vadd.f32 %v4188, %v4361
  %v4426 = vadd.f32 %v4193, %v4361
  %v4427 = vadd.f32 %v4198, %v4361
  %v4428 = vadd.f32 %v4203, %v4361
  %v4429 = vadd.f32 %v4208, %v4361
  %v4430 = vadd.f32 %v4213, %v4361
  %v4431 = vadd.f32 %v4218, %v4361
  %v4432 = vadd.f32 %v4223, %v4361
  %v4433 = vadd.f32 %v4228, %v4361
  %v4434 = vadd.f32 %v4233, %v4361
  %v4435 = vadd.f32 %v4238, %v4361
  %v4436 = vadd.f32 %v4243, %v4361
  %v4437 = vadd.f32 %v4248, %v4361
  %v4438 = vadd.f32 %v4253, %v4361
  %v4439 = vadd.f32 %v4258, %v4361
  %v4440 = vadd.f32 %v4263, %v4361
  %v4441 = vadd.f32 %v4268, %v4361
  %v4442 = vadd.f32 %v4273, %v4361
  %v4443 = vadd.f32 %v4278, %v4361
  %v4444 = vadd.f32 %v4283, %v4361
  %v4445 = vadd.f32 %v4288, %v4361
  %v4446 = vadd.f32 %v4293, %v4361
  %v4447 = vadd.f32 %v4298, %v4361
  %v4448 = vadd.f32 %v4303, %v4361
  %v4449 = vadd.f32 %v4308, %v4361
  %v4450 = vadd.f32 %v4313, %v4361
  %v4451 = vadd.f32 %v4318, %v4361
  %v4452 = vadd.f32 %v4323, %v4361
  %v4453 = vadd.f32 %v4328, %v4361
  %v4454 = vadd.f32 %v4333, %v4361
  %v4455 = vadd.f32 %v4338, %v4361
  %v4456 = vadd.f32 %v4343, %v4361
  %v4457 = vadd.f32 %v4348, %v4361
  %v4458 = vadd.f32 %v4353, %v4361
  %v4459 = vmax.f32 %v4363, 0.0
  %v4460 = vmax.f32 %v4364, 0.0
  %v4461 = vmax.f32 %v4365, 0.0
  %v4462 = vmax.f32 %v4366, 0.0
  %v4463 = vmax.f32 %v4367, 0.0
  %v4464 = vmax.f32 %v4368, 0.0
  %v4465 = vmax.f32 %v4369, 0.0
  %v4466 = vmax.f32 %v4370, 0.0
  %v4467 = vmax.f32 %v4371, 0.0
  %v4468 = vmax.f32 %v4372, 0.0
  %v4469 = vmax.f32 %v4373, 0.0
  %v4470 = vmax.f32 %v4374, 0.0
  %v4471 = vmax.f32 %v4375, 0.0
  %v4472 = vmax.f32 %v4376, 0.0
  %v4473 = vmax.f32 %v4377, 0.0
  %v4474 = vmax.f32 %v4378, 0.0
  %v4475 = vmax.f32 %v4379, 0.0
  %v4476 = vmax.f32 %v4380, 0.0
  %v4477 = vmax.f32 %v4381, 0.0
  %v4478 = vmax.f32 %v4382, 0.0
  %v4479 = vmax.f32 %v4383, 0.0
  %v4480 = vmax.f32 %v4384, 0.0
  %v4481 = vmax.f32 %v4385, 0.0
  %v4482 = vmax.f32 %v4386, 0.0
  %v4483 = vmax.f32 %v4387, 0.0
  %v4484 = vmax.f32 %v4388, 0.0
  %v4485 = vmax.f32 %v4389, 0.0
  %v4486 = vmax.f32 %v4390, 0.0
  %v4487 = vmax.f32 %v4391, 0.0
  %v4488 = vmax.f32 %v4392, 0.0
  %v4489 = vmax.f32 %v4393, 0.0
  %v4490 = vmax.f32 %v4394, 0.0
  %v4491 = vmax.f32 %v4395, 0.0
  %v4492 = vmax.f32 %v4396, 0.0
  %v4493 = vmax.f32 %v4397, 0.0
  %v4494 = vmax.f32 %v4398, 0.0
  %v4495 = vmax.f32 %v4399, 0.0
  %v4496 = vmax.f32 %v4400, 0.0
  %v4497 = vmax.f32 %v4401, 0.0
  %v4498 = vmax.f32 %v4402, 0.0
  %v4499 = vmax.f32 %v4403, 0.0
  %v4500 = vmax.f32 %v4404, 0.0
  %v4501 = vmax.f32 %v4405, 0.0
  %v4502 = vmax.f32 %v4406, 0.0
  %v4503 = vmax.f32 %v4407, 0.0
  %v4504 = vmax.f32 %v4408, 0.0
  %v4505 = vmax.f32 %v4409, 0.0
  %v4506 = vmax.f32 %v4410, 0.0
  %v4507 = vmax.f32 %v4411, 0.0
  %v4508 = vmax.f32 %v4412, 0.0
  %v4509 = vmax.f32 %v4413, 0.0
  %v4510 = vmax.f32 %v4414, 0.0
  %v4511 = vmax.f32 %v4415, 0.0
  %v4512 = vmax.f32 %v4416, 0.0
  %v4513 = vmax.f32 %v4417, 0.0
  %v4514 = vmax.f32 %v4418, 0.0
  %v4515 = vmax.f32 %v4419, 0.0
  %v4516 = vmax.f32 %v4420, 0.0
  %v4517 = vmax.f32 %v4421, 0.0
  %v4518 = vmax.f32 %v4422, 0.0
  %v4519 = vmax.f32 %v4423, 0.0
  %v4520 = vmax.f32 %v4424, 0.0
  %v4521 = vmax.f32 %v4425, 0.0
  %v4522 = vmax.f32 %v4426, 0.0
  %v4523 = vmax.f32 %v4427, 0.0
  %v4524 = vmax.f32 %v4428, 0.0
  %v4525 = vmax.f32 %v4429, 0.0
  %v4526 = vmax.f32 %v4430, 0.0
  %v4527 = vmax.f32 %v4431, 0.0
  %v4528 = vmax.f32 %v4432, 0.0
  %v4529 = vmax.f32 %v4433, 0.0
  %v4530 = vmax.f32 %v4434, 0.0
  %v4531 = vmax.f32 %v4435, 0.0
  %v4532 = vmax.f32 %v4436, 0.0
  %v4533 = vmax.f32 %v4437, 0.0
  %v4534 = vmax.f32 %v4438, 0.0
  %v4535 = vmax.f32 %v4439, 0.0
  %v4536 = vmax.f32 %v4440, 0.0
  %v4537 = vmax.f32 %v4441, 0.0
  %v4538 = vmax.f32 %v4442, 0.0
  %v4539 = vmax.f32 %v4443, 0.0
  %v4540 = vmax.f32 %v4444, 0.0
  %v4541 = vmax.f32 %v4445, 0.0
  %v4542 = vmax.f32 %v4446, 0.0
  %v4543 = vmax.f32 %v4447, 0.0
  %v4544 = vmax.f32 %v4448, 0.0
  %v4545 = vmax.f32 %v4449, 0.0
  %v4546 = vmax.f32 %v4450, 0.0
  %v4547 = vmax.f32 %v4451, 0.0
  %v4548 = vmax.f32 %v4452, 0.0
  %v4549 = vmax.f32 %v4453, 0.0
  %v4550 = vmax.f32 %v4454, 0.0
  %v4551 = vmax.f32 %v4455, 0.0
  %v4552 = vmax.f32 %v4456, 0.0
  %v4553 = vmax.f32 %v4457, 0.0
  %v4554 = vmax.f32 %v4458, 0.0
  %v4555 = vld [vmem:[%s10] sm:$0xff]
  %v4556 = vld [vmem:[%s10 + $0x8] sm:$0xff]
  %v4557 = vld [vmem:[%s10 + $0x10] sm:$0xff]
  %v4558 = vld [vmem:[%s10 + $0x18] sm:$0xff]
  %v4559 = vld [vmem:[%s10 + $0x20] sm:$0xff]
  %v4560 = vld [vmem:[%s10 + $0x28] sm:$0xff]
  %v4561 = vld [vmem:[%s11] sm:$0x1]
  %v4563 = vlaneseq
  %v4564 = vshrl.u32 %v4563, 7
  %v4565 = vsub.s32 0, %v4564
  %v4566 = vrot.slane %v4561, %v4565
  %vm4568 = vcmask 392192
  %v4570 = vsel %vm4568, %v4459, 0
  %v4573 = vsel %vm4568, %v4460, 0
  %v4576 = vsel %vm4568, %v4461, 0
  %v4579 = vsel %vm4568, %v4462, 0
  %v4582 = vsel %vm4568, %v4463, 0
  %v4585 = vsel %vm4568, %v4464, 0
  %v4588 = vsel %vm4568, %v4465, 0
  %v4591 = vsel %vm4568, %v4466, 0
  %v4594 = vsel %vm4568, %v4467, 0
  %v4597 = vsel %vm4568, %v4468, 0
  %v4600 = vsel %vm4568, %v4469, 0
  %v4603 = vsel %vm4568, %v4470, 0
  %v4606 = vsel %vm4568, %v4471, 0
  %v4609 = vsel %vm4568, %v4472, 0
  %v4612 = vsel %vm4568, %v4473, 0
  %v4615 = vsel %vm4568, %v4474, 0
  %v4618 = vsel %vm4568, %v4475, 0
  %v4621 = vsel %vm4568, %v4476, 0
  %v4624 = vsel %vm4568, %v4477, 0
  %v4627 = vsel %vm4568, %v4478, 0
  %v4630 = vsel %vm4568, %v4479, 0
  %v4633 = vsel %vm4568, %v4480, 0
  %v4636 = vsel %vm4568, %v4481, 0
  %v4639 = vsel %vm4568, %v4482, 0
  %v4642 = vsel %vm4568, %v4483, 0
  %v4645 = vsel %vm4568, %v4484, 0
  %v4648 = vsel %vm4568, %v4485, 0
  %v4651 = vsel %vm4568, %v4486, 0
  %v4654 = vsel %vm4568, %v4487, 0
  %v4657 = vsel %vm4568, %v4488, 0
  %v4660 = vsel %vm4568, %v4489, 0
  %v4663 = vsel %vm4568, %v4490, 0
  %v4666 = vsel %vm4568, %v4491, 0
  %v4669 = vsel %vm4568, %v4492, 0
  %v4672 = vsel %vm4568, %v4493, 0
  %v4675 = vsel %vm4568, %v4494, 0
  %v4678 = vsel %vm4568, %v4495, 0
  %v4681 = vsel %vm4568, %v4496, 0
  %v4684 = vsel %vm4568, %v4497, 0
  %v4687 = vsel %vm4568, %v4498, 0
  %v4690 = vsel %vm4568, %v4499, 0
  %v4693 = vsel %vm4568, %v4500, 0
  %v4696 = vsel %vm4568, %v4501, 0
  %v4699 = vsel %vm4568, %v4502, 0
  %v4702 = vsel %vm4568, %v4503, 0
  %v4705 = vsel %vm4568, %v4504, 0
  %v4708 = vsel %vm4568, %v4505, 0
  %v4711 = vsel %vm4568, %v4506, 0
  %v4714 = vsel %vm4568, %v4507, 0
  %v4717 = vsel %vm4568, %v4508, 0
  %v4720 = vsel %vm4568, %v4509, 0
  %v4723 = vsel %vm4568, %v4510, 0
  %v4726 = vsel %vm4568, %v4511, 0
  %v4729 = vsel %vm4568, %v4512, 0
  %v4732 = vsel %vm4568, %v4513, 0
  %v4735 = vsel %vm4568, %v4514, 0
  %v4738 = vsel %vm4568, %v4515, 0
  %v4741 = vsel %vm4568, %v4516, 0
  %v4744 = vsel %vm4568, %v4517, 0
  %v4747 = vsel %vm4568, %v4518, 0
  %v4750 = vsel %vm4568, %v4519, 0
  %v4753 = vsel %vm4568, %v4520, 0
  %v4756 = vsel %vm4568, %v4521, 0
  %v4759 = vsel %vm4568, %v4522, 0
  %v4762 = vsel %vm4568, %v4523, 0
  %v4765 = vsel %vm4568, %v4524, 0
  %v4768 = vsel %vm4568, %v4525, 0
  %v4771 = vsel %vm4568, %v4526, 0
  %v4774 = vsel %vm4568, %v4527, 0
  %v4777 = vsel %vm4568, %v4528, 0
  %v4780 = vsel %vm4568, %v4529, 0
  %v4783 = vsel %vm4568, %v4530, 0
  %v4786 = vsel %vm4568, %v4531, 0
  %v4789 = vsel %vm4568, %v4532, 0
  %v4792 = vsel %vm4568, %v4533, 0
  %v4795 = vsel %vm4568, %v4534, 0
  %v4798 = vsel %vm4568, %v4535, 0
  %v4801 = vsel %vm4568, %v4536, 0
  %v4804 = vsel %vm4568, %v4537, 0
  %v4807 = vsel %vm4568, %v4538, 0
  %v4810 = vsel %vm4568, %v4539, 0
  %v4813 = vsel %vm4568, %v4540, 0
  %v4816 = vsel %vm4568, %v4541, 0
  %v4819 = vsel %vm4568, %v4542, 0
  %v4822 = vsel %vm4568, %v4543, 0
  %v4825 = vsel %vm4568, %v4544, 0
  %v4828 = vsel %vm4568, %v4545, 0
  %v4831 = vsel %vm4568, %v4546, 0
  %v4834 = vsel %vm4568, %v4547, 0
  %v4837 = vsel %vm4568, %v4548, 0
  %v4840 = vsel %vm4568, %v4549, 0
  %v4843 = vsel %vm4568, %v4550, 0
  %v4846 = vsel %vm4568, %v4551, 0
  %v4849 = vsel %vm4568, %v4552, 0
  %v4852 = vsel %vm4568, %v4553, 0
  %v4855 = vsel %vm4568, %v4554, 0
  %4857 = vmatprep.subr.mxu0 0.0
  %4858 = vmatpush1.msra.mxu0 %v4555
  %4859 = vmatprep.subr.mxu0 0.0
  %4860 = vmatpush1.msra.mxu0 %v4556
  %4861 = vmatprep.subr.mxu0 0.0
  %4862 = vmatpush1.msra.mxu0 %v4557
  %4863 = vmatprep.subr.mxu0 0.0
  %4864 = vmatpush1.msra.mxu0 %v4558
  %4865 = vmatprep.subr.mxu0 0.0
  %4866 = vmatpush1.msra.mxu0 %v4559
  %4867 = vmatprep.subr.mxu0 0.0
  %4868 = vmatpush1.msra.mxu0 %v4560
  %4869 = vmatprep.subr.mxu0 0.0
  %4870 = vmatpush1.msra.mxu0 0.0
  %4871 = vmatprep.subr.mxu0 0.0
  %4872 = vmatpush1.msra.mxu0 0.0
  %4873 = vmatprep.subr.mxu0 0.0
  %4874 = vmatpush1.msra.mxu0 0.0
  %4875 = vmatprep.subr.mxu0 0.0
  %4876 = vmatpush1.msra.mxu0 0.0
  %4877 = vmatprep.subr.mxu0 0.0
  %4878 = vmatpush1.msra.mxu0 0.0
  %4879 = vmatprep.subr.mxu0 0.0
  %4880 = vmatpush1.msra.mxu0 0.0
  %4881 = vmatprep.subr.mxu0 0.0
  %4882 = vmatpush1.msra.mxu0 0.0
  %4883 = vmatprep.subr.mxu0 0.0
  %4884 = vmatpush1.msra.mxu0 0.0
  %4885 = vmatprep.subr.mxu0 0.0
  %4886 = vmatpush1.msra.mxu0 0.0
  %4887 = vmatprep.subr.mxu0 0.0
  %4888 = vmatpush1.msra.mxu0 0.0
  %4889 = vmatprep.subr.mxu0 0.0
  %4890 = vmatpush1.msra.mxu0 0.0
  %4891 = vmatprep.subr.mxu0 0.0
  %4892 = vmatpush1.msra.mxu0 0.0
  %4893 = vmatprep.subr.mxu0 0.0
  %4894 = vmatpush1.msra.mxu0 0.0
  %4895 = vmatprep.subr.mxu0 0.0
  %4896 = vmatpush1.msra.mxu0 0.0
  %4897 = vmatprep.subr.mxu0 0.0
  %4898 = vmatpush1.msra.mxu0 0.0
  %4899 = vmatprep.subr.mxu0 0.0
  %4900 = vmatpush1.msra.mxu0 0.0
  %4901 = vmatprep.subr.mxu0 0.0
  %4902 = vmatpush1.msra.mxu0 0.0
  %4903 = vmatprep.subr.mxu0 0.0
  %4904 = vmatpush1.msra.mxu0 0.0
  %4905 = vmatprep.subr.mxu0 0.0
  %4906 = vmatpush1.msra.mxu0 0.0
  %4907 = vmatprep.subr.mxu0 0.0
  %4908 = vmatpush1.msra.mxu0 0.0
  %4909 = vmatprep.subr.mxu0 0.0
  %4910 = vmatpush1.msra.mxu0 0.0
  %4911 = vmatprep.subr.mxu0 0.0
  %4912 = vmatpush1.msra.mxu0 0.0
  %4913 = vmatprep.subr.mxu0 0.0
  %4914 = vmatpush1.msra.mxu0 0.0
  %4915 = vmatprep.subr.mxu0 0.0
  %4916 = vmatpush1.msra.mxu0 0.0
  %4917 = vmatprep.subr.mxu0 0.0
  %4918 = vmatpush1.msra.mxu0 0.0
  %4919 = vmatprep.subr.mxu0 0.0
  %4920 = vmatpush1.msra.mxu0 0.0
  %4921 = vmatprep.mubr.f32.mxu0 0.0
  %4922 = vmatmul.mubr.f32.gmra.mrb[0].mxu0 %v4570
  %v4923 = vpop.f32.mrb[0].mxu0
  %v4924 = vadd.f32 %v4566, %v4923
  %v4925 = vpop.f32.mrb[0].mxu0
  %4926 = vmatprep.mubr.f32.mxu0 0.0
  %4927 = vmatmul.mubr.f32.gmra.mrb[0].mxu0 %v4573
  %v4928 = vpop.f32.mrb[0].mxu0
  %v4929 = vadd.f32 %v4566, %v4928
  %v4930 = vpop.f32.mrb[0].mxu0
  %4931 = vmatprep.mubr.f32.mxu0 0.0
  %4932 = vmatmul.mubr.f32.gmra.mrb[0].mxu0 %v4576
  %v4933 = vpop.f32.mrb[0].mxu0
  %v4934 = vadd.f32 %v4566, %v4933
  %v4935 = vpop.f32.mrb[0].mxu0
  %4936 = vmatprep.mubr.f32.mxu0 0.0
  %4937 = vmatmul.mubr.f32.gmra.mrb[0].mxu0 %v4579
  %v4938 = vpop.f32.mrb[0].mxu0
  %v4939 = vadd.f32 %v4566, %v4938
  %v4940 = vpop.f32.mrb[0].mxu0
  %4941 = vmatprep.mubr.f32.mxu0 0.0
  %4942 = vmatmul.mubr.f32.gmra.mrb[0].mxu0 %v4582
  %v4943 = vpop.f32.mrb[0].mxu0
  %v4944 = vadd.f32 %v4566, %v4943
  %v4945 = vpop.f32.mrb[0].mxu0
  %4946 = vmatprep.mubr.f32.mxu0 0.0
  %4947 = vmatmul.mubr.f32.gmra.mrb[0].mxu0 %v4585
  %v4948 = vpop.f32.mrb[0].mxu0
  %v4949 = vadd.f32 %v4566, %v4948
  %v4950 = vpop.f32.mrb[0].mxu0
  %4951 = vmatprep.mubr.f32.mxu0 0.0
  %4952 = vmatmul.mubr.f32.gmra.mrb[0].mxu0 %v4588
  %v4953 = vpop.f32.mrb[0].mxu0
  %v4954 = vadd.f32 %v4566, %v4953
  %v4955 = vpop.f32.mrb[0].mxu0
  %4956 = vmatprep.mubr.f32.mxu0 0.0
  %4957 = vmatmul.mubr.f32.gmra.mrb[0].mxu0 %v4591
  %v4958 = vpop.f32.mrb[0].mxu0
  %v4959 = vadd.f32 %v4566, %v4958
  %v4960 = vpop.f32.mrb[0].mxu0
  %4961 = vmatprep.mubr.f32.mxu0 0.0
  %4962 = vmatmul.mubr.f32.gmra.mrb[0].mxu0 %v4594
  %v4963 = vpop.f32.mrb[0].mxu0
  %v4964 = vadd.f32 %v4566, %v4963
  %v4965 = vpop.f32.mrb[0].mxu0
  %4966 = vmatprep.mubr.f32.mxu0 0.0
  %4967 = vmatmul.mubr.f32.gmra.mrb[0].mxu0 %v4597
  %v4968 = vpop.f32.mrb[0].mxu0
  %v4969 = vadd.f32 %v4566, %v4968
  %v4970 = vpop.f32.mrb[0].mxu0
  %4971 = vmatprep.mubr.f32.mxu0 0.0
  %4972 = vmatmul.mubr.f32.gmra.mrb[0].mxu0 %v4600
  %v4973 = vpop.f32.mrb[0].mxu0
  %v4974 = vadd.f32 %v4566, %v4973
  %v4975 = vpop.f32.mrb[0].mxu0
  %4976 = vmatprep.mubr.f32.mxu0 0.0
  %4977 = vmatmul.mubr.f32.gmra.mrb[0].mxu0 %v4603
  %v4978 = vpop.f32.mrb[0].mxu0
  %v4979 = vadd.f32 %v4566, %v4978
  %v4980 = vpop.f32.mrb[0].mxu0
  %4981 = vmatprep.mubr.f32.mxu0 0.0
  %4982 = vmatmul.mubr.f32.gmra.mrb[0].mxu0 %v4606
  %v4983 = vpop.f32.mrb[0].mxu0
  %v4984 = vadd.f32 %v4566, %v4983
  %v4985 = vpop.f32.mrb[0].mxu0
  %4986 = vmatprep.mubr.f32.mxu0 0.0
  %4987 = vmatmul.mubr.f32.gmra.mrb[0].mxu0 %v4609
  %v4988 = vpop.f32.mrb[0].mxu0
  %v4989 = vadd.f32 %v4566, %v4988
  %v4990 = vpop.f32.mrb[0].mxu0
  %4991 = vmatprep.mubr.f32.mxu0 0.0
  %4992 = vmatmul.mubr.f32.gmra.mrb[0].mxu0 %v4612
  %v4993 = vpop.f32.mrb[0].mxu0
  %v4994 = vadd.f32 %v4566, %v4993
  %v4995 = vpop.f32.mrb[0].mxu0
  %4996 = vmatprep.mubr.f32.mxu0 0.0
  %4997 = vmatmul.mubr.f32.gmra.mrb[0].mxu0 %v4615
  %v4998 = vpop.f32.mrb[0].mxu0
  %v4999 = vadd.f32 %v4566, %v4998
  %v5000 = vpop.f32.mrb[0].mxu0
  %5001 = vmatprep.mubr.f32.mxu0 0.0
  %5002 = vmatmul.mubr.f32.gmra.mrb[0].mxu0 %v4618
  %v5003 = vpop.f32.mrb[0].mxu0
  %v5004 = vadd.f32 %v4566, %v5003
  %v5005 = vpop.f32.mrb[0].mxu0
  %5006 = vmatprep.mubr.f32.mxu0 0.0
  %5007 = vmatmul.mubr.f32.gmra.mrb[0].mxu0 %v4621
  %v5008 = vpop.f32.mrb[0].mxu0
  %v5009 = vadd.f32 %v4566, %v5008
  %v5010 = vpop.f32.mrb[0].mxu0
  %5011 = vmatprep.mubr.f32.mxu0 0.0
  %5012 = vmatmul.mubr.f32.gmra.mrb[0].mxu0 %v4624
  %v5013 = vpop.f32.mrb[0].mxu0
  %v5014 = vadd.f32 %v4566, %v5013
  %v5015 = vpop.f32.mrb[0].mxu0
  %5016 = vmatprep.mubr.f32.mxu0 0.0
  %5017 = vmatmul.mubr.f32.gmra.mrb[0].mxu0 %v4627
  %v5018 = vpop.f32.mrb[0].mxu0
  %v5019 = vadd.f32 %v4566, %v5018
  %v5020 = vpop.f32.mrb[0].mxu0
  %5021 = vmatprep.mubr.f32.mxu0 0.0
  %5022 = vmatmul.mubr.f32.gmra.mrb[0].mxu0 %v4630
  %v5023 = vpop.f32.mrb[0].mxu0
  %v5024 = vadd.f32 %v4566, %v5023
  %v5025 = vpop.f32.mrb[0].mxu0
  %5026 = vmatprep.mubr.f32.mxu0 0.0
  %5027 = vmatmul.mubr.f32.gmra.mrb[0].mxu0 %v4633
  %v5028 = vpop.f32.mrb[0].mxu0
  %v5029 = vadd.f32 %v4566, %v5028
  %v5030 = vpop.f32.mrb[0].mxu0
  %5031 = vmatprep.mubr.f32.mxu0 0.0
  %5032 = vmatmul.mubr.f32.gmra.mrb[0].mxu0 %v4636
  %v5033 = vpop.f32.mrb[0].mxu0
  %v5034 = vadd.f32 %v4566, %v5033
  %v5035 = vpop.f32.mrb[0].mxu0
  %5036 = vmatprep.mubr.f32.mxu0 0.0
  %5037 = vmatmul.mubr.f32.gmra.mrb[0].mxu0 %v4639
  %v5038 = vpop.f32.mrb[0].mxu0
  %v5039 = vadd.f32 %v4566, %v5038
  %v5040 = vpop.f32.mrb[0].mxu0
  %5041 = vmatprep.mubr.f32.mxu0 0.0
  %5042 = vmatmul.mubr.f32.gmra.mrb[0].mxu0 %v4642
  %v5043 = vpop.f32.mrb[0].mxu0
  %v5044 = vadd.f32 %v4566, %v5043
  %v5045 = vpop.f32.mrb[0].mxu0
  %5046 = vmatprep.mubr.f32.mxu0 0.0
  %5047 = vmatmul.mubr.f32.gmra.mrb[0].mxu0 %v4645
  %v5048 = vpop.f32.mrb[0].mxu0
  %v5049 = vadd.f32 %v4566, %v5048
  %v5050 = vpop.f32.mrb[0].mxu0
  %5051 = vmatprep.mubr.f32.mxu0 0.0
  %5052 = vmatmul.mubr.f32.gmra.mrb[0].mxu0 %v4648
  %v5053 = vpop.f32.mrb[0].mxu0
  %v5054 = vadd.f32 %v4566, %v5053
  %v5055 = vpop.f32.mrb[0].mxu0
  %5056 = vmatprep.mubr.f32.mxu0 0.0
  %5057 = vmatmul.mubr.f32.gmra.mrb[0].mxu0 %v4651
  %v5058 = vpop.f32.mrb[0].mxu0
  %v5059 = vadd.f32 %v4566, %v5058
  %v5060 = vpop.f32.mrb[0].mxu0
  %5061 = vmatprep.mubr.f32.mxu0 0.0
  %5062 = vmatmul.mubr.f32.gmra.mrb[0].mxu0 %v4654
  %v5063 = vpop.f32.mrb[0].mxu0
  %v5064 = vadd.f32 %v4566, %v5063
  %v5065 = vpop.f32.mrb[0].mxu0
  %5066 = vmatprep.mubr.f32.mxu0 0.0
  %5067 = vmatmul.mubr.f32.gmra.mrb[0].mxu0 %v4657
  %v5068 = vpop.f32.mrb[0].mxu0
  %v5069 = vadd.f32 %v4566, %v5068
  %v5070 = vpop.f32.mrb[0].mxu0
  %5071 = vmatprep.mubr.f32.mxu0 0.0
  %5072 = vmatmul.mubr.f32.gmra.mrb[0].mxu0 %v4660
  %v5073 = vpop.f32.mrb[0].mxu0
  %v5074 = vadd.f32 %v4566, %v5073
  %v5075 = vpop.f32.mrb[0].mxu0
  %5076 = vmatprep.mubr.f32.mxu0 0.0
  %5077 = vmatmul.mubr.f32.gmra.mrb[0].mxu0 %v4663
  %v5078 = vpop.f32.mrb[0].mxu0
  %v5079 = vadd.f32 %v4566, %v5078
  %v5080 = vpop.f32.mrb[0].mxu0
  %5081 = vmatprep.mubr.f32.mxu0 0.0
  %5082 = vmatmul.mubr.f32.gmra.mrb[0].mxu0 %v4666
  %v5083 = vpop.f32.mrb[0].mxu0
  %v5084 = vadd.f32 %v4566, %v5083
  %v5085 = vpop.f32.mrb[0].mxu0
  %5086 = vmatprep.mubr.f32.mxu0 0.0
  %5087 = vmatmul.mubr.f32.gmra.mrb[0].mxu0 %v4669
  %v5088 = vpop.f32.mrb[0].mxu0
  %v5089 = vadd.f32 %v4566, %v5088
  %v5090 = vpop.f32.mrb[0].mxu0
  %5091 = vmatprep.mubr.f32.mxu0 0.0
  %5092 = vmatmul.mubr.f32.gmra.mrb[0].mxu0 %v4672
  %v5093 = vpop.f32.mrb[0].mxu0
  %v5094 = vadd.f32 %v4566, %v5093
  %v5095 = vpop.f32.mrb[0].mxu0
  %5096 = vmatprep.mubr.f32.mxu0 0.0
  %5097 = vmatmul.mubr.f32.gmra.mrb[0].mxu0 %v4675
  %v5098 = vpop.f32.mrb[0].mxu0
  %v5099 = vadd.f32 %v4566, %v5098
  %v5100 = vpop.f32.mrb[0].mxu0
  %5101 = vmatprep.mubr.f32.mxu0 0.0
  %5102 = vmatmul.mubr.f32.gmra.mrb[0].mxu0 %v4678
  %v5103 = vpop.f32.mrb[0].mxu0
  %v5104 = vadd.f32 %v4566, %v5103
  %v5105 = vpop.f32.mrb[0].mxu0
  %5106 = vmatprep.mubr.f32.mxu0 0.0
  %5107 = vmatmul.mubr.f32.gmra.mrb[0].mxu0 %v4681
  %v5108 = vpop.f32.mrb[0].mxu0
  %v5109 = vadd.f32 %v4566, %v5108
  %v5110 = vpop.f32.mrb[0].mxu0
  %5111 = vmatprep.mubr.f32.mxu0 0.0
  %5112 = vmatmul.mubr.f32.gmra.mrb[0].mxu0 %v4684
  %v5113 = vpop.f32.mrb[0].mxu0
  %v5114 = vadd.f32 %v4566, %v5113
  %v5115 = vpop.f32.mrb[0].mxu0
  %5116 = vmatprep.mubr.f32.mxu0 0.0
  %5117 = vmatmul.mubr.f32.gmra.mrb[0].mxu0 %v4687
  %v5118 = vpop.f32.mrb[0].mxu0
  %v5119 = vadd.f32 %v4566, %v5118
  %v5120 = vpop.f32.mrb[0].mxu0
  %5121 = vmatprep.mubr.f32.mxu0 0.0
  %5122 = vmatmul.mubr.f32.gmra.mrb[0].mxu0 %v4690
  %v5123 = vpop.f32.mrb[0].mxu0
  %v5124 = vadd.f32 %v4566, %v5123
  %v5125 = vpop.f32.mrb[0].mxu0
  %5126 = vmatprep.mubr.f32.mxu0 0.0
  %5127 = vmatmul.mubr.f32.gmra.mrb[0].mxu0 %v4693
  %v5128 = vpop.f32.mrb[0].mxu0
  %v5129 = vadd.f32 %v4566, %v5128
  %v5130 = vpop.f32.mrb[0].mxu0
  %5131 = vmatprep.mubr.f32.mxu0 0.0
  %5132 = vmatmul.mubr.f32.gmra.mrb[0].mxu0 %v4696
  %v5133 = vpop.f32.mrb[0].mxu0
  %v5134 = vadd.f32 %v4566, %v5133
  %v5135 = vpop.f32.mrb[0].mxu0
  %5136 = vmatprep.mubr.f32.mxu0 0.0
  %5137 = vmatmul.mubr.f32.gmra.mrb[0].mxu0 %v4699
  %v5138 = vpop.f32.mrb[0].mxu0
  %v5139 = vadd.f32 %v4566, %v5138
  %v5140 = vpop.f32.mrb[0].mxu0
  %5141 = vmatprep.mubr.f32.mxu0 0.0
  %5142 = vmatmul.mubr.f32.gmra.mrb[0].mxu0 %v4702
  %v5143 = vpop.f32.mrb[0].mxu0
  %v5144 = vadd.f32 %v4566, %v5143
  %v5145 = vpop.f32.mrb[0].mxu0
  %5146 = vmatprep.mubr.f32.mxu0 0.0
  %5147 = vmatmul.mubr.f32.gmra.mrb[0].mxu0 %v4705
  %v5148 = vpop.f32.mrb[0].mxu0
  %v5149 = vadd.f32 %v4566, %v5148
  %v5150 = vpop.f32.mrb[0].mxu0
  %5151 = vmatprep.mubr.f32.mxu0 0.0
  %5152 = vmatmul.mubr.f32.gmra.mrb[0].mxu0 %v4708
  %v5153 = vpop.f32.mrb[0].mxu0
  %v5154 = vadd.f32 %v4566, %v5153
  %v5155 = vpop.f32.mrb[0].mxu0
  %5156 = vmatprep.mubr.f32.mxu0 0.0
  %5157 = vmatmul.mubr.f32.gmra.mrb[0].mxu0 %v4711
  %v5158 = vpop.f32.mrb[0].mxu0
  %v5159 = vadd.f32 %v4566, %v5158
  %v5160 = vpop.f32.mrb[0].mxu0
  %5161 = vmatprep.mubr.f32.mxu0 0.0
  %5162 = vmatmul.mubr.f32.gmra.mrb[0].mxu0 %v4714
  %v5163 = vpop.f32.mrb[0].mxu0
  %v5164 = vadd.f32 %v4566, %v5163
  %v5165 = vpop.f32.mrb[0].mxu0
  %5166 = vmatprep.mubr.f32.mxu0 0.0
  %5167 = vmatmul.mubr.f32.gmra.mrb[0].mxu0 %v4717
  %v5168 = vpop.f32.mrb[0].mxu0
  %v5169 = vadd.f32 %v4566, %v5168
  %v5170 = vpop.f32.mrb[0].mxu0
  %5171 = vmatprep.mubr.f32.mxu0 0.0
  %5172 = vmatmul.mubr.f32.gmra.mrb[0].mxu0 %v4720
  %v5173 = vpop.f32.mrb[0].mxu0
  %v5174 = vadd.f32 %v4566, %v5173
  %v5175 = vpop.f32.mrb[0].mxu0
  %5176 = vmatprep.mubr.f32.mxu0 0.0
  %5177 = vmatmul.mubr.f32.gmra.mrb[0].mxu0 %v4723
  %v5178 = vpop.f32.mrb[0].mxu0
  %v5179 = vadd.f32 %v4566, %v5178
  %v5180 = vpop.f32.mrb[0].mxu0
  %5181 = vmatprep.mubr.f32.mxu0 0.0
  %5182 = vmatmul.mubr.f32.gmra.mrb[0].mxu0 %v4726
  %v5183 = vpop.f32.mrb[0].mxu0
  %v5184 = vadd.f32 %v4566, %v5183
  %v5185 = vpop.f32.mrb[0].mxu0
  %5186 = vmatprep.mubr.f32.mxu0 0.0
  %5187 = vmatmul.mubr.f32.gmra.mrb[0].mxu0 %v4729
  %v5188 = vpop.f32.mrb[0].mxu0
  %v5189 = vadd.f32 %v4566, %v5188
  %v5190 = vpop.f32.mrb[0].mxu0
  %5191 = vmatprep.mubr.f32.mxu0 0.0
  %5192 = vmatmul.mubr.f32.gmra.mrb[0].mxu0 %v4732
  %v5193 = vpop.f32.mrb[0].mxu0
  %v5194 = vadd.f32 %v4566, %v5193
  %v5195 = vpop.f32.mrb[0].mxu0
  %5196 = vmatprep.mubr.f32.mxu0 0.0
  %5197 = vmatmul.mubr.f32.gmra.mrb[0].mxu0 %v4735
  %v5198 = vpop.f32.mrb[0].mxu0
  %v5199 = vadd.f32 %v4566, %v5198
  %v5200 = vpop.f32.mrb[0].mxu0
  %5201 = vmatprep.mubr.f32.mxu0 0.0
  %5202 = vmatmul.mubr.f32.gmra.mrb[0].mxu0 %v4738
  %v5203 = vpop.f32.mrb[0].mxu0
  %v5204 = vadd.f32 %v4566, %v5203
  %v5205 = vpop.f32.mrb[0].mxu0
  %5206 = vmatprep.mubr.f32.mxu0 0.0
  %5207 = vmatmul.mubr.f32.gmra.mrb[0].mxu0 %v4741
  %v5208 = vpop.f32.mrb[0].mxu0
  %v5209 = vadd.f32 %v4566, %v5208
  %v5210 = vpop.f32.mrb[0].mxu0
  %5211 = vmatprep.mubr.f32.mxu0 0.0
  %5212 = vmatmul.mubr.f32.gmra.mrb[0].mxu0 %v4744
  %v5213 = vpop.f32.mrb[0].mxu0
  %v5214 = vadd.f32 %v4566, %v5213
  %v5215 = vpop.f32.mrb[0].mxu0
  %5216 = vmatprep.mubr.f32.mxu0 0.0
  %5217 = vmatmul.mubr.f32.gmra.mrb[0].mxu0 %v4747
  %v5218 = vpop.f32.mrb[0].mxu0
  %v5219 = vadd.f32 %v4566, %v5218
  %v5220 = vpop.f32.mrb[0].mxu0
  %5221 = vmatprep.mubr.f32.mxu0 0.0
  %5222 = vmatmul.mubr.f32.gmra.mrb[0].mxu0 %v4750
  %v5223 = vpop.f32.mrb[0].mxu0
  %v5224 = vadd.f32 %v4566, %v5223
  %v5225 = vpop.f32.mrb[0].mxu0
  %5226 = vmatprep.mubr.f32.mxu0 0.0
  %5227 = vmatmul.mubr.f32.gmra.mrb[0].mxu0 %v4753
  %v5228 = vpop.f32.mrb[0].mxu0
  %v5229 = vadd.f32 %v4566, %v5228
  %v5230 = vpop.f32.mrb[0].mxu0
  %5231 = vmatprep.mubr.f32.mxu0 0.0
  %5232 = vmatmul.mubr.f32.gmra.mrb[0].mxu0 %v4756
  %v5233 = vpop.f32.mrb[0].mxu0
  %v5234 = vadd.f32 %v4566, %v5233
  %v5235 = vpop.f32.mrb[0].mxu0
  %5236 = vmatprep.mubr.f32.mxu0 0.0
  %5237 = vmatmul.mubr.f32.gmra.mrb[0].mxu0 %v4759
  %v5238 = vpop.f32.mrb[0].mxu0
  %v5239 = vadd.f32 %v4566, %v5238
  %v5240 = vpop.f32.mrb[0].mxu0
  %5241 = vmatprep.mubr.f32.mxu0 0.0
  %5242 = vmatmul.mubr.f32.gmra.mrb[0].mxu0 %v4762
  %v5243 = vpop.f32.mrb[0].mxu0
  %v5244 = vadd.f32 %v4566, %v5243
  %v5245 = vpop.f32.mrb[0].mxu0
  %5246 = vmatprep.mubr.f32.mxu0 0.0
  %5247 = vmatmul.mubr.f32.gmra.mrb[0].mxu0 %v4765
  %v5248 = vpop.f32.mrb[0].mxu0
  %v5249 = vadd.f32 %v4566, %v5248
  %v5250 = vpop.f32.mrb[0].mxu0
  %5251 = vmatprep.mubr.f32.mxu0 0.0
  %5252 = vmatmul.mubr.f32.gmra.mrb[0].mxu0 %v4768
  %v5253 = vpop.f32.mrb[0].mxu0
  %v5254 = vadd.f32 %v4566, %v5253
  %v5255 = vpop.f32.mrb[0].mxu0
  %5256 = vmatprep.mubr.f32.mxu0 0.0
  %5257 = vmatmul.mubr.f32.gmra.mrb[0].mxu0 %v4771
  %v5258 = vpop.f32.mrb[0].mxu0
  %v5259 = vadd.f32 %v4566, %v5258
  %v5260 = vpop.f32.mrb[0].mxu0
  %5261 = vmatprep.mubr.f32.mxu0 0.0
  %5262 = vmatmul.mubr.f32.gmra.mrb[0].mxu0 %v4774
  %v5263 = vpop.f32.mrb[0].mxu0
  %v5264 = vadd.f32 %v4566, %v5263
  %v5265 = vpop.f32.mrb[0].mxu0
  %5266 = vmatprep.mubr.f32.mxu0 0.0
  %5267 = vmatmul.mubr.f32.gmra.mrb[0].mxu0 %v4777
  %v5268 = vpop.f32.mrb[0].mxu0
  %v5269 = vadd.f32 %v4566, %v5268
  %v5270 = vpop.f32.mrb[0].mxu0
  %5271 = vmatprep.mubr.f32.mxu0 0.0
  %5272 = vmatmul.mubr.f32.gmra.mrb[0].mxu0 %v4780
  %v5273 = vpop.f32.mrb[0].mxu0
  %v5274 = vadd.f32 %v4566, %v5273
  %v5275 = vpop.f32.mrb[0].mxu0
  %5276 = vmatprep.mubr.f32.mxu0 0.0
  %5277 = vmatmul.mubr.f32.gmra.mrb[0].mxu0 %v4783
  %v5278 = vpop.f32.mrb[0].mxu0
  %v5279 = vadd.f32 %v4566, %v5278
  %v5280 = vpop.f32.mrb[0].mxu0
  %5281 = vmatprep.mubr.f32.mxu0 0.0
  %5282 = vmatmul.mubr.f32.gmra.mrb[0].mxu0 %v4786
  %v5283 = vpop.f32.mrb[0].mxu0
  %v5284 = vadd.f32 %v4566, %v5283
  %v5285 = vpop.f32.mrb[0].mxu0
  %5286 = vmatprep.mubr.f32.mxu0 0.0
  %5287 = vmatmul.mubr.f32.gmra.mrb[0].mxu0 %v4789
  %v5288 = vpop.f32.mrb[0].mxu0
  %v5289 = vadd.f32 %v4566, %v5288
  %v5290 = vpop.f32.mrb[0].mxu0
  %5291 = vmatprep.mubr.f32.mxu0 0.0
  %5292 = vmatmul.mubr.f32.gmra.mrb[0].mxu0 %v4792
  %v5293 = vpop.f32.mrb[0].mxu0
  %v5294 = vadd.f32 %v4566, %v5293
  %v5295 = vpop.f32.mrb[0].mxu0
  %5296 = vmatprep.mubr.f32.mxu0 0.0
  %5297 = vmatmul.mubr.f32.gmra.mrb[0].mxu0 %v4795
  %v5298 = vpop.f32.mrb[0].mxu0
  %v5299 = vadd.f32 %v4566, %v5298
  %v5300 = vpop.f32.mrb[0].mxu0
  %5301 = vmatprep.mubr.f32.mxu0 0.0
  %5302 = vmatmul.mubr.f32.gmra.mrb[0].mxu0 %v4798
  %v5303 = vpop.f32.mrb[0].mxu0
  %v5304 = vadd.f32 %v4566, %v5303
  %v5305 = vpop.f32.mrb[0].mxu0
  %5306 = vmatprep.mubr.f32.mxu0 0.0
  %5307 = vmatmul.mubr.f32.gmra.mrb[0].mxu0 %v4801
  %v5308 = vpop.f32.mrb[0].mxu0
  %v5309 = vadd.f32 %v4566, %v5308
  %v5310 = vpop.f32.mrb[0].mxu0
  %5311 = vmatprep.mubr.f32.mxu0 0.0
  %5312 = vmatmul.mubr.f32.gmra.mrb[0].mxu0 %v4804
  %v5313 = vpop.f32.mrb[0].mxu0
  %v5314 = vadd.f32 %v4566, %v5313
  %v5315 = vpop.f32.mrb[0].mxu0
  %5316 = vmatprep.mubr.f32.mxu0 0.0
  %5317 = vmatmul.mubr.f32.gmra.mrb[0].mxu0 %v4807
  %v5318 = vpop.f32.mrb[0].mxu0
  %v5319 = vadd.f32 %v4566, %v5318
  %v5320 = vpop.f32.mrb[0].mxu0
  %5321 = vmatprep.mubr.f32.mxu0 0.0
  %5322 = vmatmul.mubr.f32.gmra.mrb[0].mxu0 %v4810
  %v5323 = vpop.f32.mrb[0].mxu0
  %v5324 = vadd.f32 %v4566, %v5323
  %v5325 = vpop.f32.mrb[0].mxu0
  %5326 = vmatprep.mubr.f32.mxu0 0.0
  %5327 = vmatmul.mubr.f32.gmra.mrb[0].mxu0 %v4813
  %v5328 = vpop.f32.mrb[0].mxu0
  %v5329 = vadd.f32 %v4566, %v5328
  %v5330 = vpop.f32.mrb[0].mxu0
  %5331 = vmatprep.mubr.f32.mxu0 0.0
  %5332 = vmatmul.mubr.f32.gmra.mrb[0].mxu0 %v4816
  %v5333 = vpop.f32.mrb[0].mxu0
  %v5334 = vadd.f32 %v4566, %v5333
  %v5335 = vpop.f32.mrb[0].mxu0
  %5336 = vmatprep.mubr.f32.mxu0 0.0
  %5337 = vmatmul.mubr.f32.gmra.mrb[0].mxu0 %v4819
  %v5338 = vpop.f32.mrb[0].mxu0
  %v5339 = vadd.f32 %v4566, %v5338
  %v5340 = vpop.f32.mrb[0].mxu0
  %5341 = vmatprep.mubr.f32.mxu0 0.0
  %5342 = vmatmul.mubr.f32.gmra.mrb[0].mxu0 %v4822
  %v5343 = vpop.f32.mrb[0].mxu0
  %v5344 = vadd.f32 %v4566, %v5343
  %v5345 = vpop.f32.mrb[0].mxu0
  %5346 = vmatprep.mubr.f32.mxu0 0.0
  %5347 = vmatmul.mubr.f32.gmra.mrb[0].mxu0 %v4825
  %v5348 = vpop.f32.mrb[0].mxu0
  %v5349 = vadd.f32 %v4566, %v5348
  %v5350 = vpop.f32.mrb[0].mxu0
  %5351 = vmatprep.mubr.f32.mxu0 0.0
  %5352 = vmatmul.mubr.f32.gmra.mrb[0].mxu0 %v4828
  %v5353 = vpop.f32.mrb[0].mxu0
  %v5354 = vadd.f32 %v4566, %v5353
  %v5355 = vpop.f32.mrb[0].mxu0
  %5356 = vmatprep.mubr.f32.mxu0 0.0
  %5357 = vmatmul.mubr.f32.gmra.mrb[0].mxu0 %v4831
  %v5358 = vpop.f32.mrb[0].mxu0
  %v5359 = vadd.f32 %v4566, %v5358
  %v5360 = vpop.f32.mrb[0].mxu0
  %5361 = vmatprep.mubr.f32.mxu0 0.0
  %5362 = vmatmul.mubr.f32.gmra.mrb[0].mxu0 %v4834
  %v5363 = vpop.f32.mrb[0].mxu0
  %v5364 = vadd.f32 %v4566, %v5363
  %v5365 = vpop.f32.mrb[0].mxu0
  %5366 = vmatprep.mubr.f32.mxu0 0.0
  %5367 = vmatmul.mubr.f32.gmra.mrb[0].mxu0 %v4837
  %v5368 = vpop.f32.mrb[0].mxu0
  %v5369 = vadd.f32 %v4566, %v5368
  %v5370 = vpop.f32.mrb[0].mxu0
  %5371 = vmatprep.mubr.f32.mxu0 0.0
  %5372 = vmatmul.mubr.f32.gmra.mrb[0].mxu0 %v4840
  %v5373 = vpop.f32.mrb[0].mxu0
  %v5374 = vadd.f32 %v4566, %v5373
  %v5375 = vpop.f32.mrb[0].mxu0
  %5376 = vmatprep.mubr.f32.mxu0 0.0
  %5377 = vmatmul.mubr.f32.gmra.mrb[0].mxu0 %v4843
  %v5378 = vpop.f32.mrb[0].mxu0
  %v5379 = vadd.f32 %v4566, %v5378
  %v5380 = vpop.f32.mrb[0].mxu0
  %5381 = vmatprep.mubr.f32.mxu0 0.0
  %5382 = vmatmul.mubr.f32.gmra.mrb[0].mxu0 %v4846
  %v5383 = vpop.f32.mrb[0].mxu0
  %v5384 = vadd.f32 %v4566, %v5383
  %v5385 = vpop.f32.mrb[0].mxu0
  %5386 = vmatprep.mubr.f32.mxu0 0.0
  %5387 = vmatmul.mubr.f32.gmra.mrb[0].mxu0 %v4849
  %v5388 = vpop.f32.mrb[0].mxu0
  %v5389 = vadd.f32 %v4566, %v5388
  %v5390 = vpop.f32.mrb[0].mxu0
  %5391 = vmatprep.mubr.f32.mxu0 0.0
  %5392 = vmatmul.mubr.f32.gmra.mrb[0].mxu0 %v4852
  %v5393 = vpop.f32.mrb[0].mxu0
  %v5394 = vadd.f32 %v4566, %v5393
  %v5395 = vpop.f32.mrb[0].mxu0
  %5396 = vmatprep.mubr.f32.mxu0 0.0
  %5397 = vmatmul.mubr.f32.gmra.mrb[0].mxu0 %v4855
  %v5398 = vpop.f32.mrb[0].mxu0
  %v5399 = vadd.f32 %v4566, %v5398
  %v5400 = vpop.f32.mrb[0].mxu0
  %5401 = vdwg.mxu0
  %v5402 = vmax.f32 %v4924, 0.0
  %v5403 = vmax.f32 %v4929, 0.0
  %v5404 = vmax.f32 %v4934, 0.0
  %v5405 = vmax.f32 %v4939, 0.0
  %v5406 = vmax.f32 %v4944, 0.0
  %v5407 = vmax.f32 %v4949, 0.0
  %v5408 = vmax.f32 %v4954, 0.0
  %v5409 = vmax.f32 %v4959, 0.0
  %v5410 = vmax.f32 %v4964, 0.0
  %v5411 = vmax.f32 %v4969, 0.0
  %v5412 = vmax.f32 %v4974, 0.0
  %v5413 = vmax.f32 %v4979, 0.0
  %v5414 = vmax.f32 %v4984, 0.0
  %v5415 = vmax.f32 %v4989, 0.0
  %v5416 = vmax.f32 %v4994, 0.0
  %v5417 = vmax.f32 %v4999, 0.0
  %v5418 = vmax.f32 %v5004, 0.0
  %v5419 = vmax.f32 %v5009, 0.0
  %v5420 = vmax.f32 %v5014, 0.0
  %v5421 = vmax.f32 %v5019, 0.0
  %v5422 = vmax.f32 %v5024, 0.0
  %v5423 = vmax.f32 %v5029, 0.0
  %v5424 = vmax.f32 %v5034, 0.0
  %v5425 = vmax.f32 %v5039, 0.0
  %v5426 = vmax.f32 %v5044, 0.0
  %v5427 = vmax.f32 %v5049, 0.0
  %v5428 = vmax.f32 %v5054, 0.0
  %v5429 = vmax.f32 %v5059, 0.0
  %v5430 = vmax.f32 %v5064, 0.0
  %v5431 = vmax.f32 %v5069, 0.0
  %v5432 = vmax.f32 %v5074, 0.0
  %v5433 = vmax.f32 %v5079, 0.0
  %v5434 = vmax.f32 %v5084, 0.0
  %v5435 = vmax.f32 %v5089, 0.0
  %v5436 = vmax.f32 %v5094, 0.0
  %v5437 = vmax.f32 %v5099, 0.0
  %v5438 = vmax.f32 %v5104, 0.0
  %v5439 = vmax.f32 %v5109, 0.0
  %v5440 = vmax.f32 %v5114, 0.0
  %v5441 = vmax.f32 %v5119, 0.0
  %v5442 = vmax.f32 %v5124, 0.0
  %v5443 = vmax.f32 %v5129, 0.0
  %v5444 = vmax.f32 %v5134, 0.0
  %v5445 = vmax.f32 %v5139, 0.0
  %v5446 = vmax.f32 %v5144, 0.0
  %v5447 = vmax.f32 %v5149, 0.0
  %v5448 = vmax.f32 %v5154, 0.0
  %v5449 = vmax.f32 %v5159, 0.0
  %v5450 = vmax.f32 %v5164, 0.0
  %v5451 = vmax.f32 %v5169, 0.0
  %v5452 = vmax.f32 %v5174, 0.0
  %v5453 = vmax.f32 %v5179, 0.0
  %v5454 = vmax.f32 %v5184, 0.0
  %v5455 = vmax.f32 %v5189, 0.0
  %v5456 = vmax.f32 %v5194, 0.0
  %v5457 = vmax.f32 %v5199, 0.0
  %v5458 = vmax.f32 %v5204, 0.0
  %v5459 = vmax.f32 %v5209, 0.0
  %v5460 = vmax.f32 %v5214, 0.0
  %v5461 = vmax.f32 %v5219, 0.0
  %v5462 = vmax.f32 %v5224, 0.0
  %v5463 = vmax.f32 %v5229, 0.0
  %v5464 = vmax.f32 %v5234, 0.0
  %v5465 = vmax.f32 %v5239, 0.0
  %v5466 = vmax.f32 %v5244, 0.0
  %v5467 = vmax.f32 %v5249, 0.0
  %v5468 = vmax.f32 %v5254, 0.0
  %v5469 = vmax.f32 %v5259, 0.0
  %v5470 = vmax.f32 %v5264, 0.0
  %v5471 = vmax.f32 %v5269, 0.0
  %v5472 = vmax.f32 %v5274, 0.0
  %v5473 = vmax.f32 %v5279, 0.0
  %v5474 = vmax.f32 %v5284, 0.0
  %v5475 = vmax.f32 %v5289, 0.0
  %v5476 = vmax.f32 %v5294, 0.0
  %v5477 = vmax.f32 %v5299, 0.0
  %v5478 = vmax.f32 %v5304, 0.0
  %v5479 = vmax.f32 %v5309, 0.0
  %v5480 = vmax.f32 %v5314, 0.0
  %v5481 = vmax.f32 %v5319, 0.0
  %v5482 = vmax.f32 %v5324, 0.0
  %v5483 = vmax.f32 %v5329, 0.0
  %v5484 = vmax.f32 %v5334, 0.0
  %v5485 = vmax.f32 %v5339, 0.0
  %v5486 = vmax.f32 %v5344, 0.0
  %v5487 = vmax.f32 %v5349, 0.0
  %v5488 = vmax.f32 %v5354, 0.0
  %v5489 = vmax.f32 %v5359, 0.0
  %v5490 = vmax.f32 %v5364, 0.0
  %v5491 = vmax.f32 %v5369, 0.0
  %v5492 = vmax.f32 %v5374, 0.0
  %v5493 = vmax.f32 %v5379, 0.0
  %v5494 = vmax.f32 %v5384, 0.0
  %v5495 = vmax.f32 %v5389, 0.0
  %v5496 = vmax.f32 %v5394, 0.0
  %v5497 = vmax.f32 %v5399, 0.0
  %v5498 = vld [vmem:[%s12] sm:$0xff]
  %v5499 = vld [vmem:[%s12 + $0x8] sm:$0xff]
  %v5500 = vld [vmem:[%s12 + $0x10] sm:$0xff]
  %v5501 = vld [vmem:[%s12 + $0x18] sm:$0xff]
  %v5502 = vld [vmem:[%s12 + $0x20] sm:$0xff]
  %v5503 = vld [vmem:[%s12 + $0x28] sm:$0xff]
  %v5504 = vld [vmem:[%s12 + $0x30] sm:$0xff]
  %v5505 = vld [vmem:[%s12 + $0x38] sm:$0xff]
  %v5506 = vld [vmem:[%s12 + $0x40] sm:$0xff]
  %v5507 = vld [vmem:[%s13] sm:$0x1]
  %v5509 = vlaneseq
  %v5510 = vshrl.u32 %v5509, 7
  %v5511 = vsub.s32 0, %v5510
  %v5512 = vrot.slane %v5507, %v5511
  %vm5514 = vcmask 588800
  %v5516 = vsel %vm5514, %v5402, 0
  %v5519 = vsel %vm5514, %v5403, 0
  %v5522 = vsel %vm5514, %v5404, 0
  %v5525 = vsel %vm5514, %v5405, 0
  %v5528 = vsel %vm5514, %v5406, 0
  %v5531 = vsel %vm5514, %v5407, 0
  %v5534 = vsel %vm5514, %v5408, 0
  %v5537 = vsel %vm5514, %v5409, 0
  %v5540 = vsel %vm5514, %v5410, 0
  %v5543 = vsel %vm5514, %v5411, 0
  %v5546 = vsel %vm5514, %v5412, 0
  %v5549 = vsel %vm5514, %v5413, 0
  %v5552 = vsel %vm5514, %v5414, 0
  %v5555 = vsel %vm5514, %v5415, 0
  %v5558 = vsel %vm5514, %v5416, 0
  %v5561 = vsel %vm5514, %v5417, 0
  %v5564 = vsel %vm5514, %v5418, 0
  %v5567 = vsel %vm5514, %v5419, 0
  %v5570 = vsel %vm5514, %v5420, 0
  %v5573 = vsel %vm5514, %v5421, 0
  %v5576 = vsel %vm5514, %v5422, 0
  %v5579 = vsel %vm5514, %v5423, 0
  %v5582 = vsel %vm5514, %v5424, 0
  %v5585 = vsel %vm5514, %v5425, 0
  %v5588 = vsel %vm5514, %v5426, 0
  %v5591 = vsel %vm5514, %v5427, 0
  %v5594 = vsel %vm5514, %v5428, 0
  %v5597 = vsel %vm5514, %v5429, 0
  %v5600 = vsel %vm5514, %v5430, 0
  %v5603 = vsel %vm5514, %v5431, 0
  %v5606 = vsel %vm5514, %v5432, 0
  %v5609 = vsel %vm5514, %v5433, 0
  %v5612 = vsel %vm5514, %v5434, 0
  %v5615 = vsel %vm5514, %v5435, 0
  %v5618 = vsel %vm5514, %v5436, 0
  %v5621 = vsel %vm5514, %v5437, 0
  %v5624 = vsel %vm5514, %v5438, 0
  %v5627 = vsel %vm5514, %v5439, 0
  %v5630 = vsel %vm5514, %v5440, 0
  %v5633 = vsel %vm5514, %v5441, 0
  %v5636 = vsel %vm5514, %v5442, 0
  %v5639 = vsel %vm5514, %v5443, 0
  %v5642 = vsel %vm5514, %v5444, 0
  %v5645 = vsel %vm5514, %v5445, 0
  %v5648 = vsel %vm5514, %v5446, 0
  %v5651 = vsel %vm5514, %v5447, 0
  %v5654 = vsel %vm5514, %v5448, 0
  %v5657 = vsel %vm5514, %v5449, 0
  %v5660 = vsel %vm5514, %v5450, 0
  %v5663 = vsel %vm5514, %v5451, 0
  %v5666 = vsel %vm5514, %v5452, 0
  %v5669 = vsel %vm5514, %v5453, 0
  %v5672 = vsel %vm5514, %v5454, 0
  %v5675 = vsel %vm5514, %v5455, 0
  %v5678 = vsel %vm5514, %v5456, 0
  %v5681 = vsel %vm5514, %v5457, 0
  %v5684 = vsel %vm5514, %v5458, 0
  %v5687 = vsel %vm5514, %v5459, 0
  %v5690 = vsel %vm5514, %v5460, 0
  %v5693 = vsel %vm5514, %v5461, 0
  %v5696 = vsel %vm5514, %v5462, 0
  %v5699 = vsel %vm5514, %v5463, 0
  %v5702 = vsel %vm5514, %v5464, 0
  %v5705 = vsel %vm5514, %v5465, 0
  %v5708 = vsel %vm5514, %v5466, 0
  %v5711 = vsel %vm5514, %v5467, 0
  %v5714 = vsel %vm5514, %v5468, 0
  %v5717 = vsel %vm5514, %v5469, 0
  %v5720 = vsel %vm5514, %v5470, 0
  %v5723 = vsel %vm5514, %v5471, 0
  %v5726 = vsel %vm5514, %v5472, 0
  %v5729 = vsel %vm5514, %v5473, 0
  %v5732 = vsel %vm5514, %v5474, 0
  %v5735 = vsel %vm5514, %v5475, 0
  %v5738 = vsel %vm5514, %v5476, 0
  %v5741 = vsel %vm5514, %v5477, 0
  %v5744 = vsel %vm5514, %v5478, 0
  %v5747 = vsel %vm5514, %v5479, 0
  %v5750 = vsel %vm5514, %v5480, 0
  %v5753 = vsel %vm5514, %v5481, 0
  %v5756 = vsel %vm5514, %v5482, 0
  %v5759 = vsel %vm5514, %v5483, 0
  %v5762 = vsel %vm5514, %v5484, 0
  %v5765 = vsel %vm5514, %v5485, 0
  %v5768 = vsel %vm5514, %v5486, 0
  %v5771 = vsel %vm5514, %v5487, 0
  %v5774 = vsel %vm5514, %v5488, 0
  %v5777 = vsel %vm5514, %v5489, 0
  %v5780 = vsel %vm5514, %v5490, 0
  %v5783 = vsel %vm5514, %v5491, 0
  %v5786 = vsel %vm5514, %v5492, 0
  %v5789 = vsel %vm5514, %v5493, 0
  %v5792 = vsel %vm5514, %v5494, 0
  %v5795 = vsel %vm5514, %v5495, 0
  %v5798 = vsel %vm5514, %v5496, 0
  %v5801 = vsel %vm5514, %v5497, 0
  %5803 = vmatprep.subr.mxu0 0.0
  %5804 = vmatpush1.msra.mxu0 %v5498
  %5805 = vmatprep.subr.mxu0 0.0
  %5806 = vmatpush1.msra.mxu0 %v5499
  %5807 = vmatprep.subr.mxu0 0.0
  %5808 = vmatpush1.msra.mxu0 %v5500
  %5809 = vmatprep.subr.mxu0 0.0
  %5810 = vmatpush1.msra.mxu0 %v5501
  %5811 = vmatprep.subr.mxu0 0.0
  %5812 = vmatpush1.msra.mxu0 %v5502
  %5813 = vmatprep.subr.mxu0 0.0
  %5814 = vmatpush1.msra.mxu0 %v5503
  %5815 = vmatprep.subr.mxu0 0.0
  %5816 = vmatpush1.msra.mxu0 %v5504
  %5817 = vmatprep.subr.mxu0 0.0
  %5818 = vmatpush1.msra.mxu0 %v5505
  %5819 = vmatprep.subr.mxu0 0.0
  %5820 = vmatpush1.msra.mxu0 %v5506
  %5821 = vmatprep.subr.mxu0 0.0
  %5822 = vmatpush1.msra.mxu0 0.0
  %5823 = vmatprep.subr.mxu0 0.0
  %5824 = vmatpush1.msra.mxu0 0.0
  %5825 = vmatprep.subr.mxu0 0.0
  %5826 = vmatpush1.msra.mxu0 0.0
  %5827 = vmatprep.subr.mxu0 0.0
  %5828 = vmatpush1.msra.mxu0 0.0
  %5829 = vmatprep.subr.mxu0 0.0
  %5830 = vmatpush1.msra.mxu0 0.0
  %5831 = vmatprep.subr.mxu0 0.0
  %5832 = vmatpush1.msra.mxu0 0.0
  %5833 = vmatprep.subr.mxu0 0.0
  %5834 = vmatpush1.msra.mxu0 0.0
  %5835 = vmatprep.subr.mxu0 0.0
  %5836 = vmatpush1.msra.mxu0 0.0
  %5837 = vmatprep.subr.mxu0 0.0
  %5838 = vmatpush1.msra.mxu0 0.0
  %5839 = vmatprep.subr.mxu0 0.0
  %5840 = vmatpush1.msra.mxu0 0.0
  %5841 = vmatprep.subr.mxu0 0.0
  %5842 = vmatpush1.msra.mxu0 0.0
  %5843 = vmatprep.subr.mxu0 0.0
  %5844 = vmatpush1.msra.mxu0 0.0
  %5845 = vmatprep.subr.mxu0 0.0
  %5846 = vmatpush1.msra.mxu0 0.0
  %5847 = vmatprep.subr.mxu0 0.0
  %5848 = vmatpush1.msra.mxu0 0.0
  %5849 = vmatprep.subr.mxu0 0.0
  %5850 = vmatpush1.msra.mxu0 0.0
  %5851 = vmatprep.subr.mxu0 0.0
  %5852 = vmatpush1.msra.mxu0 0.0
  %5853 = vmatprep.subr.mxu0 0.0
  %5854 = vmatpush1.msra.mxu0 0.0
  %5855 = vmatprep.subr.mxu0 0.0
  %5856 = vmatpush1.msra.mxu0 0.0
  %5857 = vmatprep.subr.mxu0 0.0
  %5858 = vmatpush1.msra.mxu0 0.0
  %5859 = vmatprep.subr.mxu0 0.0
  %5860 = vmatpush1.msra.mxu0 0.0
  %5861 = vmatprep.subr.mxu0 0.0
  %5862 = vmatpush1.msra.mxu0 0.0
  %5863 = vmatprep.subr.mxu0 0.0
  %5864 = vmatpush1.msra.mxu0 0.0
  %5865 = vmatprep.subr.mxu0 0.0
  %5866 = vmatpush1.msra.mxu0 0.0
  %5867 = vmatprep.mubr.f32.mxu0 0.0
  %5868 = vmatmul.mubr.f32.gmra.mrb[0].mxu0 %v5516
  %v5869 = vpop.f32.mrb[0].mxu0
  %v5870 = vadd.f32 %v5512, %v5869
  %v5871 = vpop.f32.mrb[0].mxu0
  %5872 = vmatprep.mubr.f32.mxu0 0.0
  %5873 = vmatmul.mubr.f32.gmra.mrb[0].mxu0 %v5519
  %v5874 = vpop.f32.mrb[0].mxu0
  %v5875 = vadd.f32 %v5512, %v5874
  %v5876 = vpop.f32.mrb[0].mxu0
  %5877 = vmatprep.mubr.f32.mxu0 0.0
  %5878 = vmatmul.mubr.f32.gmra.mrb[0].mxu0 %v5522
  %v5879 = vpop.f32.mrb[0].mxu0
  %v5880 = vadd.f32 %v5512, %v5879
  %v5881 = vpop.f32.mrb[0].mxu0
  %5882 = vmatprep.mubr.f32.mxu0 0.0
  %5883 = vmatmul.mubr.f32.gmra.mrb[0].mxu0 %v5525
  %v5884 = vpop.f32.mrb[0].mxu0
  %v5885 = vadd.f32 %v5512, %v5884
  %v5886 = vpop.f32.mrb[0].mxu0
  %5887 = vmatprep.mubr.f32.mxu0 0.0
  %5888 = vmatmul.mubr.f32.gmra.mrb[0].mxu0 %v5528
  %v5889 = vpop.f32.mrb[0].mxu0
  %v5890 = vadd.f32 %v5512, %v5889
  %v5891 = vpop.f32.mrb[0].mxu0
  %5892 = vmatprep.mubr.f32.mxu0 0.0
  %5893 = vmatmul.mubr.f32.gmra.mrb[0].mxu0 %v5531
  %v5894 = vpop.f32.mrb[0].mxu0
  %v5895 = vadd.f32 %v5512, %v5894
  %v5896 = vpop.f32.mrb[0].mxu0
  %5897 = vmatprep.mubr.f32.mxu0 0.0
  %5898 = vmatmul.mubr.f32.gmra.mrb[0].mxu0 %v5534
  %v5899 = vpop.f32.mrb[0].mxu0
  %v5900 = vadd.f32 %v5512, %v5899
  %v5901 = vpop.f32.mrb[0].mxu0
  %5902 = vmatprep.mubr.f32.mxu0 0.0
  %5903 = vmatmul.mubr.f32.gmra.mrb[0].mxu0 %v5537
  %v5904 = vpop.f32.mrb[0].mxu0
  %v5905 = vadd.f32 %v5512, %v5904
  %v5906 = vpop.f32.mrb[0].mxu0
  %5907 = vmatprep.mubr.f32.mxu0 0.0
  %5908 = vmatmul.mubr.f32.gmra.mrb[0].mxu0 %v5540
  %v5909 = vpop.f32.mrb[0].mxu0
  %v5910 = vadd.f32 %v5512, %v5909
  %v5911 = vpop.f32.mrb[0].mxu0
  %5912 = vmatprep.mubr.f32.mxu0 0.0
  %5913 = vmatmul.mubr.f32.gmra.mrb[0].mxu0 %v5543
  %v5914 = vpop.f32.mrb[0].mxu0
  %v5915 = vadd.f32 %v5512, %v5914
  %v5916 = vpop.f32.mrb[0].mxu0
  %5917 = vmatprep.mubr.f32.mxu0 0.0
  %5918 = vmatmul.mubr.f32.gmra.mrb[0].mxu0 %v5546
  %v5919 = vpop.f32.mrb[0].mxu0
  %v5920 = vadd.f32 %v5512, %v5919
  %v5921 = vpop.f32.mrb[0].mxu0
  %5922 = vmatprep.mubr.f32.mxu0 0.0
  %5923 = vmatmul.mubr.f32.gmra.mrb[0].mxu0 %v5549
  %v5924 = vpop.f32.mrb[0].mxu0
  %v5925 = vadd.f32 %v5512, %v5924
  %v5926 = vpop.f32.mrb[0].mxu0
  %5927 = vmatprep.mubr.f32.mxu0 0.0
  %5928 = vmatmul.mubr.f32.gmra.mrb[0].mxu0 %v5552
  %v5929 = vpop.f32.mrb[0].mxu0
  %v5930 = vadd.f32 %v5512, %v5929
  %v5931 = vpop.f32.mrb[0].mxu0
  %5932 = vmatprep.mubr.f32.mxu0 0.0
  %5933 = vmatmul.mubr.f32.gmra.mrb[0].mxu0 %v5555
  %v5934 = vpop.f32.mrb[0].mxu0
  %v5935 = vadd.f32 %v5512, %v5934
  %v5936 = vpop.f32.mrb[0].mxu0
  %5937 = vmatprep.mubr.f32.mxu0 0.0
  %5938 = vmatmul.mubr.f32.gmra.mrb[0].mxu0 %v5558
  %v5939 = vpop.f32.mrb[0].mxu0
  %v5940 = vadd.f32 %v5512, %v5939
  %v5941 = vpop.f32.mrb[0].mxu0
  %5942 = vmatprep.mubr.f32.mxu0 0.0
  %5943 = vmatmul.mubr.f32.gmra.mrb[0].mxu0 %v5561
  %v5944 = vpop.f32.mrb[0].mxu0
  %v5945 = vadd.f32 %v5512, %v5944
  %v5946 = vpop.f32.mrb[0].mxu0
  %5947 = vmatprep.mubr.f32.mxu0 0.0
  %5948 = vmatmul.mubr.f32.gmra.mrb[0].mxu0 %v5564
  %v5949 = vpop.f32.mrb[0].mxu0
  %v5950 = vadd.f32 %v5512, %v5949
  %v5951 = vpop.f32.mrb[0].mxu0
  %5952 = vmatprep.mubr.f32.mxu0 0.0
  %5953 = vmatmul.mubr.f32.gmra.mrb[0].mxu0 %v5567
  %v5954 = vpop.f32.mrb[0].mxu0
  %v5955 = vadd.f32 %v5512, %v5954
  %v5956 = vpop.f32.mrb[0].mxu0
  %5957 = vmatprep.mubr.f32.mxu0 0.0
  %5958 = vmatmul.mubr.f32.gmra.mrb[0].mxu0 %v5570
  %v5959 = vpop.f32.mrb[0].mxu0
  %v5960 = vadd.f32 %v5512, %v5959
  %v5961 = vpop.f32.mrb[0].mxu0
  %5962 = vmatprep.mubr.f32.mxu0 0.0
  %5963 = vmatmul.mubr.f32.gmra.mrb[0].mxu0 %v5573
  %v5964 = vpop.f32.mrb[0].mxu0
  %v5965 = vadd.f32 %v5512, %v5964
  %v5966 = vpop.f32.mrb[0].mxu0
  %5967 = vmatprep.mubr.f32.mxu0 0.0
  %5968 = vmatmul.mubr.f32.gmra.mrb[0].mxu0 %v5576
  %v5969 = vpop.f32.mrb[0].mxu0
  %v5970 = vadd.f32 %v5512, %v5969
  %v5971 = vpop.f32.mrb[0].mxu0
  %5972 = vmatprep.mubr.f32.mxu0 0.0
  %5973 = vmatmul.mubr.f32.gmra.mrb[0].mxu0 %v5579
  %v5974 = vpop.f32.mrb[0].mxu0
  %v5975 = vadd.f32 %v5512, %v5974
  %v5976 = vpop.f32.mrb[0].mxu0
  %5977 = vmatprep.mubr.f32.mxu0 0.0
  %5978 = vmatmul.mubr.f32.gmra.mrb[0].mxu0 %v5582
  %v5979 = vpop.f32.mrb[0].mxu0
  %v5980 = vadd.f32 %v5512, %v5979
  %v5981 = vpop.f32.mrb[0].mxu0
  %5982 = vmatprep.mubr.f32.mxu0 0.0
  %5983 = vmatmul.mubr.f32.gmra.mrb[0].mxu0 %v5585
  %v5984 = vpop.f32.mrb[0].mxu0
  %v5985 = vadd.f32 %v5512, %v5984
  %v5986 = vpop.f32.mrb[0].mxu0
  %5987 = vmatprep.mubr.f32.mxu0 0.0
  %5988 = vmatmul.mubr.f32.gmra.mrb[0].mxu0 %v5588
  %v5989 = vpop.f32.mrb[0].mxu0
  %v5990 = vadd.f32 %v5512, %v5989
  %v5991 = vpop.f32.mrb[0].mxu0
  %5992 = vmatprep.mubr.f32.mxu0 0.0
  %5993 = vmatmul.mubr.f32.gmra.mrb[0].mxu0 %v5591
  %v5994 = vpop.f32.mrb[0].mxu0
  %v5995 = vadd.f32 %v5512, %v5994
  %v5996 = vpop.f32.mrb[0].mxu0
  %5997 = vmatprep.mubr.f32.mxu0 0.0
  %5998 = vmatmul.mubr.f32.gmra.mrb[0].mxu0 %v5594
  %v5999 = vpop.f32.mrb[0].mxu0
  %v6000 = vadd.f32 %v5512, %v5999
  %v6001 = vpop.f32.mrb[0].mxu0
  %6002 = vmatprep.mubr.f32.mxu0 0.0
  %6003 = vmatmul.mubr.f32.gmra.mrb[0].mxu0 %v5597
  %v6004 = vpop.f32.mrb[0].mxu0
  %v6005 = vadd.f32 %v5512, %v6004
  %v6006 = vpop.f32.mrb[0].mxu0
  %6007 = vmatprep.mubr.f32.mxu0 0.0
  %6008 = vmatmul.mubr.f32.gmra.mrb[0].mxu0 %v5600
  %v6009 = vpop.f32.mrb[0].mxu0
  %v6010 = vadd.f32 %v5512, %v6009
  %v6011 = vpop.f32.mrb[0].mxu0
  %6012 = vmatprep.mubr.f32.mxu0 0.0
  %6013 = vmatmul.mubr.f32.gmra.mrb[0].mxu0 %v5603
  %v6014 = vpop.f32.mrb[0].mxu0
  %v6015 = vadd.f32 %v5512, %v6014
  %v6016 = vpop.f32.mrb[0].mxu0
  %6017 = vmatprep.mubr.f32.mxu0 0.0
  %6018 = vmatmul.mubr.f32.gmra.mrb[0].mxu0 %v5606
  %v6019 = vpop.f32.mrb[0].mxu0
  %v6020 = vadd.f32 %v5512, %v6019
  %v6021 = vpop.f32.mrb[0].mxu0
  %6022 = vmatprep.mubr.f32.mxu0 0.0
  %6023 = vmatmul.mubr.f32.gmra.mrb[0].mxu0 %v5609
  %v6024 = vpop.f32.mrb[0].mxu0
  %v6025 = vadd.f32 %v5512, %v6024
  %v6026 = vpop.f32.mrb[0].mxu0
  %6027 = vmatprep.mubr.f32.mxu0 0.0
  %6028 = vmatmul.mubr.f32.gmra.mrb[0].mxu0 %v5612
  %v6029 = vpop.f32.mrb[0].mxu0
  %v6030 = vadd.f32 %v5512, %v6029
  %v6031 = vpop.f32.mrb[0].mxu0
  %6032 = vmatprep.mubr.f32.mxu0 0.0
  %6033 = vmatmul.mubr.f32.gmra.mrb[0].mxu0 %v5615
  %v6034 = vpop.f32.mrb[0].mxu0
  %v6035 = vadd.f32 %v5512, %v6034
  %v6036 = vpop.f32.mrb[0].mxu0
  %6037 = vmatprep.mubr.f32.mxu0 0.0
  %6038 = vmatmul.mubr.f32.gmra.mrb[0].mxu0 %v5618
  %v6039 = vpop.f32.mrb[0].mxu0
  %v6040 = vadd.f32 %v5512, %v6039
  %v6041 = vpop.f32.mrb[0].mxu0
  %6042 = vmatprep.mubr.f32.mxu0 0.0
  %6043 = vmatmul.mubr.f32.gmra.mrb[0].mxu0 %v5621
  %v6044 = vpop.f32.mrb[0].mxu0
  %v6045 = vadd.f32 %v5512, %v6044
  %v6046 = vpop.f32.mrb[0].mxu0
  %6047 = vmatprep.mubr.f32.mxu0 0.0
  %6048 = vmatmul.mubr.f32.gmra.mrb[0].mxu0 %v5624
  %v6049 = vpop.f32.mrb[0].mxu0
  %v6050 = vadd.f32 %v5512, %v6049
  %v6051 = vpop.f32.mrb[0].mxu0
  %6052 = vmatprep.mubr.f32.mxu0 0.0
  %6053 = vmatmul.mubr.f32.gmra.mrb[0].mxu0 %v5627
  %v6054 = vpop.f32.mrb[0].mxu0
  %v6055 = vadd.f32 %v5512, %v6054
  %v6056 = vpop.f32.mrb[0].mxu0
  %6057 = vmatprep.mubr.f32.mxu0 0.0
  %6058 = vmatmul.mubr.f32.gmra.mrb[0].mxu0 %v5630
  %v6059 = vpop.f32.mrb[0].mxu0
  %v6060 = vadd.f32 %v5512, %v6059
  %v6061 = vpop.f32.mrb[0].mxu0
  %6062 = vmatprep.mubr.f32.mxu0 0.0
  %6063 = vmatmul.mubr.f32.gmra.mrb[0].mxu0 %v5633
  %v6064 = vpop.f32.mrb[0].mxu0
  %v6065 = vadd.f32 %v5512, %v6064
  %v6066 = vpop.f32.mrb[0].mxu0
  %6067 = vmatprep.mubr.f32.mxu0 0.0
  %6068 = vmatmul.mubr.f32.gmra.mrb[0].mxu0 %v5636
  %v6069 = vpop.f32.mrb[0].mxu0
  %v6070 = vadd.f32 %v5512, %v6069
  %v6071 = vpop.f32.mrb[0].mxu0
  %6072 = vmatprep.mubr.f32.mxu0 0.0
  %6073 = vmatmul.mubr.f32.gmra.mrb[0].mxu0 %v5639
  %v6074 = vpop.f32.mrb[0].mxu0
  %v6075 = vadd.f32 %v5512, %v6074
  %v6076 = vpop.f32.mrb[0].mxu0
  %6077 = vmatprep.mubr.f32.mxu0 0.0
  %6078 = vmatmul.mubr.f32.gmra.mrb[0].mxu0 %v5642
  %v6079 = vpop.f32.mrb[0].mxu0
  %v6080 = vadd.f32 %v5512, %v6079
  %v6081 = vpop.f32.mrb[0].mxu0
  %6082 = vmatprep.mubr.f32.mxu0 0.0
  %6083 = vmatmul.mubr.f32.gmra.mrb[0].mxu0 %v5645
  %v6084 = vpop.f32.mrb[0].mxu0
  %v6085 = vadd.f32 %v5512, %v6084
  %v6086 = vpop.f32.mrb[0].mxu0
  %6087 = vmatprep.mubr.f32.mxu0 0.0
  %6088 = vmatmul.mubr.f32.gmra.mrb[0].mxu0 %v5648
  %v6089 = vpop.f32.mrb[0].mxu0
  %v6090 = vadd.f32 %v5512, %v6089
  %v6091 = vpop.f32.mrb[0].mxu0
  %6092 = vmatprep.mubr.f32.mxu0 0.0
  %6093 = vmatmul.mubr.f32.gmra.mrb[0].mxu0 %v5651
  %v6094 = vpop.f32.mrb[0].mxu0
  %v6095 = vadd.f32 %v5512, %v6094
  %v6096 = vpop.f32.mrb[0].mxu0
  %6097 = vmatprep.mubr.f32.mxu0 0.0
  %6098 = vmatmul.mubr.f32.gmra.mrb[0].mxu0 %v5654
  %v6099 = vpop.f32.mrb[0].mxu0
  %v6100 = vadd.f32 %v5512, %v6099
  %v6101 = vpop.f32.mrb[0].mxu0
  %6102 = vmatprep.mubr.f32.mxu0 0.0
  %6103 = vmatmul.mubr.f32.gmra.mrb[0].mxu0 %v5657
  %v6104 = vpop.f32.mrb[0].mxu0
  %v6105 = vadd.f32 %v5512, %v6104
  %v6106 = vpop.f32.mrb[0].mxu0
  %6107 = vmatprep.mubr.f32.mxu0 0.0
  %6108 = vmatmul.mubr.f32.gmra.mrb[0].mxu0 %v5660
  %v6109 = vpop.f32.mrb[0].mxu0
  %v6110 = vadd.f32 %v5512, %v6109
  %v6111 = vpop.f32.mrb[0].mxu0
  %6112 = vmatprep.mubr.f32.mxu0 0.0
  %6113 = vmatmul.mubr.f32.gmra.mrb[0].mxu0 %v5663
  %v6114 = vpop.f32.mrb[0].mxu0
  %v6115 = vadd.f32 %v5512, %v6114
  %v6116 = vpop.f32.mrb[0].mxu0
  %6117 = vmatprep.mubr.f32.mxu0 0.0
  %6118 = vmatmul.mubr.f32.gmra.mrb[0].mxu0 %v5666
  %v6119 = vpop.f32.mrb[0].mxu0
  %v6120 = vadd.f32 %v5512, %v6119
  %v6121 = vpop.f32.mrb[0].mxu0
  %6122 = vmatprep.mubr.f32.mxu0 0.0
  %6123 = vmatmul.mubr.f32.gmra.mrb[0].mxu0 %v5669
  %v6124 = vpop.f32.mrb[0].mxu0
  %v6125 = vadd.f32 %v5512, %v6124
  %v6126 = vpop.f32.mrb[0].mxu0
  %6127 = vmatprep.mubr.f32.mxu0 0.0
  %6128 = vmatmul.mubr.f32.gmra.mrb[0].mxu0 %v5672
  %v6129 = vpop.f32.mrb[0].mxu0
  %v6130 = vadd.f32 %v5512, %v6129
  %v6131 = vpop.f32.mrb[0].mxu0
  %6132 = vmatprep.mubr.f32.mxu0 0.0
  %6133 = vmatmul.mubr.f32.gmra.mrb[0].mxu0 %v5675
  %v6134 = vpop.f32.mrb[0].mxu0
  %v6135 = vadd.f32 %v5512, %v6134
  %v6136 = vpop.f32.mrb[0].mxu0
  %6137 = vmatprep.mubr.f32.mxu0 0.0
  %6138 = vmatmul.mubr.f32.gmra.mrb[0].mxu0 %v5678
  %v6139 = vpop.f32.mrb[0].mxu0
  %v6140 = vadd.f32 %v5512, %v6139
  %v6141 = vpop.f32.mrb[0].mxu0
  %6142 = vmatprep.mubr.f32.mxu0 0.0
  %6143 = vmatmul.mubr.f32.gmra.mrb[0].mxu0 %v5681
  %v6144 = vpop.f32.mrb[0].mxu0
  %v6145 = vadd.f32 %v5512, %v6144
  %v6146 = vpop.f32.mrb[0].mxu0
  %6147 = vmatprep.mubr.f32.mxu0 0.0
  %6148 = vmatmul.mubr.f32.gmra.mrb[0].mxu0 %v5684
  %v6149 = vpop.f32.mrb[0].mxu0
  %v6150 = vadd.f32 %v5512, %v6149
  %v6151 = vpop.f32.mrb[0].mxu0
  %6152 = vmatprep.mubr.f32.mxu0 0.0
  %6153 = vmatmul.mubr.f32.gmra.mrb[0].mxu0 %v5687
  %v6154 = vpop.f32.mrb[0].mxu0
  %v6155 = vadd.f32 %v5512, %v6154
  %v6156 = vpop.f32.mrb[0].mxu0
  %6157 = vmatprep.mubr.f32.mxu0 0.0
  %6158 = vmatmul.mubr.f32.gmra.mrb[0].mxu0 %v5690
  %v6159 = vpop.f32.mrb[0].mxu0
  %v6160 = vadd.f32 %v5512, %v6159
  %v6161 = vpop.f32.mrb[0].mxu0
  %6162 = vmatprep.mubr.f32.mxu0 0.0
  %6163 = vmatmul.mubr.f32.gmra.mrb[0].mxu0 %v5693
  %v6164 = vpop.f32.mrb[0].mxu0
  %v6165 = vadd.f32 %v5512, %v6164
  %v6166 = vpop.f32.mrb[0].mxu0
  %6167 = vmatprep.mubr.f32.mxu0 0.0
  %6168 = vmatmul.mubr.f32.gmra.mrb[0].mxu0 %v5696
  %v6169 = vpop.f32.mrb[0].mxu0
  %v6170 = vadd.f32 %v5512, %v6169
  %v6171 = vpop.f32.mrb[0].mxu0
  %6172 = vmatprep.mubr.f32.mxu0 0.0
  %6173 = vmatmul.mubr.f32.gmra.mrb[0].mxu0 %v5699
  %v6174 = vpop.f32.mrb[0].mxu0
  %v6175 = vadd.f32 %v5512, %v6174
  %v6176 = vpop.f32.mrb[0].mxu0
  %6177 = vmatprep.mubr.f32.mxu0 0.0
  %6178 = vmatmul.mubr.f32.gmra.mrb[0].mxu0 %v5702
  %v6179 = vpop.f32.mrb[0].mxu0
  %v6180 = vadd.f32 %v5512, %v6179
  %v6181 = vpop.f32.mrb[0].mxu0
  %6182 = vmatprep.mubr.f32.mxu0 0.0
  %6183 = vmatmul.mubr.f32.gmra.mrb[0].mxu0 %v5705
  %v6184 = vpop.f32.mrb[0].mxu0
  %v6185 = vadd.f32 %v5512, %v6184
  %v6186 = vpop.f32.mrb[0].mxu0
  %6187 = vmatprep.mubr.f32.mxu0 0.0
  %6188 = vmatmul.mubr.f32.gmra.mrb[0].mxu0 %v5708
  %v6189 = vpop.f32.mrb[0].mxu0
  %v6190 = vadd.f32 %v5512, %v6189
  %v6191 = vpop.f32.mrb[0].mxu0
  %6192 = vmatprep.mubr.f32.mxu0 0.0
  %6193 = vmatmul.mubr.f32.gmra.mrb[0].mxu0 %v5711
  %v6194 = vpop.f32.mrb[0].mxu0
  %v6195 = vadd.f32 %v5512, %v6194
  %v6196 = vpop.f32.mrb[0].mxu0
  %6197 = vmatprep.mubr.f32.mxu0 0.0
  %6198 = vmatmul.mubr.f32.gmra.mrb[0].mxu0 %v5714
  %v6199 = vpop.f32.mrb[0].mxu0
  %v6200 = vadd.f32 %v5512, %v6199
  %v6201 = vpop.f32.mrb[0].mxu0
  %6202 = vmatprep.mubr.f32.mxu0 0.0
  %6203 = vmatmul.mubr.f32.gmra.mrb[0].mxu0 %v5717
  %v6204 = vpop.f32.mrb[0].mxu0
  %v6205 = vadd.f32 %v5512, %v6204
  %v6206 = vpop.f32.mrb[0].mxu0
  %6207 = vmatprep.mubr.f32.mxu0 0.0
  %6208 = vmatmul.mubr.f32.gmra.mrb[0].mxu0 %v5720
  %v6209 = vpop.f32.mrb[0].mxu0
  %v6210 = vadd.f32 %v5512, %v6209
  %v6211 = vpop.f32.mrb[0].mxu0
  %6212 = vmatprep.mubr.f32.mxu0 0.0
  %6213 = vmatmul.mubr.f32.gmra.mrb[0].mxu0 %v5723
  %v6214 = vpop.f32.mrb[0].mxu0
  %v6215 = vadd.f32 %v5512, %v6214
  %v6216 = vpop.f32.mrb[0].mxu0
  %6217 = vmatprep.mubr.f32.mxu0 0.0
  %6218 = vmatmul.mubr.f32.gmra.mrb[0].mxu0 %v5726
  %v6219 = vpop.f32.mrb[0].mxu0
  %v6220 = vadd.f32 %v5512, %v6219
  %v6221 = vpop.f32.mrb[0].mxu0
  %6222 = vmatprep.mubr.f32.mxu0 0.0
  %6223 = vmatmul.mubr.f32.gmra.mrb[0].mxu0 %v5729
  %v6224 = vpop.f32.mrb[0].mxu0
  %v6225 = vadd.f32 %v5512, %v6224
  %v6226 = vpop.f32.mrb[0].mxu0
  %6227 = vmatprep.mubr.f32.mxu0 0.0
  %6228 = vmatmul.mubr.f32.gmra.mrb[0].mxu0 %v5732
  %v6229 = vpop.f32.mrb[0].mxu0
  %v6230 = vadd.f32 %v5512, %v6229
  %v6231 = vpop.f32.mrb[0].mxu0
  %6232 = vmatprep.mubr.f32.mxu0 0.0
  %6233 = vmatmul.mubr.f32.gmra.mrb[0].mxu0 %v5735
  %v6234 = vpop.f32.mrb[0].mxu0
  %v6235 = vadd.f32 %v5512, %v6234
  %v6236 = vpop.f32.mrb[0].mxu0
  %6237 = vmatprep.mubr.f32.mxu0 0.0
  %6238 = vmatmul.mubr.f32.gmra.mrb[0].mxu0 %v5738
  %v6239 = vpop.f32.mrb[0].mxu0
  %v6240 = vadd.f32 %v5512, %v6239
  %v6241 = vpop.f32.mrb[0].mxu0
  %6242 = vmatprep.mubr.f32.mxu0 0.0
  %6243 = vmatmul.mubr.f32.gmra.mrb[0].mxu0 %v5741
  %v6244 = vpop.f32.mrb[0].mxu0
  %v6245 = vadd.f32 %v5512, %v6244
  %v6246 = vpop.f32.mrb[0].mxu0
  %6247 = vmatprep.mubr.f32.mxu0 0.0
  %6248 = vmatmul.mubr.f32.gmra.mrb[0].mxu0 %v5744
  %v6249 = vpop.f32.mrb[0].mxu0
  %v6250 = vadd.f32 %v5512, %v6249
  %v6251 = vpop.f32.mrb[0].mxu0
  %6252 = vmatprep.mubr.f32.mxu0 0.0
  %6253 = vmatmul.mubr.f32.gmra.mrb[0].mxu0 %v5747
  %v6254 = vpop.f32.mrb[0].mxu0
  %v6255 = vadd.f32 %v5512, %v6254
  %v6256 = vpop.f32.mrb[0].mxu0
  %6257 = vmatprep.mubr.f32.mxu0 0.0
  %6258 = vmatmul.mubr.f32.gmra.mrb[0].mxu0 %v5750
  %v6259 = vpop.f32.mrb[0].mxu0
  %v6260 = vadd.f32 %v5512, %v6259
  %v6261 = vpop.f32.mrb[0].mxu0
  %6262 = vmatprep.mubr.f32.mxu0 0.0
  %6263 = vmatmul.mubr.f32.gmra.mrb[0].mxu0 %v5753
  %v6264 = vpop.f32.mrb[0].mxu0
  %v6265 = vadd.f32 %v5512, %v6264
  %v6266 = vpop.f32.mrb[0].mxu0
  %6267 = vmatprep.mubr.f32.mxu0 0.0
  %6268 = vmatmul.mubr.f32.gmra.mrb[0].mxu0 %v5756
  %v6269 = vpop.f32.mrb[0].mxu0
  %v6270 = vadd.f32 %v5512, %v6269
  %v6271 = vpop.f32.mrb[0].mxu0
  %6272 = vmatprep.mubr.f32.mxu0 0.0
  %6273 = vmatmul.mubr.f32.gmra.mrb[0].mxu0 %v5759
  %v6274 = vpop.f32.mrb[0].mxu0
  %v6275 = vadd.f32 %v5512, %v6274
  %v6276 = vpop.f32.mrb[0].mxu0
  %6277 = vmatprep.mubr.f32.mxu0 0.0
  %6278 = vmatmul.mubr.f32.gmra.mrb[0].mxu0 %v5762
  %v6279 = vpop.f32.mrb[0].mxu0
  %v6280 = vadd.f32 %v5512, %v6279
  %v6281 = vpop.f32.mrb[0].mxu0
  %6282 = vmatprep.mubr.f32.mxu0 0.0
  %6283 = vmatmul.mubr.f32.gmra.mrb[0].mxu0 %v5765
  %v6284 = vpop.f32.mrb[0].mxu0
  %v6285 = vadd.f32 %v5512, %v6284
  %v6286 = vpop.f32.mrb[0].mxu0
  %6287 = vmatprep.mubr.f32.mxu0 0.0
  %6288 = vmatmul.mubr.f32.gmra.mrb[0].mxu0 %v5768
  %v6289 = vpop.f32.mrb[0].mxu0
  %v6290 = vadd.f32 %v5512, %v6289
  %v6291 = vpop.f32.mrb[0].mxu0
  %6292 = vmatprep.mubr.f32.mxu0 0.0
  %6293 = vmatmul.mubr.f32.gmra.mrb[0].mxu0 %v5771
  %v6294 = vpop.f32.mrb[0].mxu0
  %v6295 = vadd.f32 %v5512, %v6294
  %v6296 = vpop.f32.mrb[0].mxu0
  %6297 = vmatprep.mubr.f32.mxu0 0.0
  %6298 = vmatmul.mubr.f32.gmra.mrb[0].mxu0 %v5774
  %v6299 = vpop.f32.mrb[0].mxu0
  %v6300 = vadd.f32 %v5512, %v6299
  %v6301 = vpop.f32.mrb[0].mxu0
  %6302 = vmatprep.mubr.f32.mxu0 0.0
  %6303 = vmatmul.mubr.f32.gmra.mrb[0].mxu0 %v5777
  %v6304 = vpop.f32.mrb[0].mxu0
  %v6305 = vadd.f32 %v5512, %v6304
  %v6306 = vpop.f32.mrb[0].mxu0
  %6307 = vmatprep.mubr.f32.mxu0 0.0
  %6308 = vmatmul.mubr.f32.gmra.mrb[0].mxu0 %v5780
  %v6309 = vpop.f32.mrb[0].mxu0
  %v6310 = vadd.f32 %v5512, %v6309
  %v6311 = vpop.f32.mrb[0].mxu0
  %6312 = vmatprep.mubr.f32.mxu0 0.0
  %6313 = vmatmul.mubr.f32.gmra.mrb[0].mxu0 %v5783
  %v6314 = vpop.f32.mrb[0].mxu0
  %v6315 = vadd.f32 %v5512, %v6314
  %v6316 = vpop.f32.mrb[0].mxu0
  %6317 = vmatprep.mubr.f32.mxu0 0.0
  %6318 = vmatmul.mubr.f32.gmra.mrb[0].mxu0 %v5786
  %v6319 = vpop.f32.mrb[0].mxu0
  %v6320 = vadd.f32 %v5512, %v6319
  %v6321 = vpop.f32.mrb[0].mxu0
  %6322 = vmatprep.mubr.f32.mxu0 0.0
  %6323 = vmatmul.mubr.f32.gmra.mrb[0].mxu0 %v5789
  %v6324 = vpop.f32.mrb[0].mxu0
  %v6325 = vadd.f32 %v5512, %v6324
  %v6326 = vpop.f32.mrb[0].mxu0
  %6327 = vmatprep.mubr.f32.mxu0 0.0
  %6328 = vmatmul.mubr.f32.gmra.mrb[0].mxu0 %v5792
  %v6329 = vpop.f32.mrb[0].mxu0
  %v6330 = vadd.f32 %v5512, %v6329
  %v6331 = vpop.f32.mrb[0].mxu0
  %6332 = vmatprep.mubr.f32.mxu0 0.0
  %6333 = vmatmul.mubr.f32.gmra.mrb[0].mxu0 %v5795
  %v6334 = vpop.f32.mrb[0].mxu0
  %v6335 = vadd.f32 %v5512, %v6334
  %v6336 = vpop.f32.mrb[0].mxu0
  %6337 = vmatprep.mubr.f32.mxu0 0.0
  %6338 = vmatmul.mubr.f32.gmra.mrb[0].mxu0 %v5798
  %v6339 = vpop.f32.mrb[0].mxu0
  %v6340 = vadd.f32 %v5512, %v6339
  %v6341 = vpop.f32.mrb[0].mxu0
  %6342 = vmatprep.mubr.f32.mxu0 0.0
  %6343 = vmatmul.mubr.f32.gmra.mrb[0].mxu0 %v5801
  %v6344 = vpop.f32.mrb[0].mxu0
  %v6345 = vadd.f32 %v5512, %v6344
  %v6346 = vpop.f32.mrb[0].mxu0
  %6347 = vdwg.mxu0
  %v6348 = vmax.f32 %v5870, 0.0
  %v6349 = vmax.f32 %v5875, 0.0
  %v6350 = vmax.f32 %v5880, 0.0
  %v6351 = vmax.f32 %v5885, 0.0
  %v6352 = vmax.f32 %v5890, 0.0
  %v6353 = vmax.f32 %v5895, 0.0
  %v6354 = vmax.f32 %v5900, 0.0
  %v6355 = vmax.f32 %v5905, 0.0
  %v6356 = vmax.f32 %v5910, 0.0
  %v6357 = vmax.f32 %v5915, 0.0
  %v6358 = vmax.f32 %v5920, 0.0
  %v6359 = vmax.f32 %v5925, 0.0
  %v6360 = vmax.f32 %v5930, 0.0
  %v6361 = vmax.f32 %v5935, 0.0
  %v6362 = vmax.f32 %v5940, 0.0
  %v6363 = vmax.f32 %v5945, 0.0
  %v6364 = vmax.f32 %v5950, 0.0
  %v6365 = vmax.f32 %v5955, 0.0
  %v6366 = vmax.f32 %v5960, 0.0
  %v6367 = vmax.f32 %v5965, 0.0
  %v6368 = vmax.f32 %v5970, 0.0
  %v6369 = vmax.f32 %v5975, 0.0
  %v6370 = vmax.f32 %v5980, 0.0
  %v6371 = vmax.f32 %v5985, 0.0
  %v6372 = vmax.f32 %v5990, 0.0
  %v6373 = vmax.f32 %v5995, 0.0
  %v6374 = vmax.f32 %v6000, 0.0
  %v6375 = vmax.f32 %v6005, 0.0
  %v6376 = vmax.f32 %v6010, 0.0
  %v6377 = vmax.f32 %v6015, 0.0
  %v6378 = vmax.f32 %v6020, 0.0
  %v6379 = vmax.f32 %v6025, 0.0
  %v6380 = vmax.f32 %v6030, 0.0
  %v6381 = vmax.f32 %v6035, 0.0
  %v6382 = vmax.f32 %v6040, 0.0
  %v6383 = vmax.f32 %v6045, 0.0
  %v6384 = vmax.f32 %v6050, 0.0
  %v6385 = vmax.f32 %v6055, 0.0
  %v6386 = vmax.f32 %v6060, 0.0
  %v6387 = vmax.f32 %v6065, 0.0
  %v6388 = vmax.f32 %v6070, 0.0
  %v6389 = vmax.f32 %v6075, 0.0
  %v6390 = vmax.f32 %v6080, 0.0
  %v6391 = vmax.f32 %v6085, 0.0
  %v6392 = vmax.f32 %v6090, 0.0
  %v6393 = vmax.f32 %v6095, 0.0
  %v6394 = vmax.f32 %v6100, 0.0
  %v6395 = vmax.f32 %v6105, 0.0
  %v6396 = vmax.f32 %v6110, 0.0
  %v6397 = vmax.f32 %v6115, 0.0
  %v6398 = vmax.f32 %v6120, 0.0
  %v6399 = vmax.f32 %v6125, 0.0
  %v6400 = vmax.f32 %v6130, 0.0
  %v6401 = vmax.f32 %v6135, 0.0
  %v6402 = vmax.f32 %v6140, 0.0
  %v6403 = vmax.f32 %v6145, 0.0
  %v6404 = vmax.f32 %v6150, 0.0
  %v6405 = vmax.f32 %v6155, 0.0
  %v6406 = vmax.f32 %v6160, 0.0
  %v6407 = vmax.f32 %v6165, 0.0
  %v6408 = vmax.f32 %v6170, 0.0
  %v6409 = vmax.f32 %v6175, 0.0
  %v6410 = vmax.f32 %v6180, 0.0
  %v6411 = vmax.f32 %v6185, 0.0
  %v6412 = vmax.f32 %v6190, 0.0
  %v6413 = vmax.f32 %v6195, 0.0
  %v6414 = vmax.f32 %v6200, 0.0
  %v6415 = vmax.f32 %v6205, 0.0
  %v6416 = vmax.f32 %v6210, 0.0
  %v6417 = vmax.f32 %v6215, 0.0
  %v6418 = vmax.f32 %v6220, 0.0
  %v6419 = vmax.f32 %v6225, 0.0
  %v6420 = vmax.f32 %v6230, 0.0
  %v6421 = vmax.f32 %v6235, 0.0
  %v6422 = vmax.f32 %v6240, 0.0
  %v6423 = vmax.f32 %v6245, 0.0
  %v6424 = vmax.f32 %v6250, 0.0
  %v6425 = vmax.f32 %v6255, 0.0
  %v6426 = vmax.f32 %v6260, 0.0
  %v6427 = vmax.f32 %v6265, 0.0
  %v6428 = vmax.f32 %v6270, 0.0
  %v6429 = vmax.f32 %v6275, 0.0
  %v6430 = vmax.f32 %v6280, 0.0
  %v6431 = vmax.f32 %v6285, 0.0
  %v6432 = vmax.f32 %v6290, 0.0
  %v6433 = vmax.f32 %v6295, 0.0
  %v6434 = vmax.f32 %v6300, 0.0
  %v6435 = vmax.f32 %v6305, 0.0
  %v6436 = vmax.f32 %v6310, 0.0
  %v6437 = vmax.f32 %v6315, 0.0
  %v6438 = vmax.f32 %v6320, 0.0
  %v6439 = vmax.f32 %v6325, 0.0
  %v6440 = vmax.f32 %v6330, 0.0
  %v6441 = vmax.f32 %v6335, 0.0
  %v6442 = vmax.f32 %v6340, 0.0
  %v6443 = vmax.f32 %v6345, 0.0
  %v6444 = vld [vmem:[%s14] sm:$0xff]
  %v6445 = vld [vmem:[%s14 + $0x8] sm:$0xff]
  %v6446 = vld [vmem:[%s14 + $0x10] sm:$0xff]
  %v6447 = vld [vmem:[%s14 + $0x18] sm:$0xff]
  %v6448 = vld [vmem:[%s14 + $0x20] sm:$0xff]
  %v6449 = vld [vmem:[%s14 + $0x28] sm:$0xff]
  %v6450 = vld [vmem:[%s14 + $0x30] sm:$0xff]
  %v6451 = vld [vmem:[%s14 + $0x38] sm:$0xff]
  %v6452 = vld [vmem:[%s14 + $0x40] sm:$0xff]
  %v6453 = vld [vmem:[%s14 + $0x48] sm:$0xff]
  %v6454 = vld [vmem:[%s14 + $0x50] sm:$0xff]
  %v6455 = vld [vmem:[%s14 + $0x58] sm:$0xff]
  %v6456 = vld [vmem:[#allocation2] sm:$0x1]
  %v6458 = vlaneseq
  %v6459 = vshrl.u32 %v6458, 7
  %v6460 = vsub.s32 0, %v6459
  %v6461 = vrot.slane %v6456, %v6460
  %vm6463 = vcmask 785408
  %v6465 = vsel %vm6463, %v6348, 0
  %v6468 = vsel %vm6463, %v6349, 0
  %v6471 = vsel %vm6463, %v6350, 0
  %v6474 = vsel %vm6463, %v6351, 0
  %v6477 = vsel %vm6463, %v6352, 0
  %v6480 = vsel %vm6463, %v6353, 0
  %v6483 = vsel %vm6463, %v6354, 0
  %v6486 = vsel %vm6463, %v6355, 0
  %v6489 = vsel %vm6463, %v6356, 0
  %v6492 = vsel %vm6463, %v6357, 0
  %v6495 = vsel %vm6463, %v6358, 0
  %v6498 = vsel %vm6463, %v6359, 0
  %v6501 = vsel %vm6463, %v6360, 0
  %v6504 = vsel %vm6463, %v6361, 0
  %v6507 = vsel %vm6463, %v6362, 0
  %v6510 = vsel %vm6463, %v6363, 0
  %v6513 = vsel %vm6463, %v6364, 0
  %v6516 = vsel %vm6463, %v6365, 0
  %v6519 = vsel %vm6463, %v6366, 0
  %v6522 = vsel %vm6463, %v6367, 0
  %v6525 = vsel %vm6463, %v6368, 0
  %v6528 = vsel %vm6463, %v6369, 0
  %v6531 = vsel %vm6463, %v6370, 0
  %v6534 = vsel %vm6463, %v6371, 0
  %v6537 = vsel %vm6463, %v6372, 0
  %v6540 = vsel %vm6463, %v6373, 0
  %v6543 = vsel %vm6463, %v6374, 0
  %v6546 = vsel %vm6463, %v6375, 0
  %v6549 = vsel %vm6463, %v6376, 0
  %v6552 = vsel %vm6463, %v6377, 0
  %v6555 = vsel %vm6463, %v6378, 0
  %v6558 = vsel %vm6463, %v6379, 0
  %v6561 = vsel %vm6463, %v6380, 0
  %v6564 = vsel %vm6463, %v6381, 0
  %v6567 = vsel %vm6463, %v6382, 0
  %v6570 = vsel %vm6463, %v6383, 0
  %v6573 = vsel %vm6463, %v6384, 0
  %v6576 = vsel %vm6463, %v6385, 0
  %v6579 = vsel %vm6463, %v6386, 0
  %v6582 = vsel %vm6463, %v6387, 0
  %v6585 = vsel %vm6463, %v6388, 0
  %v6588 = vsel %vm6463, %v6389, 0
  %v6591 = vsel %vm6463, %v6390, 0
  %v6594 = vsel %vm6463, %v6391, 0
  %v6597 = vsel %vm6463, %v6392, 0
  %v6600 = vsel %vm6463, %v6393, 0
  %v6603 = vsel %vm6463, %v6394, 0
  %v6606 = vsel %vm6463, %v6395, 0
  %v6609 = vsel %vm6463, %v6396, 0
  %v6612 = vsel %vm6463, %v6397, 0
  %v6615 = vsel %vm6463, %v6398, 0
  %v6618 = vsel %vm6463, %v6399, 0
  %v6621 = vsel %vm6463, %v6400, 0
  %v6624 = vsel %vm6463, %v6401, 0
  %v6627 = vsel %vm6463, %v6402, 0
  %v6630 = vsel %vm6463, %v6403, 0
  %v6633 = vsel %vm6463, %v6404, 0
  %v6636 = vsel %vm6463, %v6405, 0
  %v6639 = vsel %vm6463, %v6406, 0
  %v6642 = vsel %vm6463, %v6407, 0
  %v6645 = vsel %vm6463, %v6408, 0
  %v6648 = vsel %vm6463, %v6409, 0
  %v6651 = vsel %vm6463, %v6410, 0
  %v6654 = vsel %vm6463, %v6411, 0
  %v6657 = vsel %vm6463, %v6412, 0
  %v6660 = vsel %vm6463, %v6413, 0
  %v6663 = vsel %vm6463, %v6414, 0
  %v6666 = vsel %vm6463, %v6415, 0
  %v6669 = vsel %vm6463, %v6416, 0
  %v6672 = vsel %vm6463, %v6417, 0
  %v6675 = vsel %vm6463, %v6418, 0
  %v6678 = vsel %vm6463, %v6419, 0
  %v6681 = vsel %vm6463, %v6420, 0
  %v6684 = vsel %vm6463, %v6421, 0
  %v6687 = vsel %vm6463, %v6422, 0
  %v6690 = vsel %vm6463, %v6423, 0
  %v6693 = vsel %vm6463, %v6424, 0
  %v6696 = vsel %vm6463, %v6425, 0
  %v6699 = vsel %vm6463, %v6426, 0
  %v6702 = vsel %vm6463, %v6427, 0
  %v6705 = vsel %vm6463, %v6428, 0
  %v6708 = vsel %vm6463, %v6429, 0
  %v6711 = vsel %vm6463, %v6430, 0
  %v6714 = vsel %vm6463, %v6431, 0
  %v6717 = vsel %vm6463, %v6432, 0
  %v6720 = vsel %vm6463, %v6433, 0
  %v6723 = vsel %vm6463, %v6434, 0
  %v6726 = vsel %vm6463, %v6435, 0
  %v6729 = vsel %vm6463, %v6436, 0
  %v6732 = vsel %vm6463, %v6437, 0
  %v6735 = vsel %vm6463, %v6438, 0
  %v6738 = vsel %vm6463, %v6439, 0
  %v6741 = vsel %vm6463, %v6440, 0
  %v6744 = vsel %vm6463, %v6441, 0
  %v6747 = vsel %vm6463, %v6442, 0
  %v6750 = vsel %vm6463, %v6443, 0
  %6752 = vmatprep.subr.mxu0 0.0
  %6753 = vmatpush1.msra.mxu0 %v6444
  %6754 = vmatprep.subr.mxu0 0.0
  %6755 = vmatpush1.msra.mxu0 %v6445
  %6756 = vmatprep.subr.mxu0 0.0
  %6757 = vmatpush1.msra.mxu0 %v6446
  %6758 = vmatprep.subr.mxu0 0.0
  %6759 = vmatpush1.msra.mxu0 %v6447
  %6760 = vmatprep.subr.mxu0 0.0
  %6761 = vmatpush1.msra.mxu0 %v6448
  %6762 = vmatprep.subr.mxu0 0.0
  %6763 = vmatpush1.msra.mxu0 %v6449
  %6764 = vmatprep.subr.mxu0 0.0
  %6765 = vmatpush1.msra.mxu0 %v6450
  %6766 = vmatprep.subr.mxu0 0.0
  %6767 = vmatpush1.msra.mxu0 %v6451
  %6768 = vmatprep.subr.mxu0 0.0
  %6769 = vmatpush1.msra.mxu0 %v6452
  %6770 = vmatprep.subr.mxu0 0.0
  %6771 = vmatpush1.msra.mxu0 %v6453
  %6772 = vmatprep.subr.mxu0 0.0
  %6773 = vmatpush1.msra.mxu0 %v6454
  %6774 = vmatprep.subr.mxu0 0.0
  %6775 = vmatpush1.msra.mxu0 %v6455
  %6776 = vmatprep.subr.mxu0 0.0
  %6777 = vmatpush1.msra.mxu0 0.0
  %6778 = vmatprep.subr.mxu0 0.0
  %6779 = vmatpush1.msra.mxu0 0.0
  %6780 = vmatprep.subr.mxu0 0.0
  %6781 = vmatpush1.msra.mxu0 0.0
  %6782 = vmatprep.subr.mxu0 0.0
  %6783 = vmatpush1.msra.mxu0 0.0
  %6784 = vmatprep.subr.mxu0 0.0
  %6785 = vmatpush1.msra.mxu0 0.0
  %6786 = vmatprep.subr.mxu0 0.0
  %6787 = vmatpush1.msra.mxu0 0.0
  %6788 = vmatprep.subr.mxu0 0.0
  %6789 = vmatpush1.msra.mxu0 0.0
  %6790 = vmatprep.subr.mxu0 0.0
  %6791 = vmatpush1.msra.mxu0 0.0
  %6792 = vmatprep.subr.mxu0 0.0
  %6793 = vmatpush1.msra.mxu0 0.0
  %6794 = vmatprep.subr.mxu0 0.0
  %6795 = vmatpush1.msra.mxu0 0.0
  %6796 = vmatprep.subr.mxu0 0.0
  %6797 = vmatpush1.msra.mxu0 0.0
  %6798 = vmatprep.subr.mxu0 0.0
  %6799 = vmatpush1.msra.mxu0 0.0
  %6800 = vmatprep.subr.mxu0 0.0
  %6801 = vmatpush1.msra.mxu0 0.0
  %6802 = vmatprep.subr.mxu0 0.0
  %6803 = vmatpush1.msra.mxu0 0.0
  %6804 = vmatprep.subr.mxu0 0.0
  %6805 = vmatpush1.msra.mxu0 0.0
  %6806 = vmatprep.subr.mxu0 0.0
  %6807 = vmatpush1.msra.mxu0 0.0
  %6808 = vmatprep.subr.mxu0 0.0
  %6809 = vmatpush1.msra.mxu0 0.0
  %6810 = vmatprep.subr.mxu0 0.0
  %6811 = vmatpush1.msra.mxu0 0.0
  %6812 = vmatprep.subr.mxu0 0.0
  %6813 = vmatpush1.msra.mxu0 0.0
  %6814 = vmatprep.subr.mxu0 0.0
  %6815 = vmatpush1.msra.mxu0 0.0
  %6816 = vmatprep.mubr.f32.mxu0 0.0
  %6817 = vmatmul.mubr.f32.gmra.mrb[0].mxu0 %v6465
  %v6818 = vpop.f32.mrb[0].mxu0
  %v6819 = vadd.f32 %v6461, %v6818
  %v6820 = vpop.f32.mrb[0].mxu0
  %6821 = vmatprep.mubr.f32.mxu0 0.0
  %6822 = vmatmul.mubr.f32.gmra.mrb[0].mxu0 %v6468
  %v6823 = vpop.f32.mrb[0].mxu0
  %v6824 = vadd.f32 %v6461, %v6823
  %v6825 = vpop.f32.mrb[0].mxu0
  %6826 = vmatprep.mubr.f32.mxu0 0.0
  %6827 = vmatmul.mubr.f32.gmra.mrb[0].mxu0 %v6471
  %v6828 = vpop.f32.mrb[0].mxu0
  %v6829 = vadd.f32 %v6461, %v6828
  %v6830 = vpop.f32.mrb[0].mxu0
  %6831 = vmatprep.mubr.f32.mxu0 0.0
  %6832 = vmatmul.mubr.f32.gmra.mrb[0].mxu0 %v6474
  %v6833 = vpop.f32.mrb[0].mxu0
  %v6834 = vadd.f32 %v6461, %v6833
  %v6835 = vpop.f32.mrb[0].mxu0
  %6836 = vmatprep.mubr.f32.mxu0 0.0
  %6837 = vmatmul.mubr.f32.gmra.mrb[0].mxu0 %v6477
  %v6838 = vpop.f32.mrb[0].mxu0
  %v6839 = vadd.f32 %v6461, %v6838
  %v6840 = vpop.f32.mrb[0].mxu0
  %6841 = vmatprep.mubr.f32.mxu0 0.0
  %6842 = vmatmul.mubr.f32.gmra.mrb[0].mxu0 %v6480
  %v6843 = vpop.f32.mrb[0].mxu0
  %v6844 = vadd.f32 %v6461, %v6843
  %v6845 = vpop.f32.mrb[0].mxu0
  %6846 = vmatprep.mubr.f32.mxu0 0.0
  %6847 = vmatmul.mubr.f32.gmra.mrb[0].mxu0 %v6483
  %v6848 = vpop.f32.mrb[0].mxu0
  %v6849 = vadd.f32 %v6461, %v6848
  %v6850 = vpop.f32.mrb[0].mxu0
  %6851 = vmatprep.mubr.f32.mxu0 0.0
  %6852 = vmatmul.mubr.f32.gmra.mrb[0].mxu0 %v6486
  %v6853 = vpop.f32.mrb[0].mxu0
  %v6854 = vadd.f32 %v6461, %v6853
  %v6855 = vpop.f32.mrb[0].mxu0
  %6856 = vmatprep.mubr.f32.mxu0 0.0
  %6857 = vmatmul.mubr.f32.gmra.mrb[0].mxu0 %v6489
  %v6858 = vpop.f32.mrb[0].mxu0
  %v6859 = vadd.f32 %v6461, %v6858
  %v6860 = vpop.f32.mrb[0].mxu0
  %6861 = vmatprep.mubr.f32.mxu0 0.0
  %6862 = vmatmul.mubr.f32.gmra.mrb[0].mxu0 %v6492
  %v6863 = vpop.f32.mrb[0].mxu0
  %v6864 = vadd.f32 %v6461, %v6863
  %v6865 = vpop.f32.mrb[0].mxu0
  %6866 = vmatprep.mubr.f32.mxu0 0.0
  %6867 = vmatmul.mubr.f32.gmra.mrb[0].mxu0 %v6495
  %v6868 = vpop.f32.mrb[0].mxu0
  %v6869 = vadd.f32 %v6461, %v6868
  %v6870 = vpop.f32.mrb[0].mxu0
  %6871 = vmatprep.mubr.f32.mxu0 0.0
  %6872 = vmatmul.mubr.f32.gmra.mrb[0].mxu0 %v6498
  %v6873 = vpop.f32.mrb[0].mxu0
  %v6874 = vadd.f32 %v6461, %v6873
  %v6875 = vpop.f32.mrb[0].mxu0
  %6876 = vmatprep.mubr.f32.mxu0 0.0
  %6877 = vmatmul.mubr.f32.gmra.mrb[0].mxu0 %v6501
  %v6878 = vpop.f32.mrb[0].mxu0
  %v6879 = vadd.f32 %v6461, %v6878
  %v6880 = vpop.f32.mrb[0].mxu0
  %6881 = vmatprep.mubr.f32.mxu0 0.0
  %6882 = vmatmul.mubr.f32.gmra.mrb[0].mxu0 %v6504
  %v6883 = vpop.f32.mrb[0].mxu0
  %v6884 = vadd.f32 %v6461, %v6883
  %v6885 = vpop.f32.mrb[0].mxu0
  %6886 = vmatprep.mubr.f32.mxu0 0.0
  %6887 = vmatmul.mubr.f32.gmra.mrb[0].mxu0 %v6507
  %v6888 = vpop.f32.mrb[0].mxu0
  %v6889 = vadd.f32 %v6461, %v6888
  %v6890 = vpop.f32.mrb[0].mxu0
  %6891 = vmatprep.mubr.f32.mxu0 0.0
  %6892 = vmatmul.mubr.f32.gmra.mrb[0].mxu0 %v6510
  %v6893 = vpop.f32.mrb[0].mxu0
  %v6894 = vadd.f32 %v6461, %v6893
  %v6895 = vpop.f32.mrb[0].mxu0
  %6896 = vmatprep.mubr.f32.mxu0 0.0
  %6897 = vmatmul.mubr.f32.gmra.mrb[0].mxu0 %v6513
  %v6898 = vpop.f32.mrb[0].mxu0
  %v6899 = vadd.f32 %v6461, %v6898
  %v6900 = vpop.f32.mrb[0].mxu0
  %6901 = vmatprep.mubr.f32.mxu0 0.0
  %6902 = vmatmul.mubr.f32.gmra.mrb[0].mxu0 %v6516
  %v6903 = vpop.f32.mrb[0].mxu0
  %v6904 = vadd.f32 %v6461, %v6903
  %v6905 = vpop.f32.mrb[0].mxu0
  %6906 = vmatprep.mubr.f32.mxu0 0.0
  %6907 = vmatmul.mubr.f32.gmra.mrb[0].mxu0 %v6519
  %v6908 = vpop.f32.mrb[0].mxu0
  %v6909 = vadd.f32 %v6461, %v6908
  %v6910 = vpop.f32.mrb[0].mxu0
  %6911 = vmatprep.mubr.f32.mxu0 0.0
  %6912 = vmatmul.mubr.f32.gmra.mrb[0].mxu0 %v6522
  %v6913 = vpop.f32.mrb[0].mxu0
  %v6914 = vadd.f32 %v6461, %v6913
  %v6915 = vpop.f32.mrb[0].mxu0
  %6916 = vmatprep.mubr.f32.mxu0 0.0
  %6917 = vmatmul.mubr.f32.gmra.mrb[0].mxu0 %v6525
  %v6918 = vpop.f32.mrb[0].mxu0
  %v6919 = vadd.f32 %v6461, %v6918
  %v6920 = vpop.f32.mrb[0].mxu0
  %6921 = vmatprep.mubr.f32.mxu0 0.0
  %6922 = vmatmul.mubr.f32.gmra.mrb[0].mxu0 %v6528
  %v6923 = vpop.f32.mrb[0].mxu0
  %v6924 = vadd.f32 %v6461, %v6923
  %v6925 = vpop.f32.mrb[0].mxu0
  %6926 = vmatprep.mubr.f32.mxu0 0.0
  %6927 = vmatmul.mubr.f32.gmra.mrb[0].mxu0 %v6531
  %v6928 = vpop.f32.mrb[0].mxu0
  %v6929 = vadd.f32 %v6461, %v6928
  %v6930 = vpop.f32.mrb[0].mxu0
  %6931 = vmatprep.mubr.f32.mxu0 0.0
  %6932 = vmatmul.mubr.f32.gmra.mrb[0].mxu0 %v6534
  %v6933 = vpop.f32.mrb[0].mxu0
  %v6934 = vadd.f32 %v6461, %v6933
  %v6935 = vpop.f32.mrb[0].mxu0
  %6936 = vmatprep.mubr.f32.mxu0 0.0
  %6937 = vmatmul.mubr.f32.gmra.mrb[0].mxu0 %v6537
  %v6938 = vpop.f32.mrb[0].mxu0
  %v6939 = vadd.f32 %v6461, %v6938
  %v6940 = vpop.f32.mrb[0].mxu0
  %6941 = vmatprep.mubr.f32.mxu0 0.0
  %6942 = vmatmul.mubr.f32.gmra.mrb[0].mxu0 %v6540
  %v6943 = vpop.f32.mrb[0].mxu0
  %v6944 = vadd.f32 %v6461, %v6943
  %v6945 = vpop.f32.mrb[0].mxu0
  %6946 = vmatprep.mubr.f32.mxu0 0.0
  %6947 = vmatmul.mubr.f32.gmra.mrb[0].mxu0 %v6543
  %v6948 = vpop.f32.mrb[0].mxu0
  %v6949 = vadd.f32 %v6461, %v6948
  %v6950 = vpop.f32.mrb[0].mxu0
  %6951 = vmatprep.mubr.f32.mxu0 0.0
  %6952 = vmatmul.mubr.f32.gmra.mrb[0].mxu0 %v6546
  %v6953 = vpop.f32.mrb[0].mxu0
  %v6954 = vadd.f32 %v6461, %v6953
  %v6955 = vpop.f32.mrb[0].mxu0
  %6956 = vmatprep.mubr.f32.mxu0 0.0
  %6957 = vmatmul.mubr.f32.gmra.mrb[0].mxu0 %v6549
  %v6958 = vpop.f32.mrb[0].mxu0
  %v6959 = vadd.f32 %v6461, %v6958
  %v6960 = vpop.f32.mrb[0].mxu0
  %6961 = vmatprep.mubr.f32.mxu0 0.0
  %6962 = vmatmul.mubr.f32.gmra.mrb[0].mxu0 %v6552
  %v6963 = vpop.f32.mrb[0].mxu0
  %v6964 = vadd.f32 %v6461, %v6963
  %v6965 = vpop.f32.mrb[0].mxu0
  %6966 = vmatprep.mubr.f32.mxu0 0.0
  %6967 = vmatmul.mubr.f32.gmra.mrb[0].mxu0 %v6555
  %v6968 = vpop.f32.mrb[0].mxu0
  %v6969 = vadd.f32 %v6461, %v6968
  %v6970 = vpop.f32.mrb[0].mxu0
  %6971 = vmatprep.mubr.f32.mxu0 0.0
  %6972 = vmatmul.mubr.f32.gmra.mrb[0].mxu0 %v6558
  %v6973 = vpop.f32.mrb[0].mxu0
  %v6974 = vadd.f32 %v6461, %v6973
  %v6975 = vpop.f32.mrb[0].mxu0
  %6976 = vmatprep.mubr.f32.mxu0 0.0
  %6977 = vmatmul.mubr.f32.gmra.mrb[0].mxu0 %v6561
  %v6978 = vpop.f32.mrb[0].mxu0
  %v6979 = vadd.f32 %v6461, %v6978
  %v6980 = vpop.f32.mrb[0].mxu0
  %6981 = vmatprep.mubr.f32.mxu0 0.0
  %6982 = vmatmul.mubr.f32.gmra.mrb[0].mxu0 %v6564
  %v6983 = vpop.f32.mrb[0].mxu0
  %v6984 = vadd.f32 %v6461, %v6983
  %v6985 = vpop.f32.mrb[0].mxu0
  %6986 = vmatprep.mubr.f32.mxu0 0.0
  %6987 = vmatmul.mubr.f32.gmra.mrb[0].mxu0 %v6567
  %v6988 = vpop.f32.mrb[0].mxu0
  %v6989 = vadd.f32 %v6461, %v6988
  %v6990 = vpop.f32.mrb[0].mxu0
  %6991 = vmatprep.mubr.f32.mxu0 0.0
  %6992 = vmatmul.mubr.f32.gmra.mrb[0].mxu0 %v6570
  %v6993 = vpop.f32.mrb[0].mxu0
  %v6994 = vadd.f32 %v6461, %v6993
  %v6995 = vpop.f32.mrb[0].mxu0
  %6996 = vmatprep.mubr.f32.mxu0 0.0
  %6997 = vmatmul.mubr.f32.gmra.mrb[0].mxu0 %v6573
  %v6998 = vpop.f32.mrb[0].mxu0
  %v6999 = vadd.f32 %v6461, %v6998
  %v7000 = vpop.f32.mrb[0].mxu0
  %7001 = vmatprep.mubr.f32.mxu0 0.0
  %7002 = vmatmul.mubr.f32.gmra.mrb[0].mxu0 %v6576
  %v7003 = vpop.f32.mrb[0].mxu0
  %v7004 = vadd.f32 %v6461, %v7003
  %v7005 = vpop.f32.mrb[0].mxu0
  %7006 = vmatprep.mubr.f32.mxu0 0.0
  %7007 = vmatmul.mubr.f32.gmra.mrb[0].mxu0 %v6579
  %v7008 = vpop.f32.mrb[0].mxu0
  %v7009 = vadd.f32 %v6461, %v7008
  %v7010 = vpop.f32.mrb[0].mxu0
  %7011 = vmatprep.mubr.f32.mxu0 0.0
  %7012 = vmatmul.mubr.f32.gmra.mrb[0].mxu0 %v6582
  %v7013 = vpop.f32.mrb[0].mxu0
  %v7014 = vadd.f32 %v6461, %v7013
  %v7015 = vpop.f32.mrb[0].mxu0
  %7016 = vmatprep.mubr.f32.mxu0 0.0
  %7017 = vmatmul.mubr.f32.gmra.mrb[0].mxu0 %v6585
  %v7018 = vpop.f32.mrb[0].mxu0
  %v7019 = vadd.f32 %v6461, %v7018
  %v7020 = vpop.f32.mrb[0].mxu0
  %7021 = vmatprep.mubr.f32.mxu0 0.0
  %7022 = vmatmul.mubr.f32.gmra.mrb[0].mxu0 %v6588
  %v7023 = vpop.f32.mrb[0].mxu0
  %v7024 = vadd.f32 %v6461, %v7023
  %v7025 = vpop.f32.mrb[0].mxu0
  %7026 = vmatprep.mubr.f32.mxu0 0.0
  %7027 = vmatmul.mubr.f32.gmra.mrb[0].mxu0 %v6591
  %v7028 = vpop.f32.mrb[0].mxu0
  %v7029 = vadd.f32 %v6461, %v7028
  %v7030 = vpop.f32.mrb[0].mxu0
  %7031 = vmatprep.mubr.f32.mxu0 0.0
  %7032 = vmatmul.mubr.f32.gmra.mrb[0].mxu0 %v6594
  %v7033 = vpop.f32.mrb[0].mxu0
  %v7034 = vadd.f32 %v6461, %v7033
  %v7035 = vpop.f32.mrb[0].mxu0
  %7036 = vmatprep.mubr.f32.mxu0 0.0
  %7037 = vmatmul.mubr.f32.gmra.mrb[0].mxu0 %v6597
  %v7038 = vpop.f32.mrb[0].mxu0
  %v7039 = vadd.f32 %v6461, %v7038
  %v7040 = vpop.f32.mrb[0].mxu0
  %7041 = vmatprep.mubr.f32.mxu0 0.0
  %7042 = vmatmul.mubr.f32.gmra.mrb[0].mxu0 %v6600
  %v7043 = vpop.f32.mrb[0].mxu0
  %v7044 = vadd.f32 %v6461, %v7043
  %v7045 = vpop.f32.mrb[0].mxu0
  %7046 = vmatprep.mubr.f32.mxu0 0.0
  %7047 = vmatmul.mubr.f32.gmra.mrb[0].mxu0 %v6603
  %v7048 = vpop.f32.mrb[0].mxu0
  %v7049 = vadd.f32 %v6461, %v7048
  %v7050 = vpop.f32.mrb[0].mxu0
  %7051 = vmatprep.mubr.f32.mxu0 0.0
  %7052 = vmatmul.mubr.f32.gmra.mrb[0].mxu0 %v6606
  %v7053 = vpop.f32.mrb[0].mxu0
  %v7054 = vadd.f32 %v6461, %v7053
  %v7055 = vpop.f32.mrb[0].mxu0
  %7056 = vmatprep.mubr.f32.mxu0 0.0
  %7057 = vmatmul.mubr.f32.gmra.mrb[0].mxu0 %v6609
  %v7058 = vpop.f32.mrb[0].mxu0
  %v7059 = vadd.f32 %v6461, %v7058
  %v7060 = vpop.f32.mrb[0].mxu0
  %7061 = vmatprep.mubr.f32.mxu0 0.0
  %7062 = vmatmul.mubr.f32.gmra.mrb[0].mxu0 %v6612
  %v7063 = vpop.f32.mrb[0].mxu0
  %v7064 = vadd.f32 %v6461, %v7063
  %v7065 = vpop.f32.mrb[0].mxu0
  %7066 = vmatprep.mubr.f32.mxu0 0.0
  %7067 = vmatmul.mubr.f32.gmra.mrb[0].mxu0 %v6615
  %v7068 = vpop.f32.mrb[0].mxu0
  %v7069 = vadd.f32 %v6461, %v7068
  %v7070 = vpop.f32.mrb[0].mxu0
  %7071 = vmatprep.mubr.f32.mxu0 0.0
  %7072 = vmatmul.mubr.f32.gmra.mrb[0].mxu0 %v6618
  %v7073 = vpop.f32.mrb[0].mxu0
  %v7074 = vadd.f32 %v6461, %v7073
  %v7075 = vpop.f32.mrb[0].mxu0
  %7076 = vmatprep.mubr.f32.mxu0 0.0
  %7077 = vmatmul.mubr.f32.gmra.mrb[0].mxu0 %v6621
  %v7078 = vpop.f32.mrb[0].mxu0
  %v7079 = vadd.f32 %v6461, %v7078
  %v7080 = vpop.f32.mrb[0].mxu0
  %7081 = vmatprep.mubr.f32.mxu0 0.0
  %7082 = vmatmul.mubr.f32.gmra.mrb[0].mxu0 %v6624
  %v7083 = vpop.f32.mrb[0].mxu0
  %v7084 = vadd.f32 %v6461, %v7083
  %v7085 = vpop.f32.mrb[0].mxu0
  %7086 = vmatprep.mubr.f32.mxu0 0.0
  %7087 = vmatmul.mubr.f32.gmra.mrb[0].mxu0 %v6627
  %v7088 = vpop.f32.mrb[0].mxu0
  %v7089 = vadd.f32 %v6461, %v7088
  %v7090 = vpop.f32.mrb[0].mxu0
  %7091 = vmatprep.mubr.f32.mxu0 0.0
  %7092 = vmatmul.mubr.f32.gmra.mrb[0].mxu0 %v6630
  %v7093 = vpop.f32.mrb[0].mxu0
  %v7094 = vadd.f32 %v6461, %v7093
  %v7095 = vpop.f32.mrb[0].mxu0
  %7096 = vmatprep.mubr.f32.mxu0 0.0
  %7097 = vmatmul.mubr.f32.gmra.mrb[0].mxu0 %v6633
  %v7098 = vpop.f32.mrb[0].mxu0
  %v7099 = vadd.f32 %v6461, %v7098
  %v7100 = vpop.f32.mrb[0].mxu0
  %7101 = vmatprep.mubr.f32.mxu0 0.0
  %7102 = vmatmul.mubr.f32.gmra.mrb[0].mxu0 %v6636
  %v7103 = vpop.f32.mrb[0].mxu0
  %v7104 = vadd.f32 %v6461, %v7103
  %v7105 = vpop.f32.mrb[0].mxu0
  %7106 = vmatprep.mubr.f32.mxu0 0.0
  %7107 = vmatmul.mubr.f32.gmra.mrb[0].mxu0 %v6639
  %v7108 = vpop.f32.mrb[0].mxu0
  %v7109 = vadd.f32 %v6461, %v7108
  %v7110 = vpop.f32.mrb[0].mxu0
  %7111 = vmatprep.mubr.f32.mxu0 0.0
  %7112 = vmatmul.mubr.f32.gmra.mrb[0].mxu0 %v6642
  %v7113 = vpop.f32.mrb[0].mxu0
  %v7114 = vadd.f32 %v6461, %v7113
  %v7115 = vpop.f32.mrb[0].mxu0
  %7116 = vmatprep.mubr.f32.mxu0 0.0
  %7117 = vmatmul.mubr.f32.gmra.mrb[0].mxu0 %v6645
  %v7118 = vpop.f32.mrb[0].mxu0
  %v7119 = vadd.f32 %v6461, %v7118
  %v7120 = vpop.f32.mrb[0].mxu0
  %7121 = vmatprep.mubr.f32.mxu0 0.0
  %7122 = vmatmul.mubr.f32.gmra.mrb[0].mxu0 %v6648
  %v7123 = vpop.f32.mrb[0].mxu0
  %v7124 = vadd.f32 %v6461, %v7123
  %v7125 = vpop.f32.mrb[0].mxu0
  %7126 = vmatprep.mubr.f32.mxu0 0.0
  %7127 = vmatmul.mubr.f32.gmra.mrb[0].mxu0 %v6651
  %v7128 = vpop.f32.mrb[0].mxu0
  %v7129 = vadd.f32 %v6461, %v7128
  %v7130 = vpop.f32.mrb[0].mxu0
  %7131 = vmatprep.mubr.f32.mxu0 0.0
  %7132 = vmatmul.mubr.f32.gmra.mrb[0].mxu0 %v6654
  %v7133 = vpop.f32.mrb[0].mxu0
  %v7134 = vadd.f32 %v6461, %v7133
  %v7135 = vpop.f32.mrb[0].mxu0
  %7136 = vmatprep.mubr.f32.mxu0 0.0
  %7137 = vmatmul.mubr.f32.gmra.mrb[0].mxu0 %v6657
  %v7138 = vpop.f32.mrb[0].mxu0
  %v7139 = vadd.f32 %v6461, %v7138
  %v7140 = vpop.f32.mrb[0].mxu0
  %7141 = vmatprep.mubr.f32.mxu0 0.0
  %7142 = vmatmul.mubr.f32.gmra.mrb[0].mxu0 %v6660
  %v7143 = vpop.f32.mrb[0].mxu0
  %v7144 = vadd.f32 %v6461, %v7143
  %v7145 = vpop.f32.mrb[0].mxu0
  %7146 = vmatprep.mubr.f32.mxu0 0.0
  %7147 = vmatmul.mubr.f32.gmra.mrb[0].mxu0 %v6663
  %v7148 = vpop.f32.mrb[0].mxu0
  %v7149 = vadd.f32 %v6461, %v7148
  %v7150 = vpop.f32.mrb[0].mxu0
  %7151 = vmatprep.mubr.f32.mxu0 0.0
  %7152 = vmatmul.mubr.f32.gmra.mrb[0].mxu0 %v6666
  %v7153 = vpop.f32.mrb[0].mxu0
  %v7154 = vadd.f32 %v6461, %v7153
  %v7155 = vpop.f32.mrb[0].mxu0
  %7156 = vmatprep.mubr.f32.mxu0 0.0
  %7157 = vmatmul.mubr.f32.gmra.mrb[0].mxu0 %v6669
  %v7158 = vpop.f32.mrb[0].mxu0
  %v7159 = vadd.f32 %v6461, %v7158
  %v7160 = vpop.f32.mrb[0].mxu0
  %7161 = vmatprep.mubr.f32.mxu0 0.0
  %7162 = vmatmul.mubr.f32.gmra.mrb[0].mxu0 %v6672
  %v7163 = vpop.f32.mrb[0].mxu0
  %v7164 = vadd.f32 %v6461, %v7163
  %v7165 = vpop.f32.mrb[0].mxu0
  %7166 = vmatprep.mubr.f32.mxu0 0.0
  %7167 = vmatmul.mubr.f32.gmra.mrb[0].mxu0 %v6675
  %v7168 = vpop.f32.mrb[0].mxu0
  %v7169 = vadd.f32 %v6461, %v7168
  %v7170 = vpop.f32.mrb[0].mxu0
  %7171 = vmatprep.mubr.f32.mxu0 0.0
  %7172 = vmatmul.mubr.f32.gmra.mrb[0].mxu0 %v6678
  %v7173 = vpop.f32.mrb[0].mxu0
  %v7174 = vadd.f32 %v6461, %v7173
  %v7175 = vpop.f32.mrb[0].mxu0
  %7176 = vmatprep.mubr.f32.mxu0 0.0
  %7177 = vmatmul.mubr.f32.gmra.mrb[0].mxu0 %v6681
  %v7178 = vpop.f32.mrb[0].mxu0
  %v7179 = vadd.f32 %v6461, %v7178
  %v7180 = vpop.f32.mrb[0].mxu0
  %7181 = vmatprep.mubr.f32.mxu0 0.0
  %7182 = vmatmul.mubr.f32.gmra.mrb[0].mxu0 %v6684
  %v7183 = vpop.f32.mrb[0].mxu0
  %v7184 = vadd.f32 %v6461, %v7183
  %v7185 = vpop.f32.mrb[0].mxu0
  %7186 = vmatprep.mubr.f32.mxu0 0.0
  %7187 = vmatmul.mubr.f32.gmra.mrb[0].mxu0 %v6687
  %v7188 = vpop.f32.mrb[0].mxu0
  %v7189 = vadd.f32 %v6461, %v7188
  %v7190 = vpop.f32.mrb[0].mxu0
  %7191 = vmatprep.mubr.f32.mxu0 0.0
  %7192 = vmatmul.mubr.f32.gmra.mrb[0].mxu0 %v6690
  %v7193 = vpop.f32.mrb[0].mxu0
  %v7194 = vadd.f32 %v6461, %v7193
  %v7195 = vpop.f32.mrb[0].mxu0
  %7196 = vmatprep.mubr.f32.mxu0 0.0
  %7197 = vmatmul.mubr.f32.gmra.mrb[0].mxu0 %v6693
  %v7198 = vpop.f32.mrb[0].mxu0
  %v7199 = vadd.f32 %v6461, %v7198
  %v7200 = vpop.f32.mrb[0].mxu0
  %7201 = vmatprep.mubr.f32.mxu0 0.0
  %7202 = vmatmul.mubr.f32.gmra.mrb[0].mxu0 %v6696
  %v7203 = vpop.f32.mrb[0].mxu0
  %v7204 = vadd.f32 %v6461, %v7203
  %v7205 = vpop.f32.mrb[0].mxu0
  %7206 = vmatprep.mubr.f32.mxu0 0.0
  %7207 = vmatmul.mubr.f32.gmra.mrb[0].mxu0 %v6699
  %v7208 = vpop.f32.mrb[0].mxu0
  %v7209 = vadd.f32 %v6461, %v7208
  %v7210 = vpop.f32.mrb[0].mxu0
  %7211 = vmatprep.mubr.f32.mxu0 0.0
  %7212 = vmatmul.mubr.f32.gmra.mrb[0].mxu0 %v6702
  %v7213 = vpop.f32.mrb[0].mxu0
  %v7214 = vadd.f32 %v6461, %v7213
  %v7215 = vpop.f32.mrb[0].mxu0
  %7216 = vmatprep.mubr.f32.mxu0 0.0
  %7217 = vmatmul.mubr.f32.gmra.mrb[0].mxu0 %v6705
  %v7218 = vpop.f32.mrb[0].mxu0
  %v7219 = vadd.f32 %v6461, %v7218
  %v7220 = vpop.f32.mrb[0].mxu0
  %7221 = vmatprep.mubr.f32.mxu0 0.0
  %7222 = vmatmul.mubr.f32.gmra.mrb[0].mxu0 %v6708
  %v7223 = vpop.f32.mrb[0].mxu0
  %v7224 = vadd.f32 %v6461, %v7223
  %v7225 = vpop.f32.mrb[0].mxu0
  %7226 = vmatprep.mubr.f32.mxu0 0.0
  %7227 = vmatmul.mubr.f32.gmra.mrb[0].mxu0 %v6711
  %v7228 = vpop.f32.mrb[0].mxu0
  %v7229 = vadd.f32 %v6461, %v7228
  %v7230 = vpop.f32.mrb[0].mxu0
  %7231 = vmatprep.mubr.f32.mxu0 0.0
  %7232 = vmatmul.mubr.f32.gmra.mrb[0].mxu0 %v6714
  %v7233 = vpop.f32.mrb[0].mxu0
  %v7234 = vadd.f32 %v6461, %v7233
  %v7235 = vpop.f32.mrb[0].mxu0
  %7236 = vmatprep.mubr.f32.mxu0 0.0
  %7237 = vmatmul.mubr.f32.gmra.mrb[0].mxu0 %v6717
  %v7238 = vpop.f32.mrb[0].mxu0
  %v7239 = vadd.f32 %v6461, %v7238
  %v7240 = vpop.f32.mrb[0].mxu0
  %7241 = vmatprep.mubr.f32.mxu0 0.0
  %7242 = vmatmul.mubr.f32.gmra.mrb[0].mxu0 %v6720
  %v7243 = vpop.f32.mrb[0].mxu0
  %v7244 = vadd.f32 %v6461, %v7243
  %v7245 = vpop.f32.mrb[0].mxu0
  %7246 = vmatprep.mubr.f32.mxu0 0.0
  %7247 = vmatmul.mubr.f32.gmra.mrb[0].mxu0 %v6723
  %v7248 = vpop.f32.mrb[0].mxu0
  %v7249 = vadd.f32 %v6461, %v7248
  %v7250 = vpop.f32.mrb[0].mxu0
  %7251 = vmatprep.mubr.f32.mxu0 0.0
  %7252 = vmatmul.mubr.f32.gmra.mrb[0].mxu0 %v6726
  %v7253 = vpop.f32.mrb[0].mxu0
  %v7254 = vadd.f32 %v6461, %v7253
  %v7255 = vpop.f32.mrb[0].mxu0
  %7256 = vmatprep.mubr.f32.mxu0 0.0
  %7257 = vmatmul.mubr.f32.gmra.mrb[0].mxu0 %v6729
  %v7258 = vpop.f32.mrb[0].mxu0
  %v7259 = vadd.f32 %v6461, %v7258
  %v7260 = vpop.f32.mrb[0].mxu0
  %7261 = vmatprep.mubr.f32.mxu0 0.0
  %7262 = vmatmul.mubr.f32.gmra.mrb[0].mxu0 %v6732
  %v7263 = vpop.f32.mrb[0].mxu0
  %v7264 = vadd.f32 %v6461, %v7263
  %v7265 = vpop.f32.mrb[0].mxu0
  %7266 = vmatprep.mubr.f32.mxu0 0.0
  %7267 = vmatmul.mubr.f32.gmra.mrb[0].mxu0 %v6735
  %v7268 = vpop.f32.mrb[0].mxu0
  %v7269 = vadd.f32 %v6461, %v7268
  %v7270 = vpop.f32.mrb[0].mxu0
  %7271 = vmatprep.mubr.f32.mxu0 0.0
  %7272 = vmatmul.mubr.f32.gmra.mrb[0].mxu0 %v6738
  %v7273 = vpop.f32.mrb[0].mxu0
  %v7274 = vadd.f32 %v6461, %v7273
  %v7275 = vpop.f32.mrb[0].mxu0
  %7276 = vmatprep.mubr.f32.mxu0 0.0
  %7277 = vmatmul.mubr.f32.gmra.mrb[0].mxu0 %v6741
  %v7278 = vpop.f32.mrb[0].mxu0
  %v7279 = vadd.f32 %v6461, %v7278
  %v7280 = vpop.f32.mrb[0].mxu0
  %7281 = vmatprep.mubr.f32.mxu0 0.0
  %7282 = vmatmul.mubr.f32.gmra.mrb[0].mxu0 %v6744
  %v7283 = vpop.f32.mrb[0].mxu0
  %v7284 = vadd.f32 %v6461, %v7283
  %v7285 = vpop.f32.mrb[0].mxu0
  %7286 = vmatprep.mubr.f32.mxu0 0.0
  %7287 = vmatmul.mubr.f32.gmra.mrb[0].mxu0 %v6747
  %v7288 = vpop.f32.mrb[0].mxu0
  %v7289 = vadd.f32 %v6461, %v7288
  %v7290 = vpop.f32.mrb[0].mxu0
  %7291 = vmatprep.mubr.f32.mxu0 0.0
  %7292 = vmatmul.mubr.f32.gmra.mrb[0].mxu0 %v6750
  %v7293 = vpop.f32.mrb[0].mxu0
  %v7294 = vadd.f32 %v6461, %v7293
  %v7295 = vpop.f32.mrb[0].mxu0
  %7296 = vdwg.mxu0
  %vm7297 = vcmask 7168
  %v7298 = vsel %vm7297, %v6819, -inf
  %v7299 = vsel %vm7297, %v6824, -inf
  %v7300 = vmax.f32 %v7298, %v7299
  %v7301 = vsel %vm7297, %v6829, -inf
  %v7302 = vmax.f32 %v7300, %v7301
  %v7303 = vsel %vm7297, %v6834, -inf
  %v7304 = vmax.f32 %v7302, %v7303
  %v7305 = vsel %vm7297, %v6839, -inf
  %v7306 = vmax.f32 %v7304, %v7305
  %v7307 = vsel %vm7297, %v6844, -inf
  %v7308 = vmax.f32 %v7306, %v7307
  %v7309 = vsel %vm7297, %v6849, -inf
  %v7310 = vmax.f32 %v7308, %v7309
  %v7311 = vsel %vm7297, %v6854, -inf
  %v7312 = vmax.f32 %v7310, %v7311
  %v7313 = vsel %vm7297, %v6859, -inf
  %v7314 = vmax.f32 %v7312, %v7313
  %v7315 = vsel %vm7297, %v6864, -inf
  %v7316 = vmax.f32 %v7314, %v7315
  %v7317 = vsel %vm7297, %v6869, -inf
  %v7318 = vmax.f32 %v7316, %v7317
  %v7319 = vsel %vm7297, %v6874, -inf
  %v7320 = vmax.f32 %v7318, %v7319
  %v7321 = vrot.slane %v7320, 4
  %v7322 = vmax.f32 %v7320, %v7321
  %v7323 = vrot.slane %v7322, 2
  %v7324 = vmax.f32 %v7322, %v7323
  %v7325 = vrot.slane %v7324, 1
  %v7326 = vmax.f32 %v7324, %v7325
  %v7327 = vsel %vm7297, %v6879, -inf
  %v7328 = vsel %vm7297, %v6884, -inf
  %v7329 = vmax.f32 %v7327, %v7328
  %v7330 = vsel %vm7297, %v6889, -inf
  %v7331 = vmax.f32 %v7329, %v7330
  %v7332 = vsel %vm7297, %v6894, -inf
  %v7333 = vmax.f32 %v7331, %v7332
  %v7334 = vsel %vm7297, %v6899, -inf
  %v7335 = vmax.f32 %v7333, %v7334
  %v7336 = vsel %vm7297, %v6904, -inf
  %v7337 = vmax.f32 %v7335, %v7336
  %v7338 = vsel %vm7297, %v6909, -inf
  %v7339 = vmax.f32 %v7337, %v7338
  %v7340 = vsel %vm7297, %v6914, -inf
  %v7341 = vmax.f32 %v7339, %v7340
  %v7342 = vsel %vm7297, %v6919, -inf
  %v7343 = vmax.f32 %v7341, %v7342
  %v7344 = vsel %vm7297, %v6924, -inf
  %v7345 = vmax.f32 %v7343, %v7344
  %v7346 = vsel %vm7297, %v6929, -inf
  %v7347 = vmax.f32 %v7345, %v7346
  %v7348 = vsel %vm7297, %v6934, -inf
  %v7349 = vmax.f32 %v7347, %v7348
  %v7350 = vrot.slane %v7349, 4
  %v7351 = vmax.f32 %v7349, %v7350
  %v7352 = vrot.slane %v7351, 2
  %v7353 = vmax.f32 %v7351, %v7352
  %v7354 = vrot.slane %v7353, 1
  %v7355 = vmax.f32 %v7353, %v7354
  %v7356 = vsel %vm7297, %v6939, -inf
  %v7357 = vsel %vm7297, %v6944, -inf
  %v7358 = vmax.f32 %v7356, %v7357
  %v7359 = vsel %vm7297, %v6949, -inf
  %v7360 = vmax.f32 %v7358, %v7359
  %v7361 = vsel %vm7297, %v6954, -inf
  %v7362 = vmax.f32 %v7360, %v7361
  %v7363 = vsel %vm7297, %v6959, -inf
  %v7364 = vmax.f32 %v7362, %v7363
  %v7365 = vsel %vm7297, %v6964, -inf
  %v7366 = vmax.f32 %v7364, %v7365
  %v7367 = vsel %vm7297, %v6969, -inf
  %v7368 = vmax.f32 %v7366, %v7367
  %v7369 = vsel %vm7297, %v6974, -inf
  %v7370 = vmax.f32 %v7368, %v7369
  %v7371 = vsel %vm7297, %v6979, -inf
  %v7372 = vmax.f32 %v7370, %v7371
  %v7373 = vsel %vm7297, %v6984, -inf
  %v7374 = vmax.f32 %v7372, %v7373
  %v7375 = vsel %vm7297, %v6989, -inf
  %v7376 = vmax.f32 %v7374, %v7375
  %v7377 = vsel %vm7297, %v6994, -inf
  %v7378 = vmax.f32 %v7376, %v7377
  %v7379 = vrot.slane %v7378, 4
  %v7380 = vmax.f32 %v7378, %v7379
  %v7381 = vrot.slane %v7380, 2
  %v7382 = vmax.f32 %v7380, %v7381
  %v7383 = vrot.slane %v7382, 1
  %v7384 = vmax.f32 %v7382, %v7383
  %v7385 = vsel %vm7297, %v6999, -inf
  %v7386 = vsel %vm7297, %v7004, -inf
  %v7387 = vmax.f32 %v7385, %v7386
  %v7388 = vsel %vm7297, %v7009, -inf
  %v7389 = vmax.f32 %v7387, %v7388
  %v7390 = vsel %vm7297, %v7014, -inf
  %v7391 = vmax.f32 %v7389, %v7390
  %v7392 = vsel %vm7297, %v7019, -inf
  %v7393 = vmax.f32 %v7391, %v7392
  %v7394 = vsel %vm7297, %v7024, -inf
  %v7395 = vmax.f32 %v7393, %v7394
  %v7396 = vsel %vm7297, %v7029, -inf
  %v7397 = vmax.f32 %v7395, %v7396
  %v7398 = vsel %vm7297, %v7034, -inf
  %v7399 = vmax.f32 %v7397, %v7398
  %v7400 = vsel %vm7297, %v7039, -inf
  %v7401 = vmax.f32 %v7399, %v7400
  %v7402 = vsel %vm7297, %v7044, -inf
  %v7403 = vmax.f32 %v7401, %v7402
  %v7404 = vsel %vm7297, %v7049, -inf
  %v7405 = vmax.f32 %v7403, %v7404
  %v7406 = vsel %vm7297, %v7054, -inf
  %v7407 = vmax.f32 %v7405, %v7406
  %v7408 = vrot.slane %v7407, 4
  %v7409 = vmax.f32 %v7407, %v7408
  %v7410 = vrot.slane %v7409, 2
  %v7411 = vmax.f32 %v7409, %v7410
  %v7412 = vrot.slane %v7411, 1
  %v7413 = vmax.f32 %v7411, %v7412
  %v7414 = vsel %vm7297, %v7059, -inf
  %v7415 = vsel %vm7297, %v7064, -inf
  %v7416 = vmax.f32 %v7414, %v7415
  %v7417 = vsel %vm7297, %v7069, -inf
  %v7418 = vmax.f32 %v7416, %v7417
  %v7419 = vsel %vm7297, %v7074, -inf
  %v7420 = vmax.f32 %v7418, %v7419
  %v7421 = vsel %vm7297, %v7079, -inf
  %v7422 = vmax.f32 %v7420, %v7421
  %v7423 = vsel %vm7297, %v7084, -inf
  %v7424 = vmax.f32 %v7422, %v7423
  %v7425 = vsel %vm7297, %v7089, -inf
  %v7426 = vmax.f32 %v7424, %v7425
  %v7427 = vsel %vm7297, %v7094, -inf
  %v7428 = vmax.f32 %v7426, %v7427
  %v7429 = vsel %vm7297, %v7099, -inf
  %v7430 = vmax.f32 %v7428, %v7429
  %v7431 = vsel %vm7297, %v7104, -inf
  %v7432 = vmax.f32 %v7430, %v7431
  %v7433 = vsel %vm7297, %v7109, -inf
  %v7434 = vmax.f32 %v7432, %v7433
  %v7435 = vsel %vm7297, %v7114, -inf
  %v7436 = vmax.f32 %v7434, %v7435
  %v7437 = vrot.slane %v7436, 4
  %v7438 = vmax.f32 %v7436, %v7437
  %v7439 = vrot.slane %v7438, 2
  %v7440 = vmax.f32 %v7438, %v7439
  %v7441 = vrot.slane %v7440, 1
  %v7442 = vmax.f32 %v7440, %v7441
  %v7443 = vsel %vm7297, %v7119, -inf
  %v7444 = vsel %vm7297, %v7124, -inf
  %v7445 = vmax.f32 %v7443, %v7444
  %v7446 = vsel %vm7297, %v7129, -inf
  %v7447 = vmax.f32 %v7445, %v7446
  %v7448 = vsel %vm7297, %v7134, -inf
  %v7449 = vmax.f32 %v7447, %v7448
  %v7450 = vsel %vm7297, %v7139, -inf
  %v7451 = vmax.f32 %v7449, %v7450
  %v7452 = vsel %vm7297, %v7144, -inf
  %v7453 = vmax.f32 %v7451, %v7452
  %v7454 = vsel %vm7297, %v7149, -inf
  %v7455 = vmax.f32 %v7453, %v7454
  %v7456 = vsel %vm7297, %v7154, -inf
  %v7457 = vmax.f32 %v7455, %v7456
  %v7458 = vsel %vm7297, %v7159, -inf
  %v7459 = vmax.f32 %v7457, %v7458
  %v7460 = vsel %vm7297, %v7164, -inf
  %v7461 = vmax.f32 %v7459, %v7460
  %v7462 = vsel %vm7297, %v7169, -inf
  %v7463 = vmax.f32 %v7461, %v7462
  %v7464 = vsel %vm7297, %v7174, -inf
  %v7465 = vmax.f32 %v7463, %v7464
  %v7466 = vrot.slane %v7465, 4
  %v7467 = vmax.f32 %v7465, %v7466
  %v7468 = vrot.slane %v7467, 2
  %v7469 = vmax.f32 %v7467, %v7468
  %v7470 = vrot.slane %v7469, 1
  %v7471 = vmax.f32 %v7469, %v7470
  %v7472 = vsel %vm7297, %v7179, -inf
  %v7473 = vsel %vm7297, %v7184, -inf
  %v7474 = vmax.f32 %v7472, %v7473
  %v7475 = vsel %vm7297, %v7189, -inf
  %v7476 = vmax.f32 %v7474, %v7475
  %v7477 = vsel %vm7297, %v7194, -inf
  %v7478 = vmax.f32 %v7476, %v7477
  %v7479 = vsel %vm7297, %v7199, -inf
  %v7480 = vmax.f32 %v7478, %v7479
  %v7481 = vsel %vm7297, %v7204, -inf
  %v7482 = vmax.f32 %v7480, %v7481
  %v7483 = vsel %vm7297, %v7209, -inf
  %v7484 = vmax.f32 %v7482, %v7483
  %v7485 = vsel %vm7297, %v7214, -inf
  %v7486 = vmax.f32 %v7484, %v7485
  %v7487 = vsel %vm7297, %v7219, -inf
  %v7488 = vmax.f32 %v7486, %v7487
  %v7489 = vsel %vm7297, %v7224, -inf
  %v7490 = vmax.f32 %v7488, %v7489
  %v7491 = vsel %vm7297, %v7229, -inf
  %v7492 = vmax.f32 %v7490, %v7491
  %v7493 = vsel %vm7297, %v7234, -inf
  %v7494 = vmax.f32 %v7492, %v7493
  %v7495 = vrot.slane %v7494, 4
  %v7496 = vmax.f32 %v7494, %v7495
  %v7497 = vrot.slane %v7496, 2
  %v7498 = vmax.f32 %v7496, %v7497
  %v7499 = vrot.slane %v7498, 1
  %v7500 = vmax.f32 %v7498, %v7499
  %v7501 = vsel %vm7297, %v7239, -inf
  %v7502 = vsel %vm7297, %v7244, -inf
  %v7503 = vmax.f32 %v7501, %v7502
  %v7504 = vsel %vm7297, %v7249, -inf
  %v7505 = vmax.f32 %v7503, %v7504
  %v7506 = vsel %vm7297, %v7254, -inf
  %v7507 = vmax.f32 %v7505, %v7506
  %v7508 = vsel %vm7297, %v7259, -inf
  %v7509 = vmax.f32 %v7507, %v7508
  %v7510 = vsel %vm7297, %v7264, -inf
  %v7511 = vmax.f32 %v7509, %v7510
  %v7512 = vsel %vm7297, %v7269, -inf
  %v7513 = vmax.f32 %v7511, %v7512
  %v7514 = vsel %vm7297, %v7274, -inf
  %v7515 = vmax.f32 %v7513, %v7514
  %v7516 = vsel %vm7297, %v7279, -inf
  %v7517 = vmax.f32 %v7515, %v7516
  %v7518 = vsel %vm7297, %v7284, -inf
  %v7519 = vmax.f32 %v7517, %v7518
  %v7520 = vsel %vm7297, %v7289, -inf
  %v7521 = vmax.f32 %v7519, %v7520
  %v7522 = vsel %vm7297, %v7294, -inf
  %v7523 = vmax.f32 %v7521, %v7522
  %v7524 = vrot.slane %v7523, 4
  %v7525 = vmax.f32 %v7523, %v7524
  %v7526 = vrot.slane %v7525, 2
  %v7527 = vmax.f32 %v7525, %v7526
  %v7528 = vrot.slane %v7527, 1
  %v7529 = vmax.f32 %v7527, %v7528
  %v7530 = vsub.f32 %v6819, %v7326
  %v7531 = vsub.f32 %v6824, %v7326
  %v7532 = vsub.f32 %v6829, %v7326
  %v7533 = vsub.f32 %v6834, %v7326
  %v7534 = vsub.f32 %v6839, %v7326
  %v7535 = vsub.f32 %v6844, %v7326
  %v7536 = vsub.f32 %v6849, %v7326
  %v7537 = vsub.f32 %v6854, %v7326
  %v7538 = vsub.f32 %v6859, %v7326
  %v7539 = vsub.f32 %v6864, %v7326
  %v7540 = vsub.f32 %v6869, %v7326
  %v7541 = vsub.f32 %v6874, %v7326
  %v7542 = vsub.f32 %v6879, %v7355
  %v7543 = vsub.f32 %v6884, %v7355
  %v7544 = vsub.f32 %v6889, %v7355
  %v7545 = vsub.f32 %v6894, %v7355
  %v7546 = vsub.f32 %v6899, %v7355
  %v7547 = vsub.f32 %v6904, %v7355
  %v7548 = vsub.f32 %v6909, %v7355
  %v7549 = vsub.f32 %v6914, %v7355
  %v7550 = vsub.f32 %v6919, %v7355
  %v7551 = vsub.f32 %v6924, %v7355
  %v7552 = vsub.f32 %v6929, %v7355
  %v7553 = vsub.f32 %v6934, %v7355
  %v7554 = vsub.f32 %v6939, %v7384
  %v7555 = vsub.f32 %v6944, %v7384
  %v7556 = vsub.f32 %v6949, %v7384
  %v7557 = vsub.f32 %v6954, %v7384
  %v7558 = vsub.f32 %v6959, %v7384
  %v7559 = vsub.f32 %v6964, %v7384
  %v7560 = vsub.f32 %v6969, %v7384
  %v7561 = vsub.f32 %v6974, %v7384
  %v7562 = vsub.f32 %v6979, %v7384
  %v7563 = vsub.f32 %v6984, %v7384
  %v7564 = vsub.f32 %v6989, %v7384
  %v7565 = vsub.f32 %v6994, %v7384
  %v7566 = vsub.f32 %v6999, %v7413
  %v7567 = vsub.f32 %v7004, %v7413
  %v7568 = vsub.f32 %v7009, %v7413
  %v7569 = vsub.f32 %v7014, %v7413
  %v7570 = vsub.f32 %v7019, %v7413
  %v7571 = vsub.f32 %v7024, %v7413
  %v7572 = vsub.f32 %v7029, %v7413
  %v7573 = vsub.f32 %v7034, %v7413
  %v7574 = vsub.f32 %v7039, %v7413
  %v7575 = vsub.f32 %v7044, %v7413
  %v7576 = vsub.f32 %v7049, %v7413
  %v7577 = vsub.f32 %v7054, %v7413
  %v7578 = vsub.f32 %v7059, %v7442
  %v7579 = vsub.f32 %v7064, %v7442
  %v7580 = vsub.f32 %v7069, %v7442
  %v7581 = vsub.f32 %v7074, %v7442
  %v7582 = vsub.f32 %v7079, %v7442
  %v7583 = vsub.f32 %v7084, %v7442
  %v7584 = vsub.f32 %v7089, %v7442
  %v7585 = vsub.f32 %v7094, %v7442
  %v7586 = vsub.f32 %v7099, %v7442
  %v7587 = vsub.f32 %v7104, %v7442
  %v7588 = vsub.f32 %v7109, %v7442
  %v7589 = vsub.f32 %v7114, %v7442
  %v7590 = vsub.f32 %v7119, %v7471
  %v7591 = vsub.f32 %v7124, %v7471
  %v7592 = vsub.f32 %v7129, %v7471
  %v7593 = vsub.f32 %v7134, %v7471
  %v7594 = vsub.f32 %v7139, %v7471
  %v7595 = vsub.f32 %v7144, %v7471
  %v7596 = vsub.f32 %v7149, %v7471
  %v7597 = vsub.f32 %v7154, %v7471
  %v7598 = vsub.f32 %v7159, %v7471
  %v7599 = vsub.f32 %v7164, %v7471
  %v7600 = vsub.f32 %v7169, %v7471
  %v7601 = vsub.f32 %v7174, %v7471
  %v7602 = vsub.f32 %v7179, %v7500
  %v7603 = vsub.f32 %v7184, %v7500
  %v7604 = vsub.f32 %v7189, %v7500
  %v7605 = vsub.f32 %v7194, %v7500
  %v7606 = vsub.f32 %v7199, %v7500
  %v7607 = vsub.f32 %v7204, %v7500
  %v7608 = vsub.f32 %v7209, %v7500
  %v7609 = vsub.f32 %v7214, %v7500
  %v7610 = vsub.f32 %v7219, %v7500
  %v7611 = vsub.f32 %v7224, %v7500
  %v7612 = vsub.f32 %v7229, %v7500
  %v7613 = vsub.f32 %v7234, %v7500
  %v7614 = vsub.f32 %v7239, %v7529
  %v7615 = vsub.f32 %v7244, %v7529
  %v7616 = vsub.f32 %v7249, %v7529
  %v7617 = vsub.f32 %v7254, %v7529
  %v7618 = vsub.f32 %v7259, %v7529
  %v7619 = vsub.f32 %v7264, %v7529
  %v7620 = vsub.f32 %v7269, %v7529
  %v7621 = vsub.f32 %v7274, %v7529
  %v7622 = vsub.f32 %v7279, %v7529
  %v7623 = vsub.f32 %v7284, %v7529
  %v7624 = vsub.f32 %v7289, %v7529
  %v7625 = vsub.f32 %v7294, %v7529
  %v7626 = vmul.f32 %v7530, 1.442695
  %v7627 = vpow.pop %v7626
  %v7628 = vmul.f32 %v7531, 1.442695
  %v7629 = vpow.pop %v7628
  %v7630 = vmul.f32 %v7532, 1.442695
  %v7631 = vpow.pop %v7630
  %v7632 = vmul.f32 %v7533, 1.442695
  %v7633 = vpow.pop %v7632
  %v7634 = vmul.f32 %v7534, 1.442695
  %v7635 = vpow.pop %v7634
  %v7636 = vmul.f32 %v7535, 1.442695
  %v7637 = vpow.pop %v7636
  %v7638 = vmul.f32 %v7536, 1.442695
  %v7639 = vpow.pop %v7638
  %v7640 = vmul.f32 %v7537, 1.442695
  %v7641 = vpow.pop %v7640
  %v7642 = vmul.f32 %v7538, 1.442695
  %v7643 = vpow.pop %v7642
  %v7644 = vmul.f32 %v7539, 1.442695
  %v7645 = vpow.pop %v7644
  %v7646 = vmul.f32 %v7540, 1.442695
  %v7647 = vpow.pop %v7646
  %v7648 = vmul.f32 %v7541, 1.442695
  %v7649 = vpow.pop %v7648
  %v7650 = vmul.f32 %v7542, 1.442695
  %v7651 = vpow.pop %v7650
  %v7652 = vmul.f32 %v7543, 1.442695
  %v7653 = vpow.pop %v7652
  %v7654 = vmul.f32 %v7544, 1.442695
  %v7655 = vpow.pop %v7654
  %v7656 = vmul.f32 %v7545, 1.442695
  %v7657 = vpow.pop %v7656
  %v7658 = vmul.f32 %v7546, 1.442695
  %v7659 = vpow.pop %v7658
  %v7660 = vmul.f32 %v7547, 1.442695
  %v7661 = vpow.pop %v7660
  %v7662 = vmul.f32 %v7548, 1.442695
  %v7663 = vpow.pop %v7662
  %v7664 = vmul.f32 %v7549, 1.442695
  %v7665 = vpow.pop %v7664
  %v7666 = vmul.f32 %v7550, 1.442695
  %v7667 = vpow.pop %v7666
  %v7668 = vmul.f32 %v7551, 1.442695
  %v7669 = vpow.pop %v7668
  %v7670 = vmul.f32 %v7552, 1.442695
  %v7671 = vpow.pop %v7670
  %v7672 = vmul.f32 %v7553, 1.442695
  %v7673 = vpow.pop %v7672
  %v7674 = vmul.f32 %v7554, 1.442695
  %v7675 = vpow.pop %v7674
  %v7676 = vmul.f32 %v7555, 1.442695
  %v7677 = vpow.pop %v7676
  %v7678 = vmul.f32 %v7556, 1.442695
  %v7679 = vpow.pop %v7678
  %v7680 = vmul.f32 %v7557, 1.442695
  %v7681 = vpow.pop %v7680
  %v7682 = vmul.f32 %v7558, 1.442695
  %v7683 = vpow.pop %v7682
  %v7684 = vmul.f32 %v7559, 1.442695
  %v7685 = vpow.pop %v7684
  %v7686 = vmul.f32 %v7560, 1.442695
  %v7687 = vpow.pop %v7686
  %v7688 = vmul.f32 %v7561, 1.442695
  %v7689 = vpow.pop %v7688
  %v7690 = vmul.f32 %v7562, 1.442695
  %v7691 = vpow.pop %v7690
  %v7692 = vmul.f32 %v7563, 1.442695
  %v7693 = vpow.pop %v7692
  %v7694 = vmul.f32 %v7564, 1.442695
  %v7695 = vpow.pop %v7694
  %v7696 = vmul.f32 %v7565, 1.442695
  %v7697 = vpow.pop %v7696
  %v7698 = vmul.f32 %v7566, 1.442695
  %v7699 = vpow.pop %v7698
  %v7700 = vmul.f32 %v7567, 1.442695
  %v7701 = vpow.pop %v7700
  %v7702 = vmul.f32 %v7568, 1.442695
  %v7703 = vpow.pop %v7702
  %v7704 = vmul.f32 %v7569, 1.442695
  %v7705 = vpow.pop %v7704
  %v7706 = vmul.f32 %v7570, 1.442695
  %v7707 = vpow.pop %v7706
  %v7708 = vmul.f32 %v7571, 1.442695
  %v7709 = vpow.pop %v7708
  %v7710 = vmul.f32 %v7572, 1.442695
  %v7711 = vpow.pop %v7710
  %v7712 = vmul.f32 %v7573, 1.442695
  %v7713 = vpow.pop %v7712
  %v7714 = vmul.f32 %v7574, 1.442695
  %v7715 = vpow.pop %v7714
  %v7716 = vmul.f32 %v7575, 1.442695
  %v7717 = vpow.pop %v7716
  %v7718 = vmul.f32 %v7576, 1.442695
  %v7719 = vpow.pop %v7718
  %v7720 = vmul.f32 %v7577, 1.442695
  %v7721 = vpow.pop %v7720
  %v7722 = vmul.f32 %v7578, 1.442695
  %v7723 = vpow.pop %v7722
  %v7724 = vmul.f32 %v7579, 1.442695
  %v7725 = vpow.pop %v7724
  %v7726 = vmul.f32 %v7580, 1.442695
  %v7727 = vpow.pop %v7726
  %v7728 = vmul.f32 %v7581, 1.442695
  %v7729 = vpow.pop %v7728
  %v7730 = vmul.f32 %v7582, 1.442695
  %v7731 = vpow.pop %v7730
  %v7732 = vmul.f32 %v7583, 1.442695
  %v7733 = vpow.pop %v7732
  %v7734 = vmul.f32 %v7584, 1.442695
  %v7735 = vpow.pop %v7734
  %v7736 = vmul.f32 %v7585, 1.442695
  %v7737 = vpow.pop %v7736
  %v7738 = vmul.f32 %v7586, 1.442695
  %v7739 = vpow.pop %v7738
  %v7740 = vmul.f32 %v7587, 1.442695
  %v7741 = vpow.pop %v7740
  %v7742 = vmul.f32 %v7588, 1.442695
  %v7743 = vpow.pop %v7742
  %v7744 = vmul.f32 %v7589, 1.442695
  %v7745 = vpow.pop %v7744
  %v7746 = vmul.f32 %v7590, 1.442695
  %v7747 = vpow.pop %v7746
  %v7748 = vmul.f32 %v7591, 1.442695
  %v7749 = vpow.pop %v7748
  %v7750 = vmul.f32 %v7592, 1.442695
  %v7751 = vpow.pop %v7750
  %v7752 = vmul.f32 %v7593, 1.442695
  %v7753 = vpow.pop %v7752
  %v7754 = vmul.f32 %v7594, 1.442695
  %v7755 = vpow.pop %v7754
  %v7756 = vmul.f32 %v7595, 1.442695
  %v7757 = vpow.pop %v7756
  %v7758 = vmul.f32 %v7596, 1.442695
  %v7759 = vpow.pop %v7758
  %v7760 = vmul.f32 %v7597, 1.442695
  %v7761 = vpow.pop %v7760
  %v7762 = vmul.f32 %v7598, 1.442695
  %v7763 = vpow.pop %v7762
  %v7764 = vmul.f32 %v7599, 1.442695
  %v7765 = vpow.pop %v7764
  %v7766 = vmul.f32 %v7600, 1.442695
  %v7767 = vpow.pop %v7766
  %v7768 = vmul.f32 %v7601, 1.442695
  %v7769 = vpow.pop %v7768
  %v7770 = vmul.f32 %v7602, 1.442695
  %v7771 = vpow.pop %v7770
  %v7772 = vmul.f32 %v7603, 1.442695
  %v7773 = vpow.pop %v7772
  %v7774 = vmul.f32 %v7604, 1.442695
  %v7775 = vpow.pop %v7774
  %v7776 = vmul.f32 %v7605, 1.442695
  %v7777 = vpow.pop %v7776
  %v7778 = vmul.f32 %v7606, 1.442695
  %v7779 = vpow.pop %v7778
  %v7780 = vmul.f32 %v7607, 1.442695
  %v7781 = vpow.pop %v7780
  %v7782 = vmul.f32 %v7608, 1.442695
  %v7783 = vpow.pop %v7782
  %v7784 = vmul.f32 %v7609, 1.442695
  %v7785 = vpow.pop %v7784
  %v7786 = vmul.f32 %v7610, 1.442695
  %v7787 = vpow.pop %v7786
  %v7788 = vmul.f32 %v7611, 1.442695
  %v7789 = vpow.pop %v7788
  %v7790 = vmul.f32 %v7612, 1.442695
  %v7791 = vpow.pop %v7790
  %v7792 = vmul.f32 %v7613, 1.442695
  %v7793 = vpow.pop %v7792
  %v7794 = vmul.f32 %v7614, 1.442695
  %v7795 = vpow.pop %v7794
  %v7796 = vmul.f32 %v7615, 1.442695
  %v7797 = vpow.pop %v7796
  %v7798 = vmul.f32 %v7616, 1.442695
  %v7799 = vpow.pop %v7798
  %v7800 = vmul.f32 %v7617, 1.442695
  %v7801 = vpow.pop %v7800
  %v7802 = vmul.f32 %v7618, 1.442695
  %v7803 = vpow.pop %v7802
  %v7804 = vmul.f32 %v7619, 1.442695
  %v7805 = vpow.pop %v7804
  %v7806 = vmul.f32 %v7620, 1.442695
  %v7807 = vpow.pop %v7806
  %v7808 = vmul.f32 %v7621, 1.442695
  %v7809 = vpow.pop %v7808
  %v7810 = vmul.f32 %v7622, 1.442695
  %v7811 = vpow.pop %v7810
  %v7812 = vmul.f32 %v7623, 1.442695
  %v7813 = vpow.pop %v7812
  %v7814 = vmul.f32 %v7624, 1.442695
  %v7815 = vpow.pop %v7814
  %v7816 = vmul.f32 %v7625, 1.442695
  %v7817 = vpow.pop %v7816
  %v7818 = vsel %vm7297, %v7627, 0.0
  %v7819 = vsel %vm7297, %v7629, 0.0
  %v7820 = vadd.f32 %v7818, %v7819
  %v7821 = vsel %vm7297, %v7631, 0.0
  %v7822 = vadd.f32 %v7820, %v7821
  %v7823 = vsel %vm7297, %v7633, 0.0
  %v7824 = vadd.f32 %v7822, %v7823
  %v7825 = vsel %vm7297, %v7635, 0.0
  %v7826 = vadd.f32 %v7824, %v7825
  %v7827 = vsel %vm7297, %v7637, 0.0
  %v7828 = vadd.f32 %v7826, %v7827
  %v7829 = vsel %vm7297, %v7639, 0.0
  %v7830 = vadd.f32 %v7828, %v7829
  %v7831 = vsel %vm7297, %v7641, 0.0
  %v7832 = vadd.f32 %v7830, %v7831
  %v7833 = vsel %vm7297, %v7643, 0.0
  %v7834 = vadd.f32 %v7832, %v7833
  %v7835 = vsel %vm7297, %v7645, 0.0
  %v7836 = vadd.f32 %v7834, %v7835
  %v7837 = vsel %vm7297, %v7647, 0.0
  %v7838 = vadd.f32 %v7836, %v7837
  %v7839 = vsel %vm7297, %v7649, 0.0
  %v7840 = vadd.f32 %v7838, %v7839
  %v7841 = vrot.slane %v7840, 4
  %v7842 = vadd.f32 %v7840, %v7841
  %v7843 = vrot.slane %v7842, 2
  %v7844 = vadd.f32 %v7842, %v7843
  %v7845 = vrot.slane %v7844, 1
  %v7846 = vadd.f32 %v7844, %v7845
  %v7847 = vsel %vm7297, %v7651, 0.0
  %v7848 = vsel %vm7297, %v7653, 0.0
  %v7849 = vadd.f32 %v7847, %v7848
  %v7850 = vsel %vm7297, %v7655, 0.0
  %v7851 = vadd.f32 %v7849, %v7850
  %v7852 = vsel %vm7297, %v7657, 0.0
  %v7853 = vadd.f32 %v7851, %v7852
  %v7854 = vsel %vm7297, %v7659, 0.0
  %v7855 = vadd.f32 %v7853, %v7854
  %v7856 = vsel %vm7297, %v7661, 0.0
  %v7857 = vadd.f32 %v7855, %v7856
  %v7858 = vsel %vm7297, %v7663, 0.0
  %v7859 = vadd.f32 %v7857, %v7858
  %v7860 = vsel %vm7297, %v7665, 0.0
  %v7861 = vadd.f32 %v7859, %v7860
  %v7862 = vsel %vm7297, %v7667, 0.0
  %v7863 = vadd.f32 %v7861, %v7862
  %v7864 = vsel %vm7297, %v7669, 0.0
  %v7865 = vadd.f32 %v7863, %v7864
  %v7866 = vsel %vm7297, %v7671, 0.0
  %v7867 = vadd.f32 %v7865, %v7866
  %v7868 = vsel %vm7297, %v7673, 0.0
  %v7869 = vadd.f32 %v7867, %v7868
  %v7870 = vrot.slane %v7869, 4
  %v7871 = vadd.f32 %v7869, %v7870
  %v7872 = vrot.slane %v7871, 2
  %v7873 = vadd.f32 %v7871, %v7872
  %v7874 = vrot.slane %v7873, 1
  %v7875 = vadd.f32 %v7873, %v7874
  %v7876 = vsel %vm7297, %v7675, 0.0
  %v7877 = vsel %vm7297, %v7677, 0.0
  %v7878 = vadd.f32 %v7876, %v7877
  %v7879 = vsel %vm7297, %v7679, 0.0
  %v7880 = vadd.f32 %v7878, %v7879
  %v7881 = vsel %vm7297, %v7681, 0.0
  %v7882 = vadd.f32 %v7880, %v7881
  %v7883 = vsel %vm7297, %v7683, 0.0
  %v7884 = vadd.f32 %v7882, %v7883
  %v7885 = vsel %vm7297, %v7685, 0.0
  %v7886 = vadd.f32 %v7884, %v7885
  %v7887 = vsel %vm7297, %v7687, 0.0
  %v7888 = vadd.f32 %v7886, %v7887
  %v7889 = vsel %vm7297, %v7689, 0.0
  %v7890 = vadd.f32 %v7888, %v7889
  %v7891 = vsel %vm7297, %v7691, 0.0
  %v7892 = vadd.f32 %v7890, %v7891
  %v7893 = vsel %vm7297, %v7693, 0.0
  %v7894 = vadd.f32 %v7892, %v7893
  %v7895 = vsel %vm7297, %v7695, 0.0
  %v7896 = vadd.f32 %v7894, %v7895
  %v7897 = vsel %vm7297, %v7697, 0.0
  %v7898 = vadd.f32 %v7896, %v7897
  %v7899 = vrot.slane %v7898, 4
  %v7900 = vadd.f32 %v7898, %v7899
  %v7901 = vrot.slane %v7900, 2
  %v7902 = vadd.f32 %v7900, %v7901
  %v7903 = vrot.slane %v7902, 1
  %v7904 = vadd.f32 %v7902, %v7903
  %v7905 = vsel %vm7297, %v7699, 0.0
  %v7906 = vsel %vm7297, %v7701, 0.0
  %v7907 = vadd.f32 %v7905, %v7906
  %v7908 = vsel %vm7297, %v7703, 0.0
  %v7909 = vadd.f32 %v7907, %v7908
  %v7910 = vsel %vm7297, %v7705, 0.0
  %v7911 = vadd.f32 %v7909, %v7910
  %v7912 = vsel %vm7297, %v7707, 0.0
  %v7913 = vadd.f32 %v7911, %v7912
  %v7914 = vsel %vm7297, %v7709, 0.0
  %v7915 = vadd.f32 %v7913, %v7914
  %v7916 = vsel %vm7297, %v7711, 0.0
  %v7917 = vadd.f32 %v7915, %v7916
  %v7918 = vsel %vm7297, %v7713, 0.0
  %v7919 = vadd.f32 %v7917, %v7918
  %v7920 = vsel %vm7297, %v7715, 0.0
  %v7921 = vadd.f32 %v7919, %v7920
  %v7922 = vsel %vm7297, %v7717, 0.0
  %v7923 = vadd.f32 %v7921, %v7922
  %v7924 = vsel %vm7297, %v7719, 0.0
  %v7925 = vadd.f32 %v7923, %v7924
  %v7926 = vsel %vm7297, %v7721, 0.0
  %v7927 = vadd.f32 %v7925, %v7926
  %v7928 = vrot.slane %v7927, 4
  %v7929 = vadd.f32 %v7927, %v7928
  %v7930 = vrot.slane %v7929, 2
  %v7931 = vadd.f32 %v7929, %v7930
  %v7932 = vrot.slane %v7931, 1
  %v7933 = vadd.f32 %v7931, %v7932
  %v7934 = vsel %vm7297, %v7723, 0.0
  %v7935 = vsel %vm7297, %v7725, 0.0
  %v7936 = vadd.f32 %v7934, %v7935
  %v7937 = vsel %vm7297, %v7727, 0.0
  %v7938 = vadd.f32 %v7936, %v7937
  %v7939 = vsel %vm7297, %v7729, 0.0
  %v7940 = vadd.f32 %v7938, %v7939
  %v7941 = vsel %vm7297, %v7731, 0.0
  %v7942 = vadd.f32 %v7940, %v7941
  %v7943 = vsel %vm7297, %v7733, 0.0
  %v7944 = vadd.f32 %v7942, %v7943
  %v7945 = vsel %vm7297, %v7735, 0.0
  %v7946 = vadd.f32 %v7944, %v7945
  %v7947 = vsel %vm7297, %v7737, 0.0
  %v7948 = vadd.f32 %v7946, %v7947
  %v7949 = vsel %vm7297, %v7739, 0.0
  %v7950 = vadd.f32 %v7948, %v7949
  %v7951 = vsel %vm7297, %v7741, 0.0
  %v7952 = vadd.f32 %v7950, %v7951
  %v7953 = vsel %vm7297, %v7743, 0.0
  %v7954 = vadd.f32 %v7952, %v7953
  %v7955 = vsel %vm7297, %v7745, 0.0
  %v7956 = vadd.f32 %v7954, %v7955
  %v7957 = vrot.slane %v7956, 4
  %v7958 = vadd.f32 %v7956, %v7957
  %v7959 = vrot.slane %v7958, 2
  %v7960 = vadd.f32 %v7958, %v7959
  %v7961 = vrot.slane %v7960, 1
  %v7962 = vadd.f32 %v7960, %v7961
  %v7963 = vsel %vm7297, %v7747, 0.0
  %v7964 = vsel %vm7297, %v7749, 0.0
  %v7965 = vadd.f32 %v7963, %v7964
  %v7966 = vsel %vm7297, %v7751, 0.0
  %v7967 = vadd.f32 %v7965, %v7966
  %v7968 = vsel %vm7297, %v7753, 0.0
  %v7969 = vadd.f32 %v7967, %v7968
  %v7970 = vsel %vm7297, %v7755, 0.0
  %v7971 = vadd.f32 %v7969, %v7970
  %v7972 = vsel %vm7297, %v7757, 0.0
  %v7973 = vadd.f32 %v7971, %v7972
  %v7974 = vsel %vm7297, %v7759, 0.0
  %v7975 = vadd.f32 %v7973, %v7974
  %v7976 = vsel %vm7297, %v7761, 0.0
  %v7977 = vadd.f32 %v7975, %v7976
  %v7978 = vsel %vm7297, %v7763, 0.0
  %v7979 = vadd.f32 %v7977, %v7978
  %v7980 = vsel %vm7297, %v7765, 0.0
  %v7981 = vadd.f32 %v7979, %v7980
  %v7982 = vsel %vm7297, %v7767, 0.0
  %v7983 = vadd.f32 %v7981, %v7982
  %v7984 = vsel %vm7297, %v7769, 0.0
  %v7985 = vadd.f32 %v7983, %v7984
  %v7986 = vrot.slane %v7985, 4
  %v7987 = vadd.f32 %v7985, %v7986
  %v7988 = vrot.slane %v7987, 2
  %v7989 = vadd.f32 %v7987, %v7988
  %v7990 = vrot.slane %v7989, 1
  %v7991 = vadd.f32 %v7989, %v7990
  %v7992 = vsel %vm7297, %v7771, 0.0
  %v7993 = vsel %vm7297, %v7773, 0.0
  %v7994 = vadd.f32 %v7992, %v7993
  %v7995 = vsel %vm7297, %v7775, 0.0
  %v7996 = vadd.f32 %v7994, %v7995
  %v7997 = vsel %vm7297, %v7777, 0.0
  %v7998 = vadd.f32 %v7996, %v7997
  %v7999 = vsel %vm7297, %v7779, 0.0
  %v8000 = vadd.f32 %v7998, %v7999
  %v8001 = vsel %vm7297, %v7781, 0.0
  %v8002 = vadd.f32 %v8000, %v8001
  %v8003 = vsel %vm7297, %v7783, 0.0
  %v8004 = vadd.f32 %v8002, %v8003
  %v8005 = vsel %vm7297, %v7785, 0.0
  %v8006 = vadd.f32 %v8004, %v8005
  %v8007 = vsel %vm7297, %v7787, 0.0
  %v8008 = vadd.f32 %v8006, %v8007
  %v8009 = vsel %vm7297, %v7789, 0.0
  %v8010 = vadd.f32 %v8008, %v8009
  %v8011 = vsel %vm7297, %v7791, 0.0
  %v8012 = vadd.f32 %v8010, %v8011
  %v8013 = vsel %vm7297, %v7793, 0.0
  %v8014 = vadd.f32 %v8012, %v8013
  %v8015 = vrot.slane %v8014, 4
  %v8016 = vadd.f32 %v8014, %v8015
  %v8017 = vrot.slane %v8016, 2
  %v8018 = vadd.f32 %v8016, %v8017
  %v8019 = vrot.slane %v8018, 1
  %v8020 = vadd.f32 %v8018, %v8019
  %v8021 = vsel %vm7297, %v7795, 0.0
  %v8022 = vsel %vm7297, %v7797, 0.0
  %v8023 = vadd.f32 %v8021, %v8022
  %v8024 = vsel %vm7297, %v7799, 0.0
  %v8025 = vadd.f32 %v8023, %v8024
  %v8026 = vsel %vm7297, %v7801, 0.0
  %v8027 = vadd.f32 %v8025, %v8026
  %v8028 = vsel %vm7297, %v7803, 0.0
  %v8029 = vadd.f32 %v8027, %v8028
  %v8030 = vsel %vm7297, %v7805, 0.0
  %v8031 = vadd.f32 %v8029, %v8030
  %v8032 = vsel %vm7297, %v7807, 0.0
  %v8033 = vadd.f32 %v8031, %v8032
  %v8034 = vsel %vm7297, %v7809, 0.0
  %v8035 = vadd.f32 %v8033, %v8034
  %v8036 = vsel %vm7297, %v7811, 0.0
  %v8037 = vadd.f32 %v8035, %v8036
  %v8038 = vsel %vm7297, %v7813, 0.0
  %v8039 = vadd.f32 %v8037, %v8038
  %v8040 = vsel %vm7297, %v7815, 0.0
  %v8041 = vadd.f32 %v8039, %v8040
  %v8042 = vsel %vm7297, %v7817, 0.0
  %v8043 = vadd.f32 %v8041, %v8042
  %v8044 = vrot.slane %v8043, 4
  %v8045 = vadd.f32 %v8043, %v8044
  %v8046 = vrot.slane %v8045, 2
  %v8047 = vadd.f32 %v8045, %v8046
  %v8048 = vrot.slane %v8047, 1
  %v8049 = vadd.f32 %v8047, %v8048
  %v8050 = vrcp.pop %v7846
  %v8051 = vrcp.pop %v7875
  %v8052 = vrcp.pop %v7904
  %v8053 = vrcp.pop %v7933
  %v8054 = vrcp.pop %v7962
  %v8055 = vrcp.pop %v7991
  %v8056 = vrcp.pop %v8020
  %v8057 = vrcp.pop %v8049
  %v8058 = vmul.f32 %v7627, %v8050
  %v8059 = vmul.f32 %v7629, %v8050
  %v8060 = vmul.f32 %v7631, %v8050
  %v8061 = vmul.f32 %v7633, %v8050
  %v8062 = vmul.f32 %v7635, %v8050
  %v8063 = vmul.f32 %v7637, %v8050
  %v8064 = vmul.f32 %v7639, %v8050
  %v8065 = vmul.f32 %v7641, %v8050
  %v8066 = vmul.f32 %v7643, %v8050
  %v8067 = vmul.f32 %v7645, %v8050
  %v8068 = vmul.f32 %v7647, %v8050
  %v8069 = vmul.f32 %v7649, %v8050
  %v8070 = vmul.f32 %v7651, %v8051
  %v8071 = vmul.f32 %v7653, %v8051
  %v8072 = vmul.f32 %v7655, %v8051
  %v8073 = vmul.f32 %v7657, %v8051
  %v8074 = vmul.f32 %v7659, %v8051
  %v8075 = vmul.f32 %v7661, %v8051
  %v8076 = vmul.f32 %v7663, %v8051
  %v8077 = vmul.f32 %v7665, %v8051
  %v8078 = vmul.f32 %v7667, %v8051
  %v8079 = vmul.f32 %v7669, %v8051
  %v8080 = vmul.f32 %v7671, %v8051
  %v8081 = vmul.f32 %v7673, %v8051
  %v8082 = vmul.f32 %v7675, %v8052
  %v8083 = vmul.f32 %v7677, %v8052
  %v8084 = vmul.f32 %v7679, %v8052
  %v8085 = vmul.f32 %v7681, %v8052
  %v8086 = vmul.f32 %v7683, %v8052
  %v8087 = vmul.f32 %v7685, %v8052
  %v8088 = vmul.f32 %v7687, %v8052
  %v8089 = vmul.f32 %v7689, %v8052
  %v8090 = vmul.f32 %v7691, %v8052
  %v8091 = vmul.f32 %v7693, %v8052
  %v8092 = vmul.f32 %v7695, %v8052
  %v8093 = vmul.f32 %v7697, %v8052
  %v8094 = vmul.f32 %v7699, %v8053
  %v8095 = vmul.f32 %v7701, %v8053
  %v8096 = vmul.f32 %v7703, %v8053
  %v8097 = vmul.f32 %v7705, %v8053
  %v8098 = vmul.f32 %v7707, %v8053
  %v8099 = vmul.f32 %v7709, %v8053
  %v8100 = vmul.f32 %v7711, %v8053
  %v8101 = vmul.f32 %v7713, %v8053
  %v8102 = vmul.f32 %v7715, %v8053
  %v8103 = vmul.f32 %v7717, %v8053
  %v8104 = vmul.f32 %v7719, %v8053
  %v8105 = vmul.f32 %v7721, %v8053
  %v8106 = vmul.f32 %v7723, %v8054
  %v8107 = vmul.f32 %v7725, %v8054
  %v8108 = vmul.f32 %v7727, %v8054
  %v8109 = vmul.f32 %v7729, %v8054
  %v8110 = vmul.f32 %v7731, %v8054
  %v8111 = vmul.f32 %v7733, %v8054
  %v8112 = vmul.f32 %v7735, %v8054
  %v8113 = vmul.f32 %v7737, %v8054
  %v8114 = vmul.f32 %v7739, %v8054
  %v8115 = vmul.f32 %v7741, %v8054
  %v8116 = vmul.f32 %v7743, %v8054
  %v8117 = vmul.f32 %v7745, %v8054
  %v8118 = vmul.f32 %v7747, %v8055
  %v8119 = vmul.f32 %v7749, %v8055
  %v8120 = vmul.f32 %v7751, %v8055
  %v8121 = vmul.f32 %v7753, %v8055
  %v8122 = vmul.f32 %v7755, %v8055
  %v8123 = vmul.f32 %v7757, %v8055
  %v8124 = vmul.f32 %v7759, %v8055
  %v8125 = vmul.f32 %v7761, %v8055
  %v8126 = vmul.f32 %v7763, %v8055
  %v8127 = vmul.f32 %v7765, %v8055
  %v8128 = vmul.f32 %v7767, %v8055
  %v8129 = vmul.f32 %v7769, %v8055
  %v8130 = vmul.f32 %v7771, %v8056
  %v8131 = vmul.f32 %v7773, %v8056
  %v8132 = vmul.f32 %v7775, %v8056
  %v8133 = vmul.f32 %v7777, %v8056
  %v8134 = vmul.f32 %v7779, %v8056
  %v8135 = vmul.f32 %v7781, %v8056
  %v8136 = vmul.f32 %v7783, %v8056
  %v8137 = vmul.f32 %v7785, %v8056
  %v8138 = vmul.f32 %v7787, %v8056
  %v8139 = vmul.f32 %v7789, %v8056
  %v8140 = vmul.f32 %v7791, %v8056
  %v8141 = vmul.f32 %v7793, %v8056
  %v8142 = vmul.f32 %v7795, %v8057
  %v8143 = vmul.f32 %v7797, %v8057
  %v8144 = vmul.f32 %v7799, %v8057
  %v8145 = vmul.f32 %v7801, %v8057
  %v8146 = vmul.f32 %v7803, %v8057
  %v8147 = vmul.f32 %v7805, %v8057
  %v8148 = vmul.f32 %v7807, %v8057
  %v8149 = vmul.f32 %v7809, %v8057
  %v8150 = vmul.f32 %v7811, %v8057
  %v8151 = vmul.f32 %v7813, %v8057
  %v8152 = vmul.f32 %v7815, %v8057
  %v8153 = vmul.f32 %v7817, %v8057
  %8155 = vset.pattern.permute.xlu0 0
  %8156 = vperm.xlu0 %8155, %v8058
  %v8157 = vpop.permute.xlu0 %8156
  %8160 = vset.pattern.permute.xlu0 0
  %8161 = vperm.xlu0 %8160, %v8059
  %v8162 = vpop.permute.xlu0 %8161
  %8165 = vset.pattern.permute.xlu0 0
  %8166 = vperm.xlu0 %8165, %v8060
  %v8167 = vpop.permute.xlu0 %8166
  %8170 = vset.pattern.permute.xlu0 0
  %8171 = vperm.xlu0 %8170, %v8061
  %v8172 = vpop.permute.xlu0 %8171
  %8175 = vset.pattern.permute.xlu0 0
  %8176 = vperm.xlu0 %8175, %v8062
  %v8177 = vpop.permute.xlu0 %8176
  %8180 = vset.pattern.permute.xlu0 0
  %8181 = vperm.xlu0 %8180, %v8063
  %v8182 = vpop.permute.xlu0 %8181
  %8185 = vset.pattern.permute.xlu0 0
  %8186 = vperm.xlu0 %8185, %v8064
  %v8187 = vpop.permute.xlu0 %8186
  %8190 = vset.pattern.permute.xlu0 0
  %8191 = vperm.xlu0 %8190, %v8065
  %v8192 = vpop.permute.xlu0 %8191
  %8195 = vset.pattern.permute.xlu0 0
  %8196 = vperm.xlu0 %8195, %v8066
  %v8197 = vpop.permute.xlu0 %8196
  %8200 = vset.pattern.permute.xlu0 0
  %8201 = vperm.xlu0 %8200, %v8067
  %v8202 = vpop.permute.xlu0 %8201
  %8205 = vset.pattern.permute.xlu0 0
  %8206 = vperm.xlu0 %8205, %v8068
  %v8207 = vpop.permute.xlu0 %8206
  %8210 = vset.pattern.permute.xlu0 0
  %8211 = vperm.xlu0 %8210, %v8069
  %v8212 = vpop.permute.xlu0 %8211
  %8215 = vset.pattern.permute.xlu0 0
  %8216 = vperm.xlu0 %8215, %v8070
  %v8217 = vpop.permute.xlu0 %8216
  %8220 = vset.pattern.permute.xlu0 0
  %8221 = vperm.xlu0 %8220, %v8071
  %v8222 = vpop.permute.xlu0 %8221
  %8225 = vset.pattern.permute.xlu0 0
  %8226 = vperm.xlu0 %8225, %v8072
  %v8227 = vpop.permute.xlu0 %8226
  %8230 = vset.pattern.permute.xlu0 0
  %8231 = vperm.xlu0 %8230, %v8073
  %v8232 = vpop.permute.xlu0 %8231
  %8235 = vset.pattern.permute.xlu0 0
  %8236 = vperm.xlu0 %8235, %v8074
  %v8237 = vpop.permute.xlu0 %8236
  %8240 = vset.pattern.permute.xlu0 0
  %8241 = vperm.xlu0 %8240, %v8075
  %v8242 = vpop.permute.xlu0 %8241
  %8245 = vset.pattern.permute.xlu0 0
  %8246 = vperm.xlu0 %8245, %v8076
  %v8247 = vpop.permute.xlu0 %8246
  %8250 = vset.pattern.permute.xlu0 0
  %8251 = vperm.xlu0 %8250, %v8077
  %v8252 = vpop.permute.xlu0 %8251
  %8255 = vset.pattern.permute.xlu0 0
  %8256 = vperm.xlu0 %8255, %v8078
  %v8257 = vpop.permute.xlu0 %8256
  %8260 = vset.pattern.permute.xlu0 0
  %8261 = vperm.xlu0 %8260, %v8079
  %v8262 = vpop.permute.xlu0 %8261
  %8265 = vset.pattern.permute.xlu0 0
  %8266 = vperm.xlu0 %8265, %v8080
  %v8267 = vpop.permute.xlu0 %8266
  %8270 = vset.pattern.permute.xlu0 0
  %8271 = vperm.xlu0 %8270, %v8081
  %v8272 = vpop.permute.xlu0 %8271
  %8275 = vset.pattern.permute.xlu0 0
  %8276 = vperm.xlu0 %8275, %v8082
  %v8277 = vpop.permute.xlu0 %8276
  %8280 = vset.pattern.permute.xlu0 0
  %8281 = vperm.xlu0 %8280, %v8083
  %v8282 = vpop.permute.xlu0 %8281
  %8285 = vset.pattern.permute.xlu0 0
  %8286 = vperm.xlu0 %8285, %v8084
  %v8287 = vpop.permute.xlu0 %8286
  %8290 = vset.pattern.permute.xlu0 0
  %8291 = vperm.xlu0 %8290, %v8085
  %v8292 = vpop.permute.xlu0 %8291
  %8295 = vset.pattern.permute.xlu0 0
  %8296 = vperm.xlu0 %8295, %v8086
  %v8297 = vpop.permute.xlu0 %8296
  %8300 = vset.pattern.permute.xlu0 0
  %8301 = vperm.xlu0 %8300, %v8087
  %v8302 = vpop.permute.xlu0 %8301
  %8305 = vset.pattern.permute.xlu0 0
  %8306 = vperm.xlu0 %8305, %v8088
  %v8307 = vpop.permute.xlu0 %8306
  %8310 = vset.pattern.permute.xlu0 0
  %8311 = vperm.xlu0 %8310, %v8089
  %v8312 = vpop.permute.xlu0 %8311
  %8315 = vset.pattern.permute.xlu0 0
  %8316 = vperm.xlu0 %8315, %v8090
  %v8317 = vpop.permute.xlu0 %8316
  %8320 = vset.pattern.permute.xlu0 0
  %8321 = vperm.xlu0 %8320, %v8091
  %v8322 = vpop.permute.xlu0 %8321
  %8325 = vset.pattern.permute.xlu0 0
  %8326 = vperm.xlu0 %8325, %v8092
  %v8327 = vpop.permute.xlu0 %8326
  %8330 = vset.pattern.permute.xlu0 0
  %8331 = vperm.xlu0 %8330, %v8093
  %v8332 = vpop.permute.xlu0 %8331
  %8335 = vset.pattern.permute.xlu0 0
  %8336 = vperm.xlu0 %8335, %v8094
  %v8337 = vpop.permute.xlu0 %8336
  %8340 = vset.pattern.permute.xlu0 0
  %8341 = vperm.xlu0 %8340, %v8095
  %v8342 = vpop.permute.xlu0 %8341
  %8345 = vset.pattern.permute.xlu0 0
  %8346 = vperm.xlu0 %8345, %v8096
  %v8347 = vpop.permute.xlu0 %8346
  %8350 = vset.pattern.permute.xlu0 0
  %8351 = vperm.xlu0 %8350, %v8097
  %v8352 = vpop.permute.xlu0 %8351
  %8355 = vset.pattern.permute.xlu0 0
  %8356 = vperm.xlu0 %8355, %v8098
  %v8357 = vpop.permute.xlu0 %8356
  %8360 = vset.pattern.permute.xlu0 0
  %8361 = vperm.xlu0 %8360, %v8099
  %v8362 = vpop.permute.xlu0 %8361
  %8365 = vset.pattern.permute.xlu0 0
  %8366 = vperm.xlu0 %8365, %v8100
  %v8367 = vpop.permute.xlu0 %8366
  %8370 = vset.pattern.permute.xlu0 0
  %8371 = vperm.xlu0 %8370, %v8101
  %v8372 = vpop.permute.xlu0 %8371
  %8375 = vset.pattern.permute.xlu0 0
  %8376 = vperm.xlu0 %8375, %v8102
  %v8377 = vpop.permute.xlu0 %8376
  %8380 = vset.pattern.permute.xlu0 0
  %8381 = vperm.xlu0 %8380, %v8103
  %v8382 = vpop.permute.xlu0 %8381
  %8385 = vset.pattern.permute.xlu0 0
  %8386 = vperm.xlu0 %8385, %v8104
  %v8387 = vpop.permute.xlu0 %8386
  %8390 = vset.pattern.permute.xlu0 0
  %8391 = vperm.xlu0 %8390, %v8105
  %v8392 = vpop.permute.xlu0 %8391
  %8395 = vset.pattern.permute.xlu0 0
  %8396 = vperm.xlu0 %8395, %v8106
  %v8397 = vpop.permute.xlu0 %8396
  %8400 = vset.pattern.permute.xlu0 0
  %8401 = vperm.xlu0 %8400, %v8107
  %v8402 = vpop.permute.xlu0 %8401
  %8405 = vset.pattern.permute.xlu0 0
  %8406 = vperm.xlu0 %8405, %v8108
  %v8407 = vpop.permute.xlu0 %8406
  %8410 = vset.pattern.permute.xlu0 0
  %8411 = vperm.xlu0 %8410, %v8109
  %v8412 = vpop.permute.xlu0 %8411
  %8415 = vset.pattern.permute.xlu0 0
  %8416 = vperm.xlu0 %8415, %v8110
  %v8417 = vpop.permute.xlu0 %8416
  %8420 = vset.pattern.permute.xlu0 0
  %8421 = vperm.xlu0 %8420, %v8111
  %v8422 = vpop.permute.xlu0 %8421
  %8425 = vset.pattern.permute.xlu0 0
  %8426 = vperm.xlu0 %8425, %v8112
  %v8427 = vpop.permute.xlu0 %8426
  %8430 = vset.pattern.permute.xlu0 0
  %8431 = vperm.xlu0 %8430, %v8113
  %v8432 = vpop.permute.xlu0 %8431
  %8435 = vset.pattern.permute.xlu0 0
  %8436 = vperm.xlu0 %8435, %v8114
  %v8437 = vpop.permute.xlu0 %8436
  %8440 = vset.pattern.permute.xlu0 0
  %8441 = vperm.xlu0 %8440, %v8115
  %v8442 = vpop.permute.xlu0 %8441
  %8445 = vset.pattern.permute.xlu0 0
  %8446 = vperm.xlu0 %8445, %v8116
  %v8447 = vpop.permute.xlu0 %8446
  %8450 = vset.pattern.permute.xlu0 0
  %8451 = vperm.xlu0 %8450, %v8117
  %v8452 = vpop.permute.xlu0 %8451
  %8455 = vset.pattern.permute.xlu0 0
  %8456 = vperm.xlu0 %8455, %v8118
  %v8457 = vpop.permute.xlu0 %8456
  %8460 = vset.pattern.permute.xlu0 0
  %8461 = vperm.xlu0 %8460, %v8119
  %v8462 = vpop.permute.xlu0 %8461
  %8465 = vset.pattern.permute.xlu0 0
  %8466 = vperm.xlu0 %8465, %v8120
  %v8467 = vpop.permute.xlu0 %8466
  %8470 = vset.pattern.permute.xlu0 0
  %8471 = vperm.xlu0 %8470, %v8121
  %v8472 = vpop.permute.xlu0 %8471
  %8475 = vset.pattern.permute.xlu0 0
  %8476 = vperm.xlu0 %8475, %v8122
  %v8477 = vpop.permute.xlu0 %8476
  %8480 = vset.pattern.permute.xlu0 0
  %8481 = vperm.xlu0 %8480, %v8123
  %v8482 = vpop.permute.xlu0 %8481
  %8485 = vset.pattern.permute.xlu0 0
  %8486 = vperm.xlu0 %8485, %v8124
  %v8487 = vpop.permute.xlu0 %8486
  %8490 = vset.pattern.permute.xlu0 0
  %8491 = vperm.xlu0 %8490, %v8125
  %v8492 = vpop.permute.xlu0 %8491
  %8495 = vset.pattern.permute.xlu0 0
  %8496 = vperm.xlu0 %8495, %v8126
  %v8497 = vpop.permute.xlu0 %8496
  %8500 = vset.pattern.permute.xlu0 0
  %8501 = vperm.xlu0 %8500, %v8127
  %v8502 = vpop.permute.xlu0 %8501
  %8505 = vset.pattern.permute.xlu0 0
  %8506 = vperm.xlu0 %8505, %v8128
  %v8507 = vpop.permute.xlu0 %8506
  %8510 = vset.pattern.permute.xlu0 0
  %8511 = vperm.xlu0 %8510, %v8129
  %v8512 = vpop.permute.xlu0 %8511
  %8515 = vset.pattern.permute.xlu0 0
  %8516 = vperm.xlu0 %8515, %v8130
  %v8517 = vpop.permute.xlu0 %8516
  %8520 = vset.pattern.permute.xlu0 0
  %8521 = vperm.xlu0 %8520, %v8131
  %v8522 = vpop.permute.xlu0 %8521
  %8525 = vset.pattern.permute.xlu0 0
  %8526 = vperm.xlu0 %8525, %v8132
  %v8527 = vpop.permute.xlu0 %8526
  %8530 = vset.pattern.permute.xlu0 0
  %8531 = vperm.xlu0 %8530, %v8133
  %v8532 = vpop.permute.xlu0 %8531
  %8535 = vset.pattern.permute.xlu0 0
  %8536 = vperm.xlu0 %8535, %v8134
  %v8537 = vpop.permute.xlu0 %8536
  %8540 = vset.pattern.permute.xlu0 0
  %8541 = vperm.xlu0 %8540, %v8135
  %v8542 = vpop.permute.xlu0 %8541
  %8545 = vset.pattern.permute.xlu0 0
  %8546 = vperm.xlu0 %8545, %v8136
  %v8547 = vpop.permute.xlu0 %8546
  %8550 = vset.pattern.permute.xlu0 0
  %8551 = vperm.xlu0 %8550, %v8137
  %v8552 = vpop.permute.xlu0 %8551
  %8555 = vset.pattern.permute.xlu0 0
  %8556 = vperm.xlu0 %8555, %v8138
  %v8557 = vpop.permute.xlu0 %8556
  %8560 = vset.pattern.permute.xlu0 0
  %8561 = vperm.xlu0 %8560, %v8139
  %v8562 = vpop.permute.xlu0 %8561
  %8565 = vset.pattern.permute.xlu0 0
  %8566 = vperm.xlu0 %8565, %v8140
  %v8567 = vpop.permute.xlu0 %8566
  %8570 = vset.pattern.permute.xlu0 0
  %8571 = vperm.xlu0 %8570, %v8141
  %v8572 = vpop.permute.xlu0 %8571
  %8575 = vset.pattern.permute.xlu0 0
  %8576 = vperm.xlu0 %8575, %v8142
  %v8577 = vpop.permute.xlu0 %8576
  %8580 = vset.pattern.permute.xlu0 0
  %8581 = vperm.xlu0 %8580, %v8143
  %v8582 = vpop.permute.xlu0 %8581
  %8585 = vset.pattern.permute.xlu0 0
  %8586 = vperm.xlu0 %8585, %v8144
  %v8587 = vpop.permute.xlu0 %8586
  %8590 = vset.pattern.permute.xlu0 0
  %8591 = vperm.xlu0 %8590, %v8145
  %v8592 = vpop.permute.xlu0 %8591
  %8595 = vset.pattern.permute.xlu0 0
  %8596 = vperm.xlu0 %8595, %v8146
  %v8597 = vpop.permute.xlu0 %8596
  %8600 = vset.pattern.permute.xlu0 0
  %8601 = vperm.xlu0 %8600, %v8147
  %v8602 = vpop.permute.xlu0 %8601
  %8605 = vset.pattern.permute.xlu0 0
  %8606 = vperm.xlu0 %8605, %v8148
  %v8607 = vpop.permute.xlu0 %8606
  %8610 = vset.pattern.permute.xlu0 0
  %8611 = vperm.xlu0 %8610, %v8149
  %v8612 = vpop.permute.xlu0 %8611
  %8615 = vset.pattern.permute.xlu0 0
  %8616 = vperm.xlu0 %8615, %v8150
  %v8617 = vpop.permute.xlu0 %8616
  %8620 = vset.pattern.permute.xlu0 0
  %8621 = vperm.xlu0 %8620, %v8151
  %v8622 = vpop.permute.xlu0 %8621
  %8625 = vset.pattern.permute.xlu0 0
  %8626 = vperm.xlu0 %8625, %v8152
  %v8627 = vpop.permute.xlu0 %8626
  %8630 = vset.pattern.permute.xlu0 0
  %8631 = vperm.xlu0 %8630, %v8153
  %v8632 = vpop.permute.xlu0 %8631
  %v8634 = vmul.f32 %v6348, %v8157
  %v8635 = vmul.f32 %v6349, %v8162
  %v8636 = vmul.f32 %v6350, %v8167
  %v8637 = vmul.f32 %v6351, %v8172
  %v8638 = vmul.f32 %v6352, %v8177
  %v8639 = vmul.f32 %v6353, %v8182
  %v8640 = vmul.f32 %v6354, %v8187
  %v8641 = vmul.f32 %v6355, %v8192
  %v8642 = vmul.f32 %v6356, %v8197
  %v8643 = vmul.f32 %v6357, %v8202
  %v8644 = vmul.f32 %v6358, %v8207
  %v8645 = vmul.f32 %v6359, %v8212
  %v8646 = vmul.f32 %v6360, %v8217
  %v8647 = vmul.f32 %v6361, %v8222
  %v8648 = vmul.f32 %v6362, %v8227
  %v8649 = vmul.f32 %v6363, %v8232
  %v8650 = vmul.f32 %v6364, %v8237
  %v8651 = vmul.f32 %v6365, %v8242
  %v8652 = vmul.f32 %v6366, %v8247
  %v8653 = vmul.f32 %v6367, %v8252
  %v8654 = vmul.f32 %v6368, %v8257
  %v8655 = vmul.f32 %v6369, %v8262
  %v8656 = vmul.f32 %v6370, %v8267
  %v8657 = vmul.f32 %v6371, %v8272
  %v8658 = vmul.f32 %v6372, %v8277
  %v8659 = vmul.f32 %v6373, %v8282
  %v8660 = vmul.f32 %v6374, %v8287
  %v8661 = vmul.f32 %v6375, %v8292
  %v8662 = vmul.f32 %v6376, %v8297
  %v8663 = vmul.f32 %v6377, %v8302
  %v8664 = vmul.f32 %v6378, %v8307
  %v8665 = vmul.f32 %v6379, %v8312
  %v8666 = vmul.f32 %v6380, %v8317
  %v8667 = vmul.f32 %v6381, %v8322
  %v8668 = vmul.f32 %v6382, %v8327
  %v8669 = vmul.f32 %v6383, %v8332
  %v8670 = vmul.f32 %v6384, %v8337
  %v8671 = vmul.f32 %v6385, %v8342
  %v8672 = vmul.f32 %v6386, %v8347
  %v8673 = vmul.f32 %v6387, %v8352
  %v8674 = vmul.f32 %v6388, %v8357
  %v8675 = vmul.f32 %v6389, %v8362
  %v8676 = vmul.f32 %v6390, %v8367
  %v8677 = vmul.f32 %v6391, %v8372
  %v8678 = vmul.f32 %v6392, %v8377
  %v8679 = vmul.f32 %v6393, %v8382
  %v8680 = vmul.f32 %v6394, %v8387
  %v8681 = vmul.f32 %v6395, %v8392
  %v8682 = vmul.f32 %v6396, %v8397
  %v8683 = vmul.f32 %v6397, %v8402
  %v8684 = vmul.f32 %v6398, %v8407
  %v8685 = vmul.f32 %v6399, %v8412
  %v8686 = vmul.f32 %v6400, %v8417
  %v8687 = vmul.f32 %v6401, %v8422
  %v8688 = vmul.f32 %v6402, %v8427
  %v8689 = vmul.f32 %v6403, %v8432
  %v8690 = vmul.f32 %v6404, %v8437
  %v8691 = vmul.f32 %v6405, %v8442
  %v8692 = vmul.f32 %v6406, %v8447
  %v8693 = vmul.f32 %v6407, %v8452
  %v8694 = vmul.f32 %v6408, %v8457
  %v8695 = vmul.f32 %v6409, %v8462
  %v8696 = vmul.f32 %v6410, %v8467
  %v8697 = vmul.f32 %v6411, %v8472
  %v8698 = vmul.f32 %v6412, %v8477
  %v8699 = vmul.f32 %v6413, %v8482
  %v8700 = vmul.f32 %v6414, %v8487
  %v8701 = vmul.f32 %v6415, %v8492
  %v8702 = vmul.f32 %v6416, %v8497
  %v8703 = vmul.f32 %v6417, %v8502
  %v8704 = vmul.f32 %v6418, %v8507
  %v8705 = vmul.f32 %v6419, %v8512
  %v8706 = vmul.f32 %v6420, %v8517
  %v8707 = vmul.f32 %v6421, %v8522
  %v8708 = vmul.f32 %v6422, %v8527
  %v8709 = vmul.f32 %v6423, %v8532
  %v8710 = vmul.f32 %v6424, %v8537
  %v8711 = vmul.f32 %v6425, %v8542
  %v8712 = vmul.f32 %v6426, %v8547
  %v8713 = vmul.f32 %v6427, %v8552
  %v8714 = vmul.f32 %v6428, %v8557
  %v8715 = vmul.f32 %v6429, %v8562
  %v8716 = vmul.f32 %v6430, %v8567
  %v8717 = vmul.f32 %v6431, %v8572
  %v8718 = vmul.f32 %v6432, %v8577
  %v8719 = vmul.f32 %v6433, %v8582
  %v8720 = vmul.f32 %v6434, %v8587
  %v8721 = vmul.f32 %v6435, %v8592
  %v8722 = vmul.f32 %v6436, %v8597
  %v8723 = vmul.f32 %v6437, %v8602
  %v8724 = vmul.f32 %v6438, %v8607
  %v8725 = vmul.f32 %v6439, %v8612
  %v8726 = vmul.f32 %v6440, %v8617
  %v8727 = vmul.f32 %v6441, %v8622
  %v8728 = vmul.f32 %v6442, %v8627
  %v8729 = vmul.f32 %v6443, %v8632
  %v8730 = vsel %vm6463, %v8634, 0.0
  %v8731 = vsel %vm6463, %v8635, 0.0
  %v8732 = vadd.f32 %v8730, %v8731
  %v8733 = vsel %vm6463, %v8636, 0.0
  %v8734 = vadd.f32 %v8732, %v8733
  %v8735 = vsel %vm6463, %v8637, 0.0
  %v8736 = vadd.f32 %v8734, %v8735
  %v8737 = vsel %vm6463, %v8638, 0.0
  %v8738 = vadd.f32 %v8736, %v8737
  %v8739 = vsel %vm6463, %v8639, 0.0
  %v8740 = vadd.f32 %v8738, %v8739
  %v8741 = vsel %vm6463, %v8640, 0.0
  %v8742 = vadd.f32 %v8740, %v8741
  %v8743 = vsel %vm6463, %v8641, 0.0
  %v8744 = vadd.f32 %v8742, %v8743
  %v8745 = vsel %vm6463, %v8642, 0.0
  %v8746 = vadd.f32 %v8744, %v8745
  %v8747 = vsel %vm6463, %v8643, 0.0
  %v8748 = vadd.f32 %v8746, %v8747
  %v8749 = vsel %vm6463, %v8644, 0.0
  %v8750 = vadd.f32 %v8748, %v8749
  %v8751 = vsel %vm6463, %v8645, 0.0
  %v8752 = vadd.f32 %v8750, %v8751
  %v8753 = vrot.slane %v8752, 4
  %v8754 = vadd.f32 %v8752, %v8753
  %v8755 = vrot.slane %v8754, 2
  %v8756 = vadd.f32 %v8754, %v8755
  %v8757 = vrot.slane %v8756, 1
  %v8758 = vadd.f32 %v8756, %v8757
  %v8759 = vsel %vm6463, %v8646, 0.0
  %v8760 = vsel %vm6463, %v8647, 0.0
  %v8761 = vadd.f32 %v8759, %v8760
  %v8762 = vsel %vm6463, %v8648, 0.0
  %v8763 = vadd.f32 %v8761, %v8762
  %v8764 = vsel %vm6463, %v8649, 0.0
  %v8765 = vadd.f32 %v8763, %v8764
  %v8766 = vsel %vm6463, %v8650, 0.0
  %v8767 = vadd.f32 %v8765, %v8766
  %v8768 = vsel %vm6463, %v8651, 0.0
  %v8769 = vadd.f32 %v8767, %v8768
  %v8770 = vsel %vm6463, %v8652, 0.0
  %v8771 = vadd.f32 %v8769, %v8770
  %v8772 = vsel %vm6463, %v8653, 0.0
  %v8773 = vadd.f32 %v8771, %v8772
  %v8774 = vsel %vm6463, %v8654, 0.0
  %v8775 = vadd.f32 %v8773, %v8774
  %v8776 = vsel %vm6463, %v8655, 0.0
  %v8777 = vadd.f32 %v8775, %v8776
  %v8778 = vsel %vm6463, %v8656, 0.0
  %v8779 = vadd.f32 %v8777, %v8778
  %v8780 = vsel %vm6463, %v8657, 0.0
  %v8781 = vadd.f32 %v8779, %v8780
  %v8782 = vrot.slane %v8781, 4
  %v8783 = vadd.f32 %v8781, %v8782
  %v8784 = vrot.slane %v8783, 2
  %v8785 = vadd.f32 %v8783, %v8784
  %v8786 = vrot.slane %v8785, 1
  %v8787 = vadd.f32 %v8785, %v8786
  %v8788 = vsel %vm6463, %v8658, 0.0
  %v8789 = vsel %vm6463, %v8659, 0.0
  %v8790 = vadd.f32 %v8788, %v8789
  %v8791 = vsel %vm6463, %v8660, 0.0
  %v8792 = vadd.f32 %v8790, %v8791
  %v8793 = vsel %vm6463, %v8661, 0.0
  %v8794 = vadd.f32 %v8792, %v8793
  %v8795 = vsel %vm6463, %v8662, 0.0
  %v8796 = vadd.f32 %v8794, %v8795
  %v8797 = vsel %vm6463, %v8663, 0.0
  %v8798 = vadd.f32 %v8796, %v8797
  %v8799 = vsel %vm6463, %v8664, 0.0
  %v8800 = vadd.f32 %v8798, %v8799
  %v8801 = vsel %vm6463, %v8665, 0.0
  %v8802 = vadd.f32 %v8800, %v8801
  %v8803 = vsel %vm6463, %v8666, 0.0
  %v8804 = vadd.f32 %v8802, %v8803
  %v8805 = vsel %vm6463, %v8667, 0.0
  %v8806 = vadd.f32 %v8804, %v8805
  %v8807 = vsel %vm6463, %v8668, 0.0
  %v8808 = vadd.f32 %v8806, %v8807
  %v8809 = vsel %vm6463, %v8669, 0.0
  %v8810 = vadd.f32 %v8808, %v8809
  %v8811 = vrot.slane %v8810, 4
  %v8812 = vadd.f32 %v8810, %v8811
  %v8813 = vrot.slane %v8812, 2
  %v8814 = vadd.f32 %v8812, %v8813
  %v8815 = vrot.slane %v8814, 1
  %v8816 = vadd.f32 %v8814, %v8815
  %v8817 = vsel %vm6463, %v8670, 0.0
  %v8818 = vsel %vm6463, %v8671, 0.0
  %v8819 = vadd.f32 %v8817, %v8818
  %v8820 = vsel %vm6463, %v8672, 0.0
  %v8821 = vadd.f32 %v8819, %v8820
  %v8822 = vsel %vm6463, %v8673, 0.0
  %v8823 = vadd.f32 %v8821, %v8822
  %v8824 = vsel %vm6463, %v8674, 0.0
  %v8825 = vadd.f32 %v8823, %v8824
  %v8826 = vsel %vm6463, %v8675, 0.0
  %v8827 = vadd.f32 %v8825, %v8826
  %v8828 = vsel %vm6463, %v8676, 0.0
  %v8829 = vadd.f32 %v8827, %v8828
  %v8830 = vsel %vm6463, %v8677, 0.0
  %v8831 = vadd.f32 %v8829, %v8830
  %v8832 = vsel %vm6463, %v8678, 0.0
  %v8833 = vadd.f32 %v8831, %v8832
  %v8834 = vsel %vm6463, %v8679, 0.0
  %v8835 = vadd.f32 %v8833, %v8834
  %v8836 = vsel %vm6463, %v8680, 0.0
  %v8837 = vadd.f32 %v8835, %v8836
  %v8838 = vsel %vm6463, %v8681, 0.0
  %v8839 = vadd.f32 %v8837, %v8838
  %v8840 = vrot.slane %v8839, 4
  %v8841 = vadd.f32 %v8839, %v8840
  %v8842 = vrot.slane %v8841, 2
  %v8843 = vadd.f32 %v8841, %v8842
  %v8844 = vrot.slane %v8843, 1
  %v8845 = vadd.f32 %v8843, %v8844
  %v8846 = vsel %vm6463, %v8682, 0.0
  %v8847 = vsel %vm6463, %v8683, 0.0
  %v8848 = vadd.f32 %v8846, %v8847
  %v8849 = vsel %vm6463, %v8684, 0.0
  %v8850 = vadd.f32 %v8848, %v8849
  %v8851 = vsel %vm6463, %v8685, 0.0
  %v8852 = vadd.f32 %v8850, %v8851
  %v8853 = vsel %vm6463, %v8686, 0.0
  %v8854 = vadd.f32 %v8852, %v8853
  %v8855 = vsel %vm6463, %v8687, 0.0
  %v8856 = vadd.f32 %v8854, %v8855
  %v8857 = vsel %vm6463, %v8688, 0.0
  %v8858 = vadd.f32 %v8856, %v8857
  %v8859 = vsel %vm6463, %v8689, 0.0
  %v8860 = vadd.f32 %v8858, %v8859
  %v8861 = vsel %vm6463, %v8690, 0.0
  %v8862 = vadd.f32 %v8860, %v8861
  %v8863 = vsel %vm6463, %v8691, 0.0
  %v8864 = vadd.f32 %v8862, %v8863
  %v8865 = vsel %vm6463, %v8692, 0.0
  %v8866 = vadd.f32 %v8864, %v8865
  %v8867 = vsel %vm6463, %v8693, 0.0
  %v8868 = vadd.f32 %v8866, %v8867
  %v8869 = vrot.slane %v8868, 4
  %v8870 = vadd.f32 %v8868, %v8869
  %v8871 = vrot.slane %v8870, 2
  %v8872 = vadd.f32 %v8870, %v8871
  %v8873 = vrot.slane %v8872, 1
  %v8874 = vadd.f32 %v8872, %v8873
  %v8875 = vsel %vm6463, %v8694, 0.0
  %v8876 = vsel %vm6463, %v8695, 0.0
  %v8877 = vadd.f32 %v8875, %v8876
  %v8878 = vsel %vm6463, %v8696, 0.0
  %v8879 = vadd.f32 %v8877, %v8878
  %v8880 = vsel %vm6463, %v8697, 0.0
  %v8881 = vadd.f32 %v8879, %v8880
  %v8882 = vsel %vm6463, %v8698, 0.0
  %v8883 = vadd.f32 %v8881, %v8882
  %v8884 = vsel %vm6463, %v8699, 0.0
  %v8885 = vadd.f32 %v8883, %v8884
  %v8886 = vsel %vm6463, %v8700, 0.0
  %v8887 = vadd.f32 %v8885, %v8886
  %v8888 = vsel %vm6463, %v8701, 0.0
  %v8889 = vadd.f32 %v8887, %v8888
  %v8890 = vsel %vm6463, %v8702, 0.0
  %v8891 = vadd.f32 %v8889, %v8890
  %v8892 = vsel %vm6463, %v8703, 0.0
  %v8893 = vadd.f32 %v8891, %v8892
  %v8894 = vsel %vm6463, %v8704, 0.0
  %v8895 = vadd.f32 %v8893, %v8894
  %v8896 = vsel %vm6463, %v8705, 0.0
  %v8897 = vadd.f32 %v8895, %v8896
  %v8898 = vrot.slane %v8897, 4
  %v8899 = vadd.f32 %v8897, %v8898
  %v8900 = vrot.slane %v8899, 2
  %v8901 = vadd.f32 %v8899, %v8900
  %v8902 = vrot.slane %v8901, 1
  %v8903 = vadd.f32 %v8901, %v8902
  %v8904 = vsel %vm6463, %v8706, 0.0
  %v8905 = vsel %vm6463, %v8707, 0.0
  %v8906 = vadd.f32 %v8904, %v8905
  %v8907 = vsel %vm6463, %v8708, 0.0
  %v8908 = vadd.f32 %v8906, %v8907
  %v8909 = vsel %vm6463, %v8709, 0.0
  %v8910 = vadd.f32 %v8908, %v8909
  %v8911 = vsel %vm6463, %v8710, 0.0
  %v8912 = vadd.f32 %v8910, %v8911
  %v8913 = vsel %vm6463, %v8711, 0.0
  %v8914 = vadd.f32 %v8912, %v8913
  %v8915 = vsel %vm6463, %v8712, 0.0
  %v8916 = vadd.f32 %v8914, %v8915
  %v8917 = vsel %vm6463, %v8713, 0.0
  %v8918 = vadd.f32 %v8916, %v8917
  %v8919 = vsel %vm6463, %v8714, 0.0
  %v8920 = vadd.f32 %v8918, %v8919
  %v8921 = vsel %vm6463, %v8715, 0.0
  %v8922 = vadd.f32 %v8920, %v8921
  %v8923 = vsel %vm6463, %v8716, 0.0
  %v8924 = vadd.f32 %v8922, %v8923
  %v8925 = vsel %vm6463, %v8717, 0.0
  %v8926 = vadd.f32 %v8924, %v8925
  %v8927 = vrot.slane %v8926, 4
  %v8928 = vadd.f32 %v8926, %v8927
  %v8929 = vrot.slane %v8928, 2
  %v8930 = vadd.f32 %v8928, %v8929
  %v8931 = vrot.slane %v8930, 1
  %v8932 = vadd.f32 %v8930, %v8931
  %v8933 = vsel %vm6463, %v8718, 0.0
  %v8934 = vsel %vm6463, %v8719, 0.0
  %v8935 = vadd.f32 %v8933, %v8934
  %v8936 = vsel %vm6463, %v8720, 0.0
  %v8937 = vadd.f32 %v8935, %v8936
  %v8938 = vsel %vm6463, %v8721, 0.0
  %v8939 = vadd.f32 %v8937, %v8938
  %v8940 = vsel %vm6463, %v8722, 0.0
  %v8941 = vadd.f32 %v8939, %v8940
  %v8942 = vsel %vm6463, %v8723, 0.0
  %v8943 = vadd.f32 %v8941, %v8942
  %v8944 = vsel %vm6463, %v8724, 0.0
  %v8945 = vadd.f32 %v8943, %v8944
  %v8946 = vsel %vm6463, %v8725, 0.0
  %v8947 = vadd.f32 %v8945, %v8946
  %v8948 = vsel %vm6463, %v8726, 0.0
  %v8949 = vadd.f32 %v8947, %v8948
  %v8950 = vsel %vm6463, %v8727, 0.0
  %v8951 = vadd.f32 %v8949, %v8950
  %v8952 = vsel %vm6463, %v8728, 0.0
  %v8953 = vadd.f32 %v8951, %v8952
  %v8954 = vsel %vm6463, %v8729, 0.0
  %v8955 = vadd.f32 %v8953, %v8954
  %v8956 = vrot.slane %v8955, 4
  %v8957 = vadd.f32 %v8955, %v8956
  %v8958 = vrot.slane %v8957, 2
  %v8959 = vadd.f32 %v8957, %v8958
  %v8960 = vrot.slane %v8959, 1
  %v8961 = vadd.f32 %v8959, %v8960
  %vm8970 = vcmask 1041409
  %v8971 = vsel %vm8970, %v8787, %v8758
  %vm8972 = vcmask 1042434
  %v8973 = vsel %vm8972, %v8816, %v8971
  %vm8974 = vcmask 1043459
  %v8975 = vsel %vm8974, %v8845, %v8973
  %vm8976 = vcmask 1044484
  %v8977 = vsel %vm8976, %v8874, %v8975
  %vm8978 = vcmask 1045509
  %v8979 = vsel %vm8978, %v8903, %v8977
  %vm8980 = vcmask 1046534
  %v8981 = vsel %vm8980, %v8932, %v8979
  %vm8982 = vcmask 1047559
  %v8983 = vsel %vm8982, %v8961, %v8981
  %8985 = vst.msk [vmem:[%s16] sm:$0xff] %vm6463, %v8983
  // Predicated region
  $region66: #{vr_pct_forward.11} parent=0 // pred_check
    _
  $region67: #{vr_pct_forward.11} parent=0 // pred_check_branch
    %8987 = sbr.rel (0) target = $region69
  $region68: #{vr_pct_forward.11} parent=0 // pred_region
    _
  $region69: #{vr_pct_forward.11} parent=0 // pred_fallthru
    _
  // Predicated region
  $region70: #{vr_pct_forward.11} parent=0 // pred_check
    _
  $region71: #{vr_pct_forward.11} parent=0 // pred_check_branch
    %8989 = sbr.rel (0) target = $region73
  $region72: #{vr_pct_forward.11} parent=0 // pred_region
    _
  $region73: #{vr_pct_forward.11} parent=0 // pred_fallthru
    _

</llo_original>
